<compile_context>
chip_gen: v7x
topology: tpu7x:2x2x1
jax: 0.10.0
libtpu: 0.0.40
codegen_flags: <defaults>
</compile_context>

<pallas_src>
import functools

import numpy as np

import jax
import jax.numpy as jnp
from jax.experimental import pallas as pl
from jax.experimental.pallas import tpu as pltpu


# Geometry of the 'two_keys' branch (fixed by the module definition).
_H = 13                    # input spatial size; three 2x2 valid convs -> 10x10
_FR = _H * _H              # frame size (169) kept through the conv stack
_SHIFT_PAD = _H + 1        # max tap shift p*13 + q = 14 -> zero pad rows
_C1, _C2, _C3 = 32, 64, 64
_OUT_HW = 10               # valid spatial extent after conv3
_FLAT = _OUT_HW * _OUT_HW * _C3   # 6400
_FC1 = 256


# ----------------------------------------------------------------------------
# The fused kernel
# ----------------------------------------------------------------------------
def _fused_kernel(B, G,
                  x_ref, w1a_hbm,
                  cw1_ref, cb1_ref, cw2_ref, cb2_ref, cw3_ref, cb3_ref,
                  goal_ref, w1b_ref, fb1_ref, w2_ref, fb2_ref, mask_ref,
                  out_ref,
                  w1a_vmem, dma_sem, act1, act2, act3, x2):
    F = B * _FR

    # (1) Kick off the big fc1 weight DMA (HBM -> VMEM); it overlaps the convs.
    w1_copy = pltpu.make_async_copy(w1a_hbm, w1a_vmem, dma_sem.at[0])
    w1_copy.start()

    # (2) Zero the conv activation frames once so the shifted-window pad rows
    #     (and frame-border garbage sources) are finite zeros.
    act1[...] = jnp.zeros(act1.shape, jnp.float32)
    act2[...] = jnp.zeros(act2.shape, jnp.float32)

    def conv2x2_relu(src_ref, w_ref, b_ref, cout):
        """valid 2x2 conv on a frame-flat (rows, Cin) ref -> (F, cout) value."""
        acc = jnp.zeros((F, cout), jnp.float32)
        for p in range(2):
            for q in range(2):
                shift = p * _H + q
                tap = src_ref[pl.ds(shift, F), :]                  # (F, Cin)
                acc = acc + jnp.dot(tap, w_ref[p * 2 + q],
                                    preferred_element_type=jnp.float32)
        return jnp.maximum(acc + b_ref[...], 0.0)

    act1[pl.ds(0, F), :] = conv2x2_relu(x_ref, cw1_ref, cb1_ref, _C1)
    act2[pl.ds(0, F), :] = conv2x2_relu(act1, cw2_ref, cb2_ref, _C2)
    act3[pl.ds(0, F), :] = conv2x2_relu(act2, cw3_ref, cb3_ref, _C3)

    # (3) Scatter the valid 10x10 window of conv3 into the fc1 input layout:
    #     x2[b, (i*10 + j)*64 + c] = conv3[b, i, j, c]   (NHWC flatten order).
    #     Two adjacent j's are packed per store so every store is a 128-lane
    #     aligned block.
    for b in range(B):
        for i in range(_OUT_HW):
            src_row = b * _FR + i * _H
            dst_col = i * _OUT_HW * _C3
            for j in range(0, _OUT_HW, 2):
                r0 = act3[pl.ds(src_row + j, 1), :]                # (1, 64)
                r1 = act3[pl.ds(src_row + j + 1, 1), :]            # (1, 64)
                x2[pl.ds(b, 1), pl.ds(dst_col + j * _C3, 2 * _C3)] = (
                    jnp.concatenate([r0, r1], axis=1))

    # (4) fc1 (conv part in bf16 + goal part) + ReLU, then fc2 + bias + mask.
    #     Only now wait on the weight DMA -- it has been in flight all along.
    w1_copy.wait()
    h = jnp.dot(x2[...].astype(jnp.bfloat16), w1a_vmem[...],
                preferred_element_type=jnp.float32)                # (B, 256)
    h = h + jnp.dot(goal_ref[...], w1b_ref[...],
                    preferred_element_type=jnp.float32)
    h = jnp.maximum(h + fb1_ref[...], 0.0)
    out = jnp.dot(h, w2_ref[...], preferred_element_type=jnp.float32)
    out_ref[...] = out + fb2_ref[...] + mask_ref[...]


# ----------------------------------------------------------------------------
# Host wrapper
# ----------------------------------------------------------------------------
@jax.jit
def gnet_goal_dqn_forward(params, x, goalnet_code, mask):
    """x: (B, 3, 13, 13) NCHW, goalnet_code: (B, G), mask: (G,). Returns (B, G)."""
    B = x.shape[0]
    G = params["fc2_b"].shape[-1]
    F = B * _FR
    rows = F + _SHIFT_PAD

    # Tiny (4 KB) host-side layout glue on the input only: NCHW -> frame-flat
    # NHWC rows (b*169 + i*13 + j, c) plus zero pad rows for the tap shifts.
    x_flat = jnp.transpose(x, (0, 2, 3, 1)).reshape(F, 3)
    x_flat = jnp.pad(x_flat, ((0, _SHIFT_PAD), (0, 0)))

    goal = goalnet_code.astype(jnp.float32)
    mask2 = mask.astype(jnp.float32).reshape(1, G)

    kernel = functools.partial(_fused_kernel, B, G)

    def full(shape):
        return pl.BlockSpec(shape, lambda i, _s=shape: (0,) * len(_s))

    return pl.pallas_call(
        kernel,
        out_shape=jax.ShapeDtypeStruct((B, G), jnp.float32),
        grid=(1,),
        in_specs=[
            full((rows, 3)),                        # x (frame-flat, padded)
            pl.BlockSpec(memory_space=pl.ANY),      # fc1 conv-part weight (HBM)
            full((4, 3, _C1)), full((1, _C1)),      # conv1 taps, bias
            full((4, _C1, _C2)), full((1, _C2)),    # conv2 taps, bias
            full((4, _C2, _C3)), full((1, _C3)),    # conv3 taps, bias
            full((B, G)),                           # goalnet_code
            full((G, _FC1)), full((1, _FC1)),       # fc1 goal-part weight, bias
            full((_FC1, G)), full((1, G)),          # fc2 weight, bias
            full((1, G)),                           # action mask
        ],
        out_specs=full((B, G)),
        scratch_shapes=[
            pltpu.VMEM((_FLAT, _FC1), jnp.bfloat16),   # fc1 weight landing buffer
            pltpu.SemaphoreType.DMA((1,)),
            pltpu.VMEM((rows, _C1), jnp.float32),      # conv1 output frame
            pltpu.VMEM((rows, _C2), jnp.float32),      # conv2 output frame
            pltpu.VMEM((F, _C3), jnp.float32),         # conv3 output frame
            pltpu.VMEM((B, _FLAT), jnp.float32),       # fc1 input (flattened)
        ],
        compiler_params=pltpu.CompilerParams(
            dimension_semantics=("arbitrary",),
            vmem_limit_bytes=32 << 20,
        ),
    )(x_flat, params["fc1_wa"],
      params["conv1_w"], params["conv1_b"],
      params["conv2_w"], params["conv2_b"],
      params["conv3_w"], params["conv3_b"],
      goal, params["fc1_wb"], params["fc1_b"],
      params["fc2_w"], params["fc2_b"], mask2)


# ----------------------------------------------------------------------------
# Parameters: PyTorch-layout init + one-time conversion to the kernel layout
# ----------------------------------------------------------------------------
def init_params(num_goals, key):
    """Parameters in the PyTorch layout of GNetGoalDQN('two_keys')."""
    ks = jax.random.split(key, 10)
    s = 0.05
    w = lambda k, shp: (s * jax.random.normal(k, shp)).astype(jnp.float32)
    return {
        "conv1_w": w(ks[0], (_C1, 3, 2, 2)),    "conv1_b": w(ks[1], (_C1,)),
        "conv2_w": w(ks[2], (_C2, _C1, 2, 2)),  "conv2_b": w(ks[3], (_C2,)),
        "conv3_w": w(ks[4], (_C3, _C2, 2, 2)),  "conv3_b": w(ks[5], (_C3,)),
        "fc1_w": w(ks[6], (_FC1, _FLAT + num_goals)), "fc1_b": w(ks[7], (_FC1,)),
        "fc2_w": w(ks[8], (num_goals, _FC1)),   "fc2_b": w(ks[9], (num_goals,)),
    }


def prepare_params(tp):
    """One-time conversion from PyTorch layout to the kernel layout."""
    def conv_taps(w):  # (Oc, Cin, 2, 2) -> (4, Cin, Oc), tap index = p*2 + q
        return jnp.transpose(w, (2, 3, 1, 0)).reshape(4, w.shape[1], w.shape[0])

    # fc1: split conv part / goal part; permute conv rows from the PyTorch NCHW
    # flatten order (c, i, j) to the kernel's NHWC order (i, j, c); cast bf16.
    w1 = tp["fc1_w"]                                         # (256, 6400 + G)
    w1a = jnp.transpose(
        w1[:, :_FLAT].reshape(_FC1, _C3, _OUT_HW, _OUT_HW),
        (2, 3, 1, 0)).reshape(_FLAT, _FC1).astype(jnp.bfloat16)
    w1b = jnp.transpose(w1[:, _FLAT:])                       # (G, 256) f32

    return {
        "conv1_w": conv_taps(tp["conv1_w"]), "conv1_b": tp["conv1_b"].reshape(1, -1),
        "conv2_w": conv_taps(tp["conv2_w"]), "conv2_b": tp["conv2_b"].reshape(1, -1),
        "conv3_w": conv_taps(tp["conv3_w"]), "conv3_b": tp["conv3_b"].reshape(1, -1),
        "fc1_wa": w1a, "fc1_wb": w1b, "fc1_b": tp["fc1_b"].reshape(1, -1),
        "fc2_w": jnp.transpose(tp["fc2_w"]), "fc2_b": tp["fc2_b"].reshape(1, -1),
    }


# ----------------------------------------------------------------------------
# Pure-JAX reference (PyTorch semantics) for a numerical sanity check
# ----------------------------------------------------------------------------
def reference_forward(tp, x, goal, mask):
    def conv(h, w, b):
        y = jax.lax.conv_general_dilated(
            h, w, window_strides=(1, 1), padding="VALID",
            dimension_numbers=("NCHW", "OIHW", "NCHW"))
        return jax.nn.relu(y + b[None, :, None, None])

    h = conv(x, tp["conv1_w"], tp["conv1_b"])
    h = conv(h, tp["conv2_w"], tp["conv2_b"])
    h = conv(h, tp["conv3_w"], tp["conv3_b"])
    h = h.reshape(x.shape[0], -1)
    h = jnp.concatenate([h, goal.astype(jnp.float32)], axis=1)
    h = jax.nn.relu(h @ tp["fc1_w"].T + tp["fc1_b"])
    return h @ tp["fc2_w"].T + tp["fc2_b"] + mask[None, :]


if __name__ == "__main__":
    num_goals = 8
    batch = 2

    key = jax.random.PRNGKey(0)
    k_x, k_g, k_m, k_p = jax.random.split(key, 4)

    # 13x13 input so three 2x2 valid convs give 10x10 (matches fc1's 10*10*64).
    x = jax.random.normal(k_x, (batch, 3, _H, _H), dtype=jnp.float32)
    goalnet_code = (jax.random.uniform(k_g, (batch, num_goals)) > 0.5).astype(jnp.float32)
    mask = -1000.0 * (jax.random.uniform(k_m, (num_goals,)) > 0.5).astype(jnp.float32)

    torch_params = init_params(num_goals, k_p)
    params = prepare_params(torch_params)       # one-time layout conversion

    out = gnet_goal_dqn_forward(params, x, goalnet_code, mask)
    jax.block_until_ready(out)
    assert out.shape == (batch, num_goals)

    ref = reference_forward(torch_params, x, goalnet_code, mask)
    np.testing.assert_allclose(np.asarray(out), np.asarray(ref),
                               atol=5e-2, rtol=1e-3)

    print("KERNEL_OK")
</pallas_src>

<mosaic_0001>
module attributes {stable_mosaic.version = 11 : i64} {
  func.func @_fused_kernel(%arg0: i32, %arg1: memref<352x3xf32, #tpu.memory_space<vmem>>, %arg2: memref<6400x256xbf16, #tpu.memory_space<any>>, %arg3: memref<4x3x32xf32, #tpu.memory_space<vmem>>, %arg4: memref<1x32xf32, #tpu.memory_space<vmem>>, %arg5: memref<4x32x64xf32, #tpu.memory_space<vmem>>, %arg6: memref<1x64xf32, #tpu.memory_space<vmem>>, %arg7: memref<4x64x64xf32, #tpu.memory_space<vmem>>, %arg8: memref<1x64xf32, #tpu.memory_space<vmem>>, %arg9: memref<2x8xf32, #tpu.memory_space<vmem>>, %arg10: memref<8x256xf32, #tpu.memory_space<vmem>>, %arg11: memref<1x256xf32, #tpu.memory_space<vmem>>, %arg12: memref<256x8xf32, #tpu.memory_space<vmem>>, %arg13: memref<1x8xf32, #tpu.memory_space<vmem>>, %arg14: memref<1x8xf32, #tpu.memory_space<vmem>>, %arg15: memref<2x8xf32, #tpu.memory_space<vmem>>, %arg16: memref<6400x256xbf16, #tpu.memory_space<vmem>>, %arg17: memref<1x!tpu.dma_semaphore, #tpu.memory_space<semaphore_mem>>, %arg18: memref<352x32xf32, #tpu.memory_space<vmem>>, %arg19: memref<352x64xf32, #tpu.memory_space<vmem>>, %arg20: memref<338x64xf32, #tpu.memory_space<vmem>>, %arg21: memref<2x6400xf32, #tpu.memory_space<vmem>>) attributes {dimension_semantics = [#tpu.dimension_semantics<arbitrary>], iteration_bounds = array<i64: 1>, scalar_prefetch = 0 : i64, scratch_operands = 6 : i64, tpu.core_type = #tpu.core_type<tc>, window_params = [{pipeline_mode = #tpu.pipeline_mode<synchronous>, transform_indices = @transform_0, window_bounds = array<i64: 352, 3>}, {}, {pipeline_mode = #tpu.pipeline_mode<synchronous>, transform_indices = @transform_2, window_bounds = array<i64: 4, 3, 32>}, {pipeline_mode = #tpu.pipeline_mode<synchronous>, transform_indices = @transform_3, window_bounds = array<i64: 1, 32>}, {pipeline_mode = #tpu.pipeline_mode<synchronous>, transform_indices = @transform_4, window_bounds = array<i64: 4, 32, 64>}, {pipeline_mode = #tpu.pipeline_mode<synchronous>, transform_indices = @transform_5, window_bounds = array<i64: 1, 64>}, {pipeline_mode = #tpu.pipeline_mode<synchronous>, transform_indices = @transform_6, window_bounds = array<i64: 4, 64, 64>}, {pipeline_mode = #tpu.pipeline_mode<synchronous>, transform_indices = @transform_7, window_bounds = array<i64: 1, 64>}, {pipeline_mode = #tpu.pipeline_mode<synchronous>, transform_indices = @transform_8, window_bounds = array<i64: 2, 8>}, {pipeline_mode = #tpu.pipeline_mode<synchronous>, transform_indices = @transform_9, window_bounds = array<i64: 8, 256>}, {pipeline_mode = #tpu.pipeline_mode<synchronous>, transform_indices = @transform_10, window_bounds = array<i64: 1, 256>}, {pipeline_mode = #tpu.pipeline_mode<synchronous>, transform_indices = @transform_11, window_bounds = array<i64: 256, 8>}, {pipeline_mode = #tpu.pipeline_mode<synchronous>, transform_indices = @transform_12, window_bounds = array<i64: 1, 8>}, {pipeline_mode = #tpu.pipeline_mode<synchronous>, transform_indices = @transform_13, window_bounds = array<i64: 1, 8>}, {pipeline_mode = #tpu.pipeline_mode<synchronous>, transform_indices = @transform_14, window_bounds = array<i64: 2, 8>}]} {
    %c0_i32 = arith.constant 0 : i32
    %0 = tpu.memref_slice %arg17[%c0_i32] : memref<1x!tpu.dma_semaphore, #tpu.memory_space<semaphore_mem>> -> memref<1x!tpu.dma_semaphore, #tpu.memory_space<semaphore_mem>>
    %1 = tpu.memref_squeeze %0 : memref<1x!tpu.dma_semaphore, #tpu.memory_space<semaphore_mem>> -> memref<!tpu.dma_semaphore, #tpu.memory_space<semaphore_mem>>
    tpu.enqueue_dma source(%arg2 : memref<6400x256xbf16, #tpu.memory_space<any>>) target(%arg16 : memref<6400x256xbf16, #tpu.memory_space<vmem>>) target_semaphore(%1 : memref<!tpu.dma_semaphore, #tpu.memory_space<semaphore_mem>>)
    %cst = arith.constant 0.000000e+00 : f32
    %2 = vector.broadcast %cst : f32 to vector<352x32xf32>
    %c0 = arith.constant 0 : index
    %c0_0 = arith.constant 0 : index
    %3 = vector.load %arg18[%c0, %c0_0] : memref<352x32xf32, #tpu.memory_space<vmem>>, vector<352x32xf32>
    tpu.vector_store %arg18[%c0, %c0_0], %2 {strides = array<i32>} : memref<352x32xf32, #tpu.memory_space<vmem>>, vector<352x32xf32>,
    %cst_1 = arith.constant 0.000000e+00 : f32
    %4 = vector.broadcast %cst_1 : f32 to vector<352x64xf32>
    %c0_2 = arith.constant 0 : index
    %c0_3 = arith.constant 0 : index
    %5 = vector.load %arg19[%c0_2, %c0_3] : memref<352x64xf32, #tpu.memory_space<vmem>>, vector<352x64xf32>
    tpu.vector_store %arg19[%c0_2, %c0_3], %4 {strides = array<i32>} : memref<352x64xf32, #tpu.memory_space<vmem>>, vector<352x64xf32>,
    %cst_4 = arith.constant 0.000000e+00 : f32
    %6 = vector.broadcast %cst_4 : f32 to vector<338x32xf32>
    %c0_5 = arith.constant 0 : index
    %c0_6 = arith.constant 0 : index
    %7 = vector.load %arg1[%c0_5, %c0_6] : memref<352x3xf32, #tpu.memory_space<vmem>>, vector<338x3xf32>
    %c0_7 = arith.constant 0 : index
    %c0_8 = arith.constant 0 : index
    %c0_9 = arith.constant 0 : index
    %8 = vector.load %arg3[%c0_7, %c0_8, %c0_9] : memref<4x3x32xf32, #tpu.memory_space<vmem>>, vector<1x3x32xf32>
    %9 = vector.shape_cast %8 : vector<1x3x32xf32> to vector<3x32xf32>
    %cst_10 = arith.constant dense<0.000000e+00> : vector<338x32xf32>
    %10 = tpu.matmul %7, %9, %cst_10 {dimension_numbers = #tpu.dot_dimension_numbers<[1], [0], [0], [1], [0, 0, 1, 1], [], []>} : vector<338x3xf32>, vector<3x32xf32>, vector<338x32xf32> -> vector<338x32xf32>
    %11 = arith.addf %6, %10 : vector<338x32xf32>
    %c1 = arith.constant 1 : index
    %c0_11 = arith.constant 0 : index
    %12 = vector.load %arg1[%c1, %c0_11] : memref<352x3xf32, #tpu.memory_space<vmem>>, vector<338x3xf32>
    %c1_12 = arith.constant 1 : index
    %c0_13 = arith.constant 0 : index
    %c0_14 = arith.constant 0 : index
    %13 = vector.load %arg3[%c1_12, %c0_13, %c0_14] : memref<4x3x32xf32, #tpu.memory_space<vmem>>, vector<1x3x32xf32>
    %14 = vector.shape_cast %13 : vector<1x3x32xf32> to vector<3x32xf32>
    %cst_15 = arith.constant dense<0.000000e+00> : vector<338x32xf32>
    %15 = tpu.matmul %12, %14, %cst_15 {dimension_numbers = #tpu.dot_dimension_numbers<[1], [0], [0], [1], [0, 0, 1, 1], [], []>} : vector<338x3xf32>, vector<3x32xf32>, vector<338x32xf32> -> vector<338x32xf32>
    %16 = arith.addf %11, %15 : vector<338x32xf32>
    %c13 = arith.constant 13 : index
    %c0_16 = arith.constant 0 : index
    %17 = vector.load %arg1[%c13, %c0_16] : memref<352x3xf32, #tpu.memory_space<vmem>>, vector<338x3xf32>
    %c2 = arith.constant 2 : index
    %c0_17 = arith.constant 0 : index
    %c0_18 = arith.constant 0 : index
    %18 = vector.load %arg3[%c2, %c0_17, %c0_18] : memref<4x3x32xf32, #tpu.memory_space<vmem>>, vector<1x3x32xf32>
    %19 = vector.shape_cast %18 : vector<1x3x32xf32> to vector<3x32xf32>
    %cst_19 = arith.constant dense<0.000000e+00> : vector<338x32xf32>
    %20 = tpu.matmul %17, %19, %cst_19 {dimension_numbers = #tpu.dot_dimension_numbers<[1], [0], [0], [1], [0, 0, 1, 1], [], []>} : vector<338x3xf32>, vector<3x32xf32>, vector<338x32xf32> -> vector<338x32xf32>
    %21 = arith.addf %16, %20 : vector<338x32xf32>
    %c14 = arith.constant 14 : index
    %c0_20 = arith.constant 0 : index
    %22 = vector.load %arg1[%c14, %c0_20] : memref<352x3xf32, #tpu.memory_space<vmem>>, vector<338x3xf32>
    %c3 = arith.constant 3 : index
    %c0_21 = arith.constant 0 : index
    %c0_22 = arith.constant 0 : index
    %23 = vector.load %arg3[%c3, %c0_21, %c0_22] : memref<4x3x32xf32, #tpu.memory_space<vmem>>, vector<1x3x32xf32>
    %24 = vector.shape_cast %23 : vector<1x3x32xf32> to vector<3x32xf32>
    %cst_23 = arith.constant dense<0.000000e+00> : vector<338x32xf32>
    %25 = tpu.matmul %22, %24, %cst_23 {dimension_numbers = #tpu.dot_dimension_numbers<[1], [0], [0], [1], [0, 0, 1, 1], [], []>} : vector<338x3xf32>, vector<3x32xf32>, vector<338x32xf32> -> vector<338x32xf32>
    %26 = arith.addf %21, %25 : vector<338x32xf32>
    %c0_24 = arith.constant 0 : index
    %c0_25 = arith.constant 0 : index
    %27 = vector.load %arg4[%c0_24, %c0_25] : memref<1x32xf32, #tpu.memory_space<vmem>>, vector<1x32xf32>
    %28 = vector.broadcast %27 : vector<1x32xf32> to vector<338x32xf32>
    %29 = arith.addf %26, %28 : vector<338x32xf32>
    %cst_26 = arith.constant 0.000000e+00 : f32
    %30 = vector.broadcast %cst_26 : f32 to vector<338x32xf32>
    %31 = arith.maximumf %29, %30 : vector<338x32xf32>
    %c0_27 = arith.constant 0 : index
    %c0_28 = arith.constant 0 : index
    %32 = vector.load %arg18[%c0_27, %c0_28] : memref<352x32xf32, #tpu.memory_space<vmem>>, vector<338x32xf32>
    tpu.vector_store %arg18[%c0_27, %c0_28], %31 {strides = array<i32>} : memref<352x32xf32, #tpu.memory_space<vmem>>, vector<338x32xf32>,
    %cst_29 = arith.constant 0.000000e+00 : f32
    %33 = vector.broadcast %cst_29 : f32 to vector<338x64xf32>
    %c0_30 = arith.constant 0 : index
    %c0_31 = arith.constant 0 : index
    %34 = vector.load %arg18[%c0_30, %c0_31] : memref<352x32xf32, #tpu.memory_space<vmem>>, vector<338x32xf32>
    %c0_32 = arith.constant 0 : index
    %c0_33 = arith.constant 0 : index
    %c0_34 = arith.constant 0 : index
    %35 = vector.load %arg5[%c0_32, %c0_33, %c0_34] : memref<4x32x64xf32, #tpu.memory_space<vmem>>, vector<1x32x64xf32>
    %36 = vector.shape_cast %35 : vector<1x32x64xf32> to vector<32x64xf32>
    %cst_35 = arith.constant dense<0.000000e+00> : vector<338x64xf32>
    %37 = tpu.matmul %34, %36, %cst_35 {dimension_numbers = #tpu.dot_dimension_numbers<[1], [0], [0], [1], [0, 0, 1, 1], [], []>} : vector<338x32xf32>, vector<32x64xf32>, vector<338x64xf32> -> vector<338x64xf32>
    %38 = arith.addf %33, %37 : vector<338x64xf32>
    %c1_36 = arith.constant 1 : index
    %c0_37 = arith.constant 0 : index
    %39 = vector.load %arg18[%c1_36, %c0_37] : memref<352x32xf32, #tpu.memory_space<vmem>>, vector<338x32xf32>
    %c1_38 = arith.constant 1 : index
    %c0_39 = arith.constant 0 : index
    %c0_40 = arith.constant 0 : index
    %40 = vector.load %arg5[%c1_38, %c0_39, %c0_40] : memref<4x32x64xf32, #tpu.memory_space<vmem>>, vector<1x32x64xf32>
    %41 = vector.shape_cast %40 : vector<1x32x64xf32> to vector<32x64xf32>
    %cst_41 = arith.constant dense<0.000000e+00> : vector<338x64xf32>
    %42 = tpu.matmul %39, %41, %cst_41 {dimension_numbers = #tpu.dot_dimension_numbers<[1], [0], [0], [1], [0, 0, 1, 1], [], []>} : vector<338x32xf32>, vector<32x64xf32>, vector<338x64xf32> -> vector<338x64xf32>
    %43 = arith.addf %38, %42 : vector<338x64xf32>
    %c13_42 = arith.constant 13 : index
    %c0_43 = arith.constant 0 : index
    %44 = vector.load %arg18[%c13_42, %c0_43] : memref<352x32xf32, #tpu.memory_space<vmem>>, vector<338x32xf32>
    %c2_44 = arith.constant 2 : index
    %c0_45 = arith.constant 0 : index
    %c0_46 = arith.constant 0 : index
    %45 = vector.load %arg5[%c2_44, %c0_45, %c0_46] : memref<4x32x64xf32, #tpu.memory_space<vmem>>, vector<1x32x64xf32>
    %46 = vector.shape_cast %45 : vector<1x32x64xf32> to vector<32x64xf32>
    %cst_47 = arith.constant dense<0.000000e+00> : vector<338x64xf32>
    %47 = tpu.matmul %44, %46, %cst_47 {dimension_numbers = #tpu.dot_dimension_numbers<[1], [0], [0], [1], [0, 0, 1, 1], [], []>} : vector<338x32xf32>, vector<32x64xf32>, vector<338x64xf32> -> vector<338x64xf32>
    %48 = arith.addf %43, %47 : vector<338x64xf32>
    %c14_48 = arith.constant 14 : index
    %c0_49 = arith.constant 0 : index
    %49 = vector.load %arg18[%c14_48, %c0_49] : memref<352x32xf32, #tpu.memory_space<vmem>>, vector<338x32xf32>
    %c3_50 = arith.constant 3 : index
    %c0_51 = arith.constant 0 : index
    %c0_52 = arith.constant 0 : index
    %50 = vector.load %arg5[%c3_50, %c0_51, %c0_52] : memref<4x32x64xf32, #tpu.memory_space<vmem>>, vector<1x32x64xf32>
    %51 = vector.shape_cast %50 : vector<1x32x64xf32> to vector<32x64xf32>
    %cst_53 = arith.constant dense<0.000000e+00> : vector<338x64xf32>
    %52 = tpu.matmul %49, %51, %cst_53 {dimension_numbers = #tpu.dot_dimension_numbers<[1], [0], [0], [1], [0, 0, 1, 1], [], []>} : vector<338x32xf32>, vector<32x64xf32>, vector<338x64xf32> -> vector<338x64xf32>
    %53 = arith.addf %48, %52 : vector<338x64xf32>
    %c0_54 = arith.constant 0 : index
    %c0_55 = arith.constant 0 : index
    %54 = vector.load %arg6[%c0_54, %c0_55] : memref<1x64xf32, #tpu.memory_space<vmem>>, vector<1x64xf32>
    %55 = vector.broadcast %54 : vector<1x64xf32> to vector<338x64xf32>
    %56 = arith.addf %53, %55 : vector<338x64xf32>
    %cst_56 = arith.constant 0.000000e+00 : f32
    %57 = vector.broadcast %cst_56 : f32 to vector<338x64xf32>
    %58 = arith.maximumf %56, %57 : vector<338x64xf32>
    %c0_57 = arith.constant 0 : index
    %c0_58 = arith.constant 0 : index
    %59 = vector.load %arg19[%c0_57, %c0_58] : memref<352x64xf32, #tpu.memory_space<vmem>>, vector<338x64xf32>
    tpu.vector_store %arg19[%c0_57, %c0_58], %58 {strides = array<i32>} : memref<352x64xf32, #tpu.memory_space<vmem>>, vector<338x64xf32>,
    %cst_59 = arith.constant 0.000000e+00 : f32
    %60 = vector.broadcast %cst_59 : f32 to vector<338x64xf32>
    %c0_60 = arith.constant 0 : index
    %c0_61 = arith.constant 0 : index
    %61 = vector.load %arg19[%c0_60, %c0_61] : memref<352x64xf32, #tpu.memory_space<vmem>>, vector<338x64xf32>
    %c0_62 = arith.constant 0 : index
    %c0_63 = arith.constant 0 : index
    %c0_64 = arith.constant 0 : index
    %62 = vector.load %arg7[%c0_62, %c0_63, %c0_64] : memref<4x64x64xf32, #tpu.memory_space<vmem>>, vector<1x64x64xf32>
    %63 = vector.shape_cast %62 : vector<1x64x64xf32> to vector<64x64xf32>
    %cst_65 = arith.constant dense<0.000000e+00> : vector<338x64xf32>
    %64 = tpu.matmul %61, %63, %cst_65 {dimension_numbers = #tpu.dot_dimension_numbers<[1], [0], [0], [1], [0, 0, 1, 1], [], []>} : vector<338x64xf32>, vector<64x64xf32>, vector<338x64xf32> -> vector<338x64xf32>
    %65 = arith.addf %60, %64 : vector<338x64xf32>
    %c1_66 = arith.constant 1 : index
    %c0_67 = arith.constant 0 : index
    %66 = vector.load %arg19[%c1_66, %c0_67] : memref<352x64xf32, #tpu.memory_space<vmem>>, vector<338x64xf32>
    %c1_68 = arith.constant 1 : index
    %c0_69 = arith.constant 0 : index
    %c0_70 = arith.constant 0 : index
    %67 = vector.load %arg7[%c1_68, %c0_69, %c0_70] : memref<4x64x64xf32, #tpu.memory_space<vmem>>, vector<1x64x64xf32>
    %68 = vector.shape_cast %67 : vector<1x64x64xf32> to vector<64x64xf32>
    %cst_71 = arith.constant dense<0.000000e+00> : vector<338x64xf32>
    %69 = tpu.matmul %66, %68, %cst_71 {dimension_numbers = #tpu.dot_dimension_numbers<[1], [0], [0], [1], [0, 0, 1, 1], [], []>} : vector<338x64xf32>, vector<64x64xf32>, vector<338x64xf32> -> vector<338x64xf32>
    %70 = arith.addf %65, %69 : vector<338x64xf32>
    %c13_72 = arith.constant 13 : index
    %c0_73 = arith.constant 0 : index
    %71 = vector.load %arg19[%c13_72, %c0_73] : memref<352x64xf32, #tpu.memory_space<vmem>>, vector<338x64xf32>
    %c2_74 = arith.constant 2 : index
    %c0_75 = arith.constant 0 : index
    %c0_76 = arith.constant 0 : index
    %72 = vector.load %arg7[%c2_74, %c0_75, %c0_76] : memref<4x64x64xf32, #tpu.memory_space<vmem>>, vector<1x64x64xf32>
    %73 = vector.shape_cast %72 : vector<1x64x64xf32> to vector<64x64xf32>
    %cst_77 = arith.constant dense<0.000000e+00> : vector<338x64xf32>
    %74 = tpu.matmul %71, %73, %cst_77 {dimension_numbers = #tpu.dot_dimension_numbers<[1], [0], [0], [1], [0, 0, 1, 1], [], []>} : vector<338x64xf32>, vector<64x64xf32>, vector<338x64xf32> -> vector<338x64xf32>
    %75 = arith.addf %70, %74 : vector<338x64xf32>
    %c14_78 = arith.constant 14 : index
    %c0_79 = arith.constant 0 : index
    %76 = vector.load %arg19[%c14_78, %c0_79] : memref<352x64xf32, #tpu.memory_space<vmem>>, vector<338x64xf32>
    %c3_80 = arith.constant 3 : index
    %c0_81 = arith.constant 0 : index
    %c0_82 = arith.constant 0 : index
    %77 = vector.load %arg7[%c3_80, %c0_81, %c0_82] : memref<4x64x64xf32, #tpu.memory_space<vmem>>, vector<1x64x64xf32>
    %78 = vector.shape_cast %77 : vector<1x64x64xf32> to vector<64x64xf32>
    %cst_83 = arith.constant dense<0.000000e+00> : vector<338x64xf32>
    %79 = tpu.matmul %76, %78, %cst_83 {dimension_numbers = #tpu.dot_dimension_numbers<[1], [0], [0], [1], [0, 0, 1, 1], [], []>} : vector<338x64xf32>, vector<64x64xf32>, vector<338x64xf32> -> vector<338x64xf32>
    %80 = arith.addf %75, %79 : vector<338x64xf32>
    %c0_84 = arith.constant 0 : index
    %c0_85 = arith.constant 0 : index
    %81 = vector.load %arg8[%c0_84, %c0_85] : memref<1x64xf32, #tpu.memory_space<vmem>>, vector<1x64xf32>
    %82 = vector.broadcast %81 : vector<1x64xf32> to vector<338x64xf32>
    %83 = arith.addf %80, %82 : vector<338x64xf32>
    %cst_86 = arith.constant 0.000000e+00 : f32
    %84 = vector.broadcast %cst_86 : f32 to vector<338x64xf32>
    %85 = arith.maximumf %83, %84 : vector<338x64xf32>
    %c0_87 = arith.constant 0 : index
    %c0_88 = arith.constant 0 : index
    %86 = vector.load %arg20[%c0_87, %c0_88] : memref<338x64xf32, #tpu.memory_space<vmem>>, vector<338x64xf32>
    tpu.vector_store %arg20[%c0_87, %c0_88], %85 {strides = array<i32>} : memref<338x64xf32, #tpu.memory_space<vmem>>, vector<338x64xf32>,
    %c0_89 = arith.constant 0 : index
    %c0_90 = arith.constant 0 : index
    %87 = vector.load %arg20[%c0_89, %c0_90] : memref<338x64xf32, #tpu.memory_space<vmem>>, vector<1x64xf32>
    %c1_91 = arith.constant 1 : index
    %c0_92 = arith.constant 0 : index
    %88 = vector.load %arg20[%c1_91, %c0_92] : memref<338x64xf32, #tpu.memory_space<vmem>>, vector<1x64xf32>
    %89 = tpu.concatenate %87, %88 in 1 : vector<1x64xf32>, vector<1x64xf32> -> vector<1x128xf32>
    %c0_93 = arith.constant 0 : index
    %c0_94 = arith.constant 0 : index
    %90 = vector.load %arg21[%c0_93, %c0_94] : memref<2x6400xf32, #tpu.memory_space<vmem>>, vector<1x128xf32>
    tpu.vector_store %arg21[%c0_93, %c0_94], %89 {strides = array<i32>} : memref<2x6400xf32, #tpu.memory_space<vmem>>, vector<1x128xf32>,
    %c2_95 = arith.constant 2 : index
    %c0_96 = arith.constant 0 : index
    %91 = vector.load %arg20[%c2_95, %c0_96] : memref<338x64xf32, #tpu.memory_space<vmem>>, vector<1x64xf32>
    %c3_97 = arith.constant 3 : index
    %c0_98 = arith.constant 0 : index
    %92 = vector.load %arg20[%c3_97, %c0_98] : memref<338x64xf32, #tpu.memory_space<vmem>>, vector<1x64xf32>
    %93 = tpu.concatenate %91, %92 in 1 : vector<1x64xf32>, vector<1x64xf32> -> vector<1x128xf32>
    %c0_99 = arith.constant 0 : index
    %c128 = arith.constant 128 : index
    %94 = vector.load %arg21[%c0_99, %c128] : memref<2x6400xf32, #tpu.memory_space<vmem>>, vector<1x128xf32>
    tpu.vector_store %arg21[%c0_99, %c128], %93 {strides = array<i32>} : memref<2x6400xf32, #tpu.memory_space<vmem>>, vector<1x128xf32>,
    %c4 = arith.constant 4 : index
    %c0_100 = arith.constant 0 : index
    %95 = vector.load %arg20[%c4, %c0_100] : memref<338x64xf32, #tpu.memory_space<vmem>>, vector<1x64xf32>
    %c5 = arith.constant 5 : index
    %c0_101 = arith.constant 0 : index
    %96 = vector.load %arg20[%c5, %c0_101] : memref<338x64xf32, #tpu.memory_space<vmem>>, vector<1x64xf32>
    %97 = tpu.concatenate %95, %96 in 1 : vector<1x64xf32>, vector<1x64xf32> -> vector<1x128xf32>
    %c0_102 = arith.constant 0 : index
    %c256 = arith.constant 256 : index
    %98 = vector.load %arg21[%c0_102, %c256] : memref<2x6400xf32, #tpu.memory_space<vmem>>, vector<1x128xf32>
    tpu.vector_store %arg21[%c0_102, %c256], %97 {strides = array<i32>} : memref<2x6400xf32, #tpu.memory_space<vmem>>, vector<1x128xf32>,
    %c6 = arith.constant 6 : index
    %c0_103 = arith.constant 0 : index
    %99 = vector.load %arg20[%c6, %c0_103] : memref<338x64xf32, #tpu.memory_space<vmem>>, vector<1x64xf32>
    %c7 = arith.constant 7 : index
    %c0_104 = arith.constant 0 : index
    %100 = vector.load %arg20[%c7, %c0_104] : memref<338x64xf32, #tpu.memory_space<vmem>>, vector<1x64xf32>
    %101 = tpu.concatenate %99, %100 in 1 : vector<1x64xf32>, vector<1x64xf32> -> vector<1x128xf32>
    %c0_105 = arith.constant 0 : index
    %c384 = arith.constant 384 : index
    %102 = vector.load %arg21[%c0_105, %c384] : memref<2x6400xf32, #tpu.memory_space<vmem>>, vector<1x128xf32>
    tpu.vector_store %arg21[%c0_105, %c384], %101 {strides = array<i32>} : memref<2x6400xf32, #tpu.memory_space<vmem>>, vector<1x128xf32>,
    %c8 = arith.constant 8 : index
    %c0_106 = arith.constant 0 : index
    %103 = vector.load %arg20[%c8, %c0_106] : memref<338x64xf32, #tpu.memory_space<vmem>>, vector<1x64xf32>
    %c9 = arith.constant 9 : index
    %c0_107 = arith.constant 0 : index
    %104 = vector.load %arg20[%c9, %c0_107] : memref<338x64xf32, #tpu.memory_space<vmem>>, vector<1x64xf32>
    %105 = tpu.concatenate %103, %104 in 1 : vector<1x64xf32>, vector<1x64xf32> -> vector<1x128xf32>
    %c0_108 = arith.constant 0 : index
    %c512 = arith.constant 512 : index
    %106 = vector.load %arg21[%c0_108, %c512] : memref<2x6400xf32, #tpu.memory_space<vmem>>, vector<1x128xf32>
    tpu.vector_store %arg21[%c0_108, %c512], %105 {strides = array<i32>} : memref<2x6400xf32, #tpu.memory_space<vmem>>, vector<1x128xf32>,
    %c13_109 = arith.constant 13 : index
    %c0_110 = arith.constant 0 : index
    %107 = vector.load %arg20[%c13_109, %c0_110] : memref<338x64xf32, #tpu.memory_space<vmem>>, vector<1x64xf32>
    %c14_111 = arith.constant 14 : index
    %c0_112 = arith.constant 0 : index
    %108 = vector.load %arg20[%c14_111, %c0_112] : memref<338x64xf32, #tpu.memory_space<vmem>>, vector<1x64xf32>
    %109 = tpu.concatenate %107, %108 in 1 : vector<1x64xf32>, vector<1x64xf32> -> vector<1x128xf32>
    %c0_113 = arith.constant 0 : index
    %c640 = arith.constant 640 : index
    %110 = vector.load %arg21[%c0_113, %c640] : memref<2x6400xf32, #tpu.memory_space<vmem>>, vector<1x128xf32>
    tpu.vector_store %arg21[%c0_113, %c640], %109 {strides = array<i32>} : memref<2x6400xf32, #tpu.memory_space<vmem>>, vector<1x128xf32>,
    %c15 = arith.constant 15 : index
    %c0_114 = arith.constant 0 : index
    %111 = vector.load %arg20[%c15, %c0_114] : memref<338x64xf32, #tpu.memory_space<vmem>>, vector<1x64xf32>
    %c16 = arith.constant 16 : index
    %c0_115 = arith.constant 0 : index
    %112 = vector.load %arg20[%c16, %c0_115] : memref<338x64xf32, #tpu.memory_space<vmem>>, vector<1x64xf32>
    %113 = tpu.concatenate %111, %112 in 1 : vector<1x64xf32>, vector<1x64xf32> -> vector<1x128xf32>
    %c0_116 = arith.constant 0 : index
    %c768 = arith.constant 768 : index
    %114 = vector.load %arg21[%c0_116, %c768] : memref<2x6400xf32, #tpu.memory_space<vmem>>, vector<1x128xf32>
    tpu.vector_store %arg21[%c0_116, %c768], %113 {strides = array<i32>} : memref<2x6400xf32, #tpu.memory_space<vmem>>, vector<1x128xf32>,
    %c17 = arith.constant 17 : index
    %c0_117 = arith.constant 0 : index
    %115 = vector.load %arg20[%c17, %c0_117] : memref<338x64xf32, #tpu.memory_space<vmem>>, vector<1x64xf32>
    %c18 = arith.constant 18 : index
    %c0_118 = arith.constant 0 : index
    %116 = vector.load %arg20[%c18, %c0_118] : memref<338x64xf32, #tpu.memory_space<vmem>>, vector<1x64xf32>
    %117 = tpu.concatenate %115, %116 in 1 : vector<1x64xf32>, vector<1x64xf32> -> vector<1x128xf32>
    %c0_119 = arith.constant 0 : index
    %c896 = arith.constant 896 : index
    %118 = vector.load %arg21[%c0_119, %c896] : memref<2x6400xf32, #tpu.memory_space<vmem>>, vector<1x128xf32>
    tpu.vector_store %arg21[%c0_119, %c896], %117 {strides = array<i32>} : memref<2x6400xf32, #tpu.memory_space<vmem>>, vector<1x128xf32>,
    %c19 = arith.constant 19 : index
    %c0_120 = arith.constant 0 : index
    %119 = vector.load %arg20[%c19, %c0_120] : memref<338x64xf32, #tpu.memory_space<vmem>>, vector<1x64xf32>
    %c20 = arith.constant 20 : index
    %c0_121 = arith.constant 0 : index
    %120 = vector.load %arg20[%c20, %c0_121] : memref<338x64xf32, #tpu.memory_space<vmem>>, vector<1x64xf32>
    %121 = tpu.concatenate %119, %120 in 1 : vector<1x64xf32>, vector<1x64xf32> -> vector<1x128xf32>
    %c0_122 = arith.constant 0 : index
    %c1024 = arith.constant 1024 : index
    %122 = vector.load %arg21[%c0_122, %c1024] : memref<2x6400xf32, #tpu.memory_space<vmem>>, vector<1x128xf32>
    tpu.vector_store %arg21[%c0_122, %c1024], %121 {strides = array<i32>} : memref<2x6400xf32, #tpu.memory_space<vmem>>, vector<1x128xf32>,
    %c21 = arith.constant 21 : index
    %c0_123 = arith.constant 0 : index
    %123 = vector.load %arg20[%c21, %c0_123] : memref<338x64xf32, #tpu.memory_space<vmem>>, vector<1x64xf32>
    %c22 = arith.constant 22 : index
    %c0_124 = arith.constant 0 : index
    %124 = vector.load %arg20[%c22, %c0_124] : memref<338x64xf32, #tpu.memory_space<vmem>>, vector<1x64xf32>
    %125 = tpu.concatenate %123, %124 in 1 : vector<1x64xf32>, vector<1x64xf32> -> vector<1x128xf32>
    %c0_125 = arith.constant 0 : index
    %c1152 = arith.constant 1152 : index
    %126 = vector.load %arg21[%c0_125, %c1152] : memref<2x6400xf32, #tpu.memory_space<vmem>>, vector<1x128xf32>
    tpu.vector_store %arg21[%c0_125, %c1152], %125 {strides = array<i32>} : memref<2x6400xf32, #tpu.memory_space<vmem>>, vector<1x128xf32>,
    %c26 = arith.constant 26 : index
    %c0_126 = arith.constant 0 : index
    %127 = vector.load %arg20[%c26, %c0_126] : memref<338x64xf32, #tpu.memory_space<vmem>>, vector<1x64xf32>
    %c27 = arith.constant 27 : index
    %c0_127 = arith.constant 0 : index
    %128 = vector.load %arg20[%c27, %c0_127] : memref<338x64xf32, #tpu.memory_space<vmem>>, vector<1x64xf32>
    %129 = tpu.concatenate %127, %128 in 1 : vector<1x64xf32>, vector<1x64xf32> -> vector<1x128xf32>
    %c0_128 = arith.constant 0 : index
    %c1280 = arith.constant 1280 : index
    %130 = vector.load %arg21[%c0_128, %c1280] : memref<2x6400xf32, #tpu.memory_space<vmem>>, vector<1x128xf32>
    tpu.vector_store %arg21[%c0_128, %c1280], %129 {strides = array<i32>} : memref<2x6400xf32, #tpu.memory_space<vmem>>, vector<1x128xf32>,
    %c28 = arith.constant 28 : index
    %c0_129 = arith.constant 0 : index
    %131 = vector.load %arg20[%c28, %c0_129] : memref<338x64xf32, #tpu.memory_space<vmem>>, vector<1x64xf32>
    %c29 = arith.constant 29 : index
    %c0_130 = arith.constant 0 : index
    %132 = vector.load %arg20[%c29, %c0_130] : memref<338x64xf32, #tpu.memory_space<vmem>>, vector<1x64xf32>
    %133 = tpu.concatenate %131, %132 in 1 : vector<1x64xf32>, vector<1x64xf32> -> vector<1x128xf32>
    %c0_131 = arith.constant 0 : index
    %c1408 = arith.constant 1408 : index
    %134 = vector.load %arg21[%c0_131, %c1408] : memref<2x6400xf32, #tpu.memory_space<vmem>>, vector<1x128xf32>
    tpu.vector_store %arg21[%c0_131, %c1408], %133 {strides = array<i32>} : memref<2x6400xf32, #tpu.memory_space<vmem>>, vector<1x128xf32>,
    %c30 = arith.constant 30 : index
    %c0_132 = arith.constant 0 : index
    %135 = vector.load %arg20[%c30, %c0_132] : memref<338x64xf32, #tpu.memory_space<vmem>>, vector<1x64xf32>
    %c31 = arith.constant 31 : index
    %c0_133 = arith.constant 0 : index
    %136 = vector.load %arg20[%c31, %c0_133] : memref<338x64xf32, #tpu.memory_space<vmem>>, vector<1x64xf32>
    %137 = tpu.concatenate %135, %136 in 1 : vector<1x64xf32>, vector<1x64xf32> -> vector<1x128xf32>
    %c0_134 = arith.constant 0 : index
    %c1536 = arith.constant 1536 : index
    %138 = vector.load %arg21[%c0_134, %c1536] : memref<2x6400xf32, #tpu.memory_space<vmem>>, vector<1x128xf32>
    tpu.vector_store %arg21[%c0_134, %c1536], %137 {strides = array<i32>} : memref<2x6400xf32, #tpu.memory_space<vmem>>, vector<1x128xf32>,
    %c32 = arith.constant 32 : index
    %c0_135 = arith.constant 0 : index
    %139 = vector.load %arg20[%c32, %c0_135] : memref<338x64xf32, #tpu.memory_space<vmem>>, vector<1x64xf32>
    %c33 = arith.constant 33 : index
    %c0_136 = arith.constant 0 : index
    %140 = vector.load %arg20[%c33, %c0_136] : memref<338x64xf32, #tpu.memory_space<vmem>>, vector<1x64xf32>
    %141 = tpu.concatenate %139, %140 in 1 : vector<1x64xf32>, vector<1x64xf32> -> vector<1x128xf32>
    %c0_137 = arith.constant 0 : index
    %c1664 = arith.constant 1664 : index
    %142 = vector.load %arg21[%c0_137, %c1664] : memref<2x6400xf32, #tpu.memory_space<vmem>>, vector<1x128xf32>
    tpu.vector_store %arg21[%c0_137, %c1664], %141 {strides = array<i32>} : memref<2x6400xf32, #tpu.memory_space<vmem>>, vector<1x128xf32>,
    %c34 = arith.constant 34 : index
    %c0_138 = arith.constant 0 : index
    %143 = vector.load %arg20[%c34, %c0_138] : memref<338x64xf32, #tpu.memory_space<vmem>>, vector<1x64xf32>
    %c35 = arith.constant 35 : index
    %c0_139 = arith.constant 0 : index
    %144 = vector.load %arg20[%c35, %c0_139] : memref<338x64xf32, #tpu.memory_space<vmem>>, vector<1x64xf32>
    %145 = tpu.concatenate %143, %144 in 1 : vector<1x64xf32>, vector<1x64xf32> -> vector<1x128xf32>
    %c0_140 = arith.constant 0 : index
    %c1792 = arith.constant 1792 : index
    %146 = vector.load %arg21[%c0_140, %c1792] : memref<2x6400xf32, #tpu.memory_space<vmem>>, vector<1x128xf32>
    tpu.vector_store %arg21[%c0_140, %c1792], %145 {strides = array<i32>} : memref<2x6400xf32, #tpu.memory_space<vmem>>, vector<1x128xf32>,
    %c39 = arith.constant 39 : index
    %c0_141 = arith.constant 0 : index
    %147 = vector.load %arg20[%c39, %c0_141] : memref<338x64xf32, #tpu.memory_space<vmem>>, vector<1x64xf32>
    %c40 = arith.constant 40 : index
    %c0_142 = arith.constant 0 : index
    %148 = vector.load %arg20[%c40, %c0_142] : memref<338x64xf32, #tpu.memory_space<vmem>>, vector<1x64xf32>
    %149 = tpu.concatenate %147, %148 in 1 : vector<1x64xf32>, vector<1x64xf32> -> vector<1x128xf32>
    %c0_143 = arith.constant 0 : index
    %c1920 = arith.constant 1920 : index
    %150 = vector.load %arg21[%c0_143, %c1920] : memref<2x6400xf32, #tpu.memory_space<vmem>>, vector<1x128xf32>
    tpu.vector_store %arg21[%c0_143, %c1920], %149 {strides = array<i32>} : memref<2x6400xf32, #tpu.memory_space<vmem>>, vector<1x128xf32>,
    %c41 = arith.constant 41 : index
    %c0_144 = arith.constant 0 : index
    %151 = vector.load %arg20[%c41, %c0_144] : memref<338x64xf32, #tpu.memory_space<vmem>>, vector<1x64xf32>
    %c42 = arith.constant 42 : index
    %c0_145 = arith.constant 0 : index
    %152 = vector.load %arg20[%c42, %c0_145] : memref<338x64xf32, #tpu.memory_space<vmem>>, vector<1x64xf32>
    %153 = tpu.concatenate %151, %152 in 1 : vector<1x64xf32>, vector<1x64xf32> -> vector<1x128xf32>
    %c0_146 = arith.constant 0 : index
    %c2048 = arith.constant 2048 : index
    %154 = vector.load %arg21[%c0_146, %c2048] : memref<2x6400xf32, #tpu.memory_space<vmem>>, vector<1x128xf32>
    tpu.vector_store %arg21[%c0_146, %c2048], %153 {strides = array<i32>} : memref<2x6400xf32, #tpu.memory_space<vmem>>, vector<1x128xf32>,
    %c43 = arith.constant 43 : index
    %c0_147 = arith.constant 0 : index
    %155 = vector.load %arg20[%c43, %c0_147] : memref<338x64xf32, #tpu.memory_space<vmem>>, vector<1x64xf32>
    %c44 = arith.constant 44 : index
    %c0_148 = arith.constant 0 : index
    %156 = vector.load %arg20[%c44, %c0_148] : memref<338x64xf32, #tpu.memory_space<vmem>>, vector<1x64xf32>
    %157 = tpu.concatenate %155, %156 in 1 : vector<1x64xf32>, vector<1x64xf32> -> vector<1x128xf32>
    %c0_149 = arith.constant 0 : index
    %c2176 = arith.constant 2176 : index
    %158 = vector.load %arg21[%c0_149, %c2176] : memref<2x6400xf32, #tpu.memory_space<vmem>>, vector<1x128xf32>
    tpu.vector_store %arg21[%c0_149, %c2176], %157 {strides = array<i32>} : memref<2x6400xf32, #tpu.memory_space<vmem>>, vector<1x128xf32>,
    %c45 = arith.constant 45 : index
    %c0_150 = arith.constant 0 : index
    %159 = vector.load %arg20[%c45, %c0_150] : memref<338x64xf32, #tpu.memory_space<vmem>>, vector<1x64xf32>
    %c46 = arith.constant 46 : index
    %c0_151 = arith.constant 0 : index
    %160 = vector.load %arg20[%c46, %c0_151] : memref<338x64xf32, #tpu.memory_space<vmem>>, vector<1x64xf32>
    %161 = tpu.concatenate %159, %160 in 1 : vector<1x64xf32>, vector<1x64xf32> -> vector<1x128xf32>
    %c0_152 = arith.constant 0 : index
    %c2304 = arith.constant 2304 : index
    %162 = vector.load %arg21[%c0_152, %c2304] : memref<2x6400xf32, #tpu.memory_space<vmem>>, vector<1x128xf32>
    tpu.vector_store %arg21[%c0_152, %c2304], %161 {strides = array<i32>} : memref<2x6400xf32, #tpu.memory_space<vmem>>, vector<1x128xf32>,
    %c47 = arith.constant 47 : index
    %c0_153 = arith.constant 0 : index
    %163 = vector.load %arg20[%c47, %c0_153] : memref<338x64xf32, #tpu.memory_space<vmem>>, vector<1x64xf32>
    %c48 = arith.constant 48 : index
    %c0_154 = arith.constant 0 : index
    %164 = vector.load %arg20[%c48, %c0_154] : memref<338x64xf32, #tpu.memory_space<vmem>>, vector<1x64xf32>
    %165 = tpu.concatenate %163, %164 in 1 : vector<1x64xf32>, vector<1x64xf32> -> vector<1x128xf32>
    %c0_155 = arith.constant 0 : index
    %c2432 = arith.constant 2432 : index
    %166 = vector.load %arg21[%c0_155, %c2432] : memref<2x6400xf32, #tpu.memory_space<vmem>>, vector<1x128xf32>
    tpu.vector_store %arg21[%c0_155, %c2432], %165 {strides = array<i32>} : memref<2x6400xf32, #tpu.memory_space<vmem>>, vector<1x128xf32>,
    %c52 = arith.constant 52 : index
    %c0_156 = arith.constant 0 : index
    %167 = vector.load %arg20[%c52, %c0_156] : memref<338x64xf32, #tpu.memory_space<vmem>>, vector<1x64xf32>
    %c53 = arith.constant 53 : index
    %c0_157 = arith.constant 0 : index
    %168 = vector.load %arg20[%c53, %c0_157] : memref<338x64xf32, #tpu.memory_space<vmem>>, vector<1x64xf32>
    %169 = tpu.concatenate %167, %168 in 1 : vector<1x64xf32>, vector<1x64xf32> -> vector<1x128xf32>
    %c0_158 = arith.constant 0 : index
    %c2560 = arith.constant 2560 : index
    %170 = vector.load %arg21[%c0_158, %c2560] : memref<2x6400xf32, #tpu.memory_space<vmem>>, vector<1x128xf32>
    tpu.vector_store %arg21[%c0_158, %c2560], %169 {strides = array<i32>} : memref<2x6400xf32, #tpu.memory_space<vmem>>, vector<1x128xf32>,
    %c54 = arith.constant 54 : index
    %c0_159 = arith.constant 0 : index
    %171 = vector.load %arg20[%c54, %c0_159] : memref<338x64xf32, #tpu.memory_space<vmem>>, vector<1x64xf32>
    %c55 = arith.constant 55 : index
    %c0_160 = arith.constant 0 : index
    %172 = vector.load %arg20[%c55, %c0_160] : memref<338x64xf32, #tpu.memory_space<vmem>>, vector<1x64xf32>
    %173 = tpu.concatenate %171, %172 in 1 : vector<1x64xf32>, vector<1x64xf32> -> vector<1x128xf32>
    %c0_161 = arith.constant 0 : index
    %c2688 = arith.constant 2688 : index
    %174 = vector.load %arg21[%c0_161, %c2688] : memref<2x6400xf32, #tpu.memory_space<vmem>>, vector<1x128xf32>
    tpu.vector_store %arg21[%c0_161, %c2688], %173 {strides = array<i32>} : memref<2x6400xf32, #tpu.memory_space<vmem>>, vector<1x128xf32>,
    %c56 = arith.constant 56 : index
    %c0_162 = arith.constant 0 : index
    %175 = vector.load %arg20[%c56, %c0_162] : memref<338x64xf32, #tpu.memory_space<vmem>>, vector<1x64xf32>
    %c57 = arith.constant 57 : index
    %c0_163 = arith.constant 0 : index
    %176 = vector.load %arg20[%c57, %c0_163] : memref<338x64xf32, #tpu.memory_space<vmem>>, vector<1x64xf32>
    %177 = tpu.concatenate %175, %176 in 1 : vector<1x64xf32>, vector<1x64xf32> -> vector<1x128xf32>
    %c0_164 = arith.constant 0 : index
    %c2816 = arith.constant 2816 : index
    %178 = vector.load %arg21[%c0_164, %c2816] : memref<2x6400xf32, #tpu.memory_space<vmem>>, vector<1x128xf32>
    tpu.vector_store %arg21[%c0_164, %c2816], %177 {strides = array<i32>} : memref<2x6400xf32, #tpu.memory_space<vmem>>, vector<1x128xf32>,
    %c58 = arith.constant 58 : index
    %c0_165 = arith.constant 0 : index
    %179 = vector.load %arg20[%c58, %c0_165] : memref<338x64xf32, #tpu.memory_space<vmem>>, vector<1x64xf32>
    %c59 = arith.constant 59 : index
    %c0_166 = arith.constant 0 : index
    %180 = vector.load %arg20[%c59, %c0_166] : memref<338x64xf32, #tpu.memory_space<vmem>>, vector<1x64xf32>
    %181 = tpu.concatenate %179, %180 in 1 : vector<1x64xf32>, vector<1x64xf32> -> vector<1x128xf32>
    %c0_167 = arith.constant 0 : index
    %c2944 = arith.constant 2944 : index
    %182 = vector.load %arg21[%c0_167, %c2944] : memref<2x6400xf32, #tpu.memory_space<vmem>>, vector<1x128xf32>
    tpu.vector_store %arg21[%c0_167, %c2944], %181 {strides = array<i32>} : memref<2x6400xf32, #tpu.memory_space<vmem>>, vector<1x128xf32>,
    %c60 = arith.constant 60 : index
    %c0_168 = arith.constant 0 : index
    %183 = vector.load %arg20[%c60, %c0_168] : memref<338x64xf32, #tpu.memory_space<vmem>>, vector<1x64xf32>
    %c61 = arith.constant 61 : index
    %c0_169 = arith.constant 0 : index
    %184 = vector.load %arg20[%c61, %c0_169] : memref<338x64xf32, #tpu.memory_space<vmem>>, vector<1x64xf32>
    %185 = tpu.concatenate %183, %184 in 1 : vector<1x64xf32>, vector<1x64xf32> -> vector<1x128xf32>
    %c0_170 = arith.constant 0 : index
    %c3072 = arith.constant 3072 : index
    %186 = vector.load %arg21[%c0_170, %c3072] : memref<2x6400xf32, #tpu.memory_space<vmem>>, vector<1x128xf32>
    tpu.vector_store %arg21[%c0_170, %c3072], %185 {strides = array<i32>} : memref<2x6400xf32, #tpu.memory_space<vmem>>, vector<1x128xf32>,
    %c65 = arith.constant 65 : index
    %c0_171 = arith.constant 0 : index
    %187 = vector.load %arg20[%c65, %c0_171] : memref<338x64xf32, #tpu.memory_space<vmem>>, vector<1x64xf32>
    %c66 = arith.constant 66 : index
    %c0_172 = arith.constant 0 : index
    %188 = vector.load %arg20[%c66, %c0_172] : memref<338x64xf32, #tpu.memory_space<vmem>>, vector<1x64xf32>
    %189 = tpu.concatenate %187, %188 in 1 : vector<1x64xf32>, vector<1x64xf32> -> vector<1x128xf32>
    %c0_173 = arith.constant 0 : index
    %c3200 = arith.constant 3200 : index
    %190 = vector.load %arg21[%c0_173, %c3200] : memref<2x6400xf32, #tpu.memory_space<vmem>>, vector<1x128xf32>
    tpu.vector_store %arg21[%c0_173, %c3200], %189 {strides = array<i32>} : memref<2x6400xf32, #tpu.memory_space<vmem>>, vector<1x128xf32>,
    %c67 = arith.constant 67 : index
    %c0_174 = arith.constant 0 : index
    %191 = vector.load %arg20[%c67, %c0_174] : memref<338x64xf32, #tpu.memory_space<vmem>>, vector<1x64xf32>
    %c68 = arith.constant 68 : index
    %c0_175 = arith.constant 0 : index
    %192 = vector.load %arg20[%c68, %c0_175] : memref<338x64xf32, #tpu.memory_space<vmem>>, vector<1x64xf32>
    %193 = tpu.concatenate %191, %192 in 1 : vector<1x64xf32>, vector<1x64xf32> -> vector<1x128xf32>
    %c0_176 = arith.constant 0 : index
    %c3328 = arith.constant 3328 : index
    %194 = vector.load %arg21[%c0_176, %c3328] : memref<2x6400xf32, #tpu.memory_space<vmem>>, vector<1x128xf32>
    tpu.vector_store %arg21[%c0_176, %c3328], %193 {strides = array<i32>} : memref<2x6400xf32, #tpu.memory_space<vmem>>, vector<1x128xf32>,
    %c69 = arith.constant 69 : index
    %c0_177 = arith.constant 0 : index
    %195 = vector.load %arg20[%c69, %c0_177] : memref<338x64xf32, #tpu.memory_space<vmem>>, vector<1x64xf32>
    %c70 = arith.constant 70 : index
    %c0_178 = arith.constant 0 : index
    %196 = vector.load %arg20[%c70, %c0_178] : memref<338x64xf32, #tpu.memory_space<vmem>>, vector<1x64xf32>
    %197 = tpu.concatenate %195, %196 in 1 : vector<1x64xf32>, vector<1x64xf32> -> vector<1x128xf32>
    %c0_179 = arith.constant 0 : index
    %c3456 = arith.constant 3456 : index
    %198 = vector.load %arg21[%c0_179, %c3456] : memref<2x6400xf32, #tpu.memory_space<vmem>>, vector<1x128xf32>
    tpu.vector_store %arg21[%c0_179, %c3456], %197 {strides = array<i32>} : memref<2x6400xf32, #tpu.memory_space<vmem>>, vector<1x128xf32>,
    %c71 = arith.constant 71 : index
    %c0_180 = arith.constant 0 : index
    %199 = vector.load %arg20[%c71, %c0_180] : memref<338x64xf32, #tpu.memory_space<vmem>>, vector<1x64xf32>
    %c72 = arith.constant 72 : index
    %c0_181 = arith.constant 0 : index
    %200 = vector.load %arg20[%c72, %c0_181] : memref<338x64xf32, #tpu.memory_space<vmem>>, vector<1x64xf32>
    %201 = tpu.concatenate %199, %200 in 1 : vector<1x64xf32>, vector<1x64xf32> -> vector<1x128xf32>
    %c0_182 = arith.constant 0 : index
    %c3584 = arith.constant 3584 : index
    %202 = vector.load %arg21[%c0_182, %c3584] : memref<2x6400xf32, #tpu.memory_space<vmem>>, vector<1x128xf32>
    tpu.vector_store %arg21[%c0_182, %c3584], %201 {strides = array<i32>} : memref<2x6400xf32, #tpu.memory_space<vmem>>, vector<1x128xf32>,
    %c73 = arith.constant 73 : index
    %c0_183 = arith.constant 0 : index
    %203 = vector.load %arg20[%c73, %c0_183] : memref<338x64xf32, #tpu.memory_space<vmem>>, vector<1x64xf32>
    %c74 = arith.constant 74 : index
    %c0_184 = arith.constant 0 : index
    %204 = vector.load %arg20[%c74, %c0_184] : memref<338x64xf32, #tpu.memory_space<vmem>>, vector<1x64xf32>
    %205 = tpu.concatenate %203, %204 in 1 : vector<1x64xf32>, vector<1x64xf32> -> vector<1x128xf32>
    %c0_185 = arith.constant 0 : index
    %c3712 = arith.constant 3712 : index
    %206 = vector.load %arg21[%c0_185, %c3712] : memref<2x6400xf32, #tpu.memory_space<vmem>>, vector<1x128xf32>
    tpu.vector_store %arg21[%c0_185, %c3712], %205 {strides = array<i32>} : memref<2x6400xf32, #tpu.memory_space<vmem>>, vector<1x128xf32>,
    %c78 = arith.constant 78 : index
    %c0_186 = arith.constant 0 : index
    %207 = vector.load %arg20[%c78, %c0_186] : memref<338x64xf32, #tpu.memory_space<vmem>>, vector<1x64xf32>
    %c79 = arith.constant 79 : index
    %c0_187 = arith.constant 0 : index
    %208 = vector.load %arg20[%c79, %c0_187] : memref<338x64xf32, #tpu.memory_space<vmem>>, vector<1x64xf32>
    %209 = tpu.concatenate %207, %208 in 1 : vector<1x64xf32>, vector<1x64xf32> -> vector<1x128xf32>
    %c0_188 = arith.constant 0 : index
    %c3840 = arith.constant 3840 : index
    %210 = vector.load %arg21[%c0_188, %c3840] : memref<2x6400xf32, #tpu.memory_space<vmem>>, vector<1x128xf32>
    tpu.vector_store %arg21[%c0_188, %c3840], %209 {strides = array<i32>} : memref<2x6400xf32, #tpu.memory_space<vmem>>, vector<1x128xf32>,
    %c80 = arith.constant 80 : index
    %c0_189 = arith.constant 0 : index
    %211 = vector.load %arg20[%c80, %c0_189] : memref<338x64xf32, #tpu.memory_space<vmem>>, vector<1x64xf32>
    %c81 = arith.constant 81 : index
    %c0_190 = arith.constant 0 : index
    %212 = vector.load %arg20[%c81, %c0_190] : memref<338x64xf32, #tpu.memory_space<vmem>>, vector<1x64xf32>
    %213 = tpu.concatenate %211, %212 in 1 : vector<1x64xf32>, vector<1x64xf32> -> vector<1x128xf32>
    %c0_191 = arith.constant 0 : index
    %c3968 = arith.constant 3968 : index
    %214 = vector.load %arg21[%c0_191, %c3968] : memref<2x6400xf32, #tpu.memory_space<vmem>>, vector<1x128xf32>
    tpu.vector_store %arg21[%c0_191, %c3968], %213 {strides = array<i32>} : memref<2x6400xf32, #tpu.memory_space<vmem>>, vector<1x128xf32>,
    %c82 = arith.constant 82 : index
    %c0_192 = arith.constant 0 : index
    %215 = vector.load %arg20[%c82, %c0_192] : memref<338x64xf32, #tpu.memory_space<vmem>>, vector<1x64xf32>
    %c83 = arith.constant 83 : index
    %c0_193 = arith.constant 0 : index
    %216 = vector.load %arg20[%c83, %c0_193] : memref<338x64xf32, #tpu.memory_space<vmem>>, vector<1x64xf32>
    %217 = tpu.concatenate %215, %216 in 1 : vector<1x64xf32>, vector<1x64xf32> -> vector<1x128xf32>
    %c0_194 = arith.constant 0 : index
    %c4096 = arith.constant 4096 : index
    %218 = vector.load %arg21[%c0_194, %c4096] : memref<2x6400xf32, #tpu.memory_space<vmem>>, vector<1x128xf32>
    tpu.vector_store %arg21[%c0_194, %c4096], %217 {strides = array<i32>} : memref<2x6400xf32, #tpu.memory_space<vmem>>, vector<1x128xf32>,
    %c84 = arith.constant 84 : index
    %c0_195 = arith.constant 0 : index
    %219 = vector.load %arg20[%c84, %c0_195] : memref<338x64xf32, #tpu.memory_space<vmem>>, vector<1x64xf32>
    %c85 = arith.constant 85 : index
    %c0_196 = arith.constant 0 : index
    %220 = vector.load %arg20[%c85, %c0_196] : memref<338x64xf32, #tpu.memory_space<vmem>>, vector<1x64xf32>
    %221 = tpu.concatenate %219, %220 in 1 : vector<1x64xf32>, vector<1x64xf32> -> vector<1x128xf32>
    %c0_197 = arith.constant 0 : index
    %c4224 = arith.constant 4224 : index
    %222 = vector.load %arg21[%c0_197, %c4224] : memref<2x6400xf32, #tpu.memory_space<vmem>>, vector<1x128xf32>
    tpu.vector_store %arg21[%c0_197, %c4224], %221 {strides = array<i32>} : memref<2x6400xf32, #tpu.memory_space<vmem>>, vector<1x128xf32>,
    %c86 = arith.constant 86 : index
    %c0_198 = arith.constant 0 : index
    %223 = vector.load %arg20[%c86, %c0_198] : memref<338x64xf32, #tpu.memory_space<vmem>>, vector<1x64xf32>
    %c87 = arith.constant 87 : index
    %c0_199 = arith.constant 0 : index
    %224 = vector.load %arg20[%c87, %c0_199] : memref<338x64xf32, #tpu.memory_space<vmem>>, vector<1x64xf32>
    %225 = tpu.concatenate %223, %224 in 1 : vector<1x64xf32>, vector<1x64xf32> -> vector<1x128xf32>
    %c0_200 = arith.constant 0 : index
    %c4352 = arith.constant 4352 : index
    %226 = vector.load %arg21[%c0_200, %c4352] : memref<2x6400xf32, #tpu.memory_space<vmem>>, vector<1x128xf32>
    tpu.vector_store %arg21[%c0_200, %c4352], %225 {strides = array<i32>} : memref<2x6400xf32, #tpu.memory_space<vmem>>, vector<1x128xf32>,
    %c91 = arith.constant 91 : index
    %c0_201 = arith.constant 0 : index
    %227 = vector.load %arg20[%c91, %c0_201] : memref<338x64xf32, #tpu.memory_space<vmem>>, vector<1x64xf32>
    %c92 = arith.constant 92 : index
    %c0_202 = arith.constant 0 : index
    %228 = vector.load %arg20[%c92, %c0_202] : memref<338x64xf32, #tpu.memory_space<vmem>>, vector<1x64xf32>
    %229 = tpu.concatenate %227, %228 in 1 : vector<1x64xf32>, vector<1x64xf32> -> vector<1x128xf32>
    %c0_203 = arith.constant 0 : index
    %c4480 = arith.constant 4480 : index
    %230 = vector.load %arg21[%c0_203, %c4480] : memref<2x6400xf32, #tpu.memory_space<vmem>>, vector<1x128xf32>
    tpu.vector_store %arg21[%c0_203, %c4480], %229 {strides = array<i32>} : memref<2x6400xf32, #tpu.memory_space<vmem>>, vector<1x128xf32>,
    %c93 = arith.constant 93 : index
    %c0_204 = arith.constant 0 : index
    %231 = vector.load %arg20[%c93, %c0_204] : memref<338x64xf32, #tpu.memory_space<vmem>>, vector<1x64xf32>
    %c94 = arith.constant 94 : index
    %c0_205 = arith.constant 0 : index
    %232 = vector.load %arg20[%c94, %c0_205] : memref<338x64xf32, #tpu.memory_space<vmem>>, vector<1x64xf32>
    %233 = tpu.concatenate %231, %232 in 1 : vector<1x64xf32>, vector<1x64xf32> -> vector<1x128xf32>
    %c0_206 = arith.constant 0 : index
    %c4608 = arith.constant 4608 : index
    %234 = vector.load %arg21[%c0_206, %c4608] : memref<2x6400xf32, #tpu.memory_space<vmem>>, vector<1x128xf32>
    tpu.vector_store %arg21[%c0_206, %c4608], %233 {strides = array<i32>} : memref<2x6400xf32, #tpu.memory_space<vmem>>, vector<1x128xf32>,
    %c95 = arith.constant 95 : index
    %c0_207 = arith.constant 0 : index
    %235 = vector.load %arg20[%c95, %c0_207] : memref<338x64xf32, #tpu.memory_space<vmem>>, vector<1x64xf32>
    %c96 = arith.constant 96 : index
    %c0_208 = arith.constant 0 : index
    %236 = vector.load %arg20[%c96, %c0_208] : memref<338x64xf32, #tpu.memory_space<vmem>>, vector<1x64xf32>
    %237 = tpu.concatenate %235, %236 in 1 : vector<1x64xf32>, vector<1x64xf32> -> vector<1x128xf32>
    %c0_209 = arith.constant 0 : index
    %c4736 = arith.constant 4736 : index
    %238 = vector.load %arg21[%c0_209, %c4736] : memref<2x6400xf32, #tpu.memory_space<vmem>>, vector<1x128xf32>
    tpu.vector_store %arg21[%c0_209, %c4736], %237 {strides = array<i32>} : memref<2x6400xf32, #tpu.memory_space<vmem>>, vector<1x128xf32>,
    %c97 = arith.constant 97 : index
    %c0_210 = arith.constant 0 : index
    %239 = vector.load %arg20[%c97, %c0_210] : memref<338x64xf32, #tpu.memory_space<vmem>>, vector<1x64xf32>
    %c98 = arith.constant 98 : index
    %c0_211 = arith.constant 0 : index
    %240 = vector.load %arg20[%c98, %c0_211] : memref<338x64xf32, #tpu.memory_space<vmem>>, vector<1x64xf32>
    %241 = tpu.concatenate %239, %240 in 1 : vector<1x64xf32>, vector<1x64xf32> -> vector<1x128xf32>
    %c0_212 = arith.constant 0 : index
    %c4864 = arith.constant 4864 : index
    %242 = vector.load %arg21[%c0_212, %c4864] : memref<2x6400xf32, #tpu.memory_space<vmem>>, vector<1x128xf32>
    tpu.vector_store %arg21[%c0_212, %c4864], %241 {strides = array<i32>} : memref<2x6400xf32, #tpu.memory_space<vmem>>, vector<1x128xf32>,
    %c99 = arith.constant 99 : index
    %c0_213 = arith.constant 0 : index
    %243 = vector.load %arg20[%c99, %c0_213] : memref<338x64xf32, #tpu.memory_space<vmem>>, vector<1x64xf32>
    %c100 = arith.constant 100 : index
    %c0_214 = arith.constant 0 : index
    %244 = vector.load %arg20[%c100, %c0_214] : memref<338x64xf32, #tpu.memory_space<vmem>>, vector<1x64xf32>
    %245 = tpu.concatenate %243, %244 in 1 : vector<1x64xf32>, vector<1x64xf32> -> vector<1x128xf32>
    %c0_215 = arith.constant 0 : index
    %c4992 = arith.constant 4992 : index
    %246 = vector.load %arg21[%c0_215, %c4992] : memref<2x6400xf32, #tpu.memory_space<vmem>>, vector<1x128xf32>
    tpu.vector_store %arg21[%c0_215, %c4992], %245 {strides = array<i32>} : memref<2x6400xf32, #tpu.memory_space<vmem>>, vector<1x128xf32>,
    %c104 = arith.constant 104 : index
    %c0_216 = arith.constant 0 : index
    %247 = vector.load %arg20[%c104, %c0_216] : memref<338x64xf32, #tpu.memory_space<vmem>>, vector<1x64xf32>
    %c105 = arith.constant 105 : index
    %c0_217 = arith.constant 0 : index
    %248 = vector.load %arg20[%c105, %c0_217] : memref<338x64xf32, #tpu.memory_space<vmem>>, vector<1x64xf32>
    %249 = tpu.concatenate %247, %248 in 1 : vector<1x64xf32>, vector<1x64xf32> -> vector<1x128xf32>
    %c0_218 = arith.constant 0 : index
    %c5120 = arith.constant 5120 : index
    %250 = vector.load %arg21[%c0_218, %c5120] : memref<2x6400xf32, #tpu.memory_space<vmem>>, vector<1x128xf32>
    tpu.vector_store %arg21[%c0_218, %c5120], %249 {strides = array<i32>} : memref<2x6400xf32, #tpu.memory_space<vmem>>, vector<1x128xf32>,
    %c106 = arith.constant 106 : index
    %c0_219 = arith.constant 0 : index
    %251 = vector.load %arg20[%c106, %c0_219] : memref<338x64xf32, #tpu.memory_space<vmem>>, vector<1x64xf32>
    %c107 = arith.constant 107 : index
    %c0_220 = arith.constant 0 : index
    %252 = vector.load %arg20[%c107, %c0_220] : memref<338x64xf32, #tpu.memory_space<vmem>>, vector<1x64xf32>
    %253 = tpu.concatenate %251, %252 in 1 : vector<1x64xf32>, vector<1x64xf32> -> vector<1x128xf32>
    %c0_221 = arith.constant 0 : index
    %c5248 = arith.constant 5248 : index
    %254 = vector.load %arg21[%c0_221, %c5248] : memref<2x6400xf32, #tpu.memory_space<vmem>>, vector<1x128xf32>
    tpu.vector_store %arg21[%c0_221, %c5248], %253 {strides = array<i32>} : memref<2x6400xf32, #tpu.memory_space<vmem>>, vector<1x128xf32>,
    %c108 = arith.constant 108 : index
    %c0_222 = arith.constant 0 : index
    %255 = vector.load %arg20[%c108, %c0_222] : memref<338x64xf32, #tpu.memory_space<vmem>>, vector<1x64xf32>
    %c109 = arith.constant 109 : index
    %c0_223 = arith.constant 0 : index
    %256 = vector.load %arg20[%c109, %c0_223] : memref<338x64xf32, #tpu.memory_space<vmem>>, vector<1x64xf32>
    %257 = tpu.concatenate %255, %256 in 1 : vector<1x64xf32>, vector<1x64xf32> -> vector<1x128xf32>
    %c0_224 = arith.constant 0 : index
    %c5376 = arith.constant 5376 : index
    %258 = vector.load %arg21[%c0_224, %c5376] : memref<2x6400xf32, #tpu.memory_space<vmem>>, vector<1x128xf32>
    tpu.vector_store %arg21[%c0_224, %c5376], %257 {strides = array<i32>} : memref<2x6400xf32, #tpu.memory_space<vmem>>, vector<1x128xf32>,
    %c110 = arith.constant 110 : index
    %c0_225 = arith.constant 0 : index
    %259 = vector.load %arg20[%c110, %c0_225] : memref<338x64xf32, #tpu.memory_space<vmem>>, vector<1x64xf32>
    %c111 = arith.constant 111 : index
    %c0_226 = arith.constant 0 : index
    %260 = vector.load %arg20[%c111, %c0_226] : memref<338x64xf32, #tpu.memory_space<vmem>>, vector<1x64xf32>
    %261 = tpu.concatenate %259, %260 in 1 : vector<1x64xf32>, vector<1x64xf32> -> vector<1x128xf32>
    %c0_227 = arith.constant 0 : index
    %c5504 = arith.constant 5504 : index
    %262 = vector.load %arg21[%c0_227, %c5504] : memref<2x6400xf32, #tpu.memory_space<vmem>>, vector<1x128xf32>
    tpu.vector_store %arg21[%c0_227, %c5504], %261 {strides = array<i32>} : memref<2x6400xf32, #tpu.memory_space<vmem>>, vector<1x128xf32>,
    %c112 = arith.constant 112 : index
    %c0_228 = arith.constant 0 : index
    %263 = vector.load %arg20[%c112, %c0_228] : memref<338x64xf32, #tpu.memory_space<vmem>>, vector<1x64xf32>
    %c113 = arith.constant 113 : index
    %c0_229 = arith.constant 0 : index
    %264 = vector.load %arg20[%c113, %c0_229] : memref<338x64xf32, #tpu.memory_space<vmem>>, vector<1x64xf32>
    %265 = tpu.concatenate %263, %264 in 1 : vector<1x64xf32>, vector<1x64xf32> -> vector<1x128xf32>
    %c0_230 = arith.constant 0 : index
    %c5632 = arith.constant 5632 : index
    %266 = vector.load %arg21[%c0_230, %c5632] : memref<2x6400xf32, #tpu.memory_space<vmem>>, vector<1x128xf32>
    tpu.vector_store %arg21[%c0_230, %c5632], %265 {strides = array<i32>} : memref<2x6400xf32, #tpu.memory_space<vmem>>, vector<1x128xf32>,
    %c117 = arith.constant 117 : index
    %c0_231 = arith.constant 0 : index
    %267 = vector.load %arg20[%c117, %c0_231] : memref<338x64xf32, #tpu.memory_space<vmem>>, vector<1x64xf32>
    %c118 = arith.constant 118 : index
    %c0_232 = arith.constant 0 : index
    %268 = vector.load %arg20[%c118, %c0_232] : memref<338x64xf32, #tpu.memory_space<vmem>>, vector<1x64xf32>
    %269 = tpu.concatenate %267, %268 in 1 : vector<1x64xf32>, vector<1x64xf32> -> vector<1x128xf32>
    %c0_233 = arith.constant 0 : index
    %c5760 = arith.constant 5760 : index
    %270 = vector.load %arg21[%c0_233, %c5760] : memref<2x6400xf32, #tpu.memory_space<vmem>>, vector<1x128xf32>
    tpu.vector_store %arg21[%c0_233, %c5760], %269 {strides = array<i32>} : memref<2x6400xf32, #tpu.memory_space<vmem>>, vector<1x128xf32>,
    %c119 = arith.constant 119 : index
    %c0_234 = arith.constant 0 : index
    %271 = vector.load %arg20[%c119, %c0_234] : memref<338x64xf32, #tpu.memory_space<vmem>>, vector<1x64xf32>
    %c120 = arith.constant 120 : index
    %c0_235 = arith.constant 0 : index
    %272 = vector.load %arg20[%c120, %c0_235] : memref<338x64xf32, #tpu.memory_space<vmem>>, vector<1x64xf32>
    %273 = tpu.concatenate %271, %272 in 1 : vector<1x64xf32>, vector<1x64xf32> -> vector<1x128xf32>
    %c0_236 = arith.constant 0 : index
    %c5888 = arith.constant 5888 : index
    %274 = vector.load %arg21[%c0_236, %c5888] : memref<2x6400xf32, #tpu.memory_space<vmem>>, vector<1x128xf32>
    tpu.vector_store %arg21[%c0_236, %c5888], %273 {strides = array<i32>} : memref<2x6400xf32, #tpu.memory_space<vmem>>, vector<1x128xf32>,
    %c121 = arith.constant 121 : index
    %c0_237 = arith.constant 0 : index
    %275 = vector.load %arg20[%c121, %c0_237] : memref<338x64xf32, #tpu.memory_space<vmem>>, vector<1x64xf32>
    %c122 = arith.constant 122 : index
    %c0_238 = arith.constant 0 : index
    %276 = vector.load %arg20[%c122, %c0_238] : memref<338x64xf32, #tpu.memory_space<vmem>>, vector<1x64xf32>
    %277 = tpu.concatenate %275, %276 in 1 : vector<1x64xf32>, vector<1x64xf32> -> vector<1x128xf32>
    %c0_239 = arith.constant 0 : index
    %c6016 = arith.constant 6016 : index
    %278 = vector.load %arg21[%c0_239, %c6016] : memref<2x6400xf32, #tpu.memory_space<vmem>>, vector<1x128xf32>
    tpu.vector_store %arg21[%c0_239, %c6016], %277 {strides = array<i32>} : memref<2x6400xf32, #tpu.memory_space<vmem>>, vector<1x128xf32>,
    %c123 = arith.constant 123 : index
    %c0_240 = arith.constant 0 : index
    %279 = vector.load %arg20[%c123, %c0_240] : memref<338x64xf32, #tpu.memory_space<vmem>>, vector<1x64xf32>
    %c124 = arith.constant 124 : index
    %c0_241 = arith.constant 0 : index
    %280 = vector.load %arg20[%c124, %c0_241] : memref<338x64xf32, #tpu.memory_space<vmem>>, vector<1x64xf32>
    %281 = tpu.concatenate %279, %280 in 1 : vector<1x64xf32>, vector<1x64xf32> -> vector<1x128xf32>
    %c0_242 = arith.constant 0 : index
    %c6144 = arith.constant 6144 : index
    %282 = vector.load %arg21[%c0_242, %c6144] : memref<2x6400xf32, #tpu.memory_space<vmem>>, vector<1x128xf32>
    tpu.vector_store %arg21[%c0_242, %c6144], %281 {strides = array<i32>} : memref<2x6400xf32, #tpu.memory_space<vmem>>, vector<1x128xf32>,
    %c125 = arith.constant 125 : index
    %c0_243 = arith.constant 0 : index
    %283 = vector.load %arg20[%c125, %c0_243] : memref<338x64xf32, #tpu.memory_space<vmem>>, vector<1x64xf32>
    %c126 = arith.constant 126 : index
    %c0_244 = arith.constant 0 : index
    %284 = vector.load %arg20[%c126, %c0_244] : memref<338x64xf32, #tpu.memory_space<vmem>>, vector<1x64xf32>
    %285 = tpu.concatenate %283, %284 in 1 : vector<1x64xf32>, vector<1x64xf32> -> vector<1x128xf32>
    %c0_245 = arith.constant 0 : index
    %c6272 = arith.constant 6272 : index
    %286 = vector.load %arg21[%c0_245, %c6272] : memref<2x6400xf32, #tpu.memory_space<vmem>>, vector<1x128xf32>
    tpu.vector_store %arg21[%c0_245, %c6272], %285 {strides = array<i32>} : memref<2x6400xf32, #tpu.memory_space<vmem>>, vector<1x128xf32>,
    %c169 = arith.constant 169 : index
    %c0_246 = arith.constant 0 : index
    %287 = vector.load %arg20[%c169, %c0_246] : memref<338x64xf32, #tpu.memory_space<vmem>>, vector<1x64xf32>
    %c170 = arith.constant 170 : index
    %c0_247 = arith.constant 0 : index
    %288 = vector.load %arg20[%c170, %c0_247] : memref<338x64xf32, #tpu.memory_space<vmem>>, vector<1x64xf32>
    %289 = tpu.concatenate %287, %288 in 1 : vector<1x64xf32>, vector<1x64xf32> -> vector<1x128xf32>
    %c1_248 = arith.constant 1 : index
    %c0_249 = arith.constant 0 : index
    %290 = vector.load %arg21[%c1_248, %c0_249] : memref<2x6400xf32, #tpu.memory_space<vmem>>, vector<1x128xf32>
    tpu.vector_store %arg21[%c1_248, %c0_249], %289 {strides = array<i32>} : memref<2x6400xf32, #tpu.memory_space<vmem>>, vector<1x128xf32>,
    %c171 = arith.constant 171 : index
    %c0_250 = arith.constant 0 : index
    %291 = vector.load %arg20[%c171, %c0_250] : memref<338x64xf32, #tpu.memory_space<vmem>>, vector<1x64xf32>
    %c172 = arith.constant 172 : index
    %c0_251 = arith.constant 0 : index
    %292 = vector.load %arg20[%c172, %c0_251] : memref<338x64xf32, #tpu.memory_space<vmem>>, vector<1x64xf32>
    %293 = tpu.concatenate %291, %292 in 1 : vector<1x64xf32>, vector<1x64xf32> -> vector<1x128xf32>
    %c1_252 = arith.constant 1 : index
    %c128_253 = arith.constant 128 : index
    %294 = vector.load %arg21[%c1_252, %c128_253] : memref<2x6400xf32, #tpu.memory_space<vmem>>, vector<1x128xf32>
    tpu.vector_store %arg21[%c1_252, %c128_253], %293 {strides = array<i32>} : memref<2x6400xf32, #tpu.memory_space<vmem>>, vector<1x128xf32>,
    %c173 = arith.constant 173 : index
    %c0_254 = arith.constant 0 : index
    %295 = vector.load %arg20[%c173, %c0_254] : memref<338x64xf32, #tpu.memory_space<vmem>>, vector<1x64xf32>
    %c174 = arith.constant 174 : index
    %c0_255 = arith.constant 0 : index
    %296 = vector.load %arg20[%c174, %c0_255] : memref<338x64xf32, #tpu.memory_space<vmem>>, vector<1x64xf32>
    %297 = tpu.concatenate %295, %296 in 1 : vector<1x64xf32>, vector<1x64xf32> -> vector<1x128xf32>
    %c1_256 = arith.constant 1 : index
    %c256_257 = arith.constant 256 : index
    %298 = vector.load %arg21[%c1_256, %c256_257] : memref<2x6400xf32, #tpu.memory_space<vmem>>, vector<1x128xf32>
    tpu.vector_store %arg21[%c1_256, %c256_257], %297 {strides = array<i32>} : memref<2x6400xf32, #tpu.memory_space<vmem>>, vector<1x128xf32>,
    %c175 = arith.constant 175 : index
    %c0_258 = arith.constant 0 : index
    %299 = vector.load %arg20[%c175, %c0_258] : memref<338x64xf32, #tpu.memory_space<vmem>>, vector<1x64xf32>
    %c176 = arith.constant 176 : index
    %c0_259 = arith.constant 0 : index
    %300 = vector.load %arg20[%c176, %c0_259] : memref<338x64xf32, #tpu.memory_space<vmem>>, vector<1x64xf32>
    %301 = tpu.concatenate %299, %300 in 1 : vector<1x64xf32>, vector<1x64xf32> -> vector<1x128xf32>
    %c1_260 = arith.constant 1 : index
    %c384_261 = arith.constant 384 : index
    %302 = vector.load %arg21[%c1_260, %c384_261] : memref<2x6400xf32, #tpu.memory_space<vmem>>, vector<1x128xf32>
    tpu.vector_store %arg21[%c1_260, %c384_261], %301 {strides = array<i32>} : memref<2x6400xf32, #tpu.memory_space<vmem>>, vector<1x128xf32>,
    %c177 = arith.constant 177 : index
    %c0_262 = arith.constant 0 : index
    %303 = vector.load %arg20[%c177, %c0_262] : memref<338x64xf32, #tpu.memory_space<vmem>>, vector<1x64xf32>
    %c178 = arith.constant 178 : index
    %c0_263 = arith.constant 0 : index
    %304 = vector.load %arg20[%c178, %c0_263] : memref<338x64xf32, #tpu.memory_space<vmem>>, vector<1x64xf32>
    %305 = tpu.concatenate %303, %304 in 1 : vector<1x64xf32>, vector<1x64xf32> -> vector<1x128xf32>
    %c1_264 = arith.constant 1 : index
    %c512_265 = arith.constant 512 : index
    %306 = vector.load %arg21[%c1_264, %c512_265] : memref<2x6400xf32, #tpu.memory_space<vmem>>, vector<1x128xf32>
    tpu.vector_store %arg21[%c1_264, %c512_265], %305 {strides = array<i32>} : memref<2x6400xf32, #tpu.memory_space<vmem>>, vector<1x128xf32>,
    %c182 = arith.constant 182 : index
    %c0_266 = arith.constant 0 : index
    %307 = vector.load %arg20[%c182, %c0_266] : memref<338x64xf32, #tpu.memory_space<vmem>>, vector<1x64xf32>
    %c183 = arith.constant 183 : index
    %c0_267 = arith.constant 0 : index
    %308 = vector.load %arg20[%c183, %c0_267] : memref<338x64xf32, #tpu.memory_space<vmem>>, vector<1x64xf32>
    %309 = tpu.concatenate %307, %308 in 1 : vector<1x64xf32>, vector<1x64xf32> -> vector<1x128xf32>
    %c1_268 = arith.constant 1 : index
    %c640_269 = arith.constant 640 : index
    %310 = vector.load %arg21[%c1_268, %c640_269] : memref<2x6400xf32, #tpu.memory_space<vmem>>, vector<1x128xf32>
    tpu.vector_store %arg21[%c1_268, %c640_269], %309 {strides = array<i32>} : memref<2x6400xf32, #tpu.memory_space<vmem>>, vector<1x128xf32>,
    %c184 = arith.constant 184 : index
    %c0_270 = arith.constant 0 : index
    %311 = vector.load %arg20[%c184, %c0_270] : memref<338x64xf32, #tpu.memory_space<vmem>>, vector<1x64xf32>
    %c185 = arith.constant 185 : index
    %c0_271 = arith.constant 0 : index
    %312 = vector.load %arg20[%c185, %c0_271] : memref<338x64xf32, #tpu.memory_space<vmem>>, vector<1x64xf32>
    %313 = tpu.concatenate %311, %312 in 1 : vector<1x64xf32>, vector<1x64xf32> -> vector<1x128xf32>
    %c1_272 = arith.constant 1 : index
    %c768_273 = arith.constant 768 : index
    %314 = vector.load %arg21[%c1_272, %c768_273] : memref<2x6400xf32, #tpu.memory_space<vmem>>, vector<1x128xf32>
    tpu.vector_store %arg21[%c1_272, %c768_273], %313 {strides = array<i32>} : memref<2x6400xf32, #tpu.memory_space<vmem>>, vector<1x128xf32>,
    %c186 = arith.constant 186 : index
    %c0_274 = arith.constant 0 : index
    %315 = vector.load %arg20[%c186, %c0_274] : memref<338x64xf32, #tpu.memory_space<vmem>>, vector<1x64xf32>
    %c187 = arith.constant 187 : index
    %c0_275 = arith.constant 0 : index
    %316 = vector.load %arg20[%c187, %c0_275] : memref<338x64xf32, #tpu.memory_space<vmem>>, vector<1x64xf32>
    %317 = tpu.concatenate %315, %316 in 1 : vector<1x64xf32>, vector<1x64xf32> -> vector<1x128xf32>
    %c1_276 = arith.constant 1 : index
    %c896_277 = arith.constant 896 : index
    %318 = vector.load %arg21[%c1_276, %c896_277] : memref<2x6400xf32, #tpu.memory_space<vmem>>, vector<1x128xf32>
    tpu.vector_store %arg21[%c1_276, %c896_277], %317 {strides = array<i32>} : memref<2x6400xf32, #tpu.memory_space<vmem>>, vector<1x128xf32>,
    %c188 = arith.constant 188 : index
    %c0_278 = arith.constant 0 : index
    %319 = vector.load %arg20[%c188, %c0_278] : memref<338x64xf32, #tpu.memory_space<vmem>>, vector<1x64xf32>
    %c189 = arith.constant 189 : index
    %c0_279 = arith.constant 0 : index
    %320 = vector.load %arg20[%c189, %c0_279] : memref<338x64xf32, #tpu.memory_space<vmem>>, vector<1x64xf32>
    %321 = tpu.concatenate %319, %320 in 1 : vector<1x64xf32>, vector<1x64xf32> -> vector<1x128xf32>
    %c1_280 = arith.constant 1 : index
    %c1024_281 = arith.constant 1024 : index
    %322 = vector.load %arg21[%c1_280, %c1024_281] : memref<2x6400xf32, #tpu.memory_space<vmem>>, vector<1x128xf32>
    tpu.vector_store %arg21[%c1_280, %c1024_281], %321 {strides = array<i32>} : memref<2x6400xf32, #tpu.memory_space<vmem>>, vector<1x128xf32>,
    %c190 = arith.constant 190 : index
    %c0_282 = arith.constant 0 : index
    %323 = vector.load %arg20[%c190, %c0_282] : memref<338x64xf32, #tpu.memory_space<vmem>>, vector<1x64xf32>
    %c191 = arith.constant 191 : index
    %c0_283 = arith.constant 0 : index
    %324 = vector.load %arg20[%c191, %c0_283] : memref<338x64xf32, #tpu.memory_space<vmem>>, vector<1x64xf32>
    %325 = tpu.concatenate %323, %324 in 1 : vector<1x64xf32>, vector<1x64xf32> -> vector<1x128xf32>
    %c1_284 = arith.constant 1 : index
    %c1152_285 = arith.constant 1152 : index
    %326 = vector.load %arg21[%c1_284, %c1152_285] : memref<2x6400xf32, #tpu.memory_space<vmem>>, vector<1x128xf32>
    tpu.vector_store %arg21[%c1_284, %c1152_285], %325 {strides = array<i32>} : memref<2x6400xf32, #tpu.memory_space<vmem>>, vector<1x128xf32>,
    %c195 = arith.constant 195 : index
    %c0_286 = arith.constant 0 : index
    %327 = vector.load %arg20[%c195, %c0_286] : memref<338x64xf32, #tpu.memory_space<vmem>>, vector<1x64xf32>
    %c196 = arith.constant 196 : index
    %c0_287 = arith.constant 0 : index
    %328 = vector.load %arg20[%c196, %c0_287] : memref<338x64xf32, #tpu.memory_space<vmem>>, vector<1x64xf32>
    %329 = tpu.concatenate %327, %328 in 1 : vector<1x64xf32>, vector<1x64xf32> -> vector<1x128xf32>
    %c1_288 = arith.constant 1 : index
    %c1280_289 = arith.constant 1280 : index
    %330 = vector.load %arg21[%c1_288, %c1280_289] : memref<2x6400xf32, #tpu.memory_space<vmem>>, vector<1x128xf32>
    tpu.vector_store %arg21[%c1_288, %c1280_289], %329 {strides = array<i32>} : memref<2x6400xf32, #tpu.memory_space<vmem>>, vector<1x128xf32>,
    %c197 = arith.constant 197 : index
    %c0_290 = arith.constant 0 : index
    %331 = vector.load %arg20[%c197, %c0_290] : memref<338x64xf32, #tpu.memory_space<vmem>>, vector<1x64xf32>
    %c198 = arith.constant 198 : index
    %c0_291 = arith.constant 0 : index
    %332 = vector.load %arg20[%c198, %c0_291] : memref<338x64xf32, #tpu.memory_space<vmem>>, vector<1x64xf32>
    %333 = tpu.concatenate %331, %332 in 1 : vector<1x64xf32>, vector<1x64xf32> -> vector<1x128xf32>
    %c1_292 = arith.constant 1 : index
    %c1408_293 = arith.constant 1408 : index
    %334 = vector.load %arg21[%c1_292, %c1408_293] : memref<2x6400xf32, #tpu.memory_space<vmem>>, vector<1x128xf32>
    tpu.vector_store %arg21[%c1_292, %c1408_293], %333 {strides = array<i32>} : memref<2x6400xf32, #tpu.memory_space<vmem>>, vector<1x128xf32>,
    %c199 = arith.constant 199 : index
    %c0_294 = arith.constant 0 : index
    %335 = vector.load %arg20[%c199, %c0_294] : memref<338x64xf32, #tpu.memory_space<vmem>>, vector<1x64xf32>
    %c200 = arith.constant 200 : index
    %c0_295 = arith.constant 0 : index
    %336 = vector.load %arg20[%c200, %c0_295] : memref<338x64xf32, #tpu.memory_space<vmem>>, vector<1x64xf32>
    %337 = tpu.concatenate %335, %336 in 1 : vector<1x64xf32>, vector<1x64xf32> -> vector<1x128xf32>
    %c1_296 = arith.constant 1 : index
    %c1536_297 = arith.constant 1536 : index
    %338 = vector.load %arg21[%c1_296, %c1536_297] : memref<2x6400xf32, #tpu.memory_space<vmem>>, vector<1x128xf32>
    tpu.vector_store %arg21[%c1_296, %c1536_297], %337 {strides = array<i32>} : memref<2x6400xf32, #tpu.memory_space<vmem>>, vector<1x128xf32>,
    %c201 = arith.constant 201 : index
    %c0_298 = arith.constant 0 : index
    %339 = vector.load %arg20[%c201, %c0_298] : memref<338x64xf32, #tpu.memory_space<vmem>>, vector<1x64xf32>
    %c202 = arith.constant 202 : index
    %c0_299 = arith.constant 0 : index
    %340 = vector.load %arg20[%c202, %c0_299] : memref<338x64xf32, #tpu.memory_space<vmem>>, vector<1x64xf32>
    %341 = tpu.concatenate %339, %340 in 1 : vector<1x64xf32>, vector<1x64xf32> -> vector<1x128xf32>
    %c1_300 = arith.constant 1 : index
    %c1664_301 = arith.constant 1664 : index
    %342 = vector.load %arg21[%c1_300, %c1664_301] : memref<2x6400xf32, #tpu.memory_space<vmem>>, vector<1x128xf32>
    tpu.vector_store %arg21[%c1_300, %c1664_301], %341 {strides = array<i32>} : memref<2x6400xf32, #tpu.memory_space<vmem>>, vector<1x128xf32>,
    %c203 = arith.constant 203 : index
    %c0_302 = arith.constant 0 : index
    %343 = vector.load %arg20[%c203, %c0_302] : memref<338x64xf32, #tpu.memory_space<vmem>>, vector<1x64xf32>
    %c204 = arith.constant 204 : index
    %c0_303 = arith.constant 0 : index
    %344 = vector.load %arg20[%c204, %c0_303] : memref<338x64xf32, #tpu.memory_space<vmem>>, vector<1x64xf32>
    %345 = tpu.concatenate %343, %344 in 1 : vector<1x64xf32>, vector<1x64xf32> -> vector<1x128xf32>
    %c1_304 = arith.constant 1 : index
    %c1792_305 = arith.constant 1792 : index
    %346 = vector.load %arg21[%c1_304, %c1792_305] : memref<2x6400xf32, #tpu.memory_space<vmem>>, vector<1x128xf32>
    tpu.vector_store %arg21[%c1_304, %c1792_305], %345 {strides = array<i32>} : memref<2x6400xf32, #tpu.memory_space<vmem>>, vector<1x128xf32>,
    %c208 = arith.constant 208 : index
    %c0_306 = arith.constant 0 : index
    %347 = vector.load %arg20[%c208, %c0_306] : memref<338x64xf32, #tpu.memory_space<vmem>>, vector<1x64xf32>
    %c209 = arith.constant 209 : index
    %c0_307 = arith.constant 0 : index
    %348 = vector.load %arg20[%c209, %c0_307] : memref<338x64xf32, #tpu.memory_space<vmem>>, vector<1x64xf32>
    %349 = tpu.concatenate %347, %348 in 1 : vector<1x64xf32>, vector<1x64xf32> -> vector<1x128xf32>
    %c1_308 = arith.constant 1 : index
    %c1920_309 = arith.constant 1920 : index
    %350 = vector.load %arg21[%c1_308, %c1920_309] : memref<2x6400xf32, #tpu.memory_space<vmem>>, vector<1x128xf32>
    tpu.vector_store %arg21[%c1_308, %c1920_309], %349 {strides = array<i32>} : memref<2x6400xf32, #tpu.memory_space<vmem>>, vector<1x128xf32>,
    %c210 = arith.constant 210 : index
    %c0_310 = arith.constant 0 : index
    %351 = vector.load %arg20[%c210, %c0_310] : memref<338x64xf32, #tpu.memory_space<vmem>>, vector<1x64xf32>
    %c211 = arith.constant 211 : index
    %c0_311 = arith.constant 0 : index
    %352 = vector.load %arg20[%c211, %c0_311] : memref<338x64xf32, #tpu.memory_space<vmem>>, vector<1x64xf32>
    %353 = tpu.concatenate %351, %352 in 1 : vector<1x64xf32>, vector<1x64xf32> -> vector<1x128xf32>
    %c1_312 = arith.constant 1 : index
    %c2048_313 = arith.constant 2048 : index
    %354 = vector.load %arg21[%c1_312, %c2048_313] : memref<2x6400xf32, #tpu.memory_space<vmem>>, vector<1x128xf32>
    tpu.vector_store %arg21[%c1_312, %c2048_313], %353 {strides = array<i32>} : memref<2x6400xf32, #tpu.memory_space<vmem>>, vector<1x128xf32>,
    %c212 = arith.constant 212 : index
    %c0_314 = arith.constant 0 : index
    %355 = vector.load %arg20[%c212, %c0_314] : memref<338x64xf32, #tpu.memory_space<vmem>>, vector<1x64xf32>
    %c213 = arith.constant 213 : index
    %c0_315 = arith.constant 0 : index
    %356 = vector.load %arg20[%c213, %c0_315] : memref<338x64xf32, #tpu.memory_space<vmem>>, vector<1x64xf32>
    %357 = tpu.concatenate %355, %356 in 1 : vector<1x64xf32>, vector<1x64xf32> -> vector<1x128xf32>
    %c1_316 = arith.constant 1 : index
    %c2176_317 = arith.constant 2176 : index
    %358 = vector.load %arg21[%c1_316, %c2176_317] : memref<2x6400xf32, #tpu.memory_space<vmem>>, vector<1x128xf32>
    tpu.vector_store %arg21[%c1_316, %c2176_317], %357 {strides = array<i32>} : memref<2x6400xf32, #tpu.memory_space<vmem>>, vector<1x128xf32>,
    %c214 = arith.constant 214 : index
    %c0_318 = arith.constant 0 : index
    %359 = vector.load %arg20[%c214, %c0_318] : memref<338x64xf32, #tpu.memory_space<vmem>>, vector<1x64xf32>
    %c215 = arith.constant 215 : index
    %c0_319 = arith.constant 0 : index
    %360 = vector.load %arg20[%c215, %c0_319] : memref<338x64xf32, #tpu.memory_space<vmem>>, vector<1x64xf32>
    %361 = tpu.concatenate %359, %360 in 1 : vector<1x64xf32>, vector<1x64xf32> -> vector<1x128xf32>
    %c1_320 = arith.constant 1 : index
    %c2304_321 = arith.constant 2304 : index
    %362 = vector.load %arg21[%c1_320, %c2304_321] : memref<2x6400xf32, #tpu.memory_space<vmem>>, vector<1x128xf32>
    tpu.vector_store %arg21[%c1_320, %c2304_321], %361 {strides = array<i32>} : memref<2x6400xf32, #tpu.memory_space<vmem>>, vector<1x128xf32>,
    %c216 = arith.constant 216 : index
    %c0_322 = arith.constant 0 : index
    %363 = vector.load %arg20[%c216, %c0_322] : memref<338x64xf32, #tpu.memory_space<vmem>>, vector<1x64xf32>
    %c217 = arith.constant 217 : index
    %c0_323 = arith.constant 0 : index
    %364 = vector.load %arg20[%c217, %c0_323] : memref<338x64xf32, #tpu.memory_space<vmem>>, vector<1x64xf32>
    %365 = tpu.concatenate %363, %364 in 1 : vector<1x64xf32>, vector<1x64xf32> -> vector<1x128xf32>
    %c1_324 = arith.constant 1 : index
    %c2432_325 = arith.constant 2432 : index
    %366 = vector.load %arg21[%c1_324, %c2432_325] : memref<2x6400xf32, #tpu.memory_space<vmem>>, vector<1x128xf32>
    tpu.vector_store %arg21[%c1_324, %c2432_325], %365 {strides = array<i32>} : memref<2x6400xf32, #tpu.memory_space<vmem>>, vector<1x128xf32>,
    %c221 = arith.constant 221 : index
    %c0_326 = arith.constant 0 : index
    %367 = vector.load %arg20[%c221, %c0_326] : memref<338x64xf32, #tpu.memory_space<vmem>>, vector<1x64xf32>
    %c222 = arith.constant 222 : index
    %c0_327 = arith.constant 0 : index
    %368 = vector.load %arg20[%c222, %c0_327] : memref<338x64xf32, #tpu.memory_space<vmem>>, vector<1x64xf32>
    %369 = tpu.concatenate %367, %368 in 1 : vector<1x64xf32>, vector<1x64xf32> -> vector<1x128xf32>
    %c1_328 = arith.constant 1 : index
    %c2560_329 = arith.constant 2560 : index
    %370 = vector.load %arg21[%c1_328, %c2560_329] : memref<2x6400xf32, #tpu.memory_space<vmem>>, vector<1x128xf32>
    tpu.vector_store %arg21[%c1_328, %c2560_329], %369 {strides = array<i32>} : memref<2x6400xf32, #tpu.memory_space<vmem>>, vector<1x128xf32>,
    %c223 = arith.constant 223 : index
    %c0_330 = arith.constant 0 : index
    %371 = vector.load %arg20[%c223, %c0_330] : memref<338x64xf32, #tpu.memory_space<vmem>>, vector<1x64xf32>
    %c224 = arith.constant 224 : index
    %c0_331 = arith.constant 0 : index
    %372 = vector.load %arg20[%c224, %c0_331] : memref<338x64xf32, #tpu.memory_space<vmem>>, vector<1x64xf32>
    %373 = tpu.concatenate %371, %372 in 1 : vector<1x64xf32>, vector<1x64xf32> -> vector<1x128xf32>
    %c1_332 = arith.constant 1 : index
    %c2688_333 = arith.constant 2688 : index
    %374 = vector.load %arg21[%c1_332, %c2688_333] : memref<2x6400xf32, #tpu.memory_space<vmem>>, vector<1x128xf32>
    tpu.vector_store %arg21[%c1_332, %c2688_333], %373 {strides = array<i32>} : memref<2x6400xf32, #tpu.memory_space<vmem>>, vector<1x128xf32>,
    %c225 = arith.constant 225 : index
    %c0_334 = arith.constant 0 : index
    %375 = vector.load %arg20[%c225, %c0_334] : memref<338x64xf32, #tpu.memory_space<vmem>>, vector<1x64xf32>
    %c226 = arith.constant 226 : index
    %c0_335 = arith.constant 0 : index
    %376 = vector.load %arg20[%c226, %c0_335] : memref<338x64xf32, #tpu.memory_space<vmem>>, vector<1x64xf32>
    %377 = tpu.concatenate %375, %376 in 1 : vector<1x64xf32>, vector<1x64xf32> -> vector<1x128xf32>
    %c1_336 = arith.constant 1 : index
    %c2816_337 = arith.constant 2816 : index
    %378 = vector.load %arg21[%c1_336, %c2816_337] : memref<2x6400xf32, #tpu.memory_space<vmem>>, vector<1x128xf32>
    tpu.vector_store %arg21[%c1_336, %c2816_337], %377 {strides = array<i32>} : memref<2x6400xf32, #tpu.memory_space<vmem>>, vector<1x128xf32>,
    %c227 = arith.constant 227 : index
    %c0_338 = arith.constant 0 : index
    %379 = vector.load %arg20[%c227, %c0_338] : memref<338x64xf32, #tpu.memory_space<vmem>>, vector<1x64xf32>
    %c228 = arith.constant 228 : index
    %c0_339 = arith.constant 0 : index
    %380 = vector.load %arg20[%c228, %c0_339] : memref<338x64xf32, #tpu.memory_space<vmem>>, vector<1x64xf32>
    %381 = tpu.concatenate %379, %380 in 1 : vector<1x64xf32>, vector<1x64xf32> -> vector<1x128xf32>
    %c1_340 = arith.constant 1 : index
    %c2944_341 = arith.constant 2944 : index
    %382 = vector.load %arg21[%c1_340, %c2944_341] : memref<2x6400xf32, #tpu.memory_space<vmem>>, vector<1x128xf32>
    tpu.vector_store %arg21[%c1_340, %c2944_341], %381 {strides = array<i32>} : memref<2x6400xf32, #tpu.memory_space<vmem>>, vector<1x128xf32>,
    %c229 = arith.constant 229 : index
    %c0_342 = arith.constant 0 : index
    %383 = vector.load %arg20[%c229, %c0_342] : memref<338x64xf32, #tpu.memory_space<vmem>>, vector<1x64xf32>
    %c230 = arith.constant 230 : index
    %c0_343 = arith.constant 0 : index
    %384 = vector.load %arg20[%c230, %c0_343] : memref<338x64xf32, #tpu.memory_space<vmem>>, vector<1x64xf32>
    %385 = tpu.concatenate %383, %384 in 1 : vector<1x64xf32>, vector<1x64xf32> -> vector<1x128xf32>
    %c1_344 = arith.constant 1 : index
    %c3072_345 = arith.constant 3072 : index
    %386 = vector.load %arg21[%c1_344, %c3072_345] : memref<2x6400xf32, #tpu.memory_space<vmem>>, vector<1x128xf32>
    tpu.vector_store %arg21[%c1_344, %c3072_345], %385 {strides = array<i32>} : memref<2x6400xf32, #tpu.memory_space<vmem>>, vector<1x128xf32>,
    %c234 = arith.constant 234 : index
    %c0_346 = arith.constant 0 : index
    %387 = vector.load %arg20[%c234, %c0_346] : memref<338x64xf32, #tpu.memory_space<vmem>>, vector<1x64xf32>
    %c235 = arith.constant 235 : index
    %c0_347 = arith.constant 0 : index
    %388 = vector.load %arg20[%c235, %c0_347] : memref<338x64xf32, #tpu.memory_space<vmem>>, vector<1x64xf32>
    %389 = tpu.concatenate %387, %388 in 1 : vector<1x64xf32>, vector<1x64xf32> -> vector<1x128xf32>
    %c1_348 = arith.constant 1 : index
    %c3200_349 = arith.constant 3200 : index
    %390 = vector.load %arg21[%c1_348, %c3200_349] : memref<2x6400xf32, #tpu.memory_space<vmem>>, vector<1x128xf32>
    tpu.vector_store %arg21[%c1_348, %c3200_349], %389 {strides = array<i32>} : memref<2x6400xf32, #tpu.memory_space<vmem>>, vector<1x128xf32>,
    %c236 = arith.constant 236 : index
    %c0_350 = arith.constant 0 : index
    %391 = vector.load %arg20[%c236, %c0_350] : memref<338x64xf32, #tpu.memory_space<vmem>>, vector<1x64xf32>
    %c237 = arith.constant 237 : index
    %c0_351 = arith.constant 0 : index
    %392 = vector.load %arg20[%c237, %c0_351] : memref<338x64xf32, #tpu.memory_space<vmem>>, vector<1x64xf32>
    %393 = tpu.concatenate %391, %392 in 1 : vector<1x64xf32>, vector<1x64xf32> -> vector<1x128xf32>
    %c1_352 = arith.constant 1 : index
    %c3328_353 = arith.constant 3328 : index
    %394 = vector.load %arg21[%c1_352, %c3328_353] : memref<2x6400xf32, #tpu.memory_space<vmem>>, vector<1x128xf32>
    tpu.vector_store %arg21[%c1_352, %c3328_353], %393 {strides = array<i32>} : memref<2x6400xf32, #tpu.memory_space<vmem>>, vector<1x128xf32>,
    %c238 = arith.constant 238 : index
    %c0_354 = arith.constant 0 : index
    %395 = vector.load %arg20[%c238, %c0_354] : memref<338x64xf32, #tpu.memory_space<vmem>>, vector<1x64xf32>
    %c239 = arith.constant 239 : index
    %c0_355 = arith.constant 0 : index
    %396 = vector.load %arg20[%c239, %c0_355] : memref<338x64xf32, #tpu.memory_space<vmem>>, vector<1x64xf32>
    %397 = tpu.concatenate %395, %396 in 1 : vector<1x64xf32>, vector<1x64xf32> -> vector<1x128xf32>
    %c1_356 = arith.constant 1 : index
    %c3456_357 = arith.constant 3456 : index
    %398 = vector.load %arg21[%c1_356, %c3456_357] : memref<2x6400xf32, #tpu.memory_space<vmem>>, vector<1x128xf32>
    tpu.vector_store %arg21[%c1_356, %c3456_357], %397 {strides = array<i32>} : memref<2x6400xf32, #tpu.memory_space<vmem>>, vector<1x128xf32>,
    %c240 = arith.constant 240 : index
    %c0_358 = arith.constant 0 : index
    %399 = vector.load %arg20[%c240, %c0_358] : memref<338x64xf32, #tpu.memory_space<vmem>>, vector<1x64xf32>
    %c241 = arith.constant 241 : index
    %c0_359 = arith.constant 0 : index
    %400 = vector.load %arg20[%c241, %c0_359] : memref<338x64xf32, #tpu.memory_space<vmem>>, vector<1x64xf32>
    %401 = tpu.concatenate %399, %400 in 1 : vector<1x64xf32>, vector<1x64xf32> -> vector<1x128xf32>
    %c1_360 = arith.constant 1 : index
    %c3584_361 = arith.constant 3584 : index
    %402 = vector.load %arg21[%c1_360, %c3584_361] : memref<2x6400xf32, #tpu.memory_space<vmem>>, vector<1x128xf32>
    tpu.vector_store %arg21[%c1_360, %c3584_361], %401 {strides = array<i32>} : memref<2x6400xf32, #tpu.memory_space<vmem>>, vector<1x128xf32>,
    %c242 = arith.constant 242 : index
    %c0_362 = arith.constant 0 : index
    %403 = vector.load %arg20[%c242, %c0_362] : memref<338x64xf32, #tpu.memory_space<vmem>>, vector<1x64xf32>
    %c243 = arith.constant 243 : index
    %c0_363 = arith.constant 0 : index
    %404 = vector.load %arg20[%c243, %c0_363] : memref<338x64xf32, #tpu.memory_space<vmem>>, vector<1x64xf32>
    %405 = tpu.concatenate %403, %404 in 1 : vector<1x64xf32>, vector<1x64xf32> -> vector<1x128xf32>
    %c1_364 = arith.constant 1 : index
    %c3712_365 = arith.constant 3712 : index
    %406 = vector.load %arg21[%c1_364, %c3712_365] : memref<2x6400xf32, #tpu.memory_space<vmem>>, vector<1x128xf32>
    tpu.vector_store %arg21[%c1_364, %c3712_365], %405 {strides = array<i32>} : memref<2x6400xf32, #tpu.memory_space<vmem>>, vector<1x128xf32>,
    %c247 = arith.constant 247 : index
    %c0_366 = arith.constant 0 : index
    %407 = vector.load %arg20[%c247, %c0_366] : memref<338x64xf32, #tpu.memory_space<vmem>>, vector<1x64xf32>
    %c248 = arith.constant 248 : index
    %c0_367 = arith.constant 0 : index
    %408 = vector.load %arg20[%c248, %c0_367] : memref<338x64xf32, #tpu.memory_space<vmem>>, vector<1x64xf32>
    %409 = tpu.concatenate %407, %408 in 1 : vector<1x64xf32>, vector<1x64xf32> -> vector<1x128xf32>
    %c1_368 = arith.constant 1 : index
    %c3840_369 = arith.constant 3840 : index
    %410 = vector.load %arg21[%c1_368, %c3840_369] : memref<2x6400xf32, #tpu.memory_space<vmem>>, vector<1x128xf32>
    tpu.vector_store %arg21[%c1_368, %c3840_369], %409 {strides = array<i32>} : memref<2x6400xf32, #tpu.memory_space<vmem>>, vector<1x128xf32>,
    %c249 = arith.constant 249 : index
    %c0_370 = arith.constant 0 : index
    %411 = vector.load %arg20[%c249, %c0_370] : memref<338x64xf32, #tpu.memory_space<vmem>>, vector<1x64xf32>
    %c250 = arith.constant 250 : index
    %c0_371 = arith.constant 0 : index
    %412 = vector.load %arg20[%c250, %c0_371] : memref<338x64xf32, #tpu.memory_space<vmem>>, vector<1x64xf32>
    %413 = tpu.concatenate %411, %412 in 1 : vector<1x64xf32>, vector<1x64xf32> -> vector<1x128xf32>
    %c1_372 = arith.constant 1 : index
    %c3968_373 = arith.constant 3968 : index
    %414 = vector.load %arg21[%c1_372, %c3968_373] : memref<2x6400xf32, #tpu.memory_space<vmem>>, vector<1x128xf32>
    tpu.vector_store %arg21[%c1_372, %c3968_373], %413 {strides = array<i32>} : memref<2x6400xf32, #tpu.memory_space<vmem>>, vector<1x128xf32>,
    %c251 = arith.constant 251 : index
    %c0_374 = arith.constant 0 : index
    %415 = vector.load %arg20[%c251, %c0_374] : memref<338x64xf32, #tpu.memory_space<vmem>>, vector<1x64xf32>
    %c252 = arith.constant 252 : index
    %c0_375 = arith.constant 0 : index
    %416 = vector.load %arg20[%c252, %c0_375] : memref<338x64xf32, #tpu.memory_space<vmem>>, vector<1x64xf32>
    %417 = tpu.concatenate %415, %416 in 1 : vector<1x64xf32>, vector<1x64xf32> -> vector<1x128xf32>
    %c1_376 = arith.constant 1 : index
    %c4096_377 = arith.constant 4096 : index
    %418 = vector.load %arg21[%c1_376, %c4096_377] : memref<2x6400xf32, #tpu.memory_space<vmem>>, vector<1x128xf32>
    tpu.vector_store %arg21[%c1_376, %c4096_377], %417 {strides = array<i32>} : memref<2x6400xf32, #tpu.memory_space<vmem>>, vector<1x128xf32>,
    %c253 = arith.constant 253 : index
    %c0_378 = arith.constant 0 : index
    %419 = vector.load %arg20[%c253, %c0_378] : memref<338x64xf32, #tpu.memory_space<vmem>>, vector<1x64xf32>
    %c254 = arith.constant 254 : index
    %c0_379 = arith.constant 0 : index
    %420 = vector.load %arg20[%c254, %c0_379] : memref<338x64xf32, #tpu.memory_space<vmem>>, vector<1x64xf32>
    %421 = tpu.concatenate %419, %420 in 1 : vector<1x64xf32>, vector<1x64xf32> -> vector<1x128xf32>
    %c1_380 = arith.constant 1 : index
    %c4224_381 = arith.constant 4224 : index
    %422 = vector.load %arg21[%c1_380, %c4224_381] : memref<2x6400xf32, #tpu.memory_space<vmem>>, vector<1x128xf32>
    tpu.vector_store %arg21[%c1_380, %c4224_381], %421 {strides = array<i32>} : memref<2x6400xf32, #tpu.memory_space<vmem>>, vector<1x128xf32>,
    %c255 = arith.constant 255 : index
    %c0_382 = arith.constant 0 : index
    %423 = vector.load %arg20[%c255, %c0_382] : memref<338x64xf32, #tpu.memory_space<vmem>>, vector<1x64xf32>
    %c256_383 = arith.constant 256 : index
    %c0_384 = arith.constant 0 : index
    %424 = vector.load %arg20[%c256_383, %c0_384] : memref<338x64xf32, #tpu.memory_space<vmem>>, vector<1x64xf32>
    %425 = tpu.concatenate %423, %424 in 1 : vector<1x64xf32>, vector<1x64xf32> -> vector<1x128xf32>
    %c1_385 = arith.constant 1 : index
    %c4352_386 = arith.constant 4352 : index
    %426 = vector.load %arg21[%c1_385, %c4352_386] : memref<2x6400xf32, #tpu.memory_space<vmem>>, vector<1x128xf32>
    tpu.vector_store %arg21[%c1_385, %c4352_386], %425 {strides = array<i32>} : memref<2x6400xf32, #tpu.memory_space<vmem>>, vector<1x128xf32>,
    %c260 = arith.constant 260 : index
    %c0_387 = arith.constant 0 : index
    %427 = vector.load %arg20[%c260, %c0_387] : memref<338x64xf32, #tpu.memory_space<vmem>>, vector<1x64xf32>
    %c261 = arith.constant 261 : index
    %c0_388 = arith.constant 0 : index
    %428 = vector.load %arg20[%c261, %c0_388] : memref<338x64xf32, #tpu.memory_space<vmem>>, vector<1x64xf32>
    %429 = tpu.concatenate %427, %428 in 1 : vector<1x64xf32>, vector<1x64xf32> -> vector<1x128xf32>
    %c1_389 = arith.constant 1 : index
    %c4480_390 = arith.constant 4480 : index
    %430 = vector.load %arg21[%c1_389, %c4480_390] : memref<2x6400xf32, #tpu.memory_space<vmem>>, vector<1x128xf32>
    tpu.vector_store %arg21[%c1_389, %c4480_390], %429 {strides = array<i32>} : memref<2x6400xf32, #tpu.memory_space<vmem>>, vector<1x128xf32>,
    %c262 = arith.constant 262 : index
    %c0_391 = arith.constant 0 : index
    %431 = vector.load %arg20[%c262, %c0_391] : memref<338x64xf32, #tpu.memory_space<vmem>>, vector<1x64xf32>
    %c263 = arith.constant 263 : index
    %c0_392 = arith.constant 0 : index
    %432 = vector.load %arg20[%c263, %c0_392] : memref<338x64xf32, #tpu.memory_space<vmem>>, vector<1x64xf32>
    %433 = tpu.concatenate %431, %432 in 1 : vector<1x64xf32>, vector<1x64xf32> -> vector<1x128xf32>
    %c1_393 = arith.constant 1 : index
    %c4608_394 = arith.constant 4608 : index
    %434 = vector.load %arg21[%c1_393, %c4608_394] : memref<2x6400xf32, #tpu.memory_space<vmem>>, vector<1x128xf32>
    tpu.vector_store %arg21[%c1_393, %c4608_394], %433 {strides = array<i32>} : memref<2x6400xf32, #tpu.memory_space<vmem>>, vector<1x128xf32>,
    %c264 = arith.constant 264 : index
    %c0_395 = arith.constant 0 : index
    %435 = vector.load %arg20[%c264, %c0_395] : memref<338x64xf32, #tpu.memory_space<vmem>>, vector<1x64xf32>
    %c265 = arith.constant 265 : index
    %c0_396 = arith.constant 0 : index
    %436 = vector.load %arg20[%c265, %c0_396] : memref<338x64xf32, #tpu.memory_space<vmem>>, vector<1x64xf32>
    %437 = tpu.concatenate %435, %436 in 1 : vector<1x64xf32>, vector<1x64xf32> -> vector<1x128xf32>
    %c1_397 = arith.constant 1 : index
    %c4736_398 = arith.constant 4736 : index
    %438 = vector.load %arg21[%c1_397, %c4736_398] : memref<2x6400xf32, #tpu.memory_space<vmem>>, vector<1x128xf32>
    tpu.vector_store %arg21[%c1_397, %c4736_398], %437 {strides = array<i32>} : memref<2x6400xf32, #tpu.memory_space<vmem>>, vector<1x128xf32>,
    %c266 = arith.constant 266 : index
    %c0_399 = arith.constant 0 : index
    %439 = vector.load %arg20[%c266, %c0_399] : memref<338x64xf32, #tpu.memory_space<vmem>>, vector<1x64xf32>
    %c267 = arith.constant 267 : index
    %c0_400 = arith.constant 0 : index
    %440 = vector.load %arg20[%c267, %c0_400] : memref<338x64xf32, #tpu.memory_space<vmem>>, vector<1x64xf32>
    %441 = tpu.concatenate %439, %440 in 1 : vector<1x64xf32>, vector<1x64xf32> -> vector<1x128xf32>
    %c1_401 = arith.constant 1 : index
    %c4864_402 = arith.constant 4864 : index
    %442 = vector.load %arg21[%c1_401, %c4864_402] : memref<2x6400xf32, #tpu.memory_space<vmem>>, vector<1x128xf32>
    tpu.vector_store %arg21[%c1_401, %c4864_402], %441 {strides = array<i32>} : memref<2x6400xf32, #tpu.memory_space<vmem>>, vector<1x128xf32>,
    %c268 = arith.constant 268 : index
    %c0_403 = arith.constant 0 : index
    %443 = vector.load %arg20[%c268, %c0_403] : memref<338x64xf32, #tpu.memory_space<vmem>>, vector<1x64xf32>
    %c269 = arith.constant 269 : index
    %c0_404 = arith.constant 0 : index
    %444 = vector.load %arg20[%c269, %c0_404] : memref<338x64xf32, #tpu.memory_space<vmem>>, vector<1x64xf32>
    %445 = tpu.concatenate %443, %444 in 1 : vector<1x64xf32>, vector<1x64xf32> -> vector<1x128xf32>
    %c1_405 = arith.constant 1 : index
    %c4992_406 = arith.constant 4992 : index
    %446 = vector.load %arg21[%c1_405, %c4992_406] : memref<2x6400xf32, #tpu.memory_space<vmem>>, vector<1x128xf32>
    tpu.vector_store %arg21[%c1_405, %c4992_406], %445 {strides = array<i32>} : memref<2x6400xf32, #tpu.memory_space<vmem>>, vector<1x128xf32>,
    %c273 = arith.constant 273 : index
    %c0_407 = arith.constant 0 : index
    %447 = vector.load %arg20[%c273, %c0_407] : memref<338x64xf32, #tpu.memory_space<vmem>>, vector<1x64xf32>
    %c274 = arith.constant 274 : index
    %c0_408 = arith.constant 0 : index
    %448 = vector.load %arg20[%c274, %c0_408] : memref<338x64xf32, #tpu.memory_space<vmem>>, vector<1x64xf32>
    %449 = tpu.concatenate %447, %448 in 1 : vector<1x64xf32>, vector<1x64xf32> -> vector<1x128xf32>
    %c1_409 = arith.constant 1 : index
    %c5120_410 = arith.constant 5120 : index
    %450 = vector.load %arg21[%c1_409, %c5120_410] : memref<2x6400xf32, #tpu.memory_space<vmem>>, vector<1x128xf32>
    tpu.vector_store %arg21[%c1_409, %c5120_410], %449 {strides = array<i32>} : memref<2x6400xf32, #tpu.memory_space<vmem>>, vector<1x128xf32>,
    %c275 = arith.constant 275 : index
    %c0_411 = arith.constant 0 : index
    %451 = vector.load %arg20[%c275, %c0_411] : memref<338x64xf32, #tpu.memory_space<vmem>>, vector<1x64xf32>
    %c276 = arith.constant 276 : index
    %c0_412 = arith.constant 0 : index
    %452 = vector.load %arg20[%c276, %c0_412] : memref<338x64xf32, #tpu.memory_space<vmem>>, vector<1x64xf32>
    %453 = tpu.concatenate %451, %452 in 1 : vector<1x64xf32>, vector<1x64xf32> -> vector<1x128xf32>
    %c1_413 = arith.constant 1 : index
    %c5248_414 = arith.constant 5248 : index
    %454 = vector.load %arg21[%c1_413, %c5248_414] : memref<2x6400xf32, #tpu.memory_space<vmem>>, vector<1x128xf32>
    tpu.vector_store %arg21[%c1_413, %c5248_414], %453 {strides = array<i32>} : memref<2x6400xf32, #tpu.memory_space<vmem>>, vector<1x128xf32>,
    %c277 = arith.constant 277 : index
    %c0_415 = arith.constant 0 : index
    %455 = vector.load %arg20[%c277, %c0_415] : memref<338x64xf32, #tpu.memory_space<vmem>>, vector<1x64xf32>
    %c278 = arith.constant 278 : index
    %c0_416 = arith.constant 0 : index
    %456 = vector.load %arg20[%c278, %c0_416] : memref<338x64xf32, #tpu.memory_space<vmem>>, vector<1x64xf32>
    %457 = tpu.concatenate %455, %456 in 1 : vector<1x64xf32>, vector<1x64xf32> -> vector<1x128xf32>
    %c1_417 = arith.constant 1 : index
    %c5376_418 = arith.constant 5376 : index
    %458 = vector.load %arg21[%c1_417, %c5376_418] : memref<2x6400xf32, #tpu.memory_space<vmem>>, vector<1x128xf32>
    tpu.vector_store %arg21[%c1_417, %c5376_418], %457 {strides = array<i32>} : memref<2x6400xf32, #tpu.memory_space<vmem>>, vector<1x128xf32>,
    %c279 = arith.constant 279 : index
    %c0_419 = arith.constant 0 : index
    %459 = vector.load %arg20[%c279, %c0_419] : memref<338x64xf32, #tpu.memory_space<vmem>>, vector<1x64xf32>
    %c280 = arith.constant 280 : index
    %c0_420 = arith.constant 0 : index
    %460 = vector.load %arg20[%c280, %c0_420] : memref<338x64xf32, #tpu.memory_space<vmem>>, vector<1x64xf32>
    %461 = tpu.concatenate %459, %460 in 1 : vector<1x64xf32>, vector<1x64xf32> -> vector<1x128xf32>
    %c1_421 = arith.constant 1 : index
    %c5504_422 = arith.constant 5504 : index
    %462 = vector.load %arg21[%c1_421, %c5504_422] : memref<2x6400xf32, #tpu.memory_space<vmem>>, vector<1x128xf32>
    tpu.vector_store %arg21[%c1_421, %c5504_422], %461 {strides = array<i32>} : memref<2x6400xf32, #tpu.memory_space<vmem>>, vector<1x128xf32>,
    %c281 = arith.constant 281 : index
    %c0_423 = arith.constant 0 : index
    %463 = vector.load %arg20[%c281, %c0_423] : memref<338x64xf32, #tpu.memory_space<vmem>>, vector<1x64xf32>
    %c282 = arith.constant 282 : index
    %c0_424 = arith.constant 0 : index
    %464 = vector.load %arg20[%c282, %c0_424] : memref<338x64xf32, #tpu.memory_space<vmem>>, vector<1x64xf32>
    %465 = tpu.concatenate %463, %464 in 1 : vector<1x64xf32>, vector<1x64xf32> -> vector<1x128xf32>
    %c1_425 = arith.constant 1 : index
    %c5632_426 = arith.constant 5632 : index
    %466 = vector.load %arg21[%c1_425, %c5632_426] : memref<2x6400xf32, #tpu.memory_space<vmem>>, vector<1x128xf32>
    tpu.vector_store %arg21[%c1_425, %c5632_426], %465 {strides = array<i32>} : memref<2x6400xf32, #tpu.memory_space<vmem>>, vector<1x128xf32>,
    %c286 = arith.constant 286 : index
    %c0_427 = arith.constant 0 : index
    %467 = vector.load %arg20[%c286, %c0_427] : memref<338x64xf32, #tpu.memory_space<vmem>>, vector<1x64xf32>
    %c287 = arith.constant 287 : index
    %c0_428 = arith.constant 0 : index
    %468 = vector.load %arg20[%c287, %c0_428] : memref<338x64xf32, #tpu.memory_space<vmem>>, vector<1x64xf32>
    %469 = tpu.concatenate %467, %468 in 1 : vector<1x64xf32>, vector<1x64xf32> -> vector<1x128xf32>
    %c1_429 = arith.constant 1 : index
    %c5760_430 = arith.constant 5760 : index
    %470 = vector.load %arg21[%c1_429, %c5760_430] : memref<2x6400xf32, #tpu.memory_space<vmem>>, vector<1x128xf32>
    tpu.vector_store %arg21[%c1_429, %c5760_430], %469 {strides = array<i32>} : memref<2x6400xf32, #tpu.memory_space<vmem>>, vector<1x128xf32>,
    %c288 = arith.constant 288 : index
    %c0_431 = arith.constant 0 : index
    %471 = vector.load %arg20[%c288, %c0_431] : memref<338x64xf32, #tpu.memory_space<vmem>>, vector<1x64xf32>
    %c289 = arith.constant 289 : index
    %c0_432 = arith.constant 0 : index
    %472 = vector.load %arg20[%c289, %c0_432] : memref<338x64xf32, #tpu.memory_space<vmem>>, vector<1x64xf32>
    %473 = tpu.concatenate %471, %472 in 1 : vector<1x64xf32>, vector<1x64xf32> -> vector<1x128xf32>
    %c1_433 = arith.constant 1 : index
    %c5888_434 = arith.constant 5888 : index
    %474 = vector.load %arg21[%c1_433, %c5888_434] : memref<2x6400xf32, #tpu.memory_space<vmem>>, vector<1x128xf32>
    tpu.vector_store %arg21[%c1_433, %c5888_434], %473 {strides = array<i32>} : memref<2x6400xf32, #tpu.memory_space<vmem>>, vector<1x128xf32>,
    %c290 = arith.constant 290 : index
    %c0_435 = arith.constant 0 : index
    %475 = vector.load %arg20[%c290, %c0_435] : memref<338x64xf32, #tpu.memory_space<vmem>>, vector<1x64xf32>
    %c291 = arith.constant 291 : index
    %c0_436 = arith.constant 0 : index
    %476 = vector.load %arg20[%c291, %c0_436] : memref<338x64xf32, #tpu.memory_space<vmem>>, vector<1x64xf32>
    %477 = tpu.concatenate %475, %476 in 1 : vector<1x64xf32>, vector<1x64xf32> -> vector<1x128xf32>
    %c1_437 = arith.constant 1 : index
    %c6016_438 = arith.constant 6016 : index
    %478 = vector.load %arg21[%c1_437, %c6016_438] : memref<2x6400xf32, #tpu.memory_space<vmem>>, vector<1x128xf32>
    tpu.vector_store %arg21[%c1_437, %c6016_438], %477 {strides = array<i32>} : memref<2x6400xf32, #tpu.memory_space<vmem>>, vector<1x128xf32>,
    %c292 = arith.constant 292 : index
    %c0_439 = arith.constant 0 : index
    %479 = vector.load %arg20[%c292, %c0_439] : memref<338x64xf32, #tpu.memory_space<vmem>>, vector<1x64xf32>
    %c293 = arith.constant 293 : index
    %c0_440 = arith.constant 0 : index
    %480 = vector.load %arg20[%c293, %c0_440] : memref<338x64xf32, #tpu.memory_space<vmem>>, vector<1x64xf32>
    %481 = tpu.concatenate %479, %480 in 1 : vector<1x64xf32>, vector<1x64xf32> -> vector<1x128xf32>
    %c1_441 = arith.constant 1 : index
    %c6144_442 = arith.constant 6144 : index
    %482 = vector.load %arg21[%c1_441, %c6144_442] : memref<2x6400xf32, #tpu.memory_space<vmem>>, vector<1x128xf32>
    tpu.vector_store %arg21[%c1_441, %c6144_442], %481 {strides = array<i32>} : memref<2x6400xf32, #tpu.memory_space<vmem>>, vector<1x128xf32>,
    %c294 = arith.constant 294 : index
    %c0_443 = arith.constant 0 : index
    %483 = vector.load %arg20[%c294, %c0_443] : memref<338x64xf32, #tpu.memory_space<vmem>>, vector<1x64xf32>
    %c295 = arith.constant 295 : index
    %c0_444 = arith.constant 0 : index
    %484 = vector.load %arg20[%c295, %c0_444] : memref<338x64xf32, #tpu.memory_space<vmem>>, vector<1x64xf32>
    %485 = tpu.concatenate %483, %484 in 1 : vector<1x64xf32>, vector<1x64xf32> -> vector<1x128xf32>
    %c1_445 = arith.constant 1 : index
    %c6272_446 = arith.constant 6272 : index
    %486 = vector.load %arg21[%c1_445, %c6272_446] : memref<2x6400xf32, #tpu.memory_space<vmem>>, vector<1x128xf32>
    tpu.vector_store %arg21[%c1_445, %c6272_446], %485 {strides = array<i32>} : memref<2x6400xf32, #tpu.memory_space<vmem>>, vector<1x128xf32>,
    %c0_i32_447 = arith.constant 0 : i32
    %487 = tpu.memref_slice %arg17[%c0_i32_447] : memref<1x!tpu.dma_semaphore, #tpu.memory_space<semaphore_mem>> -> memref<1x!tpu.dma_semaphore, #tpu.memory_space<semaphore_mem>>
    %488 = tpu.memref_squeeze %487 : memref<1x!tpu.dma_semaphore, #tpu.memory_space<semaphore_mem>> -> memref<!tpu.dma_semaphore, #tpu.memory_space<semaphore_mem>>
    tpu.wait_dma2 semaphore(%488 : memref<!tpu.dma_semaphore, #tpu.memory_space<semaphore_mem>>) src(%arg2 : memref<6400x256xbf16, #tpu.memory_space<any>>) dst(%arg16 : memref<6400x256xbf16, #tpu.memory_space<vmem>>)
    %c0_448 = arith.constant 0 : index
    %c0_449 = arith.constant 0 : index
    %489 = vector.load %arg21[%c0_448, %c0_449] : memref<2x6400xf32, #tpu.memory_space<vmem>>, vector<2x6400xf32>
    %490 = arith.truncf %489 : vector<2x6400xf32> to vector<2x6400xbf16>
    %c0_450 = arith.constant 0 : index
    %c0_451 = arith.constant 0 : index
    %491 = vector.load %arg16[%c0_450, %c0_451] : memref<6400x256xbf16, #tpu.memory_space<vmem>>, vector<6400x256xbf16>
    %cst_452 = arith.constant dense<0.000000e+00> : vector<2x256xf32>
    %492 = tpu.matmul %490, %491, %cst_452 {dimension_numbers = #tpu.dot_dimension_numbers<[1], [0], [0], [1], [0, 0, 1, 1], [], []>} : vector<2x6400xbf16>, vector<6400x256xbf16>, vector<2x256xf32> -> vector<2x256xf32>
    %c0_453 = arith.constant 0 : index
    %c0_454 = arith.constant 0 : index
    %493 = vector.load %arg9[%c0_453, %c0_454] : memref<2x8xf32, #tpu.memory_space<vmem>>, vector<2x8xf32>
    %c0_455 = arith.constant 0 : index
    %c0_456 = arith.constant 0 : index
    %494 = vector.load %arg10[%c0_455, %c0_456] : memref<8x256xf32, #tpu.memory_space<vmem>>, vector<8x256xf32>
    %cst_457 = arith.constant dense<0.000000e+00> : vector<2x256xf32>
    %495 = tpu.matmul %493, %494, %cst_457 {dimension_numbers = #tpu.dot_dimension_numbers<[1], [0], [0], [1], [0, 0, 1, 1], [], []>} : vector<2x8xf32>, vector<8x256xf32>, vector<2x256xf32> -> vector<2x256xf32>
    %496 = arith.addf %492, %495 : vector<2x256xf32>
    %c0_458 = arith.constant 0 : index
    %c0_459 = arith.constant 0 : index
    %497 = vector.load %arg11[%c0_458, %c0_459] : memref<1x256xf32, #tpu.memory_space<vmem>>, vector<1x256xf32>
    %498 = vector.broadcast %497 : vector<1x256xf32> to vector<2x256xf32>
    %499 = arith.addf %496, %498 : vector<2x256xf32>
    %cst_460 = arith.constant 0.000000e+00 : f32
    %500 = vector.broadcast %cst_460 : f32 to vector<2x256xf32>
    %501 = arith.maximumf %499, %500 : vector<2x256xf32>
    %c0_461 = arith.constant 0 : index
    %c0_462 = arith.constant 0 : index
    %502 = vector.load %arg12[%c0_461, %c0_462] : memref<256x8xf32, #tpu.memory_space<vmem>>, vector<256x8xf32>
    %cst_463 = arith.constant dense<0.000000e+00> : vector<2x8xf32>
    %503 = tpu.matmul %501, %502, %cst_463 {dimension_numbers = #tpu.dot_dimension_numbers<[1], [0], [0], [1], [0, 0, 1, 1], [], []>} : vector<2x256xf32>, vector<256x8xf32>, vector<2x8xf32> -> vector<2x8xf32>
    %c0_464 = arith.constant 0 : index
    %c0_465 = arith.constant 0 : index
    %504 = vector.load %arg13[%c0_464, %c0_465] : memref<1x8xf32, #tpu.memory_space<vmem>>, vector<1x8xf32>
    %505 = vector.broadcast %504 : vector<1x8xf32> to vector<2x8xf32>
    %506 = arith.addf %503, %505 : vector<2x8xf32>
    %c0_466 = arith.constant 0 : index
    %c0_467 = arith.constant 0 : index
    %507 = vector.load %arg14[%c0_466, %c0_467] : memref<1x8xf32, #tpu.memory_space<vmem>>, vector<1x8xf32>
    %508 = vector.broadcast %507 : vector<1x8xf32> to vector<2x8xf32>
    %509 = arith.addf %506, %508 : vector<2x8xf32>
    %c0_468 = arith.constant 0 : index
    %c0_469 = arith.constant 0 : index
    %510 = vector.load %arg15[%c0_468, %c0_469] : memref<2x8xf32, #tpu.memory_space<vmem>>, vector<2x8xf32>
    tpu.vector_store %arg15[%c0_468, %c0_469], %509 {strides = array<i32>} : memref<2x8xf32, #tpu.memory_space<vmem>>, vector<2x8xf32>,
    return
  }
  func.func @transform_0(%arg0: i32) -> (i32, i32) {
    %c0_i32 = arith.constant 0 : i32
    %c0_i32_0 = arith.constant 0 : i32
    %c0_i32_1 = arith.constant 0 : i32
    return %c0_i32, %c0_i32_0 : i32, i32
  }
  func.func @transform_2(%arg0: i32) -> (i32, i32, i32) {
    %c0_i32 = arith.constant 0 : i32
    %c0_i32_0 = arith.constant 0 : i32
    %c0_i32_1 = arith.constant 0 : i32
    %c0_i32_2 = arith.constant 0 : i32
    return %c0_i32, %c0_i32_0, %c0_i32_1 : i32, i32, i32
  }
  func.func @transform_3(%arg0: i32) -> (i32, i32) {
    %c0_i32 = arith.constant 0 : i32
    %c0_i32_0 = arith.constant 0 : i32
    %c0_i32_1 = arith.constant 0 : i32
    return %c0_i32, %c0_i32_0 : i32, i32
  }
  func.func @transform_4(%arg0: i32) -> (i32, i32, i32) {
    %c0_i32 = arith.constant 0 : i32
    %c0_i32_0 = arith.constant 0 : i32
    %c0_i32_1 = arith.constant 0 : i32
    %c0_i32_2 = arith.constant 0 : i32
    return %c0_i32, %c0_i32_0, %c0_i32_1 : i32, i32, i32
  }
  func.func @transform_5(%arg0: i32) -> (i32, i32) {
    %c0_i32 = arith.constant 0 : i32
    %c0_i32_0 = arith.constant 0 : i32
    %c0_i32_1 = arith.constant 0 : i32
    return %c0_i32, %c0_i32_0 : i32, i32
  }
  func.func @transform_6(%arg0: i32) -> (i32, i32, i32) {
    %c0_i32 = arith.constant 0 : i32
    %c0_i32_0 = arith.constant 0 : i32
    %c0_i32_1 = arith.constant 0 : i32
    %c0_i32_2 = arith.constant 0 : i32
    return %c0_i32, %c0_i32_0, %c0_i32_1 : i32, i32, i32
  }
  func.func @transform_7(%arg0: i32) -> (i32, i32) {
    %c0_i32 = arith.constant 0 : i32
    %c0_i32_0 = arith.constant 0 : i32
    %c0_i32_1 = arith.constant 0 : i32
    return %c0_i32, %c0_i32_0 : i32, i32
  }
  func.func @transform_8(%arg0: i32) -> (i32, i32) {
    %c0_i32 = arith.constant 0 : i32
    %c0_i32_0 = arith.constant 0 : i32
    %c0_i32_1 = arith.constant 0 : i32
    return %c0_i32, %c0_i32_0 : i32, i32
  }
  func.func @transform_9(%arg0: i32) -> (i32, i32) {
    %c0_i32 = arith.constant 0 : i32
    %c0_i32_0 = arith.constant 0 : i32
    %c0_i32_1 = arith.constant 0 : i32
    return %c0_i32, %c0_i32_0 : i32, i32
  }
  func.func @transform_10(%arg0: i32) -> (i32, i32) {
    %c0_i32 = arith.constant 0 : i32
    %c0_i32_0 = arith.constant 0 : i32
    %c0_i32_1 = arith.constant 0 : i32
    return %c0_i32, %c0_i32_0 : i32, i32
  }
  func.func @transform_11(%arg0: i32) -> (i32, i32) {
    %c0_i32 = arith.constant 0 : i32
    %c0_i32_0 = arith.constant 0 : i32
    %c0_i32_1 = arith.constant 0 : i32
    return %c0_i32, %c0_i32_0 : i32, i32
  }
  func.func @transform_12(%arg0: i32) -> (i32, i32) {
    %c0_i32 = arith.constant 0 : i32
    %c0_i32_0 = arith.constant 0 : i32
    %c0_i32_1 = arith.constant 0 : i32
    return %c0_i32, %c0_i32_0 : i32, i32
  }
  func.func @transform_13(%arg0: i32) -> (i32, i32) {
    %c0_i32 = arith.constant 0 : i32
    %c0_i32_0 = arith.constant 0 : i32
    %c0_i32_1 = arith.constant 0 : i32
    return %c0_i32, %c0_i32_0 : i32, i32
  }
  func.func @transform_14(%arg0: i32) -> (i32, i32) {
    %c0_i32 = arith.constant 0 : i32
    %c0_i32_0 = arith.constant 0 : i32
    %c0_i32_1 = arith.constant 0 : i32
    return %c0_i32, %c0_i32_0 : i32, i32
  }
}

</mosaic_0001>

<llo_original>
// kernel: gnet_goal_dqn_forward.1
$region0: #{gnet_goal_dqn_forward.1}
  #allocation0 [shape = 'u32[]', space=smem, size = 0x4, offset = 0x4, fixed_abs, tag = 'smem constant byte address 0x4 - core index']
  #allocation1 [shape = 'u32[144,128]{1,0:T(1,128)}', space=vmem, size = 0x12000, scoped, tag = 'internal scratch']
  #allocation2 [shape = 'bf16[6400,256]{1,0:T(16,128)(2,1)}', space=vmem, size = 0x320000, scoped, tag = 'scratch operand']
  #allocation3 [shape = 's32[1]{0}', space=sflag, size = 0x4, scoped, tag = 'scratch operand']
  #allocation4 [shape = 'f32[352,32]{1,0:T(8,128)}', space=vmem, size = 0x2c000, scoped, tag = 'scratch operand']
  #allocation5 [shape = 'f32[352,64]{1,0:T(8,128)}', space=vmem, size = 0x2c000, scoped, tag = 'scratch operand']
  #allocation6 [shape = 'f32[338,64]{1,0:T(8,128)}', space=vmem, size = 0x2b000, scoped, tag = 'scratch operand']
  #allocation7 [shape = 'f32[2,6400]{1,0:T(2,128)}', space=vmem, size = 0xc800, scoped, tag = 'scratch operand']
  #allocation26 [shape = 's32[]', space=sflag, size = 0x4, offset = 0, fixed_abs, tag = 'sflag constant byte address 0x0 - dummy sync flag']
  %s0 = inlined_call_operand.vmem [shape: f32[352,3], index: 0, kind: input, shape index: {}]
  %s1 = inlined_call_operand.hbm [shape: bf16[6400,256], index: 1, kind: input, shape index: {}]
  %s2 = inlined_call_operand.vmem [shape: f32[4,3,32], index: 2, kind: input, shape index: {}]
  %s3 = inlined_call_operand.hbm [shape: f32[1,32], index: 3, kind: input, shape index: {}]
  %s4 = inlined_call_operand.hbm [shape: f32[4,32,64], index: 4, kind: input, shape index: {}]
  %s5 = inlined_call_operand.hbm [shape: f32[1,64], index: 5, kind: input, shape index: {}]
  %s6 = inlined_call_operand.hbm [shape: f32[4,64,64], index: 6, kind: input, shape index: {}]
  %s7 = inlined_call_operand.hbm [shape: f32[1,64], index: 7, kind: input, shape index: {}]
  %s8 = inlined_call_operand.hbm [shape: f32[2,8], index: 8, kind: input, shape index: {}]
  %s9 = inlined_call_operand.hbm [shape: f32[8,256], index: 9, kind: input, shape index: {}]
  %s10 = inlined_call_operand.hbm [shape: f32[1,256], index: 10, kind: input, shape index: {}]
  %s11 = inlined_call_operand.vmem [shape: f32[256,8], index: 11, kind: input, shape index: {}]
  %s12 = inlined_call_operand.hbm [shape: f32[1,8], index: 12, kind: input, shape index: {}]
  %s13 = inlined_call_operand.hbm [shape: f32[1,8], index: 13, kind: input, shape index: {}]
  %s14 = inlined_call_operand.hbm [shape: f32[2,8], index: 14, kind: output, shape index: {}]
  %s15 = sld [smem:[#allocation0]]
  $region102: #{gnet_goal_dqn_forward.1} parent=0
    _
  %s17 = ssub.s32 1, %s15
  %s18 = scalar_select 0, %s17, %s15
  $region1: #{gnet_goal_dqn_forward.1} parent=0
    #allocation8 [shape = 'u8[512]{0}', space=vmem, size = 0x400, scoped, tag = 'input window, operand 3, single buffered']
    #allocation9 [shape = 's32[1]{0}', space=sflag, size = 0x4, scoped, tag = 'scoped memory for gnet_goal_dqn_forward.1']
    #allocation10 [shape = 's32[1]{0}', space=sflag, size = 0x4, scoped, tag = 'scoped memory for gnet_goal_dqn_forward.1']
    #allocation11 [shape = 'u8[65536]{0}', space=vmem, size = 0x10000, scoped, tag = 'input window, operand 4, single buffered']
    #allocation12 [shape = 's32[1]{0}', space=sflag, size = 0x4, scoped, tag = 'scoped memory for gnet_goal_dqn_forward.1']
    #allocation13 [shape = 'u8[512]{0}', space=vmem, size = 0x400, scoped, tag = 'input window, operand 5, single buffered']
    #allocation14 [shape = 'u8[131072]{0}', space=vmem, size = 0x20000, scoped, tag = 'input window, operand 6, single buffered']
    #allocation15 [shape = 's32[1]{0}', space=sflag, size = 0x4, scoped, tag = 'scoped memory for gnet_goal_dqn_forward.1']
    #allocation16 [shape = 'u8[512]{0}', space=vmem, size = 0x400, scoped, tag = 'input window, operand 7, single buffered']
    #allocation17 [shape = 'u8[1024]{0}', space=vmem, size = 0x400, scoped, tag = 'input window, operand 8, single buffered']
    #allocation18 [shape = 's32[1]{0}', space=sflag, size = 0x4, scoped, tag = 'scoped memory for gnet_goal_dqn_forward.1']
    #allocation19 [shape = 'u8[8192]{0}', space=vmem, size = 0x2000, scoped, tag = 'input window, operand 9, single buffered']
    #allocation20 [shape = 'u8[1024]{0}', space=vmem, size = 0x400, scoped, tag = 'input window, operand 10, single buffered']
    #allocation21 [shape = 's32[1]{0}', space=sflag, size = 0x4, scoped, tag = 'scoped memory for gnet_goal_dqn_forward.1']
    #allocation22 [shape = 'u8[512]{0}', space=vmem, size = 0x400, scoped, tag = 'input window, operand 12, single buffered']
    #allocation23 [shape = 'u8[512]{0}', space=vmem, size = 0x400, scoped, tag = 'input window, operand 13, single buffered']
    #allocation24 [shape = 's32[1]{0}', space=sflag, size = 0x4, scoped, tag = 'scoped memory for gnet_goal_dqn_forward.1']
    #allocation25 [shape = 'u8[1024]{0}', space=vmem, size = 0x400, scoped, tag = 'output window, operand 0, single buffered']
    #allocation27 [shape = 'u32[9]{0}', space=smem, size = 0x24, scoped, tag = 'DMA stride descriptor']
    %19 = vsyncpa [#allocation9], 0
    %20 = vsyncpa [#allocation12], 0
    %21 = vsyncpa [#allocation15], 0
    %22 = vsyncpa [#allocation18], 0
    %23 = vsyncpa [#allocation21], 0
    %24 = vsyncpa [#allocation24], 0
    %25 = vsyncpa [#allocation10], 0
    // Predicated region
    $region2: #{gnet_goal_dqn_forward.1} parent=1 // pred_check
      _
    $region3: #{gnet_goal_dqn_forward.1} parent=1 // pred_check_branch
      %27 = sbr.rel (0) target = $region5
    $region4: #{gnet_goal_dqn_forward.1} parent=1 // pred_region
      _
    $region5: #{gnet_goal_dqn_forward.1} parent=1 // pred_fallthru
      _
    // Predicated region
    $region6: #{gnet_goal_dqn_forward.1} parent=1 // pred_check
      _
    $region7: #{gnet_goal_dqn_forward.1} parent=1 // pred_check_branch
      %29 = sbr.rel (0) target = $region9
    $region8: #{gnet_goal_dqn_forward.1} parent=1 // pred_region
      _
    $region9: #{gnet_goal_dqn_forward.1} parent=1 // pred_fallthru
      _
    // Predicated region
    $region10: #{gnet_goal_dqn_forward.1} parent=1 // pred_check
      _
    $region11: #{gnet_goal_dqn_forward.1} parent=1 // pred_check_branch
      %31 = sbr.rel (0) target = $region13
    $region12: #{gnet_goal_dqn_forward.1} parent=1 // pred_region
      %s33 = ssub.s32 16, 16
      %34 = vsyncadd [#allocation9], %s33
      %s36 = sshll.u32 [#allocation8], 4
      %s37 = int_to_ptr.vmem [resolvable:$true] %s36
      %39 = dma.hbm_to_vmem [thread:$0]  %s3, 16, %s37, [#allocation9]
    $region13: #{gnet_goal_dqn_forward.1} parent=1 // pred_fallthru
      _
    // Predicated region
    $region14: #{gnet_goal_dqn_forward.1} parent=1 // pred_check
      _
    $region15: #{gnet_goal_dqn_forward.1} parent=1 // pred_check_branch
      %41 = sbr.rel (0) target = $region17
    $region16: #{gnet_goal_dqn_forward.1} parent=1 // pred_region
      %s43 = ssub.s32 2048, 2048
      %44 = vsyncadd [#allocation12], %s43
      %s45 = sshll.u32 [#allocation11], 4
      %s46 = int_to_ptr.vmem [resolvable:$true] %s45
      %51 = dma.hbm_to_vmem [thread:$0]  %s4, 2048, %s46, [#allocation12], 128, 128, 8
    $region17: #{gnet_goal_dqn_forward.1} parent=1 // pred_fallthru
      _
    // Predicated region
    $region18: #{gnet_goal_dqn_forward.1} parent=1 // pred_check
      _
    $region19: #{gnet_goal_dqn_forward.1} parent=1 // pred_check_branch
      %53 = sbr.rel (0) target = $region21
    $region20: #{gnet_goal_dqn_forward.1} parent=1 // pred_region
      %s55 = ssub.s32 16, 16
      %56 = vsyncadd [#allocation12], %s55
      %s58 = sshll.u32 [#allocation13], 4
      %s59 = int_to_ptr.vmem [resolvable:$true] %s58
      %61 = dma.hbm_to_vmem [thread:$0]  %s5, 16, %s59, [#allocation12]
    $region21: #{gnet_goal_dqn_forward.1} parent=1 // pred_fallthru
      _
    // Predicated region
    $region22: #{gnet_goal_dqn_forward.1} parent=1 // pred_check
      _
    $region23: #{gnet_goal_dqn_forward.1} parent=1 // pred_check_branch
      %63 = sbr.rel (0) target = $region25
    $region24: #{gnet_goal_dqn_forward.1} parent=1 // pred_region
      %s65 = ssub.s32 4096, 4096
      %66 = vsyncadd [#allocation15], %s65
      %s67 = sshll.u32 [#allocation14], 4
      %s68 = int_to_ptr.vmem [resolvable:$true] %s67
      %73 = dma.hbm_to_vmem [thread:$0]  %s6, 4096, %s68, [#allocation15], 128, 128, 8
    $region25: #{gnet_goal_dqn_forward.1} parent=1 // pred_fallthru
      _
    // Predicated region
    $region26: #{gnet_goal_dqn_forward.1} parent=1 // pred_check
      _
    $region27: #{gnet_goal_dqn_forward.1} parent=1 // pred_check_branch
      %75 = sbr.rel (0) target = $region29
    $region28: #{gnet_goal_dqn_forward.1} parent=1 // pred_region
      %s77 = ssub.s32 16, 16
      %78 = vsyncadd [#allocation15], %s77
      %s80 = sshll.u32 [#allocation16], 4
      %s81 = int_to_ptr.vmem [resolvable:$true] %s80
      %83 = dma.hbm_to_vmem [thread:$0]  %s7, 16, %s81, [#allocation15]
    $region29: #{gnet_goal_dqn_forward.1} parent=1 // pred_fallthru
      _
    // Predicated region
    $region30: #{gnet_goal_dqn_forward.1} parent=1 // pred_check
      _
    $region31: #{gnet_goal_dqn_forward.1} parent=1 // pred_check_branch
      %85 = sbr.rel (0) target = $region33
    $region32: #{gnet_goal_dqn_forward.1} parent=1 // pred_region
      %s87 = ssub.s32 32, 32
      %88 = vsyncadd [#allocation18], %s87
      %s90 = sshll.u32 [#allocation17], 4
      %s91 = int_to_ptr.vmem [resolvable:$true] %s90
      %93 = dma.hbm_to_vmem [thread:$0]  %s8, 32, %s91, [#allocation18]
    $region33: #{gnet_goal_dqn_forward.1} parent=1 // pred_fallthru
      _
    // Predicated region
    $region34: #{gnet_goal_dqn_forward.1} parent=1 // pred_check
      _
    $region35: #{gnet_goal_dqn_forward.1} parent=1 // pred_check_branch
      %95 = sbr.rel (0) target = $region37
    $region36: #{gnet_goal_dqn_forward.1} parent=1 // pred_region
      %s97 = ssub.s32 256, 256
      %98 = vsyncadd [#allocation18], %s97
      %s100 = sshll.u32 [#allocation19], 4
      %s101 = int_to_ptr.vmem [resolvable:$true] %s100
      %103 = dma.hbm_to_vmem [thread:$0]  %s9, 256, %s101, [#allocation18]
    $region37: #{gnet_goal_dqn_forward.1} parent=1 // pred_fallthru
      _
    // Predicated region
    $region38: #{gnet_goal_dqn_forward.1} parent=1 // pred_check
      _
    $region39: #{gnet_goal_dqn_forward.1} parent=1 // pred_check_branch
      %105 = sbr.rel (0) target = $region41
    $region40: #{gnet_goal_dqn_forward.1} parent=1 // pred_region
      %s107 = ssub.s32 32, 32
      %108 = vsyncadd [#allocation21], %s107
      %s110 = sshll.u32 [#allocation20], 4
      %s111 = int_to_ptr.vmem [resolvable:$true] %s110
      %113 = dma.hbm_to_vmem [thread:$0]  %s10, 32, %s111, [#allocation21]
    $region41: #{gnet_goal_dqn_forward.1} parent=1 // pred_fallthru
      _
    // Predicated region
    $region42: #{gnet_goal_dqn_forward.1} parent=1 // pred_check
      _
    $region43: #{gnet_goal_dqn_forward.1} parent=1 // pred_check_branch
      %115 = sbr.rel (0) target = $region45
    $region44: #{gnet_goal_dqn_forward.1} parent=1 // pred_region
      _
    $region45: #{gnet_goal_dqn_forward.1} parent=1 // pred_fallthru
      _
    // Predicated region
    $region46: #{gnet_goal_dqn_forward.1} parent=1 // pred_check
      _
    $region47: #{gnet_goal_dqn_forward.1} parent=1 // pred_check_branch
      %117 = sbr.rel (0) target = $region49
    $region48: #{gnet_goal_dqn_forward.1} parent=1 // pred_region
      %s119 = ssub.s32 16, 16
      %120 = vsyncadd [#allocation21], %s119
      %s122 = sshll.u32 [#allocation22], 4
      %s123 = int_to_ptr.vmem [resolvable:$true] %s122
      %125 = dma.hbm_to_vmem [thread:$0]  %s12, 16, %s123, [#allocation21]
    $region49: #{gnet_goal_dqn_forward.1} parent=1 // pred_fallthru
      _
    // Predicated region
    $region50: #{gnet_goal_dqn_forward.1} parent=1 // pred_check
      _
    $region51: #{gnet_goal_dqn_forward.1} parent=1 // pred_check_branch
      %127 = sbr.rel (0) target = $region53
    $region52: #{gnet_goal_dqn_forward.1} parent=1 // pred_region
      %s129 = ssub.s32 16, 16
      %130 = vsyncadd [#allocation24], %s129
      %s132 = sshll.u32 [#allocation23], 4
      %s133 = int_to_ptr.vmem [resolvable:$true] %s132
      %135 = dma.hbm_to_vmem [thread:$0]  %s13, 16, %s133, [#allocation24]
    $region53: #{gnet_goal_dqn_forward.1} parent=1 // pred_fallthru
      _
    // Predicated region
    $region54: #{gnet_goal_dqn_forward.1} parent=1 // pred_check
      _
    $region55: #{gnet_goal_dqn_forward.1} parent=1 // pred_check_branch
      %137 = sbr.rel (0) target = $region57
    $region56: #{gnet_goal_dqn_forward.1} parent=1 // pred_region
      %138 = dma.done [#allocation9], 16
    $region57: #{gnet_goal_dqn_forward.1} parent=1 // pred_fallthru
      _
    // Predicated region
    $region58: #{gnet_goal_dqn_forward.1} parent=1 // pred_check
      _
    $region59: #{gnet_goal_dqn_forward.1} parent=1 // pred_check_branch
      %140 = sbr.rel (0) target = $region61
    $region60: #{gnet_goal_dqn_forward.1} parent=1 // pred_region
      %141 = dma.done [#allocation12], 2048
    $region61: #{gnet_goal_dqn_forward.1} parent=1 // pred_fallthru
      _
    // Predicated region
    $region62: #{gnet_goal_dqn_forward.1} parent=1 // pred_check
      _
    $region63: #{gnet_goal_dqn_forward.1} parent=1 // pred_check_branch
      %143 = sbr.rel (0) target = $region65
    $region64: #{gnet_goal_dqn_forward.1} parent=1 // pred_region
      %144 = dma.done [#allocation12], 16
    $region65: #{gnet_goal_dqn_forward.1} parent=1 // pred_fallthru
      _
    // Predicated region
    $region66: #{gnet_goal_dqn_forward.1} parent=1 // pred_check
      _
    $region67: #{gnet_goal_dqn_forward.1} parent=1 // pred_check_branch
      %146 = sbr.rel (0) target = $region69
    $region68: #{gnet_goal_dqn_forward.1} parent=1 // pred_region
      %147 = dma.done [#allocation15], 4096
    $region69: #{gnet_goal_dqn_forward.1} parent=1 // pred_fallthru
      _
    // Predicated region
    $region70: #{gnet_goal_dqn_forward.1} parent=1 // pred_check
      _
    $region71: #{gnet_goal_dqn_forward.1} parent=1 // pred_check_branch
      %149 = sbr.rel (0) target = $region73
    $region72: #{gnet_goal_dqn_forward.1} parent=1 // pred_region
      %150 = dma.done [#allocation15], 16
    $region73: #{gnet_goal_dqn_forward.1} parent=1 // pred_fallthru
      _
    // Predicated region
    $region74: #{gnet_goal_dqn_forward.1} parent=1 // pred_check
      _
    $region75: #{gnet_goal_dqn_forward.1} parent=1 // pred_check_branch
      %152 = sbr.rel (0) target = $region77
    $region76: #{gnet_goal_dqn_forward.1} parent=1 // pred_region
      %153 = dma.done [#allocation18], 32
    $region77: #{gnet_goal_dqn_forward.1} parent=1 // pred_fallthru
      _
    // Predicated region
    $region78: #{gnet_goal_dqn_forward.1} parent=1 // pred_check
      _
    $region79: #{gnet_goal_dqn_forward.1} parent=1 // pred_check_branch
      %155 = sbr.rel (0) target = $region81
    $region80: #{gnet_goal_dqn_forward.1} parent=1 // pred_region
      %156 = dma.done [#allocation18], 256
    $region81: #{gnet_goal_dqn_forward.1} parent=1 // pred_fallthru
      _
    // Predicated region
    $region82: #{gnet_goal_dqn_forward.1} parent=1 // pred_check
      _
    $region83: #{gnet_goal_dqn_forward.1} parent=1 // pred_check_branch
      %158 = sbr.rel (0) target = $region85
    $region84: #{gnet_goal_dqn_forward.1} parent=1 // pred_region
      %159 = dma.done [#allocation21], 32
    $region85: #{gnet_goal_dqn_forward.1} parent=1 // pred_fallthru
      _
    // Predicated region
    $region86: #{gnet_goal_dqn_forward.1} parent=1 // pred_check
      _
    $region87: #{gnet_goal_dqn_forward.1} parent=1 // pred_check_branch
      %161 = sbr.rel (0) target = $region89
    $region88: #{gnet_goal_dqn_forward.1} parent=1 // pred_region
      %162 = dma.done [#allocation21], 16
    $region89: #{gnet_goal_dqn_forward.1} parent=1 // pred_fallthru
      _
    // Predicated region
    $region90: #{gnet_goal_dqn_forward.1} parent=1 // pred_check
      _
    $region91: #{gnet_goal_dqn_forward.1} parent=1 // pred_check_branch
      %164 = sbr.rel (0) target = $region93
    $region92: #{gnet_goal_dqn_forward.1} parent=1 // pred_region
      %165 = dma.done [#allocation24], 16
    $region93: #{gnet_goal_dqn_forward.1} parent=1 // pred_fallthru
      _
    %s167 = sshll.u32 1, 14
    %s168 = sxor.u32 4294967295, %s167
    %s170 = sld [smem:[#allocation0]]
    %s171 = sadd.s32 2, %s170
    %s173 = sshll.u32 7, 26
    %s174 = sxor.u32 4294967295, %s173
    %s175 = sand.u32 0, %s174
    %s176 = sshll.u32 %s171, 26
    %s177 = sor.u32 %s175, %s176
    %s178 = sshll.u32 [#allocation2], 4
    %s179 = int_to_ptr.vmem [resolvable:$true] %s178
    %182 = sst [smem:[#allocation27]] 256
    %s183 = scalar_lea.smem [#allocation27], 1
    %184 = sst [smem:[%s183]] 256
    %s185 = scalar_lea.smem [#allocation27], 2
    %186 = sst [smem:[%s185]] 2
    %s187 = scalar_lea.smem [#allocation27], 3
    %188 = sst [smem:[%s187]] 64
    %s189 = scalar_lea.smem [#allocation27], 4
    %190 = sst [smem:[%s189]] 128
    %s191 = scalar_lea.smem [#allocation27], 5
    %192 = sst [smem:[%s191]] 2
    %s193 = scalar_lea.smem [#allocation27], 6
    %194 = sst [smem:[%s193]] 128
    %s195 = scalar_lea.smem [#allocation27], 7
    %196 = sst [smem:[%s195]] 64
    %s197 = scalar_lea.smem [#allocation27], 8
    %198 = sst [smem:[%s197]] 4
    %200 = dma.general %s1, 102400, %s179, [#allocation3], [#allocation26], [#allocation27], %s177, 0
    %vm201 = vcmask 261120
    %202 = vst.msk [vmem:[#allocation4] sm:$0xff] %vm201, 0.0
    %203 = vst.msk [vmem:[#allocation4 + $0x8] sm:$0xff] %vm201, 0.0
    %204 = vst.msk [vmem:[#allocation4 + $0x10] sm:$0xff] %vm201, 0.0
    %205 = vst.msk [vmem:[#allocation4 + $0x18] sm:$0xff] %vm201, 0.0
    %206 = vst.msk [vmem:[#allocation4 + $0x20] sm:$0xff] %vm201, 0.0
    %207 = vst.msk [vmem:[#allocation4 + $0x28] sm:$0xff] %vm201, 0.0
    %208 = vst.msk [vmem:[#allocation4 + $0x30] sm:$0xff] %vm201, 0.0
    %209 = vst.msk [vmem:[#allocation4 + $0x38] sm:$0xff] %vm201, 0.0
    %210 = vst.msk [vmem:[#allocation4 + $0x40] sm:$0xff] %vm201, 0.0
    %211 = vst.msk [vmem:[#allocation4 + $0x48] sm:$0xff] %vm201, 0.0
    %212 = vst.msk [vmem:[#allocation4 + $0x50] sm:$0xff] %vm201, 0.0
    %213 = vst.msk [vmem:[#allocation4 + $0x58] sm:$0xff] %vm201, 0.0
    %214 = vst.msk [vmem:[#allocation4 + $0x60] sm:$0xff] %vm201, 0.0
    %215 = vst.msk [vmem:[#allocation4 + $0x68] sm:$0xff] %vm201, 0.0
    %216 = vst.msk [vmem:[#allocation4 + $0x70] sm:$0xff] %vm201, 0.0
    %217 = vst.msk [vmem:[#allocation4 + $0x78] sm:$0xff] %vm201, 0.0
    %218 = vst.msk [vmem:[#allocation4 + $0x80] sm:$0xff] %vm201, 0.0
    %219 = vst.msk [vmem:[#allocation4 + $0x88] sm:$0xff] %vm201, 0.0
    %220 = vst.msk [vmem:[#allocation4 + $0x90] sm:$0xff] %vm201, 0.0
    %221 = vst.msk [vmem:[#allocation4 + $0x98] sm:$0xff] %vm201, 0.0
    %222 = vst.msk [vmem:[#allocation4 + $0xa0] sm:$0xff] %vm201, 0.0
    %223 = vst.msk [vmem:[#allocation4 + $0xa8] sm:$0xff] %vm201, 0.0
    %224 = vst.msk [vmem:[#allocation4 + $0xb0] sm:$0xff] %vm201, 0.0
    %225 = vst.msk [vmem:[#allocation4 + $0xb8] sm:$0xff] %vm201, 0.0
    %226 = vst.msk [vmem:[#allocation4 + $0xc0] sm:$0xff] %vm201, 0.0
    %227 = vst.msk [vmem:[#allocation4 + $0xc8] sm:$0xff] %vm201, 0.0
    %228 = vst.msk [vmem:[#allocation4 + $0xd0] sm:$0xff] %vm201, 0.0
    %229 = vst.msk [vmem:[#allocation4 + $0xd8] sm:$0xff] %vm201, 0.0
    %230 = vst.msk [vmem:[#allocation4 + $0xe0] sm:$0xff] %vm201, 0.0
    %231 = vst.msk [vmem:[#allocation4 + $0xe8] sm:$0xff] %vm201, 0.0
    %232 = vst.msk [vmem:[#allocation4 + $0xf0] sm:$0xff] %vm201, 0.0
    %233 = vst.msk [vmem:[#allocation4 + $0xf8] sm:$0xff] %vm201, 0.0
    %234 = vst.msk [vmem:[#allocation4 + $0x100] sm:$0xff] %vm201, 0.0
    %235 = vst.msk [vmem:[#allocation4 + $0x108] sm:$0xff] %vm201, 0.0
    %236 = vst.msk [vmem:[#allocation4 + $0x110] sm:$0xff] %vm201, 0.0
    %237 = vst.msk [vmem:[#allocation4 + $0x118] sm:$0xff] %vm201, 0.0
    %238 = vst.msk [vmem:[#allocation4 + $0x120] sm:$0xff] %vm201, 0.0
    %239 = vst.msk [vmem:[#allocation4 + $0x128] sm:$0xff] %vm201, 0.0
    %240 = vst.msk [vmem:[#allocation4 + $0x130] sm:$0xff] %vm201, 0.0
    %241 = vst.msk [vmem:[#allocation4 + $0x138] sm:$0xff] %vm201, 0.0
    %242 = vst.msk [vmem:[#allocation4 + $0x140] sm:$0xff] %vm201, 0.0
    %243 = vst.msk [vmem:[#allocation4 + $0x148] sm:$0xff] %vm201, 0.0
    %244 = vst.msk [vmem:[#allocation4 + $0x150] sm:$0xff] %vm201, 0.0
    %245 = vst.msk [vmem:[#allocation4 + $0x158] sm:$0xff] %vm201, 0.0
    %vm246 = vcmask 523264
    %247 = vst.msk [vmem:[#allocation5] sm:$0xff] %vm246, 0.0
    %248 = vst.msk [vmem:[#allocation5 + $0x8] sm:$0xff] %vm246, 0.0
    %249 = vst.msk [vmem:[#allocation5 + $0x10] sm:$0xff] %vm246, 0.0
    %250 = vst.msk [vmem:[#allocation5 + $0x18] sm:$0xff] %vm246, 0.0
    %251 = vst.msk [vmem:[#allocation5 + $0x20] sm:$0xff] %vm246, 0.0
    %252 = vst.msk [vmem:[#allocation5 + $0x28] sm:$0xff] %vm246, 0.0
    %253 = vst.msk [vmem:[#allocation5 + $0x30] sm:$0xff] %vm246, 0.0
    %254 = vst.msk [vmem:[#allocation5 + $0x38] sm:$0xff] %vm246, 0.0
    %255 = vst.msk [vmem:[#allocation5 + $0x40] sm:$0xff] %vm246, 0.0
    %256 = vst.msk [vmem:[#allocation5 + $0x48] sm:$0xff] %vm246, 0.0
    %257 = vst.msk [vmem:[#allocation5 + $0x50] sm:$0xff] %vm246, 0.0
    %258 = vst.msk [vmem:[#allocation5 + $0x58] sm:$0xff] %vm246, 0.0
    %259 = vst.msk [vmem:[#allocation5 + $0x60] sm:$0xff] %vm246, 0.0
    %260 = vst.msk [vmem:[#allocation5 + $0x68] sm:$0xff] %vm246, 0.0
    %261 = vst.msk [vmem:[#allocation5 + $0x70] sm:$0xff] %vm246, 0.0
    %262 = vst.msk [vmem:[#allocation5 + $0x78] sm:$0xff] %vm246, 0.0
    %263 = vst.msk [vmem:[#allocation5 + $0x80] sm:$0xff] %vm246, 0.0
    %264 = vst.msk [vmem:[#allocation5 + $0x88] sm:$0xff] %vm246, 0.0
    %265 = vst.msk [vmem:[#allocation5 + $0x90] sm:$0xff] %vm246, 0.0
    %266 = vst.msk [vmem:[#allocation5 + $0x98] sm:$0xff] %vm246, 0.0
    %267 = vst.msk [vmem:[#allocation5 + $0xa0] sm:$0xff] %vm246, 0.0
    %268 = vst.msk [vmem:[#allocation5 + $0xa8] sm:$0xff] %vm246, 0.0
    %269 = vst.msk [vmem:[#allocation5 + $0xb0] sm:$0xff] %vm246, 0.0
    %270 = vst.msk [vmem:[#allocation5 + $0xb8] sm:$0xff] %vm246, 0.0
    %271 = vst.msk [vmem:[#allocation5 + $0xc0] sm:$0xff] %vm246, 0.0
    %272 = vst.msk [vmem:[#allocation5 + $0xc8] sm:$0xff] %vm246, 0.0
    %273 = vst.msk [vmem:[#allocation5 + $0xd0] sm:$0xff] %vm246, 0.0
    %274 = vst.msk [vmem:[#allocation5 + $0xd8] sm:$0xff] %vm246, 0.0
    %275 = vst.msk [vmem:[#allocation5 + $0xe0] sm:$0xff] %vm246, 0.0
    %276 = vst.msk [vmem:[#allocation5 + $0xe8] sm:$0xff] %vm246, 0.0
    %277 = vst.msk [vmem:[#allocation5 + $0xf0] sm:$0xff] %vm246, 0.0
    %278 = vst.msk [vmem:[#allocation5 + $0xf8] sm:$0xff] %vm246, 0.0
    %279 = vst.msk [vmem:[#allocation5 + $0x100] sm:$0xff] %vm246, 0.0
    %280 = vst.msk [vmem:[#allocation5 + $0x108] sm:$0xff] %vm246, 0.0
    %281 = vst.msk [vmem:[#allocation5 + $0x110] sm:$0xff] %vm246, 0.0
    %282 = vst.msk [vmem:[#allocation5 + $0x118] sm:$0xff] %vm246, 0.0
    %283 = vst.msk [vmem:[#allocation5 + $0x120] sm:$0xff] %vm246, 0.0
    %284 = vst.msk [vmem:[#allocation5 + $0x128] sm:$0xff] %vm246, 0.0
    %285 = vst.msk [vmem:[#allocation5 + $0x130] sm:$0xff] %vm246, 0.0
    %286 = vst.msk [vmem:[#allocation5 + $0x138] sm:$0xff] %vm246, 0.0
    %287 = vst.msk [vmem:[#allocation5 + $0x140] sm:$0xff] %vm246, 0.0
    %288 = vst.msk [vmem:[#allocation5 + $0x148] sm:$0xff] %vm246, 0.0
    %289 = vst.msk [vmem:[#allocation5 + $0x150] sm:$0xff] %vm246, 0.0
    %290 = vst.msk [vmem:[#allocation5 + $0x158] sm:$0xff] %vm246, 0.0
    %v291 = vld [vmem:[%s0] sm:$0xff]
    %v292 = vld [vmem:[%s0 + $0x8] sm:$0xff]
    %v293 = vld [vmem:[%s0 + $0x10] sm:$0xff]
    %v294 = vld [vmem:[%s0 + $0x18] sm:$0xff]
    %v295 = vld [vmem:[%s0 + $0x20] sm:$0xff]
    %v296 = vld [vmem:[%s0 + $0x28] sm:$0xff]
    %v297 = vld [vmem:[%s0 + $0x30] sm:$0xff]
    %v298 = vld [vmem:[%s0 + $0x38] sm:$0xff]
    %v299 = vld [vmem:[%s0 + $0x40] sm:$0xff]
    %v300 = vld [vmem:[%s0 + $0x48] sm:$0xff]
    %v301 = vld [vmem:[%s0 + $0x50] sm:$0xff]
    %v302 = vld [vmem:[%s0 + $0x58] sm:$0xff]
    %v303 = vld [vmem:[%s0 + $0x60] sm:$0xff]
    %v304 = vld [vmem:[%s0 + $0x68] sm:$0xff]
    %v305 = vld [vmem:[%s0 + $0x70] sm:$0xff]
    %v306 = vld [vmem:[%s0 + $0x78] sm:$0xff]
    %v307 = vld [vmem:[%s0 + $0x80] sm:$0xff]
    %v308 = vld [vmem:[%s0 + $0x88] sm:$0xff]
    %v309 = vld [vmem:[%s0 + $0x90] sm:$0xff]
    %v310 = vld [vmem:[%s0 + $0x98] sm:$0xff]
    %v311 = vld [vmem:[%s0 + $0xa0] sm:$0xff]
    %v312 = vld [vmem:[%s0 + $0xa8] sm:$0xff]
    %v313 = vld [vmem:[%s0 + $0xb0] sm:$0xff]
    %v314 = vld [vmem:[%s0 + $0xb8] sm:$0xff]
    %v315 = vld [vmem:[%s0 + $0xc0] sm:$0xff]
    %v316 = vld [vmem:[%s0 + $0xc8] sm:$0xff]
    %v317 = vld [vmem:[%s0 + $0xd0] sm:$0xff]
    %v318 = vld [vmem:[%s0 + $0xd8] sm:$0xff]
    %v319 = vld [vmem:[%s0 + $0xe0] sm:$0xff]
    %v320 = vld [vmem:[%s0 + $0xe8] sm:$0xff]
    %v321 = vld [vmem:[%s0 + $0xf0] sm:$0xff]
    %v322 = vld [vmem:[%s0 + $0xf8] sm:$0xff]
    %v323 = vld [vmem:[%s0 + $0x100] sm:$0xff]
    %v324 = vld [vmem:[%s0 + $0x108] sm:$0xff]
    %v325 = vld [vmem:[%s0 + $0x110] sm:$0xff]
    %v326 = vld [vmem:[%s0 + $0x118] sm:$0xff]
    %v327 = vld [vmem:[%s0 + $0x120] sm:$0xff]
    %v328 = vld [vmem:[%s0 + $0x128] sm:$0xff]
    %v329 = vld [vmem:[%s0 + $0x130] sm:$0xff]
    %v330 = vld [vmem:[%s0 + $0x138] sm:$0xff]
    %v331 = vld [vmem:[%s0 + $0x140] sm:$0xff]
    %v332 = vld [vmem:[%s0 + $0x148] sm:$0xff]
    %v333 = vld [vmem:[%s0 + $0x150] sm:$0x3]
    %v334 = vld [vmem:[%s2] sm:$0x7]
    %v335 = vld [vmem:[%s0 + $0x1] sm:$0xff]
    %v336 = vld [vmem:[%s0 + $0x9] sm:$0xff]
    %v337 = vld [vmem:[%s0 + $0x11] sm:$0xff]
    %v338 = vld [vmem:[%s0 + $0x19] sm:$0xff]
    %v339 = vld [vmem:[%s0 + $0x21] sm:$0xff]
    %v340 = vld [vmem:[%s0 + $0x29] sm:$0xff]
    %v341 = vld [vmem:[%s0 + $0x31] sm:$0xff]
    %v342 = vld [vmem:[%s0 + $0x39] sm:$0xff]
    %v343 = vld [vmem:[%s0 + $0x41] sm:$0xff]
    %v344 = vld [vmem:[%s0 + $0x49] sm:$0xff]
    %v345 = vld [vmem:[%s0 + $0x51] sm:$0xff]
    %v346 = vld [vmem:[%s0 + $0x59] sm:$0xff]
    %v347 = vld [vmem:[%s0 + $0x61] sm:$0xff]
    %v348 = vld [vmem:[%s0 + $0x69] sm:$0xff]
    %v349 = vld [vmem:[%s0 + $0x71] sm:$0xff]
    %v350 = vld [vmem:[%s0 + $0x79] sm:$0xff]
    %v351 = vld [vmem:[%s0 + $0x81] sm:$0xff]
    %v352 = vld [vmem:[%s0 + $0x89] sm:$0xff]
    %v353 = vld [vmem:[%s0 + $0x91] sm:$0xff]
    %v354 = vld [vmem:[%s0 + $0x99] sm:$0xff]
    %v355 = vld [vmem:[%s0 + $0xa1] sm:$0xff]
    %v356 = vld [vmem:[%s0 + $0xa9] sm:$0xff]
    %v357 = vld [vmem:[%s0 + $0xb1] sm:$0xff]
    %v358 = vld [vmem:[%s0 + $0xb9] sm:$0xff]
    %v359 = vld [vmem:[%s0 + $0xc1] sm:$0xff]
    %v360 = vld [vmem:[%s0 + $0xc9] sm:$0xff]
    %v361 = vld [vmem:[%s0 + $0xd1] sm:$0xff]
    %v362 = vld [vmem:[%s0 + $0xd9] sm:$0xff]
    %v363 = vld [vmem:[%s0 + $0xe1] sm:$0xff]
    %v364 = vld [vmem:[%s0 + $0xe9] sm:$0xff]
    %v365 = vld [vmem:[%s0 + $0xf1] sm:$0xff]
    %v366 = vld [vmem:[%s0 + $0xf9] sm:$0xff]
    %v367 = vld [vmem:[%s0 + $0x101] sm:$0xff]
    %v368 = vld [vmem:[%s0 + $0x109] sm:$0xff]
    %v369 = vld [vmem:[%s0 + $0x111] sm:$0xff]
    %v370 = vld [vmem:[%s0 + $0x119] sm:$0xff]
    %v371 = vld [vmem:[%s0 + $0x121] sm:$0xff]
    %v372 = vld [vmem:[%s0 + $0x129] sm:$0xff]
    %v373 = vld [vmem:[%s0 + $0x131] sm:$0xff]
    %v374 = vld [vmem:[%s0 + $0x139] sm:$0xff]
    %v375 = vld [vmem:[%s0 + $0x141] sm:$0xff]
    %v376 = vld [vmem:[%s0 + $0x149] sm:$0xff]
    %v377 = vld [vmem:[%s0 + $0x151] sm:$0x3]
    %s378 = scalar_lea.vmem %s2, 4
    %v379 = vld [vmem:[%s378] sm:$0x7]
    %vm380 = vcmask 23552
    %v382 = vsel %vm380, %v335, 0
    %v385 = vsel %vm380, %v336, 0
    %v388 = vsel %vm380, %v337, 0
    %v391 = vsel %vm380, %v338, 0
    %v394 = vsel %vm380, %v339, 0
    %v397 = vsel %vm380, %v340, 0
    %v400 = vsel %vm380, %v341, 0
    %v403 = vsel %vm380, %v342, 0
    %v406 = vsel %vm380, %v343, 0
    %v409 = vsel %vm380, %v344, 0
    %v412 = vsel %vm380, %v345, 0
    %v415 = vsel %vm380, %v346, 0
    %v418 = vsel %vm380, %v347, 0
    %v421 = vsel %vm380, %v348, 0
    %v424 = vsel %vm380, %v349, 0
    %v427 = vsel %vm380, %v350, 0
    %v430 = vsel %vm380, %v351, 0
    %v433 = vsel %vm380, %v352, 0
    %v436 = vsel %vm380, %v353, 0
    %v439 = vsel %vm380, %v354, 0
    %v442 = vsel %vm380, %v355, 0
    %v445 = vsel %vm380, %v356, 0
    %v448 = vsel %vm380, %v357, 0
    %v451 = vsel %vm380, %v358, 0
    %v454 = vsel %vm380, %v359, 0
    %v457 = vsel %vm380, %v360, 0
    %v460 = vsel %vm380, %v361, 0
    %v463 = vsel %vm380, %v362, 0
    %v466 = vsel %vm380, %v363, 0
    %v469 = vsel %vm380, %v364, 0
    %v472 = vsel %vm380, %v365, 0
    %v475 = vsel %vm380, %v366, 0
    %v478 = vsel %vm380, %v367, 0
    %v481 = vsel %vm380, %v368, 0
    %v484 = vsel %vm380, %v369, 0
    %v487 = vsel %vm380, %v370, 0
    %v490 = vsel %vm380, %v371, 0
    %v493 = vsel %vm380, %v372, 0
    %v496 = vsel %vm380, %v373, 0
    %v499 = vsel %vm380, %v374, 0
    %v502 = vsel %vm380, %v375, 0
    %v505 = vsel %vm380, %v376, 0
    %v508 = vsel %vm380, %v377, 0
    %vm510 = vcmask 1042432
    %v512 = vsel %vm510, %v379, 0
    %514 = vmatprep.subr.mxu0 0.0
    %515 = vmatpush1.msra.mxu0 %v512
    %516 = vmatprep.subr.mxu0 0.0
    %517 = vmatpush1.msra.mxu0 0.0
    %518 = vmatprep.subr.mxu0 0.0
    %519 = vmatpush1.msra.mxu0 0.0
    %520 = vmatprep.subr.mxu0 0.0
    %521 = vmatpush1.msra.mxu0 0.0
    %522 = vmatprep.subr.mxu0 0.0
    %523 = vmatpush1.msra.mxu0 0.0
    %524 = vmatprep.subr.mxu0 0.0
    %525 = vmatpush1.msra.mxu0 0.0
    %526 = vmatprep.subr.mxu0 0.0
    %527 = vmatpush1.msra.mxu0 0.0
    %528 = vmatprep.subr.mxu0 0.0
    %529 = vmatpush1.msra.mxu0 0.0
    %530 = vmatprep.subr.mxu0 0.0
    %531 = vmatpush1.msra.mxu0 0.0
    %532 = vmatprep.subr.mxu0 0.0
    %533 = vmatpush1.msra.mxu0 0.0
    %534 = vmatprep.subr.mxu0 0.0
    %535 = vmatpush1.msra.mxu0 0.0
    %536 = vmatprep.subr.mxu0 0.0
    %537 = vmatpush1.msra.mxu0 0.0
    %538 = vmatprep.subr.mxu0 0.0
    %539 = vmatpush1.msra.mxu0 0.0
    %540 = vmatprep.subr.mxu0 0.0
    %541 = vmatpush1.msra.mxu0 0.0
    %542 = vmatprep.subr.mxu0 0.0
    %543 = vmatpush1.msra.mxu0 0.0
    %544 = vmatprep.subr.mxu0 0.0
    %545 = vmatpush1.msra.mxu0 0.0
    %546 = vmatprep.subr.mxu0 0.0
    %547 = vmatpush1.msra.mxu0 0.0
    %548 = vmatprep.subr.mxu0 0.0
    %549 = vmatpush1.msra.mxu0 0.0
    %550 = vmatprep.subr.mxu0 0.0
    %551 = vmatpush1.msra.mxu0 0.0
    %552 = vmatprep.subr.mxu0 0.0
    %553 = vmatpush1.msra.mxu0 0.0
    %554 = vmatprep.subr.mxu0 0.0
    %555 = vmatpush1.msra.mxu0 0.0
    %556 = vmatprep.subr.mxu0 0.0
    %557 = vmatpush1.msra.mxu0 0.0
    %558 = vmatprep.subr.mxu0 0.0
    %559 = vmatpush1.msra.mxu0 0.0
    %560 = vmatprep.subr.mxu0 0.0
    %561 = vmatpush1.msra.mxu0 0.0
    %562 = vmatprep.subr.mxu0 0.0
    %563 = vmatpush1.msra.mxu0 0.0
    %564 = vmatprep.subr.mxu0 0.0
    %565 = vmatpush1.msra.mxu0 0.0
    %566 = vmatprep.subr.mxu0 0.0
    %567 = vmatpush1.msra.mxu0 0.0
    %568 = vmatprep.subr.mxu0 0.0
    %569 = vmatpush1.msra.mxu0 0.0
    %570 = vmatprep.subr.mxu0 0.0
    %571 = vmatpush1.msra.mxu0 0.0
    %572 = vmatprep.subr.mxu0 0.0
    %573 = vmatpush1.msra.mxu0 0.0
    %574 = vmatprep.subr.mxu0 0.0
    %575 = vmatpush1.msra.mxu0 0.0
    %576 = vmatprep.subr.mxu0 0.0
    %577 = vmatpush1.msra.mxu0 0.0
    %578 = vmatprep.mubr.f32.mxu0 0.0
    %579 = vmatmul.mubr.f32.gmra.mrb[0].mxu0 %v382
    %v580 = vpop.f32.mrb[0].mxu0
    %v581 = vadd.f32 0.0, %v580
    %v582 = vpop.f32.mrb[0].mxu0
    %583 = vmatprep.mubr.f32.mxu0 0.0
    %584 = vmatmul.mubr.f32.gmra.mrb[0].mxu0 %v385
    %v585 = vpop.f32.mrb[0].mxu0
    %v586 = vadd.f32 0.0, %v585
    %v587 = vpop.f32.mrb[0].mxu0
    %588 = vmatprep.mubr.f32.mxu0 0.0
    %589 = vmatmul.mubr.f32.gmra.mrb[0].mxu0 %v388
    %v590 = vpop.f32.mrb[0].mxu0
    %v591 = vadd.f32 0.0, %v590
    %v592 = vpop.f32.mrb[0].mxu0
    %593 = vmatprep.mubr.f32.mxu0 0.0
    %594 = vmatmul.mubr.f32.gmra.mrb[0].mxu0 %v391
    %v595 = vpop.f32.mrb[0].mxu0
    %v596 = vadd.f32 0.0, %v595
    %v597 = vpop.f32.mrb[0].mxu0
    %598 = vmatprep.mubr.f32.mxu0 0.0
    %599 = vmatmul.mubr.f32.gmra.mrb[0].mxu0 %v394
    %v600 = vpop.f32.mrb[0].mxu0
    %v601 = vadd.f32 0.0, %v600
    %v602 = vpop.f32.mrb[0].mxu0
    %603 = vmatprep.mubr.f32.mxu0 0.0
    %604 = vmatmul.mubr.f32.gmra.mrb[0].mxu0 %v397
    %v605 = vpop.f32.mrb[0].mxu0
    %v606 = vadd.f32 0.0, %v605
    %v607 = vpop.f32.mrb[0].mxu0
    %608 = vmatprep.mubr.f32.mxu0 0.0
    %609 = vmatmul.mubr.f32.gmra.mrb[0].mxu0 %v400
    %v610 = vpop.f32.mrb[0].mxu0
    %v611 = vadd.f32 0.0, %v610
    %v612 = vpop.f32.mrb[0].mxu0
    %613 = vmatprep.mubr.f32.mxu0 0.0
    %614 = vmatmul.mubr.f32.gmra.mrb[0].mxu0 %v403
    %v615 = vpop.f32.mrb[0].mxu0
    %v616 = vadd.f32 0.0, %v615
    %v617 = vpop.f32.mrb[0].mxu0
    %618 = vmatprep.mubr.f32.mxu0 0.0
    %619 = vmatmul.mubr.f32.gmra.mrb[0].mxu0 %v406
    %v620 = vpop.f32.mrb[0].mxu0
    %v621 = vadd.f32 0.0, %v620
    %v622 = vpop.f32.mrb[0].mxu0
    %623 = vmatprep.mubr.f32.mxu0 0.0
    %624 = vmatmul.mubr.f32.gmra.mrb[0].mxu0 %v409
    %v625 = vpop.f32.mrb[0].mxu0
    %v626 = vadd.f32 0.0, %v625
    %v627 = vpop.f32.mrb[0].mxu0
    %628 = vmatprep.mubr.f32.mxu0 0.0
    %629 = vmatmul.mubr.f32.gmra.mrb[0].mxu0 %v412
    %v630 = vpop.f32.mrb[0].mxu0
    %v631 = vadd.f32 0.0, %v630
    %v632 = vpop.f32.mrb[0].mxu0
    %633 = vmatprep.mubr.f32.mxu0 0.0
    %634 = vmatmul.mubr.f32.gmra.mrb[0].mxu0 %v415
    %v635 = vpop.f32.mrb[0].mxu0
    %v636 = vadd.f32 0.0, %v635
    %v637 = vpop.f32.mrb[0].mxu0
    %638 = vmatprep.mubr.f32.mxu0 0.0
    %639 = vmatmul.mubr.f32.gmra.mrb[0].mxu0 %v418
    %v640 = vpop.f32.mrb[0].mxu0
    %v641 = vadd.f32 0.0, %v640
    %v642 = vpop.f32.mrb[0].mxu0
    %643 = vmatprep.mubr.f32.mxu0 0.0
    %644 = vmatmul.mubr.f32.gmra.mrb[0].mxu0 %v421
    %v645 = vpop.f32.mrb[0].mxu0
    %v646 = vadd.f32 0.0, %v645
    %v647 = vpop.f32.mrb[0].mxu0
    %648 = vmatprep.mubr.f32.mxu0 0.0
    %649 = vmatmul.mubr.f32.gmra.mrb[0].mxu0 %v424
    %v650 = vpop.f32.mrb[0].mxu0
    %v651 = vadd.f32 0.0, %v650
    %v652 = vpop.f32.mrb[0].mxu0
    %653 = vmatprep.mubr.f32.mxu0 0.0
    %654 = vmatmul.mubr.f32.gmra.mrb[0].mxu0 %v427
    %v655 = vpop.f32.mrb[0].mxu0
    %v656 = vadd.f32 0.0, %v655
    %v657 = vpop.f32.mrb[0].mxu0
    %658 = vmatprep.mubr.f32.mxu0 0.0
    %659 = vmatmul.mubr.f32.gmra.mrb[0].mxu0 %v430
    %v660 = vpop.f32.mrb[0].mxu0
    %v661 = vadd.f32 0.0, %v660
    %v662 = vpop.f32.mrb[0].mxu0
    %663 = vmatprep.mubr.f32.mxu0 0.0
    %664 = vmatmul.mubr.f32.gmra.mrb[0].mxu0 %v433
    %v665 = vpop.f32.mrb[0].mxu0
    %v666 = vadd.f32 0.0, %v665
    %v667 = vpop.f32.mrb[0].mxu0
    %668 = vmatprep.mubr.f32.mxu0 0.0
    %669 = vmatmul.mubr.f32.gmra.mrb[0].mxu0 %v436
    %v670 = vpop.f32.mrb[0].mxu0
    %v671 = vadd.f32 0.0, %v670
    %v672 = vpop.f32.mrb[0].mxu0
    %673 = vmatprep.mubr.f32.mxu0 0.0
    %674 = vmatmul.mubr.f32.gmra.mrb[0].mxu0 %v439
    %v675 = vpop.f32.mrb[0].mxu0
    %v676 = vadd.f32 0.0, %v675
    %v677 = vpop.f32.mrb[0].mxu0
    %678 = vmatprep.mubr.f32.mxu0 0.0
    %679 = vmatmul.mubr.f32.gmra.mrb[0].mxu0 %v442
    %v680 = vpop.f32.mrb[0].mxu0
    %v681 = vadd.f32 0.0, %v680
    %v682 = vpop.f32.mrb[0].mxu0
    %683 = vmatprep.mubr.f32.mxu0 0.0
    %684 = vmatmul.mubr.f32.gmra.mrb[0].mxu0 %v445
    %v685 = vpop.f32.mrb[0].mxu0
    %v686 = vadd.f32 0.0, %v685
    %v687 = vpop.f32.mrb[0].mxu0
    %688 = vmatprep.mubr.f32.mxu0 0.0
    %689 = vmatmul.mubr.f32.gmra.mrb[0].mxu0 %v448
    %v690 = vpop.f32.mrb[0].mxu0
    %v691 = vadd.f32 0.0, %v690
    %v692 = vpop.f32.mrb[0].mxu0
    %693 = vmatprep.mubr.f32.mxu0 0.0
    %694 = vmatmul.mubr.f32.gmra.mrb[0].mxu0 %v451
    %v695 = vpop.f32.mrb[0].mxu0
    %v696 = vadd.f32 0.0, %v695
    %v697 = vpop.f32.mrb[0].mxu0
    %698 = vmatprep.mubr.f32.mxu0 0.0
    %699 = vmatmul.mubr.f32.gmra.mrb[0].mxu0 %v454
    %v700 = vpop.f32.mrb[0].mxu0
    %v701 = vadd.f32 0.0, %v700
    %v702 = vpop.f32.mrb[0].mxu0
    %703 = vmatprep.mubr.f32.mxu0 0.0
    %704 = vmatmul.mubr.f32.gmra.mrb[0].mxu0 %v457
    %v705 = vpop.f32.mrb[0].mxu0
    %v706 = vadd.f32 0.0, %v705
    %v707 = vpop.f32.mrb[0].mxu0
    %708 = vmatprep.mubr.f32.mxu0 0.0
    %709 = vmatmul.mubr.f32.gmra.mrb[0].mxu0 %v460
    %v710 = vpop.f32.mrb[0].mxu0
    %v711 = vadd.f32 0.0, %v710
    %v712 = vpop.f32.mrb[0].mxu0
    %713 = vmatprep.mubr.f32.mxu0 0.0
    %714 = vmatmul.mubr.f32.gmra.mrb[0].mxu0 %v463
    %v715 = vpop.f32.mrb[0].mxu0
    %v716 = vadd.f32 0.0, %v715
    %v717 = vpop.f32.mrb[0].mxu0
    %718 = vmatprep.mubr.f32.mxu0 0.0
    %719 = vmatmul.mubr.f32.gmra.mrb[0].mxu0 %v466
    %v720 = vpop.f32.mrb[0].mxu0
    %v721 = vadd.f32 0.0, %v720
    %v722 = vpop.f32.mrb[0].mxu0
    %723 = vmatprep.mubr.f32.mxu0 0.0
    %724 = vmatmul.mubr.f32.gmra.mrb[0].mxu0 %v469
    %v725 = vpop.f32.mrb[0].mxu0
    %v726 = vadd.f32 0.0, %v725
    %v727 = vpop.f32.mrb[0].mxu0
    %728 = vmatprep.mubr.f32.mxu0 0.0
    %729 = vmatmul.mubr.f32.gmra.mrb[0].mxu0 %v472
    %v730 = vpop.f32.mrb[0].mxu0
    %v731 = vadd.f32 0.0, %v730
    %v732 = vpop.f32.mrb[0].mxu0
    %733 = vmatprep.mubr.f32.mxu0 0.0
    %734 = vmatmul.mubr.f32.gmra.mrb[0].mxu0 %v475
    %v735 = vpop.f32.mrb[0].mxu0
    %v736 = vadd.f32 0.0, %v735
    %v737 = vpop.f32.mrb[0].mxu0
    %738 = vmatprep.mubr.f32.mxu0 0.0
    %739 = vmatmul.mubr.f32.gmra.mrb[0].mxu0 %v478
    %v740 = vpop.f32.mrb[0].mxu0
    %v741 = vadd.f32 0.0, %v740
    %v742 = vpop.f32.mrb[0].mxu0
    %743 = vmatprep.mubr.f32.mxu0 0.0
    %744 = vmatmul.mubr.f32.gmra.mrb[0].mxu0 %v481
    %v745 = vpop.f32.mrb[0].mxu0
    %v746 = vadd.f32 0.0, %v745
    %v747 = vpop.f32.mrb[0].mxu0
    %748 = vmatprep.mubr.f32.mxu0 0.0
    %749 = vmatmul.mubr.f32.gmra.mrb[0].mxu0 %v484
    %v750 = vpop.f32.mrb[0].mxu0
    %v751 = vadd.f32 0.0, %v750
    %v752 = vpop.f32.mrb[0].mxu0
    %753 = vmatprep.mubr.f32.mxu0 0.0
    %754 = vmatmul.mubr.f32.gmra.mrb[0].mxu0 %v487
    %v755 = vpop.f32.mrb[0].mxu0
    %v756 = vadd.f32 0.0, %v755
    %v757 = vpop.f32.mrb[0].mxu0
    %758 = vmatprep.mubr.f32.mxu0 0.0
    %759 = vmatmul.mubr.f32.gmra.mrb[0].mxu0 %v490
    %v760 = vpop.f32.mrb[0].mxu0
    %v761 = vadd.f32 0.0, %v760
    %v762 = vpop.f32.mrb[0].mxu0
    %763 = vmatprep.mubr.f32.mxu0 0.0
    %764 = vmatmul.mubr.f32.gmra.mrb[0].mxu0 %v493
    %v765 = vpop.f32.mrb[0].mxu0
    %v766 = vadd.f32 0.0, %v765
    %v767 = vpop.f32.mrb[0].mxu0
    %768 = vmatprep.mubr.f32.mxu0 0.0
    %769 = vmatmul.mubr.f32.gmra.mrb[0].mxu0 %v496
    %v770 = vpop.f32.mrb[0].mxu0
    %v771 = vadd.f32 0.0, %v770
    %v772 = vpop.f32.mrb[0].mxu0
    %773 = vmatprep.mubr.f32.mxu0 0.0
    %774 = vmatmul.mubr.f32.gmra.mrb[0].mxu0 %v499
    %v775 = vpop.f32.mrb[0].mxu0
    %v776 = vadd.f32 0.0, %v775
    %v777 = vpop.f32.mrb[0].mxu0
    %778 = vmatprep.mubr.f32.mxu0 0.0
    %779 = vmatmul.mubr.f32.gmra.mrb[0].mxu0 %v502
    %v780 = vpop.f32.mrb[0].mxu0
    %v781 = vadd.f32 0.0, %v780
    %v782 = vpop.f32.mrb[0].mxu0
    %783 = vmatprep.mubr.f32.mxu0 0.0
    %784 = vmatmul.mubr.f32.gmra.mrb[0].mxu0 %v505
    %v785 = vpop.f32.mrb[0].mxu0
    %v786 = vadd.f32 0.0, %v785
    %v787 = vpop.f32.mrb[0].mxu0
    %788 = vmatprep.mubr.f32.mxu0 0.0
    %789 = vmatmul.mubr.f32.gmra.mrb[0].mxu0 %v508
    %v790 = vpop.f32.mrb[0].mxu0
    %v791 = vadd.f32 0.0, %v790
    %v792 = vpop.f32.mrb[0].mxu0
    %793 = vdwg.mxu0
    %v795 = vsel %vm380, %v291, 0
    %v798 = vsel %vm380, %v292, 0
    %v801 = vsel %vm380, %v293, 0
    %v804 = vsel %vm380, %v294, 0
    %v807 = vsel %vm380, %v295, 0
    %v810 = vsel %vm380, %v296, 0
    %v813 = vsel %vm380, %v297, 0
    %v816 = vsel %vm380, %v298, 0
    %v819 = vsel %vm380, %v299, 0
    %v822 = vsel %vm380, %v300, 0
    %v825 = vsel %vm380, %v301, 0
    %v828 = vsel %vm380, %v302, 0
    %v831 = vsel %vm380, %v303, 0
    %v834 = vsel %vm380, %v304, 0
    %v837 = vsel %vm380, %v305, 0
    %v840 = vsel %vm380, %v306, 0
    %v843 = vsel %vm380, %v307, 0
    %v846 = vsel %vm380, %v308, 0
    %v849 = vsel %vm380, %v309, 0
    %v852 = vsel %vm380, %v310, 0
    %v855 = vsel %vm380, %v311, 0
    %v858 = vsel %vm380, %v312, 0
    %v861 = vsel %vm380, %v313, 0
    %v864 = vsel %vm380, %v314, 0
    %v867 = vsel %vm380, %v315, 0
    %v870 = vsel %vm380, %v316, 0
    %v873 = vsel %vm380, %v317, 0
    %v876 = vsel %vm380, %v318, 0
    %v879 = vsel %vm380, %v319, 0
    %v882 = vsel %vm380, %v320, 0
    %v885 = vsel %vm380, %v321, 0
    %v888 = vsel %vm380, %v322, 0
    %v891 = vsel %vm380, %v323, 0
    %v894 = vsel %vm380, %v324, 0
    %v897 = vsel %vm380, %v325, 0
    %v900 = vsel %vm380, %v326, 0
    %v903 = vsel %vm380, %v327, 0
    %v906 = vsel %vm380, %v328, 0
    %v909 = vsel %vm380, %v329, 0
    %v912 = vsel %vm380, %v330, 0
    %v915 = vsel %vm380, %v331, 0
    %v918 = vsel %vm380, %v332, 0
    %v921 = vsel %vm380, %v333, 0
    %v924 = vsel %vm510, %v334, 0
    %926 = vmatprep.subr.mxu0 0.0
    %927 = vmatpush1.msra.mxu0 %v924
    %928 = vmatprep.subr.mxu0 0.0
    %929 = vmatpush1.msra.mxu0 0.0
    %930 = vmatprep.subr.mxu0 0.0
    %931 = vmatpush1.msra.mxu0 0.0
    %932 = vmatprep.subr.mxu0 0.0
    %933 = vmatpush1.msra.mxu0 0.0
    %934 = vmatprep.subr.mxu0 0.0
    %935 = vmatpush1.msra.mxu0 0.0
    %936 = vmatprep.subr.mxu0 0.0
    %937 = vmatpush1.msra.mxu0 0.0
    %938 = vmatprep.subr.mxu0 0.0
    %939 = vmatpush1.msra.mxu0 0.0
    %940 = vmatprep.subr.mxu0 0.0
    %941 = vmatpush1.msra.mxu0 0.0
    %942 = vmatprep.subr.mxu0 0.0
    %943 = vmatpush1.msra.mxu0 0.0
    %944 = vmatprep.subr.mxu0 0.0
    %945 = vmatpush1.msra.mxu0 0.0
    %946 = vmatprep.subr.mxu0 0.0
    %947 = vmatpush1.msra.mxu0 0.0
    %948 = vmatprep.subr.mxu0 0.0
    %949 = vmatpush1.msra.mxu0 0.0
    %950 = vmatprep.subr.mxu0 0.0
    %951 = vmatpush1.msra.mxu0 0.0
    %952 = vmatprep.subr.mxu0 0.0
    %953 = vmatpush1.msra.mxu0 0.0
    %954 = vmatprep.subr.mxu0 0.0
    %955 = vmatpush1.msra.mxu0 0.0
    %956 = vmatprep.subr.mxu0 0.0
    %957 = vmatpush1.msra.mxu0 0.0
    %958 = vmatprep.subr.mxu0 0.0
    %959 = vmatpush1.msra.mxu0 0.0
    %960 = vmatprep.subr.mxu0 0.0
    %961 = vmatpush1.msra.mxu0 0.0
    %962 = vmatprep.subr.mxu0 0.0
    %963 = vmatpush1.msra.mxu0 0.0
    %964 = vmatprep.subr.mxu0 0.0
    %965 = vmatpush1.msra.mxu0 0.0
    %966 = vmatprep.subr.mxu0 0.0
    %967 = vmatpush1.msra.mxu0 0.0
    %968 = vmatprep.subr.mxu0 0.0
    %969 = vmatpush1.msra.mxu0 0.0
    %970 = vmatprep.subr.mxu0 0.0
    %971 = vmatpush1.msra.mxu0 0.0
    %972 = vmatprep.subr.mxu0 0.0
    %973 = vmatpush1.msra.mxu0 0.0
    %974 = vmatprep.subr.mxu0 0.0
    %975 = vmatpush1.msra.mxu0 0.0
    %976 = vmatprep.subr.mxu0 0.0
    %977 = vmatpush1.msra.mxu0 0.0
    %978 = vmatprep.subr.mxu0 0.0
    %979 = vmatpush1.msra.mxu0 0.0
    %980 = vmatprep.subr.mxu0 0.0
    %981 = vmatpush1.msra.mxu0 0.0
    %982 = vmatprep.subr.mxu0 0.0
    %983 = vmatpush1.msra.mxu0 0.0
    %984 = vmatprep.subr.mxu0 0.0
    %985 = vmatpush1.msra.mxu0 0.0
    %986 = vmatprep.subr.mxu0 0.0
    %987 = vmatpush1.msra.mxu0 0.0
    %988 = vmatprep.subr.mxu0 0.0
    %989 = vmatpush1.msra.mxu0 0.0
    %990 = vmatprep.mubr.f32.mxu0 0.0
    %991 = vmatmul.mubr.f32.gmra.mrb[0].mxu0 %v795
    %v992 = vpop.f32.mrb[0].mxu0
    %v993 = vadd.f32 %v581, %v992
    %v994 = vpop.f32.mrb[0].mxu0
    %995 = vmatprep.mubr.f32.mxu0 0.0
    %996 = vmatmul.mubr.f32.gmra.mrb[0].mxu0 %v798
    %v997 = vpop.f32.mrb[0].mxu0
    %v998 = vadd.f32 %v586, %v997
    %v999 = vpop.f32.mrb[0].mxu0
    %1000 = vmatprep.mubr.f32.mxu0 0.0
    %1001 = vmatmul.mubr.f32.gmra.mrb[0].mxu0 %v801
    %v1002 = vpop.f32.mrb[0].mxu0
    %v1003 = vadd.f32 %v591, %v1002
    %v1004 = vpop.f32.mrb[0].mxu0
    %1005 = vmatprep.mubr.f32.mxu0 0.0
    %1006 = vmatmul.mubr.f32.gmra.mrb[0].mxu0 %v804
    %v1007 = vpop.f32.mrb[0].mxu0
    %v1008 = vadd.f32 %v596, %v1007
    %v1009 = vpop.f32.mrb[0].mxu0
    %1010 = vmatprep.mubr.f32.mxu0 0.0
    %1011 = vmatmul.mubr.f32.gmra.mrb[0].mxu0 %v807
    %v1012 = vpop.f32.mrb[0].mxu0
    %v1013 = vadd.f32 %v601, %v1012
    %v1014 = vpop.f32.mrb[0].mxu0
    %1015 = vmatprep.mubr.f32.mxu0 0.0
    %1016 = vmatmul.mubr.f32.gmra.mrb[0].mxu0 %v810
    %v1017 = vpop.f32.mrb[0].mxu0
    %v1018 = vadd.f32 %v606, %v1017
    %v1019 = vpop.f32.mrb[0].mxu0
    %1020 = vmatprep.mubr.f32.mxu0 0.0
    %1021 = vmatmul.mubr.f32.gmra.mrb[0].mxu0 %v813
    %v1022 = vpop.f32.mrb[0].mxu0
    %v1023 = vadd.f32 %v611, %v1022
    %v1024 = vpop.f32.mrb[0].mxu0
    %1025 = vmatprep.mubr.f32.mxu0 0.0
    %1026 = vmatmul.mubr.f32.gmra.mrb[0].mxu0 %v816
    %v1027 = vpop.f32.mrb[0].mxu0
    %v1028 = vadd.f32 %v616, %v1027
    %v1029 = vpop.f32.mrb[0].mxu0
    %1030 = vmatprep.mubr.f32.mxu0 0.0
    %1031 = vmatmul.mubr.f32.gmra.mrb[0].mxu0 %v819
    %v1032 = vpop.f32.mrb[0].mxu0
    %v1033 = vadd.f32 %v621, %v1032
    %v1034 = vpop.f32.mrb[0].mxu0
    %1035 = vmatprep.mubr.f32.mxu0 0.0
    %1036 = vmatmul.mubr.f32.gmra.mrb[0].mxu0 %v822
    %v1037 = vpop.f32.mrb[0].mxu0
    %v1038 = vadd.f32 %v626, %v1037
    %v1039 = vpop.f32.mrb[0].mxu0
    %1040 = vmatprep.mubr.f32.mxu0 0.0
    %1041 = vmatmul.mubr.f32.gmra.mrb[0].mxu0 %v825
    %v1042 = vpop.f32.mrb[0].mxu0
    %v1043 = vadd.f32 %v631, %v1042
    %v1044 = vpop.f32.mrb[0].mxu0
    %1045 = vmatprep.mubr.f32.mxu0 0.0
    %1046 = vmatmul.mubr.f32.gmra.mrb[0].mxu0 %v828
    %v1047 = vpop.f32.mrb[0].mxu0
    %v1048 = vadd.f32 %v636, %v1047
    %v1049 = vpop.f32.mrb[0].mxu0
    %1050 = vmatprep.mubr.f32.mxu0 0.0
    %1051 = vmatmul.mubr.f32.gmra.mrb[0].mxu0 %v831
    %v1052 = vpop.f32.mrb[0].mxu0
    %v1053 = vadd.f32 %v641, %v1052
    %v1054 = vpop.f32.mrb[0].mxu0
    %1055 = vmatprep.mubr.f32.mxu0 0.0
    %1056 = vmatmul.mubr.f32.gmra.mrb[0].mxu0 %v834
    %v1057 = vpop.f32.mrb[0].mxu0
    %v1058 = vadd.f32 %v646, %v1057
    %v1059 = vpop.f32.mrb[0].mxu0
    %1060 = vmatprep.mubr.f32.mxu0 0.0
    %1061 = vmatmul.mubr.f32.gmra.mrb[0].mxu0 %v837
    %v1062 = vpop.f32.mrb[0].mxu0
    %v1063 = vadd.f32 %v651, %v1062
    %v1064 = vpop.f32.mrb[0].mxu0
    %1065 = vmatprep.mubr.f32.mxu0 0.0
    %1066 = vmatmul.mubr.f32.gmra.mrb[0].mxu0 %v840
    %v1067 = vpop.f32.mrb[0].mxu0
    %v1068 = vadd.f32 %v656, %v1067
    %v1069 = vpop.f32.mrb[0].mxu0
    %1070 = vmatprep.mubr.f32.mxu0 0.0
    %1071 = vmatmul.mubr.f32.gmra.mrb[0].mxu0 %v843
    %v1072 = vpop.f32.mrb[0].mxu0
    %v1073 = vadd.f32 %v661, %v1072
    %v1074 = vpop.f32.mrb[0].mxu0
    %1075 = vmatprep.mubr.f32.mxu0 0.0
    %1076 = vmatmul.mubr.f32.gmra.mrb[0].mxu0 %v846
    %v1077 = vpop.f32.mrb[0].mxu0
    %v1078 = vadd.f32 %v666, %v1077
    %v1079 = vpop.f32.mrb[0].mxu0
    %1080 = vmatprep.mubr.f32.mxu0 0.0
    %1081 = vmatmul.mubr.f32.gmra.mrb[0].mxu0 %v849
    %v1082 = vpop.f32.mrb[0].mxu0
    %v1083 = vadd.f32 %v671, %v1082
    %v1084 = vpop.f32.mrb[0].mxu0
    %1085 = vmatprep.mubr.f32.mxu0 0.0
    %1086 = vmatmul.mubr.f32.gmra.mrb[0].mxu0 %v852
    %v1087 = vpop.f32.mrb[0].mxu0
    %v1088 = vadd.f32 %v676, %v1087
    %v1089 = vpop.f32.mrb[0].mxu0
    %1090 = vmatprep.mubr.f32.mxu0 0.0
    %1091 = vmatmul.mubr.f32.gmra.mrb[0].mxu0 %v855
    %v1092 = vpop.f32.mrb[0].mxu0
    %v1093 = vadd.f32 %v681, %v1092
    %v1094 = vpop.f32.mrb[0].mxu0
    %1095 = vmatprep.mubr.f32.mxu0 0.0
    %1096 = vmatmul.mubr.f32.gmra.mrb[0].mxu0 %v858
    %v1097 = vpop.f32.mrb[0].mxu0
    %v1098 = vadd.f32 %v686, %v1097
    %v1099 = vpop.f32.mrb[0].mxu0
    %1100 = vmatprep.mubr.f32.mxu0 0.0
    %1101 = vmatmul.mubr.f32.gmra.mrb[0].mxu0 %v861
    %v1102 = vpop.f32.mrb[0].mxu0
    %v1103 = vadd.f32 %v691, %v1102
    %v1104 = vpop.f32.mrb[0].mxu0
    %1105 = vmatprep.mubr.f32.mxu0 0.0
    %1106 = vmatmul.mubr.f32.gmra.mrb[0].mxu0 %v864
    %v1107 = vpop.f32.mrb[0].mxu0
    %v1108 = vadd.f32 %v696, %v1107
    %v1109 = vpop.f32.mrb[0].mxu0
    %1110 = vmatprep.mubr.f32.mxu0 0.0
    %1111 = vmatmul.mubr.f32.gmra.mrb[0].mxu0 %v867
    %v1112 = vpop.f32.mrb[0].mxu0
    %v1113 = vadd.f32 %v701, %v1112
    %v1114 = vpop.f32.mrb[0].mxu0
    %1115 = vmatprep.mubr.f32.mxu0 0.0
    %1116 = vmatmul.mubr.f32.gmra.mrb[0].mxu0 %v870
    %v1117 = vpop.f32.mrb[0].mxu0
    %v1118 = vadd.f32 %v706, %v1117
    %v1119 = vpop.f32.mrb[0].mxu0
    %1120 = vmatprep.mubr.f32.mxu0 0.0
    %1121 = vmatmul.mubr.f32.gmra.mrb[0].mxu0 %v873
    %v1122 = vpop.f32.mrb[0].mxu0
    %v1123 = vadd.f32 %v711, %v1122
    %v1124 = vpop.f32.mrb[0].mxu0
    %1125 = vmatprep.mubr.f32.mxu0 0.0
    %1126 = vmatmul.mubr.f32.gmra.mrb[0].mxu0 %v876
    %v1127 = vpop.f32.mrb[0].mxu0
    %v1128 = vadd.f32 %v716, %v1127
    %v1129 = vpop.f32.mrb[0].mxu0
    %1130 = vmatprep.mubr.f32.mxu0 0.0
    %1131 = vmatmul.mubr.f32.gmra.mrb[0].mxu0 %v879
    %v1132 = vpop.f32.mrb[0].mxu0
    %v1133 = vadd.f32 %v721, %v1132
    %v1134 = vpop.f32.mrb[0].mxu0
    %1135 = vmatprep.mubr.f32.mxu0 0.0
    %1136 = vmatmul.mubr.f32.gmra.mrb[0].mxu0 %v882
    %v1137 = vpop.f32.mrb[0].mxu0
    %v1138 = vadd.f32 %v726, %v1137
    %v1139 = vpop.f32.mrb[0].mxu0
    %1140 = vmatprep.mubr.f32.mxu0 0.0
    %1141 = vmatmul.mubr.f32.gmra.mrb[0].mxu0 %v885
    %v1142 = vpop.f32.mrb[0].mxu0
    %v1143 = vadd.f32 %v731, %v1142
    %v1144 = vpop.f32.mrb[0].mxu0
    %1145 = vmatprep.mubr.f32.mxu0 0.0
    %1146 = vmatmul.mubr.f32.gmra.mrb[0].mxu0 %v888
    %v1147 = vpop.f32.mrb[0].mxu0
    %v1148 = vadd.f32 %v736, %v1147
    %v1149 = vpop.f32.mrb[0].mxu0
    %1150 = vmatprep.mubr.f32.mxu0 0.0
    %1151 = vmatmul.mubr.f32.gmra.mrb[0].mxu0 %v891
    %v1152 = vpop.f32.mrb[0].mxu0
    %v1153 = vadd.f32 %v741, %v1152
    %v1154 = vpop.f32.mrb[0].mxu0
    %1155 = vmatprep.mubr.f32.mxu0 0.0
    %1156 = vmatmul.mubr.f32.gmra.mrb[0].mxu0 %v894
    %v1157 = vpop.f32.mrb[0].mxu0
    %v1158 = vadd.f32 %v746, %v1157
    %v1159 = vpop.f32.mrb[0].mxu0
    %1160 = vmatprep.mubr.f32.mxu0 0.0
    %1161 = vmatmul.mubr.f32.gmra.mrb[0].mxu0 %v897
    %v1162 = vpop.f32.mrb[0].mxu0
    %v1163 = vadd.f32 %v751, %v1162
    %v1164 = vpop.f32.mrb[0].mxu0
    %1165 = vmatprep.mubr.f32.mxu0 0.0
    %1166 = vmatmul.mubr.f32.gmra.mrb[0].mxu0 %v900
    %v1167 = vpop.f32.mrb[0].mxu0
    %v1168 = vadd.f32 %v756, %v1167
    %v1169 = vpop.f32.mrb[0].mxu0
    %1170 = vmatprep.mubr.f32.mxu0 0.0
    %1171 = vmatmul.mubr.f32.gmra.mrb[0].mxu0 %v903
    %v1172 = vpop.f32.mrb[0].mxu0
    %v1173 = vadd.f32 %v761, %v1172
    %v1174 = vpop.f32.mrb[0].mxu0
    %1175 = vmatprep.mubr.f32.mxu0 0.0
    %1176 = vmatmul.mubr.f32.gmra.mrb[0].mxu0 %v906
    %v1177 = vpop.f32.mrb[0].mxu0
    %v1178 = vadd.f32 %v766, %v1177
    %v1179 = vpop.f32.mrb[0].mxu0
    %1180 = vmatprep.mubr.f32.mxu0 0.0
    %1181 = vmatmul.mubr.f32.gmra.mrb[0].mxu0 %v909
    %v1182 = vpop.f32.mrb[0].mxu0
    %v1183 = vadd.f32 %v771, %v1182
    %v1184 = vpop.f32.mrb[0].mxu0
    %1185 = vmatprep.mubr.f32.mxu0 0.0
    %1186 = vmatmul.mubr.f32.gmra.mrb[0].mxu0 %v912
    %v1187 = vpop.f32.mrb[0].mxu0
    %v1188 = vadd.f32 %v776, %v1187
    %v1189 = vpop.f32.mrb[0].mxu0
    %1190 = vmatprep.mubr.f32.mxu0 0.0
    %1191 = vmatmul.mubr.f32.gmra.mrb[0].mxu0 %v915
    %v1192 = vpop.f32.mrb[0].mxu0
    %v1193 = vadd.f32 %v781, %v1192
    %v1194 = vpop.f32.mrb[0].mxu0
    %1195 = vmatprep.mubr.f32.mxu0 0.0
    %1196 = vmatmul.mubr.f32.gmra.mrb[0].mxu0 %v918
    %v1197 = vpop.f32.mrb[0].mxu0
    %v1198 = vadd.f32 %v786, %v1197
    %v1199 = vpop.f32.mrb[0].mxu0
    %1200 = vmatprep.mubr.f32.mxu0 0.0
    %1201 = vmatmul.mubr.f32.gmra.mrb[0].mxu0 %v921
    %v1202 = vpop.f32.mrb[0].mxu0
    %v1203 = vadd.f32 %v791, %v1202
    %v1204 = vpop.f32.mrb[0].mxu0
    %1205 = vdwg.mxu0
    %v1206 = vld [vmem:[%s0 + $0xd] sm:$0xff]
    %v1207 = vld [vmem:[%s0 + $0x15] sm:$0xff]
    %v1208 = vld [vmem:[%s0 + $0x1d] sm:$0xff]
    %v1209 = vld [vmem:[%s0 + $0x25] sm:$0xff]
    %v1210 = vld [vmem:[%s0 + $0x2d] sm:$0xff]
    %v1211 = vld [vmem:[%s0 + $0x35] sm:$0xff]
    %v1212 = vld [vmem:[%s0 + $0x3d] sm:$0xff]
    %v1213 = vld [vmem:[%s0 + $0x45] sm:$0xff]
    %v1214 = vld [vmem:[%s0 + $0x4d] sm:$0xff]
    %v1215 = vld [vmem:[%s0 + $0x55] sm:$0xff]
    %v1216 = vld [vmem:[%s0 + $0x5d] sm:$0xff]
    %v1217 = vld [vmem:[%s0 + $0x65] sm:$0xff]
    %v1218 = vld [vmem:[%s0 + $0x6d] sm:$0xff]
    %v1219 = vld [vmem:[%s0 + $0x75] sm:$0xff]
    %v1220 = vld [vmem:[%s0 + $0x7d] sm:$0xff]
    %v1221 = vld [vmem:[%s0 + $0x85] sm:$0xff]
    %v1222 = vld [vmem:[%s0 + $0x8d] sm:$0xff]
    %v1223 = vld [vmem:[%s0 + $0x95] sm:$0xff]
    %v1224 = vld [vmem:[%s0 + $0x9d] sm:$0xff]
    %v1225 = vld [vmem:[%s0 + $0xa5] sm:$0xff]
    %v1226 = vld [vmem:[%s0 + $0xad] sm:$0xff]
    %v1227 = vld [vmem:[%s0 + $0xb5] sm:$0xff]
    %v1228 = vld [vmem:[%s0 + $0xbd] sm:$0xff]
    %v1229 = vld [vmem:[%s0 + $0xc5] sm:$0xff]
    %v1230 = vld [vmem:[%s0 + $0xcd] sm:$0xff]
    %v1231 = vld [vmem:[%s0 + $0xd5] sm:$0xff]
    %v1232 = vld [vmem:[%s0 + $0xdd] sm:$0xff]
    %v1233 = vld [vmem:[%s0 + $0xe5] sm:$0xff]
    %v1234 = vld [vmem:[%s0 + $0xed] sm:$0xff]
    %v1235 = vld [vmem:[%s0 + $0xf5] sm:$0xff]
    %v1236 = vld [vmem:[%s0 + $0xfd] sm:$0xff]
    %v1237 = vld [vmem:[%s0 + $0x105] sm:$0xff]
    %v1238 = vld [vmem:[%s0 + $0x10d] sm:$0xff]
    %v1239 = vld [vmem:[%s0 + $0x115] sm:$0xff]
    %v1240 = vld [vmem:[%s0 + $0x11d] sm:$0xff]
    %v1241 = vld [vmem:[%s0 + $0x125] sm:$0xff]
    %v1242 = vld [vmem:[%s0 + $0x12d] sm:$0xff]
    %v1243 = vld [vmem:[%s0 + $0x135] sm:$0xff]
    %v1244 = vld [vmem:[%s0 + $0x13d] sm:$0xff]
    %v1245 = vld [vmem:[%s0 + $0x145] sm:$0xff]
    %v1246 = vld [vmem:[%s0 + $0x14d] sm:$0xff]
    %v1247 = vld [vmem:[%s0 + $0x155] sm:$0xff]
    %v1248 = vld [vmem:[%s0 + $0x15d] sm:$0x3]
    %s1249 = scalar_lea.vmem %s2, 8
    %v1250 = vld [vmem:[%s1249] sm:$0x7]
    %v1252 = vsel %vm380, %v1206, 0
    %v1255 = vsel %vm380, %v1207, 0
    %v1258 = vsel %vm380, %v1208, 0
    %v1261 = vsel %vm380, %v1209, 0
    %v1264 = vsel %vm380, %v1210, 0
    %v1267 = vsel %vm380, %v1211, 0
    %v1270 = vsel %vm380, %v1212, 0
    %v1273 = vsel %vm380, %v1213, 0
    %v1276 = vsel %vm380, %v1214, 0
    %v1279 = vsel %vm380, %v1215, 0
    %v1282 = vsel %vm380, %v1216, 0
    %v1285 = vsel %vm380, %v1217, 0
    %v1288 = vsel %vm380, %v1218, 0
    %v1291 = vsel %vm380, %v1219, 0
    %v1294 = vsel %vm380, %v1220, 0
    %v1297 = vsel %vm380, %v1221, 0
    %v1300 = vsel %vm380, %v1222, 0
    %v1303 = vsel %vm380, %v1223, 0
    %v1306 = vsel %vm380, %v1224, 0
    %v1309 = vsel %vm380, %v1225, 0
    %v1312 = vsel %vm380, %v1226, 0
    %v1315 = vsel %vm380, %v1227, 0
    %v1318 = vsel %vm380, %v1228, 0
    %v1321 = vsel %vm380, %v1229, 0
    %v1324 = vsel %vm380, %v1230, 0
    %v1327 = vsel %vm380, %v1231, 0
    %v1330 = vsel %vm380, %v1232, 0
    %v1333 = vsel %vm380, %v1233, 0
    %v1336 = vsel %vm380, %v1234, 0
    %v1339 = vsel %vm380, %v1235, 0
    %v1342 = vsel %vm380, %v1236, 0
    %v1345 = vsel %vm380, %v1237, 0
    %v1348 = vsel %vm380, %v1238, 0
    %v1351 = vsel %vm380, %v1239, 0
    %v1354 = vsel %vm380, %v1240, 0
    %v1357 = vsel %vm380, %v1241, 0
    %v1360 = vsel %vm380, %v1242, 0
    %v1363 = vsel %vm380, %v1243, 0
    %v1366 = vsel %vm380, %v1244, 0
    %v1369 = vsel %vm380, %v1245, 0
    %v1372 = vsel %vm380, %v1246, 0
    %v1375 = vsel %vm380, %v1247, 0
    %v1378 = vsel %vm380, %v1248, 0
    %v1381 = vsel %vm510, %v1250, 0
    %1383 = vmatprep.subr.mxu0 0.0
    %1384 = vmatpush1.msra.mxu0 %v1381
    %1385 = vmatprep.subr.mxu0 0.0
    %1386 = vmatpush1.msra.mxu0 0.0
    %1387 = vmatprep.subr.mxu0 0.0
    %1388 = vmatpush1.msra.mxu0 0.0
    %1389 = vmatprep.subr.mxu0 0.0
    %1390 = vmatpush1.msra.mxu0 0.0
    %1391 = vmatprep.subr.mxu0 0.0
    %1392 = vmatpush1.msra.mxu0 0.0
    %1393 = vmatprep.subr.mxu0 0.0
    %1394 = vmatpush1.msra.mxu0 0.0
    %1395 = vmatprep.subr.mxu0 0.0
    %1396 = vmatpush1.msra.mxu0 0.0
    %1397 = vmatprep.subr.mxu0 0.0
    %1398 = vmatpush1.msra.mxu0 0.0
    %1399 = vmatprep.subr.mxu0 0.0
    %1400 = vmatpush1.msra.mxu0 0.0
    %1401 = vmatprep.subr.mxu0 0.0
    %1402 = vmatpush1.msra.mxu0 0.0
    %1403 = vmatprep.subr.mxu0 0.0
    %1404 = vmatpush1.msra.mxu0 0.0
    %1405 = vmatprep.subr.mxu0 0.0
    %1406 = vmatpush1.msra.mxu0 0.0
    %1407 = vmatprep.subr.mxu0 0.0
    %1408 = vmatpush1.msra.mxu0 0.0
    %1409 = vmatprep.subr.mxu0 0.0
    %1410 = vmatpush1.msra.mxu0 0.0
    %1411 = vmatprep.subr.mxu0 0.0
    %1412 = vmatpush1.msra.mxu0 0.0
    %1413 = vmatprep.subr.mxu0 0.0
    %1414 = vmatpush1.msra.mxu0 0.0
    %1415 = vmatprep.subr.mxu0 0.0
    %1416 = vmatpush1.msra.mxu0 0.0
    %1417 = vmatprep.subr.mxu0 0.0
    %1418 = vmatpush1.msra.mxu0 0.0
    %1419 = vmatprep.subr.mxu0 0.0
    %1420 = vmatpush1.msra.mxu0 0.0
    %1421 = vmatprep.subr.mxu0 0.0
    %1422 = vmatpush1.msra.mxu0 0.0
    %1423 = vmatprep.subr.mxu0 0.0
    %1424 = vmatpush1.msra.mxu0 0.0
    %1425 = vmatprep.subr.mxu0 0.0
    %1426 = vmatpush1.msra.mxu0 0.0
    %1427 = vmatprep.subr.mxu0 0.0
    %1428 = vmatpush1.msra.mxu0 0.0
    %1429 = vmatprep.subr.mxu0 0.0
    %1430 = vmatpush1.msra.mxu0 0.0
    %1431 = vmatprep.subr.mxu0 0.0
    %1432 = vmatpush1.msra.mxu0 0.0
    %1433 = vmatprep.subr.mxu0 0.0
    %1434 = vmatpush1.msra.mxu0 0.0
    %1435 = vmatprep.subr.mxu0 0.0
    %1436 = vmatpush1.msra.mxu0 0.0
    %1437 = vmatprep.subr.mxu0 0.0
    %1438 = vmatpush1.msra.mxu0 0.0
    %1439 = vmatprep.subr.mxu0 0.0
    %1440 = vmatpush1.msra.mxu0 0.0
    %1441 = vmatprep.subr.mxu0 0.0
    %1442 = vmatpush1.msra.mxu0 0.0
    %1443 = vmatprep.subr.mxu0 0.0
    %1444 = vmatpush1.msra.mxu0 0.0
    %1445 = vmatprep.subr.mxu0 0.0
    %1446 = vmatpush1.msra.mxu0 0.0
    %1447 = vmatprep.mubr.f32.mxu0 0.0
    %1448 = vmatmul.mubr.f32.gmra.mrb[0].mxu0 %v1252
    %v1449 = vpop.f32.mrb[0].mxu0
    %v1450 = vadd.f32 0.0, %v1449
    %v1451 = vpop.f32.mrb[0].mxu0
    %1452 = vmatprep.mubr.f32.mxu0 0.0
    %1453 = vmatmul.mubr.f32.gmra.mrb[0].mxu0 %v1255
    %v1454 = vpop.f32.mrb[0].mxu0
    %v1455 = vadd.f32 0.0, %v1454
    %v1456 = vpop.f32.mrb[0].mxu0
    %1457 = vmatprep.mubr.f32.mxu0 0.0
    %1458 = vmatmul.mubr.f32.gmra.mrb[0].mxu0 %v1258
    %v1459 = vpop.f32.mrb[0].mxu0
    %v1460 = vadd.f32 0.0, %v1459
    %v1461 = vpop.f32.mrb[0].mxu0
    %1462 = vmatprep.mubr.f32.mxu0 0.0
    %1463 = vmatmul.mubr.f32.gmra.mrb[0].mxu0 %v1261
    %v1464 = vpop.f32.mrb[0].mxu0
    %v1465 = vadd.f32 0.0, %v1464
    %v1466 = vpop.f32.mrb[0].mxu0
    %1467 = vmatprep.mubr.f32.mxu0 0.0
    %1468 = vmatmul.mubr.f32.gmra.mrb[0].mxu0 %v1264
    %v1469 = vpop.f32.mrb[0].mxu0
    %v1470 = vadd.f32 0.0, %v1469
    %v1471 = vpop.f32.mrb[0].mxu0
    %1472 = vmatprep.mubr.f32.mxu0 0.0
    %1473 = vmatmul.mubr.f32.gmra.mrb[0].mxu0 %v1267
    %v1474 = vpop.f32.mrb[0].mxu0
    %v1475 = vadd.f32 0.0, %v1474
    %v1476 = vpop.f32.mrb[0].mxu0
    %1477 = vmatprep.mubr.f32.mxu0 0.0
    %1478 = vmatmul.mubr.f32.gmra.mrb[0].mxu0 %v1270
    %v1479 = vpop.f32.mrb[0].mxu0
    %v1480 = vadd.f32 0.0, %v1479
    %v1481 = vpop.f32.mrb[0].mxu0
    %1482 = vmatprep.mubr.f32.mxu0 0.0
    %1483 = vmatmul.mubr.f32.gmra.mrb[0].mxu0 %v1273
    %v1484 = vpop.f32.mrb[0].mxu0
    %v1485 = vadd.f32 0.0, %v1484
    %v1486 = vpop.f32.mrb[0].mxu0
    %1487 = vmatprep.mubr.f32.mxu0 0.0
    %1488 = vmatmul.mubr.f32.gmra.mrb[0].mxu0 %v1276
    %v1489 = vpop.f32.mrb[0].mxu0
    %v1490 = vadd.f32 0.0, %v1489
    %v1491 = vpop.f32.mrb[0].mxu0
    %1492 = vmatprep.mubr.f32.mxu0 0.0
    %1493 = vmatmul.mubr.f32.gmra.mrb[0].mxu0 %v1279
    %v1494 = vpop.f32.mrb[0].mxu0
    %v1495 = vadd.f32 0.0, %v1494
    %v1496 = vpop.f32.mrb[0].mxu0
    %1497 = vmatprep.mubr.f32.mxu0 0.0
    %1498 = vmatmul.mubr.f32.gmra.mrb[0].mxu0 %v1282
    %v1499 = vpop.f32.mrb[0].mxu0
    %v1500 = vadd.f32 0.0, %v1499
    %v1501 = vpop.f32.mrb[0].mxu0
    %1502 = vmatprep.mubr.f32.mxu0 0.0
    %1503 = vmatmul.mubr.f32.gmra.mrb[0].mxu0 %v1285
    %v1504 = vpop.f32.mrb[0].mxu0
    %v1505 = vadd.f32 0.0, %v1504
    %v1506 = vpop.f32.mrb[0].mxu0
    %1507 = vmatprep.mubr.f32.mxu0 0.0
    %1508 = vmatmul.mubr.f32.gmra.mrb[0].mxu0 %v1288
    %v1509 = vpop.f32.mrb[0].mxu0
    %v1510 = vadd.f32 0.0, %v1509
    %v1511 = vpop.f32.mrb[0].mxu0
    %1512 = vmatprep.mubr.f32.mxu0 0.0
    %1513 = vmatmul.mubr.f32.gmra.mrb[0].mxu0 %v1291
    %v1514 = vpop.f32.mrb[0].mxu0
    %v1515 = vadd.f32 0.0, %v1514
    %v1516 = vpop.f32.mrb[0].mxu0
    %1517 = vmatprep.mubr.f32.mxu0 0.0
    %1518 = vmatmul.mubr.f32.gmra.mrb[0].mxu0 %v1294
    %v1519 = vpop.f32.mrb[0].mxu0
    %v1520 = vadd.f32 0.0, %v1519
    %v1521 = vpop.f32.mrb[0].mxu0
    %1522 = vmatprep.mubr.f32.mxu0 0.0
    %1523 = vmatmul.mubr.f32.gmra.mrb[0].mxu0 %v1297
    %v1524 = vpop.f32.mrb[0].mxu0
    %v1525 = vadd.f32 0.0, %v1524
    %v1526 = vpop.f32.mrb[0].mxu0
    %1527 = vmatprep.mubr.f32.mxu0 0.0
    %1528 = vmatmul.mubr.f32.gmra.mrb[0].mxu0 %v1300
    %v1529 = vpop.f32.mrb[0].mxu0
    %v1530 = vadd.f32 0.0, %v1529
    %v1531 = vpop.f32.mrb[0].mxu0
    %1532 = vmatprep.mubr.f32.mxu0 0.0
    %1533 = vmatmul.mubr.f32.gmra.mrb[0].mxu0 %v1303
    %v1534 = vpop.f32.mrb[0].mxu0
    %v1535 = vadd.f32 0.0, %v1534
    %v1536 = vpop.f32.mrb[0].mxu0
    %1537 = vmatprep.mubr.f32.mxu0 0.0
    %1538 = vmatmul.mubr.f32.gmra.mrb[0].mxu0 %v1306
    %v1539 = vpop.f32.mrb[0].mxu0
    %v1540 = vadd.f32 0.0, %v1539
    %v1541 = vpop.f32.mrb[0].mxu0
    %1542 = vmatprep.mubr.f32.mxu0 0.0
    %1543 = vmatmul.mubr.f32.gmra.mrb[0].mxu0 %v1309
    %v1544 = vpop.f32.mrb[0].mxu0
    %v1545 = vadd.f32 0.0, %v1544
    %v1546 = vpop.f32.mrb[0].mxu0
    %1547 = vmatprep.mubr.f32.mxu0 0.0
    %1548 = vmatmul.mubr.f32.gmra.mrb[0].mxu0 %v1312
    %v1549 = vpop.f32.mrb[0].mxu0
    %v1550 = vadd.f32 0.0, %v1549
    %v1551 = vpop.f32.mrb[0].mxu0
    %1552 = vmatprep.mubr.f32.mxu0 0.0
    %1553 = vmatmul.mubr.f32.gmra.mrb[0].mxu0 %v1315
    %v1554 = vpop.f32.mrb[0].mxu0
    %v1555 = vadd.f32 0.0, %v1554
    %v1556 = vpop.f32.mrb[0].mxu0
    %1557 = vmatprep.mubr.f32.mxu0 0.0
    %1558 = vmatmul.mubr.f32.gmra.mrb[0].mxu0 %v1318
    %v1559 = vpop.f32.mrb[0].mxu0
    %v1560 = vadd.f32 0.0, %v1559
    %v1561 = vpop.f32.mrb[0].mxu0
    %1562 = vmatprep.mubr.f32.mxu0 0.0
    %1563 = vmatmul.mubr.f32.gmra.mrb[0].mxu0 %v1321
    %v1564 = vpop.f32.mrb[0].mxu0
    %v1565 = vadd.f32 0.0, %v1564
    %v1566 = vpop.f32.mrb[0].mxu0
    %1567 = vmatprep.mubr.f32.mxu0 0.0
    %1568 = vmatmul.mubr.f32.gmra.mrb[0].mxu0 %v1324
    %v1569 = vpop.f32.mrb[0].mxu0
    %v1570 = vadd.f32 0.0, %v1569
    %v1571 = vpop.f32.mrb[0].mxu0
    %1572 = vmatprep.mubr.f32.mxu0 0.0
    %1573 = vmatmul.mubr.f32.gmra.mrb[0].mxu0 %v1327
    %v1574 = vpop.f32.mrb[0].mxu0
    %v1575 = vadd.f32 0.0, %v1574
    %v1576 = vpop.f32.mrb[0].mxu0
    %1577 = vmatprep.mubr.f32.mxu0 0.0
    %1578 = vmatmul.mubr.f32.gmra.mrb[0].mxu0 %v1330
    %v1579 = vpop.f32.mrb[0].mxu0
    %v1580 = vadd.f32 0.0, %v1579
    %v1581 = vpop.f32.mrb[0].mxu0
    %1582 = vmatprep.mubr.f32.mxu0 0.0
    %1583 = vmatmul.mubr.f32.gmra.mrb[0].mxu0 %v1333
    %v1584 = vpop.f32.mrb[0].mxu0
    %v1585 = vadd.f32 0.0, %v1584
    %v1586 = vpop.f32.mrb[0].mxu0
    %1587 = vmatprep.mubr.f32.mxu0 0.0
    %1588 = vmatmul.mubr.f32.gmra.mrb[0].mxu0 %v1336
    %v1589 = vpop.f32.mrb[0].mxu0
    %v1590 = vadd.f32 0.0, %v1589
    %v1591 = vpop.f32.mrb[0].mxu0
    %1592 = vmatprep.mubr.f32.mxu0 0.0
    %1593 = vmatmul.mubr.f32.gmra.mrb[0].mxu0 %v1339
    %v1594 = vpop.f32.mrb[0].mxu0
    %v1595 = vadd.f32 0.0, %v1594
    %v1596 = vpop.f32.mrb[0].mxu0
    %1597 = vmatprep.mubr.f32.mxu0 0.0
    %1598 = vmatmul.mubr.f32.gmra.mrb[0].mxu0 %v1342
    %v1599 = vpop.f32.mrb[0].mxu0
    %v1600 = vadd.f32 0.0, %v1599
    %v1601 = vpop.f32.mrb[0].mxu0
    %1602 = vmatprep.mubr.f32.mxu0 0.0
    %1603 = vmatmul.mubr.f32.gmra.mrb[0].mxu0 %v1345
    %v1604 = vpop.f32.mrb[0].mxu0
    %v1605 = vadd.f32 0.0, %v1604
    %v1606 = vpop.f32.mrb[0].mxu0
    %1607 = vmatprep.mubr.f32.mxu0 0.0
    %1608 = vmatmul.mubr.f32.gmra.mrb[0].mxu0 %v1348
    %v1609 = vpop.f32.mrb[0].mxu0
    %v1610 = vadd.f32 0.0, %v1609
    %v1611 = vpop.f32.mrb[0].mxu0
    %1612 = vmatprep.mubr.f32.mxu0 0.0
    %1613 = vmatmul.mubr.f32.gmra.mrb[0].mxu0 %v1351
    %v1614 = vpop.f32.mrb[0].mxu0
    %v1615 = vadd.f32 0.0, %v1614
    %v1616 = vpop.f32.mrb[0].mxu0
    %1617 = vmatprep.mubr.f32.mxu0 0.0
    %1618 = vmatmul.mubr.f32.gmra.mrb[0].mxu0 %v1354
    %v1619 = vpop.f32.mrb[0].mxu0
    %v1620 = vadd.f32 0.0, %v1619
    %v1621 = vpop.f32.mrb[0].mxu0
    %1622 = vmatprep.mubr.f32.mxu0 0.0
    %1623 = vmatmul.mubr.f32.gmra.mrb[0].mxu0 %v1357
    %v1624 = vpop.f32.mrb[0].mxu0
    %v1625 = vadd.f32 0.0, %v1624
    %v1626 = vpop.f32.mrb[0].mxu0
    %1627 = vmatprep.mubr.f32.mxu0 0.0
    %1628 = vmatmul.mubr.f32.gmra.mrb[0].mxu0 %v1360
    %v1629 = vpop.f32.mrb[0].mxu0
    %v1630 = vadd.f32 0.0, %v1629
    %v1631 = vpop.f32.mrb[0].mxu0
    %1632 = vmatprep.mubr.f32.mxu0 0.0
    %1633 = vmatmul.mubr.f32.gmra.mrb[0].mxu0 %v1363
    %v1634 = vpop.f32.mrb[0].mxu0
    %v1635 = vadd.f32 0.0, %v1634
    %v1636 = vpop.f32.mrb[0].mxu0
    %1637 = vmatprep.mubr.f32.mxu0 0.0
    %1638 = vmatmul.mubr.f32.gmra.mrb[0].mxu0 %v1366
    %v1639 = vpop.f32.mrb[0].mxu0
    %v1640 = vadd.f32 0.0, %v1639
    %v1641 = vpop.f32.mrb[0].mxu0
    %1642 = vmatprep.mubr.f32.mxu0 0.0
    %1643 = vmatmul.mubr.f32.gmra.mrb[0].mxu0 %v1369
    %v1644 = vpop.f32.mrb[0].mxu0
    %v1645 = vadd.f32 0.0, %v1644
    %v1646 = vpop.f32.mrb[0].mxu0
    %1647 = vmatprep.mubr.f32.mxu0 0.0
    %1648 = vmatmul.mubr.f32.gmra.mrb[0].mxu0 %v1372
    %v1649 = vpop.f32.mrb[0].mxu0
    %v1650 = vadd.f32 0.0, %v1649
    %v1651 = vpop.f32.mrb[0].mxu0
    %1652 = vmatprep.mubr.f32.mxu0 0.0
    %1653 = vmatmul.mubr.f32.gmra.mrb[0].mxu0 %v1375
    %v1654 = vpop.f32.mrb[0].mxu0
    %v1655 = vadd.f32 0.0, %v1654
    %v1656 = vpop.f32.mrb[0].mxu0
    %1657 = vmatprep.mubr.f32.mxu0 0.0
    %1658 = vmatmul.mubr.f32.gmra.mrb[0].mxu0 %v1378
    %v1659 = vpop.f32.mrb[0].mxu0
    %v1660 = vadd.f32 0.0, %v1659
    %v1661 = vpop.f32.mrb[0].mxu0
    %1662 = vdwg.mxu0
    %v1663 = vadd.f32 %v993, %v1450
    %v1664 = vadd.f32 %v998, %v1455
    %v1665 = vadd.f32 %v1003, %v1460
    %v1666 = vadd.f32 %v1008, %v1465
    %v1667 = vadd.f32 %v1013, %v1470
    %v1668 = vadd.f32 %v1018, %v1475
    %v1669 = vadd.f32 %v1023, %v1480
    %v1670 = vadd.f32 %v1028, %v1485
    %v1671 = vadd.f32 %v1033, %v1490
    %v1672 = vadd.f32 %v1038, %v1495
    %v1673 = vadd.f32 %v1043, %v1500
    %v1674 = vadd.f32 %v1048, %v1505
    %v1675 = vadd.f32 %v1053, %v1510
    %v1676 = vadd.f32 %v1058, %v1515
    %v1677 = vadd.f32 %v1063, %v1520
    %v1678 = vadd.f32 %v1068, %v1525
    %v1679 = vadd.f32 %v1073, %v1530
    %v1680 = vadd.f32 %v1078, %v1535
    %v1681 = vadd.f32 %v1083, %v1540
    %v1682 = vadd.f32 %v1088, %v1545
    %v1683 = vadd.f32 %v1093, %v1550
    %v1684 = vadd.f32 %v1098, %v1555
    %v1685 = vadd.f32 %v1103, %v1560
    %v1686 = vadd.f32 %v1108, %v1565
    %v1687 = vadd.f32 %v1113, %v1570
    %v1688 = vadd.f32 %v1118, %v1575
    %v1689 = vadd.f32 %v1123, %v1580
    %v1690 = vadd.f32 %v1128, %v1585
    %v1691 = vadd.f32 %v1133, %v1590
    %v1692 = vadd.f32 %v1138, %v1595
    %v1693 = vadd.f32 %v1143, %v1600
    %v1694 = vadd.f32 %v1148, %v1605
    %v1695 = vadd.f32 %v1153, %v1610
    %v1696 = vadd.f32 %v1158, %v1615
    %v1697 = vadd.f32 %v1163, %v1620
    %v1698 = vadd.f32 %v1168, %v1625
    %v1699 = vadd.f32 %v1173, %v1630
    %v1700 = vadd.f32 %v1178, %v1635
    %v1701 = vadd.f32 %v1183, %v1640
    %v1702 = vadd.f32 %v1188, %v1645
    %v1703 = vadd.f32 %v1193, %v1650
    %v1704 = vadd.f32 %v1198, %v1655
    %v1705 = vadd.f32 %v1203, %v1660
    %v1706 = vld [vmem:[%s0 + $0xe] sm:$0xff]
    %v1707 = vld [vmem:[%s0 + $0x16] sm:$0xff]
    %v1708 = vld [vmem:[%s0 + $0x1e] sm:$0xff]
    %v1709 = vld [vmem:[%s0 + $0x26] sm:$0xff]
    %v1710 = vld [vmem:[%s0 + $0x2e] sm:$0xff]
    %v1711 = vld [vmem:[%s0 + $0x36] sm:$0xff]
    %v1712 = vld [vmem:[%s0 + $0x3e] sm:$0xff]
    %v1713 = vld [vmem:[%s0 + $0x46] sm:$0xff]
    %v1714 = vld [vmem:[%s0 + $0x4e] sm:$0xff]
    %v1715 = vld [vmem:[%s0 + $0x56] sm:$0xff]
    %v1716 = vld [vmem:[%s0 + $0x5e] sm:$0xff]
    %v1717 = vld [vmem:[%s0 + $0x66] sm:$0xff]
    %v1718 = vld [vmem:[%s0 + $0x6e] sm:$0xff]
    %v1719 = vld [vmem:[%s0 + $0x76] sm:$0xff]
    %v1720 = vld [vmem:[%s0 + $0x7e] sm:$0xff]
    %v1721 = vld [vmem:[%s0 + $0x86] sm:$0xff]
    %v1722 = vld [vmem:[%s0 + $0x8e] sm:$0xff]
    %v1723 = vld [vmem:[%s0 + $0x96] sm:$0xff]
    %v1724 = vld [vmem:[%s0 + $0x9e] sm:$0xff]
    %v1725 = vld [vmem:[%s0 + $0xa6] sm:$0xff]
    %v1726 = vld [vmem:[%s0 + $0xae] sm:$0xff]
    %v1727 = vld [vmem:[%s0 + $0xb6] sm:$0xff]
    %v1728 = vld [vmem:[%s0 + $0xbe] sm:$0xff]
    %v1729 = vld [vmem:[%s0 + $0xc6] sm:$0xff]
    %v1730 = vld [vmem:[%s0 + $0xce] sm:$0xff]
    %v1731 = vld [vmem:[%s0 + $0xd6] sm:$0xff]
    %v1732 = vld [vmem:[%s0 + $0xde] sm:$0xff]
    %v1733 = vld [vmem:[%s0 + $0xe6] sm:$0xff]
    %v1734 = vld [vmem:[%s0 + $0xee] sm:$0xff]
    %v1735 = vld [vmem:[%s0 + $0xf6] sm:$0xff]
    %v1736 = vld [vmem:[%s0 + $0xfe] sm:$0xff]
    %v1737 = vld [vmem:[%s0 + $0x106] sm:$0xff]
    %v1738 = vld [vmem:[%s0 + $0x10e] sm:$0xff]
    %v1739 = vld [vmem:[%s0 + $0x116] sm:$0xff]
    %v1740 = vld [vmem:[%s0 + $0x11e] sm:$0xff]
    %v1741 = vld [vmem:[%s0 + $0x126] sm:$0xff]
    %v1742 = vld [vmem:[%s0 + $0x12e] sm:$0xff]
    %v1743 = vld [vmem:[%s0 + $0x136] sm:$0xff]
    %v1744 = vld [vmem:[%s0 + $0x13e] sm:$0xff]
    %v1745 = vld [vmem:[%s0 + $0x146] sm:$0xff]
    %v1746 = vld [vmem:[%s0 + $0x14e] sm:$0xff]
    %v1747 = vld [vmem:[%s0 + $0x156] sm:$0xff]
    %v1748 = vld [vmem:[%s0 + $0x15e] sm:$0x3]
    %s1749 = scalar_lea.vmem %s2, 12
    %v1750 = vld [vmem:[%s1749] sm:$0x7]
    %v1752 = vsel %vm380, %v1706, 0
    %v1755 = vsel %vm380, %v1707, 0
    %v1758 = vsel %vm380, %v1708, 0
    %v1761 = vsel %vm380, %v1709, 0
    %v1764 = vsel %vm380, %v1710, 0
    %v1767 = vsel %vm380, %v1711, 0
    %v1770 = vsel %vm380, %v1712, 0
    %v1773 = vsel %vm380, %v1713, 0
    %v1776 = vsel %vm380, %v1714, 0
    %v1779 = vsel %vm380, %v1715, 0
    %v1782 = vsel %vm380, %v1716, 0
    %v1785 = vsel %vm380, %v1717, 0
    %v1788 = vsel %vm380, %v1718, 0
    %v1791 = vsel %vm380, %v1719, 0
    %v1794 = vsel %vm380, %v1720, 0
    %v1797 = vsel %vm380, %v1721, 0
    %v1800 = vsel %vm380, %v1722, 0
    %v1803 = vsel %vm380, %v1723, 0
    %v1806 = vsel %vm380, %v1724, 0
    %v1809 = vsel %vm380, %v1725, 0
    %v1812 = vsel %vm380, %v1726, 0
    %v1815 = vsel %vm380, %v1727, 0
    %v1818 = vsel %vm380, %v1728, 0
    %v1821 = vsel %vm380, %v1729, 0
    %v1824 = vsel %vm380, %v1730, 0
    %v1827 = vsel %vm380, %v1731, 0
    %v1830 = vsel %vm380, %v1732, 0
    %v1833 = vsel %vm380, %v1733, 0
    %v1836 = vsel %vm380, %v1734, 0
    %v1839 = vsel %vm380, %v1735, 0
    %v1842 = vsel %vm380, %v1736, 0
    %v1845 = vsel %vm380, %v1737, 0
    %v1848 = vsel %vm380, %v1738, 0
    %v1851 = vsel %vm380, %v1739, 0
    %v1854 = vsel %vm380, %v1740, 0
    %v1857 = vsel %vm380, %v1741, 0
    %v1860 = vsel %vm380, %v1742, 0
    %v1863 = vsel %vm380, %v1743, 0
    %v1866 = vsel %vm380, %v1744, 0
    %v1869 = vsel %vm380, %v1745, 0
    %v1872 = vsel %vm380, %v1746, 0
    %v1875 = vsel %vm380, %v1747, 0
    %v1878 = vsel %vm380, %v1748, 0
    %v1881 = vsel %vm510, %v1750, 0
    %1883 = vmatprep.subr.mxu0 0.0
    %1884 = vmatpush1.msra.mxu0 %v1881
    %1885 = vmatprep.subr.mxu0 0.0
    %1886 = vmatpush1.msra.mxu0 0.0
    %1887 = vmatprep.subr.mxu0 0.0
    %1888 = vmatpush1.msra.mxu0 0.0
    %1889 = vmatprep.subr.mxu0 0.0
    %1890 = vmatpush1.msra.mxu0 0.0
    %1891 = vmatprep.subr.mxu0 0.0
    %1892 = vmatpush1.msra.mxu0 0.0
    %1893 = vmatprep.subr.mxu0 0.0
    %1894 = vmatpush1.msra.mxu0 0.0
    %1895 = vmatprep.subr.mxu0 0.0
    %1896 = vmatpush1.msra.mxu0 0.0
    %1897 = vmatprep.subr.mxu0 0.0
    %1898 = vmatpush1.msra.mxu0 0.0
    %1899 = vmatprep.subr.mxu0 0.0
    %1900 = vmatpush1.msra.mxu0 0.0
    %1901 = vmatprep.subr.mxu0 0.0
    %1902 = vmatpush1.msra.mxu0 0.0
    %1903 = vmatprep.subr.mxu0 0.0
    %1904 = vmatpush1.msra.mxu0 0.0
    %1905 = vmatprep.subr.mxu0 0.0
    %1906 = vmatpush1.msra.mxu0 0.0
    %1907 = vmatprep.subr.mxu0 0.0
    %1908 = vmatpush1.msra.mxu0 0.0
    %1909 = vmatprep.subr.mxu0 0.0
    %1910 = vmatpush1.msra.mxu0 0.0
    %1911 = vmatprep.subr.mxu0 0.0
    %1912 = vmatpush1.msra.mxu0 0.0
    %1913 = vmatprep.subr.mxu0 0.0
    %1914 = vmatpush1.msra.mxu0 0.0
    %1915 = vmatprep.subr.mxu0 0.0
    %1916 = vmatpush1.msra.mxu0 0.0
    %1917 = vmatprep.subr.mxu0 0.0
    %1918 = vmatpush1.msra.mxu0 0.0
    %1919 = vmatprep.subr.mxu0 0.0
    %1920 = vmatpush1.msra.mxu0 0.0
    %1921 = vmatprep.subr.mxu0 0.0
    %1922 = vmatpush1.msra.mxu0 0.0
    %1923 = vmatprep.subr.mxu0 0.0
    %1924 = vmatpush1.msra.mxu0 0.0
    %1925 = vmatprep.subr.mxu0 0.0
    %1926 = vmatpush1.msra.mxu0 0.0
    %1927 = vmatprep.subr.mxu0 0.0
    %1928 = vmatpush1.msra.mxu0 0.0
    %1929 = vmatprep.subr.mxu0 0.0
    %1930 = vmatpush1.msra.mxu0 0.0
    %1931 = vmatprep.subr.mxu0 0.0
    %1932 = vmatpush1.msra.mxu0 0.0
    %1933 = vmatprep.subr.mxu0 0.0
    %1934 = vmatpush1.msra.mxu0 0.0
    %1935 = vmatprep.subr.mxu0 0.0
    %1936 = vmatpush1.msra.mxu0 0.0
    %1937 = vmatprep.subr.mxu0 0.0
    %1938 = vmatpush1.msra.mxu0 0.0
    %1939 = vmatprep.subr.mxu0 0.0
    %1940 = vmatpush1.msra.mxu0 0.0
    %1941 = vmatprep.subr.mxu0 0.0
    %1942 = vmatpush1.msra.mxu0 0.0
    %1943 = vmatprep.subr.mxu0 0.0
    %1944 = vmatpush1.msra.mxu0 0.0
    %1945 = vmatprep.subr.mxu0 0.0
    %1946 = vmatpush1.msra.mxu0 0.0
    %1947 = vmatprep.mubr.f32.mxu0 0.0
    %1948 = vmatmul.mubr.f32.gmra.mrb[0].mxu0 %v1752
    %v1949 = vpop.f32.mrb[0].mxu0
    %v1950 = vadd.f32 0.0, %v1949
    %v1951 = vpop.f32.mrb[0].mxu0
    %1952 = vmatprep.mubr.f32.mxu0 0.0
    %1953 = vmatmul.mubr.f32.gmra.mrb[0].mxu0 %v1755
    %v1954 = vpop.f32.mrb[0].mxu0
    %v1955 = vadd.f32 0.0, %v1954
    %v1956 = vpop.f32.mrb[0].mxu0
    %1957 = vmatprep.mubr.f32.mxu0 0.0
    %1958 = vmatmul.mubr.f32.gmra.mrb[0].mxu0 %v1758
    %v1959 = vpop.f32.mrb[0].mxu0
    %v1960 = vadd.f32 0.0, %v1959
    %v1961 = vpop.f32.mrb[0].mxu0
    %1962 = vmatprep.mubr.f32.mxu0 0.0
    %1963 = vmatmul.mubr.f32.gmra.mrb[0].mxu0 %v1761
    %v1964 = vpop.f32.mrb[0].mxu0
    %v1965 = vadd.f32 0.0, %v1964
    %v1966 = vpop.f32.mrb[0].mxu0
    %1967 = vmatprep.mubr.f32.mxu0 0.0
    %1968 = vmatmul.mubr.f32.gmra.mrb[0].mxu0 %v1764
    %v1969 = vpop.f32.mrb[0].mxu0
    %v1970 = vadd.f32 0.0, %v1969
    %v1971 = vpop.f32.mrb[0].mxu0
    %1972 = vmatprep.mubr.f32.mxu0 0.0
    %1973 = vmatmul.mubr.f32.gmra.mrb[0].mxu0 %v1767
    %v1974 = vpop.f32.mrb[0].mxu0
    %v1975 = vadd.f32 0.0, %v1974
    %v1976 = vpop.f32.mrb[0].mxu0
    %1977 = vmatprep.mubr.f32.mxu0 0.0
    %1978 = vmatmul.mubr.f32.gmra.mrb[0].mxu0 %v1770
    %v1979 = vpop.f32.mrb[0].mxu0
    %v1980 = vadd.f32 0.0, %v1979
    %v1981 = vpop.f32.mrb[0].mxu0
    %1982 = vmatprep.mubr.f32.mxu0 0.0
    %1983 = vmatmul.mubr.f32.gmra.mrb[0].mxu0 %v1773
    %v1984 = vpop.f32.mrb[0].mxu0
    %v1985 = vadd.f32 0.0, %v1984
    %v1986 = vpop.f32.mrb[0].mxu0
    %1987 = vmatprep.mubr.f32.mxu0 0.0
    %1988 = vmatmul.mubr.f32.gmra.mrb[0].mxu0 %v1776
    %v1989 = vpop.f32.mrb[0].mxu0
    %v1990 = vadd.f32 0.0, %v1989
    %v1991 = vpop.f32.mrb[0].mxu0
    %1992 = vmatprep.mubr.f32.mxu0 0.0
    %1993 = vmatmul.mubr.f32.gmra.mrb[0].mxu0 %v1779
    %v1994 = vpop.f32.mrb[0].mxu0
    %v1995 = vadd.f32 0.0, %v1994
    %v1996 = vpop.f32.mrb[0].mxu0
    %1997 = vmatprep.mubr.f32.mxu0 0.0
    %1998 = vmatmul.mubr.f32.gmra.mrb[0].mxu0 %v1782
    %v1999 = vpop.f32.mrb[0].mxu0
    %v2000 = vadd.f32 0.0, %v1999
    %v2001 = vpop.f32.mrb[0].mxu0
    %2002 = vmatprep.mubr.f32.mxu0 0.0
    %2003 = vmatmul.mubr.f32.gmra.mrb[0].mxu0 %v1785
    %v2004 = vpop.f32.mrb[0].mxu0
    %v2005 = vadd.f32 0.0, %v2004
    %v2006 = vpop.f32.mrb[0].mxu0
    %2007 = vmatprep.mubr.f32.mxu0 0.0
    %2008 = vmatmul.mubr.f32.gmra.mrb[0].mxu0 %v1788
    %v2009 = vpop.f32.mrb[0].mxu0
    %v2010 = vadd.f32 0.0, %v2009
    %v2011 = vpop.f32.mrb[0].mxu0
    %2012 = vmatprep.mubr.f32.mxu0 0.0
    %2013 = vmatmul.mubr.f32.gmra.mrb[0].mxu0 %v1791
    %v2014 = vpop.f32.mrb[0].mxu0
    %v2015 = vadd.f32 0.0, %v2014
    %v2016 = vpop.f32.mrb[0].mxu0
    %2017 = vmatprep.mubr.f32.mxu0 0.0
    %2018 = vmatmul.mubr.f32.gmra.mrb[0].mxu0 %v1794
    %v2019 = vpop.f32.mrb[0].mxu0
    %v2020 = vadd.f32 0.0, %v2019
    %v2021 = vpop.f32.mrb[0].mxu0
    %2022 = vmatprep.mubr.f32.mxu0 0.0
    %2023 = vmatmul.mubr.f32.gmra.mrb[0].mxu0 %v1797
    %v2024 = vpop.f32.mrb[0].mxu0
    %v2025 = vadd.f32 0.0, %v2024
    %v2026 = vpop.f32.mrb[0].mxu0
    %2027 = vmatprep.mubr.f32.mxu0 0.0
    %2028 = vmatmul.mubr.f32.gmra.mrb[0].mxu0 %v1800
    %v2029 = vpop.f32.mrb[0].mxu0
    %v2030 = vadd.f32 0.0, %v2029
    %v2031 = vpop.f32.mrb[0].mxu0
    %2032 = vmatprep.mubr.f32.mxu0 0.0
    %2033 = vmatmul.mubr.f32.gmra.mrb[0].mxu0 %v1803
    %v2034 = vpop.f32.mrb[0].mxu0
    %v2035 = vadd.f32 0.0, %v2034
    %v2036 = vpop.f32.mrb[0].mxu0
    %2037 = vmatprep.mubr.f32.mxu0 0.0
    %2038 = vmatmul.mubr.f32.gmra.mrb[0].mxu0 %v1806
    %v2039 = vpop.f32.mrb[0].mxu0
    %v2040 = vadd.f32 0.0, %v2039
    %v2041 = vpop.f32.mrb[0].mxu0
    %2042 = vmatprep.mubr.f32.mxu0 0.0
    %2043 = vmatmul.mubr.f32.gmra.mrb[0].mxu0 %v1809
    %v2044 = vpop.f32.mrb[0].mxu0
    %v2045 = vadd.f32 0.0, %v2044
    %v2046 = vpop.f32.mrb[0].mxu0
    %2047 = vmatprep.mubr.f32.mxu0 0.0
    %2048 = vmatmul.mubr.f32.gmra.mrb[0].mxu0 %v1812
    %v2049 = vpop.f32.mrb[0].mxu0
    %v2050 = vadd.f32 0.0, %v2049
    %v2051 = vpop.f32.mrb[0].mxu0
    %2052 = vmatprep.mubr.f32.mxu0 0.0
    %2053 = vmatmul.mubr.f32.gmra.mrb[0].mxu0 %v1815
    %v2054 = vpop.f32.mrb[0].mxu0
    %v2055 = vadd.f32 0.0, %v2054
    %v2056 = vpop.f32.mrb[0].mxu0
    %2057 = vmatprep.mubr.f32.mxu0 0.0
    %2058 = vmatmul.mubr.f32.gmra.mrb[0].mxu0 %v1818
    %v2059 = vpop.f32.mrb[0].mxu0
    %v2060 = vadd.f32 0.0, %v2059
    %v2061 = vpop.f32.mrb[0].mxu0
    %2062 = vmatprep.mubr.f32.mxu0 0.0
    %2063 = vmatmul.mubr.f32.gmra.mrb[0].mxu0 %v1821
    %v2064 = vpop.f32.mrb[0].mxu0
    %v2065 = vadd.f32 0.0, %v2064
    %v2066 = vpop.f32.mrb[0].mxu0
    %2067 = vmatprep.mubr.f32.mxu0 0.0
    %2068 = vmatmul.mubr.f32.gmra.mrb[0].mxu0 %v1824
    %v2069 = vpop.f32.mrb[0].mxu0
    %v2070 = vadd.f32 0.0, %v2069
    %v2071 = vpop.f32.mrb[0].mxu0
    %2072 = vmatprep.mubr.f32.mxu0 0.0
    %2073 = vmatmul.mubr.f32.gmra.mrb[0].mxu0 %v1827
    %v2074 = vpop.f32.mrb[0].mxu0
    %v2075 = vadd.f32 0.0, %v2074
    %v2076 = vpop.f32.mrb[0].mxu0
    %2077 = vmatprep.mubr.f32.mxu0 0.0
    %2078 = vmatmul.mubr.f32.gmra.mrb[0].mxu0 %v1830
    %v2079 = vpop.f32.mrb[0].mxu0
    %v2080 = vadd.f32 0.0, %v2079
    %v2081 = vpop.f32.mrb[0].mxu0
    %2082 = vmatprep.mubr.f32.mxu0 0.0
    %2083 = vmatmul.mubr.f32.gmra.mrb[0].mxu0 %v1833
    %v2084 = vpop.f32.mrb[0].mxu0
    %v2085 = vadd.f32 0.0, %v2084
    %v2086 = vpop.f32.mrb[0].mxu0
    %2087 = vmatprep.mubr.f32.mxu0 0.0
    %2088 = vmatmul.mubr.f32.gmra.mrb[0].mxu0 %v1836
    %v2089 = vpop.f32.mrb[0].mxu0
    %v2090 = vadd.f32 0.0, %v2089
    %v2091 = vpop.f32.mrb[0].mxu0
    %2092 = vmatprep.mubr.f32.mxu0 0.0
    %2093 = vmatmul.mubr.f32.gmra.mrb[0].mxu0 %v1839
    %v2094 = vpop.f32.mrb[0].mxu0
    %v2095 = vadd.f32 0.0, %v2094
    %v2096 = vpop.f32.mrb[0].mxu0
    %2097 = vmatprep.mubr.f32.mxu0 0.0
    %2098 = vmatmul.mubr.f32.gmra.mrb[0].mxu0 %v1842
    %v2099 = vpop.f32.mrb[0].mxu0
    %v2100 = vadd.f32 0.0, %v2099
    %v2101 = vpop.f32.mrb[0].mxu0
    %2102 = vmatprep.mubr.f32.mxu0 0.0
    %2103 = vmatmul.mubr.f32.gmra.mrb[0].mxu0 %v1845
    %v2104 = vpop.f32.mrb[0].mxu0
    %v2105 = vadd.f32 0.0, %v2104
    %v2106 = vpop.f32.mrb[0].mxu0
    %2107 = vmatprep.mubr.f32.mxu0 0.0
    %2108 = vmatmul.mubr.f32.gmra.mrb[0].mxu0 %v1848
    %v2109 = vpop.f32.mrb[0].mxu0
    %v2110 = vadd.f32 0.0, %v2109
    %v2111 = vpop.f32.mrb[0].mxu0
    %2112 = vmatprep.mubr.f32.mxu0 0.0
    %2113 = vmatmul.mubr.f32.gmra.mrb[0].mxu0 %v1851
    %v2114 = vpop.f32.mrb[0].mxu0
    %v2115 = vadd.f32 0.0, %v2114
    %v2116 = vpop.f32.mrb[0].mxu0
    %2117 = vmatprep.mubr.f32.mxu0 0.0
    %2118 = vmatmul.mubr.f32.gmra.mrb[0].mxu0 %v1854
    %v2119 = vpop.f32.mrb[0].mxu0
    %v2120 = vadd.f32 0.0, %v2119
    %v2121 = vpop.f32.mrb[0].mxu0
    %2122 = vmatprep.mubr.f32.mxu0 0.0
    %2123 = vmatmul.mubr.f32.gmra.mrb[0].mxu0 %v1857
    %v2124 = vpop.f32.mrb[0].mxu0
    %v2125 = vadd.f32 0.0, %v2124
    %v2126 = vpop.f32.mrb[0].mxu0
    %2127 = vmatprep.mubr.f32.mxu0 0.0
    %2128 = vmatmul.mubr.f32.gmra.mrb[0].mxu0 %v1860
    %v2129 = vpop.f32.mrb[0].mxu0
    %v2130 = vadd.f32 0.0, %v2129
    %v2131 = vpop.f32.mrb[0].mxu0
    %2132 = vmatprep.mubr.f32.mxu0 0.0
    %2133 = vmatmul.mubr.f32.gmra.mrb[0].mxu0 %v1863
    %v2134 = vpop.f32.mrb[0].mxu0
    %v2135 = vadd.f32 0.0, %v2134
    %v2136 = vpop.f32.mrb[0].mxu0
    %2137 = vmatprep.mubr.f32.mxu0 0.0
    %2138 = vmatmul.mubr.f32.gmra.mrb[0].mxu0 %v1866
    %v2139 = vpop.f32.mrb[0].mxu0
    %v2140 = vadd.f32 0.0, %v2139
    %v2141 = vpop.f32.mrb[0].mxu0
    %2142 = vmatprep.mubr.f32.mxu0 0.0
    %2143 = vmatmul.mubr.f32.gmra.mrb[0].mxu0 %v1869
    %v2144 = vpop.f32.mrb[0].mxu0
    %v2145 = vadd.f32 0.0, %v2144
    %v2146 = vpop.f32.mrb[0].mxu0
    %2147 = vmatprep.mubr.f32.mxu0 0.0
    %2148 = vmatmul.mubr.f32.gmra.mrb[0].mxu0 %v1872
    %v2149 = vpop.f32.mrb[0].mxu0
    %v2150 = vadd.f32 0.0, %v2149
    %v2151 = vpop.f32.mrb[0].mxu0
    %2152 = vmatprep.mubr.f32.mxu0 0.0
    %2153 = vmatmul.mubr.f32.gmra.mrb[0].mxu0 %v1875
    %v2154 = vpop.f32.mrb[0].mxu0
    %v2155 = vadd.f32 0.0, %v2154
    %v2156 = vpop.f32.mrb[0].mxu0
    %2157 = vmatprep.mubr.f32.mxu0 0.0
    %2158 = vmatmul.mubr.f32.gmra.mrb[0].mxu0 %v1878
    %v2159 = vpop.f32.mrb[0].mxu0
    %v2160 = vadd.f32 0.0, %v2159
    %v2161 = vpop.f32.mrb[0].mxu0
    %2162 = vdwg.mxu0
    %v2163 = vadd.f32 %v1663, %v1950
    %v2164 = vadd.f32 %v1664, %v1955
    %v2165 = vadd.f32 %v1665, %v1960
    %v2166 = vadd.f32 %v1666, %v1965
    %v2167 = vadd.f32 %v1667, %v1970
    %v2168 = vadd.f32 %v1668, %v1975
    %v2169 = vadd.f32 %v1669, %v1980
    %v2170 = vadd.f32 %v1670, %v1985
    %v2171 = vadd.f32 %v1671, %v1990
    %v2172 = vadd.f32 %v1672, %v1995
    %v2173 = vadd.f32 %v1673, %v2000
    %v2174 = vadd.f32 %v1674, %v2005
    %v2175 = vadd.f32 %v1675, %v2010
    %v2176 = vadd.f32 %v1676, %v2015
    %v2177 = vadd.f32 %v1677, %v2020
    %v2178 = vadd.f32 %v1678, %v2025
    %v2179 = vadd.f32 %v1679, %v2030
    %v2180 = vadd.f32 %v1680, %v2035
    %v2181 = vadd.f32 %v1681, %v2040
    %v2182 = vadd.f32 %v1682, %v2045
    %v2183 = vadd.f32 %v1683, %v2050
    %v2184 = vadd.f32 %v1684, %v2055
    %v2185 = vadd.f32 %v1685, %v2060
    %v2186 = vadd.f32 %v1686, %v2065
    %v2187 = vadd.f32 %v1687, %v2070
    %v2188 = vadd.f32 %v1688, %v2075
    %v2189 = vadd.f32 %v1689, %v2080
    %v2190 = vadd.f32 %v1690, %v2085
    %v2191 = vadd.f32 %v1691, %v2090
    %v2192 = vadd.f32 %v1692, %v2095
    %v2193 = vadd.f32 %v1693, %v2100
    %v2194 = vadd.f32 %v1694, %v2105
    %v2195 = vadd.f32 %v1695, %v2110
    %v2196 = vadd.f32 %v1696, %v2115
    %v2197 = vadd.f32 %v1697, %v2120
    %v2198 = vadd.f32 %v1698, %v2125
    %v2199 = vadd.f32 %v1699, %v2130
    %v2200 = vadd.f32 %v1700, %v2135
    %v2201 = vadd.f32 %v1701, %v2140
    %v2202 = vadd.f32 %v1702, %v2145
    %v2203 = vadd.f32 %v1703, %v2150
    %v2204 = vadd.f32 %v1704, %v2155
    %v2205 = vadd.f32 %v1705, %v2160
    %v2206 = vld [vmem:[#allocation8] sm:$0x1]
    %v2208 = vlaneseq
    %v2209 = vshrl.u32 %v2208, 7
    %v2210 = vsub.s32 0, %v2209
    %v2211 = vrot.slane %v2206, %v2210
    %v2213 = vadd.f32 %v2163, %v2211
    %v2214 = vadd.f32 %v2164, %v2211
    %v2215 = vadd.f32 %v2165, %v2211
    %v2216 = vadd.f32 %v2166, %v2211
    %v2217 = vadd.f32 %v2167, %v2211
    %v2218 = vadd.f32 %v2168, %v2211
    %v2219 = vadd.f32 %v2169, %v2211
    %v2220 = vadd.f32 %v2170, %v2211
    %v2221 = vadd.f32 %v2171, %v2211
    %v2222 = vadd.f32 %v2172, %v2211
    %v2223 = vadd.f32 %v2173, %v2211
    %v2224 = vadd.f32 %v2174, %v2211
    %v2225 = vadd.f32 %v2175, %v2211
    %v2226 = vadd.f32 %v2176, %v2211
    %v2227 = vadd.f32 %v2177, %v2211
    %v2228 = vadd.f32 %v2178, %v2211
    %v2229 = vadd.f32 %v2179, %v2211
    %v2230 = vadd.f32 %v2180, %v2211
    %v2231 = vadd.f32 %v2181, %v2211
    %v2232 = vadd.f32 %v2182, %v2211
    %v2233 = vadd.f32 %v2183, %v2211
    %v2234 = vadd.f32 %v2184, %v2211
    %v2235 = vadd.f32 %v2185, %v2211
    %v2236 = vadd.f32 %v2186, %v2211
    %v2237 = vadd.f32 %v2187, %v2211
    %v2238 = vadd.f32 %v2188, %v2211
    %v2239 = vadd.f32 %v2189, %v2211
    %v2240 = vadd.f32 %v2190, %v2211
    %v2241 = vadd.f32 %v2191, %v2211
    %v2242 = vadd.f32 %v2192, %v2211
    %v2243 = vadd.f32 %v2193, %v2211
    %v2244 = vadd.f32 %v2194, %v2211
    %v2245 = vadd.f32 %v2195, %v2211
    %v2246 = vadd.f32 %v2196, %v2211
    %v2247 = vadd.f32 %v2197, %v2211
    %v2248 = vadd.f32 %v2198, %v2211
    %v2249 = vadd.f32 %v2199, %v2211
    %v2250 = vadd.f32 %v2200, %v2211
    %v2251 = vadd.f32 %v2201, %v2211
    %v2252 = vadd.f32 %v2202, %v2211
    %v2253 = vadd.f32 %v2203, %v2211
    %v2254 = vadd.f32 %v2204, %v2211
    %v2255 = vadd.f32 %v2205, %v2211
    %v2256 = vmax.f32 %v2213, 0.0
    %v2257 = vmax.f32 %v2214, 0.0
    %v2258 = vmax.f32 %v2215, 0.0
    %v2259 = vmax.f32 %v2216, 0.0
    %v2260 = vmax.f32 %v2217, 0.0
    %v2261 = vmax.f32 %v2218, 0.0
    %v2262 = vmax.f32 %v2219, 0.0
    %v2263 = vmax.f32 %v2220, 0.0
    %v2264 = vmax.f32 %v2221, 0.0
    %v2265 = vmax.f32 %v2222, 0.0
    %v2266 = vmax.f32 %v2223, 0.0
    %v2267 = vmax.f32 %v2224, 0.0
    %v2268 = vmax.f32 %v2225, 0.0
    %v2269 = vmax.f32 %v2226, 0.0
    %v2270 = vmax.f32 %v2227, 0.0
    %v2271 = vmax.f32 %v2228, 0.0
    %v2272 = vmax.f32 %v2229, 0.0
    %v2273 = vmax.f32 %v2230, 0.0
    %v2274 = vmax.f32 %v2231, 0.0
    %v2275 = vmax.f32 %v2232, 0.0
    %v2276 = vmax.f32 %v2233, 0.0
    %v2277 = vmax.f32 %v2234, 0.0
    %v2278 = vmax.f32 %v2235, 0.0
    %v2279 = vmax.f32 %v2236, 0.0
    %v2280 = vmax.f32 %v2237, 0.0
    %v2281 = vmax.f32 %v2238, 0.0
    %v2282 = vmax.f32 %v2239, 0.0
    %v2283 = vmax.f32 %v2240, 0.0
    %v2284 = vmax.f32 %v2241, 0.0
    %v2285 = vmax.f32 %v2242, 0.0
    %v2286 = vmax.f32 %v2243, 0.0
    %v2287 = vmax.f32 %v2244, 0.0
    %v2288 = vmax.f32 %v2245, 0.0
    %v2289 = vmax.f32 %v2246, 0.0
    %v2290 = vmax.f32 %v2247, 0.0
    %v2291 = vmax.f32 %v2248, 0.0
    %v2292 = vmax.f32 %v2249, 0.0
    %v2293 = vmax.f32 %v2250, 0.0
    %v2294 = vmax.f32 %v2251, 0.0
    %v2295 = vmax.f32 %v2252, 0.0
    %v2296 = vmax.f32 %v2253, 0.0
    %v2297 = vmax.f32 %v2254, 0.0
    %v2298 = vmax.f32 %v2255, 0.0
    %2299 = vst.msk [vmem:[#allocation4] sm:$0xff] %vm201, %v2256
    %2300 = vst.msk [vmem:[#allocation4 + $0x8] sm:$0xff] %vm201, %v2257
    %2301 = vst.msk [vmem:[#allocation4 + $0x10] sm:$0xff] %vm201, %v2258
    %2302 = vst.msk [vmem:[#allocation4 + $0x18] sm:$0xff] %vm201, %v2259
    %2303 = vst.msk [vmem:[#allocation4 + $0x20] sm:$0xff] %vm201, %v2260
    %2304 = vst.msk [vmem:[#allocation4 + $0x28] sm:$0xff] %vm201, %v2261
    %2305 = vst.msk [vmem:[#allocation4 + $0x30] sm:$0xff] %vm201, %v2262
    %2306 = vst.msk [vmem:[#allocation4 + $0x38] sm:$0xff] %vm201, %v2263
    %2307 = vst.msk [vmem:[#allocation4 + $0x40] sm:$0xff] %vm201, %v2264
    %2308 = vst.msk [vmem:[#allocation4 + $0x48] sm:$0xff] %vm201, %v2265
    %2309 = vst.msk [vmem:[#allocation4 + $0x50] sm:$0xff] %vm201, %v2266
    %2310 = vst.msk [vmem:[#allocation4 + $0x58] sm:$0xff] %vm201, %v2267
    %2311 = vst.msk [vmem:[#allocation4 + $0x60] sm:$0xff] %vm201, %v2268
    %2312 = vst.msk [vmem:[#allocation4 + $0x68] sm:$0xff] %vm201, %v2269
    %2313 = vst.msk [vmem:[#allocation4 + $0x70] sm:$0xff] %vm201, %v2270
    %2314 = vst.msk [vmem:[#allocation4 + $0x78] sm:$0xff] %vm201, %v2271
    %2315 = vst.msk [vmem:[#allocation4 + $0x80] sm:$0xff] %vm201, %v2272
    %2316 = vst.msk [vmem:[#allocation4 + $0x88] sm:$0xff] %vm201, %v2273
    %2317 = vst.msk [vmem:[#allocation4 + $0x90] sm:$0xff] %vm201, %v2274
    %2318 = vst.msk [vmem:[#allocation4 + $0x98] sm:$0xff] %vm201, %v2275
    %2319 = vst.msk [vmem:[#allocation4 + $0xa0] sm:$0xff] %vm201, %v2276
    %2320 = vst.msk [vmem:[#allocation4 + $0xa8] sm:$0xff] %vm201, %v2277
    %2321 = vst.msk [vmem:[#allocation4 + $0xb0] sm:$0xff] %vm201, %v2278
    %2322 = vst.msk [vmem:[#allocation4 + $0xb8] sm:$0xff] %vm201, %v2279
    %2323 = vst.msk [vmem:[#allocation4 + $0xc0] sm:$0xff] %vm201, %v2280
    %2324 = vst.msk [vmem:[#allocation4 + $0xc8] sm:$0xff] %vm201, %v2281
    %2325 = vst.msk [vmem:[#allocation4 + $0xd0] sm:$0xff] %vm201, %v2282
    %2326 = vst.msk [vmem:[#allocation4 + $0xd8] sm:$0xff] %vm201, %v2283
    %2327 = vst.msk [vmem:[#allocation4 + $0xe0] sm:$0xff] %vm201, %v2284
    %2328 = vst.msk [vmem:[#allocation4 + $0xe8] sm:$0xff] %vm201, %v2285
    %2329 = vst.msk [vmem:[#allocation4 + $0xf0] sm:$0xff] %vm201, %v2286
    %2330 = vst.msk [vmem:[#allocation4 + $0xf8] sm:$0xff] %vm201, %v2287
    %2331 = vst.msk [vmem:[#allocation4 + $0x100] sm:$0xff] %vm201, %v2288
    %2332 = vst.msk [vmem:[#allocation4 + $0x108] sm:$0xff] %vm201, %v2289
    %2333 = vst.msk [vmem:[#allocation4 + $0x110] sm:$0xff] %vm201, %v2290
    %2334 = vst.msk [vmem:[#allocation4 + $0x118] sm:$0xff] %vm201, %v2291
    %2335 = vst.msk [vmem:[#allocation4 + $0x120] sm:$0xff] %vm201, %v2292
    %2336 = vst.msk [vmem:[#allocation4 + $0x128] sm:$0xff] %vm201, %v2293
    %2337 = vst.msk [vmem:[#allocation4 + $0x130] sm:$0xff] %vm201, %v2294
    %2338 = vst.msk [vmem:[#allocation4 + $0x138] sm:$0xff] %vm201, %v2295
    %2339 = vst.msk [vmem:[#allocation4 + $0x140] sm:$0xff] %vm201, %v2296
    %2340 = vst.msk [vmem:[#allocation4 + $0x148] sm:$0xff] %vm201, %v2297
    %vm2341 = vcmask 254976
    %2342 = vst.msk [vmem:[#allocation4 + $0x150] sm:$0x3] %vm2341, %v2298
    %v2343 = vld [vmem:[#allocation4] sm:$0xff]
    %v2344 = vld [vmem:[#allocation4 + $0x8] sm:$0xff]
    %v2345 = vld [vmem:[#allocation4 + $0x10] sm:$0xff]
    %v2346 = vld [vmem:[#allocation4 + $0x18] sm:$0xff]
    %v2347 = vld [vmem:[#allocation4 + $0x20] sm:$0xff]
    %v2348 = vld [vmem:[#allocation4 + $0x28] sm:$0xff]
    %v2349 = vld [vmem:[#allocation4 + $0x30] sm:$0xff]
    %v2350 = vld [vmem:[#allocation4 + $0x38] sm:$0xff]
    %v2351 = vld [vmem:[#allocation4 + $0x40] sm:$0xff]
    %v2352 = vld [vmem:[#allocation4 + $0x48] sm:$0xff]
    %v2353 = vld [vmem:[#allocation4 + $0x50] sm:$0xff]
    %v2354 = vld [vmem:[#allocation4 + $0x58] sm:$0xff]
    %v2355 = vld [vmem:[#allocation4 + $0x60] sm:$0xff]
    %v2356 = vld [vmem:[#allocation4 + $0x68] sm:$0xff]
    %v2357 = vld [vmem:[#allocation4 + $0x70] sm:$0xff]
    %v2358 = vld [vmem:[#allocation4 + $0x78] sm:$0xff]
    %v2359 = vld [vmem:[#allocation4 + $0x80] sm:$0xff]
    %v2360 = vld [vmem:[#allocation4 + $0x88] sm:$0xff]
    %v2361 = vld [vmem:[#allocation4 + $0x90] sm:$0xff]
    %v2362 = vld [vmem:[#allocation4 + $0x98] sm:$0xff]
    %v2363 = vld [vmem:[#allocation4 + $0xa0] sm:$0xff]
    %v2364 = vld [vmem:[#allocation4 + $0xa8] sm:$0xff]
    %v2365 = vld [vmem:[#allocation4 + $0xb0] sm:$0xff]
    %v2366 = vld [vmem:[#allocation4 + $0xb8] sm:$0xff]
    %v2367 = vld [vmem:[#allocation4 + $0xc0] sm:$0xff]
    %v2368 = vld [vmem:[#allocation4 + $0xc8] sm:$0xff]
    %v2369 = vld [vmem:[#allocation4 + $0xd0] sm:$0xff]
    %v2370 = vld [vmem:[#allocation4 + $0xd8] sm:$0xff]
    %v2371 = vld [vmem:[#allocation4 + $0xe0] sm:$0xff]
    %v2372 = vld [vmem:[#allocation4 + $0xe8] sm:$0xff]
    %v2373 = vld [vmem:[#allocation4 + $0xf0] sm:$0xff]
    %v2374 = vld [vmem:[#allocation4 + $0xf8] sm:$0xff]
    %v2375 = vld [vmem:[#allocation4 + $0x100] sm:$0xff]
    %v2376 = vld [vmem:[#allocation4 + $0x108] sm:$0xff]
    %v2377 = vld [vmem:[#allocation4 + $0x110] sm:$0xff]
    %v2378 = vld [vmem:[#allocation4 + $0x118] sm:$0xff]
    %v2379 = vld [vmem:[#allocation4 + $0x120] sm:$0xff]
    %v2380 = vld [vmem:[#allocation4 + $0x128] sm:$0xff]
    %v2381 = vld [vmem:[#allocation4 + $0x130] sm:$0xff]
    %v2382 = vld [vmem:[#allocation4 + $0x138] sm:$0xff]
    %v2383 = vld [vmem:[#allocation4 + $0x140] sm:$0xff]
    %v2384 = vld [vmem:[#allocation4 + $0x148] sm:$0xff]
    %v2385 = vld [vmem:[#allocation4 + $0x150] sm:$0x3]
    %v2386 = vld [vmem:[#allocation11] sm:$0xff]
    %v2387 = vld [vmem:[#allocation11 + $0x8] sm:$0xff]
    %v2388 = vld [vmem:[#allocation11 + $0x10] sm:$0xff]
    %v2389 = vld [vmem:[#allocation11 + $0x18] sm:$0xff]
    %v2390 = vld [vmem:[#allocation4 + $0x1] sm:$0xff]
    %v2391 = vld [vmem:[#allocation4 + $0x9] sm:$0xff]
    %v2392 = vld [vmem:[#allocation4 + $0x11] sm:$0xff]
    %v2393 = vld [vmem:[#allocation4 + $0x19] sm:$0xff]
    %v2394 = vld [vmem:[#allocation4 + $0x21] sm:$0xff]
    %v2395 = vld [vmem:[#allocation4 + $0x29] sm:$0xff]
    %v2396 = vld [vmem:[#allocation4 + $0x31] sm:$0xff]
    %v2397 = vld [vmem:[#allocation4 + $0x39] sm:$0xff]
    %v2398 = vld [vmem:[#allocation4 + $0x41] sm:$0xff]
    %v2399 = vld [vmem:[#allocation4 + $0x49] sm:$0xff]
    %v2400 = vld [vmem:[#allocation4 + $0x51] sm:$0xff]
    %v2401 = vld [vmem:[#allocation4 + $0x59] sm:$0xff]
    %v2402 = vld [vmem:[#allocation4 + $0x61] sm:$0xff]
    %v2403 = vld [vmem:[#allocation4 + $0x69] sm:$0xff]
    %v2404 = vld [vmem:[#allocation4 + $0x71] sm:$0xff]
    %v2405 = vld [vmem:[#allocation4 + $0x79] sm:$0xff]
    %v2406 = vld [vmem:[#allocation4 + $0x81] sm:$0xff]
    %v2407 = vld [vmem:[#allocation4 + $0x89] sm:$0xff]
    %v2408 = vld [vmem:[#allocation4 + $0x91] sm:$0xff]
    %v2409 = vld [vmem:[#allocation4 + $0x99] sm:$0xff]
    %v2410 = vld [vmem:[#allocation4 + $0xa1] sm:$0xff]
    %v2411 = vld [vmem:[#allocation4 + $0xa9] sm:$0xff]
    %v2412 = vld [vmem:[#allocation4 + $0xb1] sm:$0xff]
    %v2413 = vld [vmem:[#allocation4 + $0xb9] sm:$0xff]
    %v2414 = vld [vmem:[#allocation4 + $0xc1] sm:$0xff]
    %v2415 = vld [vmem:[#allocation4 + $0xc9] sm:$0xff]
    %v2416 = vld [vmem:[#allocation4 + $0xd1] sm:$0xff]
    %v2417 = vld [vmem:[#allocation4 + $0xd9] sm:$0xff]
    %v2418 = vld [vmem:[#allocation4 + $0xe1] sm:$0xff]
    %v2419 = vld [vmem:[#allocation4 + $0xe9] sm:$0xff]
    %v2420 = vld [vmem:[#allocation4 + $0xf1] sm:$0xff]
    %v2421 = vld [vmem:[#allocation4 + $0xf9] sm:$0xff]
    %v2422 = vld [vmem:[#allocation4 + $0x101] sm:$0xff]
    %v2423 = vld [vmem:[#allocation4 + $0x109] sm:$0xff]
    %v2424 = vld [vmem:[#allocation4 + $0x111] sm:$0xff]
    %v2425 = vld [vmem:[#allocation4 + $0x119] sm:$0xff]
    %v2426 = vld [vmem:[#allocation4 + $0x121] sm:$0xff]
    %v2427 = vld [vmem:[#allocation4 + $0x129] sm:$0xff]
    %v2428 = vld [vmem:[#allocation4 + $0x131] sm:$0xff]
    %v2429 = vld [vmem:[#allocation4 + $0x139] sm:$0xff]
    %v2430 = vld [vmem:[#allocation4 + $0x141] sm:$0xff]
    %v2431 = vld [vmem:[#allocation4 + $0x149] sm:$0xff]
    %v2432 = vld [vmem:[#allocation4 + $0x151] sm:$0x3]
    %s2433 = scalar_lea.vmem [#allocation11], 32
    %v2434 = vld [vmem:[%s2433] sm:$0xff]
    %v2435 = vld [vmem:[%s2433 + $0x8] sm:$0xff]
    %v2436 = vld [vmem:[%s2433 + $0x10] sm:$0xff]
    %v2437 = vld [vmem:[%s2433 + $0x18] sm:$0xff]
    %v2439 = vsel %vm201, %v2390, 0
    %v2442 = vsel %vm201, %v2391, 0
    %v2445 = vsel %vm201, %v2392, 0
    %v2448 = vsel %vm201, %v2393, 0
    %v2451 = vsel %vm201, %v2394, 0
    %v2454 = vsel %vm201, %v2395, 0
    %v2457 = vsel %vm201, %v2396, 0
    %v2460 = vsel %vm201, %v2397, 0
    %v2463 = vsel %vm201, %v2398, 0
    %v2466 = vsel %vm201, %v2399, 0
    %v2469 = vsel %vm201, %v2400, 0
    %v2472 = vsel %vm201, %v2401, 0
    %v2475 = vsel %vm201, %v2402, 0
    %v2478 = vsel %vm201, %v2403, 0
    %v2481 = vsel %vm201, %v2404, 0
    %v2484 = vsel %vm201, %v2405, 0
    %v2487 = vsel %vm201, %v2406, 0
    %v2490 = vsel %vm201, %v2407, 0
    %v2493 = vsel %vm201, %v2408, 0
    %v2496 = vsel %vm201, %v2409, 0
    %v2499 = vsel %vm201, %v2410, 0
    %v2502 = vsel %vm201, %v2411, 0
    %v2505 = vsel %vm201, %v2412, 0
    %v2508 = vsel %vm201, %v2413, 0
    %v2511 = vsel %vm201, %v2414, 0
    %v2514 = vsel %vm201, %v2415, 0
    %v2517 = vsel %vm201, %v2416, 0
    %v2520 = vsel %vm201, %v2417, 0
    %v2523 = vsel %vm201, %v2418, 0
    %v2526 = vsel %vm201, %v2419, 0
    %v2529 = vsel %vm201, %v2420, 0
    %v2532 = vsel %vm201, %v2421, 0
    %v2535 = vsel %vm201, %v2422, 0
    %v2538 = vsel %vm201, %v2423, 0
    %v2541 = vsel %vm201, %v2424, 0
    %v2544 = vsel %vm201, %v2425, 0
    %v2547 = vsel %vm201, %v2426, 0
    %v2550 = vsel %vm201, %v2427, 0
    %v2553 = vsel %vm201, %v2428, 0
    %v2556 = vsel %vm201, %v2429, 0
    %v2559 = vsel %vm201, %v2430, 0
    %v2562 = vsel %vm201, %v2431, 0
    %v2565 = vsel %vm201, %v2432, 0
    %2567 = vmatprep.subr.mxu0 0.0
    %2568 = vmatpush1.msra.mxu0 %v2434
    %2569 = vmatprep.subr.mxu0 0.0
    %2570 = vmatpush1.msra.mxu0 %v2435
    %2571 = vmatprep.subr.mxu0 0.0
    %2572 = vmatpush1.msra.mxu0 %v2436
    %2573 = vmatprep.subr.mxu0 0.0
    %2574 = vmatpush1.msra.mxu0 %v2437
    %2575 = vmatprep.subr.mxu0 0.0
    %2576 = vmatpush1.msra.mxu0 0.0
    %2577 = vmatprep.subr.mxu0 0.0
    %2578 = vmatpush1.msra.mxu0 0.0
    %2579 = vmatprep.subr.mxu0 0.0
    %2580 = vmatpush1.msra.mxu0 0.0
    %2581 = vmatprep.subr.mxu0 0.0
    %2582 = vmatpush1.msra.mxu0 0.0
    %2583 = vmatprep.subr.mxu0 0.0
    %2584 = vmatpush1.msra.mxu0 0.0
    %2585 = vmatprep.subr.mxu0 0.0
    %2586 = vmatpush1.msra.mxu0 0.0
    %2587 = vmatprep.subr.mxu0 0.0
    %2588 = vmatpush1.msra.mxu0 0.0
    %2589 = vmatprep.subr.mxu0 0.0
    %2590 = vmatpush1.msra.mxu0 0.0
    %2591 = vmatprep.subr.mxu0 0.0
    %2592 = vmatpush1.msra.mxu0 0.0
    %2593 = vmatprep.subr.mxu0 0.0
    %2594 = vmatpush1.msra.mxu0 0.0
    %2595 = vmatprep.subr.mxu0 0.0
    %2596 = vmatpush1.msra.mxu0 0.0
    %2597 = vmatprep.subr.mxu0 0.0
    %2598 = vmatpush1.msra.mxu0 0.0
    %2599 = vmatprep.subr.mxu0 0.0
    %2600 = vmatpush1.msra.mxu0 0.0
    %2601 = vmatprep.subr.mxu0 0.0
    %2602 = vmatpush1.msra.mxu0 0.0
    %2603 = vmatprep.subr.mxu0 0.0
    %2604 = vmatpush1.msra.mxu0 0.0
    %2605 = vmatprep.subr.mxu0 0.0
    %2606 = vmatpush1.msra.mxu0 0.0
    %2607 = vmatprep.subr.mxu0 0.0
    %2608 = vmatpush1.msra.mxu0 0.0
    %2609 = vmatprep.subr.mxu0 0.0
    %2610 = vmatpush1.msra.mxu0 0.0
    %2611 = vmatprep.subr.mxu0 0.0
    %2612 = vmatpush1.msra.mxu0 0.0
    %2613 = vmatprep.subr.mxu0 0.0
    %2614 = vmatpush1.msra.mxu0 0.0
    %2615 = vmatprep.subr.mxu0 0.0
    %2616 = vmatpush1.msra.mxu0 0.0
    %2617 = vmatprep.subr.mxu0 0.0
    %2618 = vmatpush1.msra.mxu0 0.0
    %2619 = vmatprep.subr.mxu0 0.0
    %2620 = vmatpush1.msra.mxu0 0.0
    %2621 = vmatprep.subr.mxu0 0.0
    %2622 = vmatpush1.msra.mxu0 0.0
    %2623 = vmatprep.subr.mxu0 0.0
    %2624 = vmatpush1.msra.mxu0 0.0
    %2625 = vmatprep.subr.mxu0 0.0
    %2626 = vmatpush1.msra.mxu0 0.0
    %2627 = vmatprep.subr.mxu0 0.0
    %2628 = vmatpush1.msra.mxu0 0.0
    %2629 = vmatprep.subr.mxu0 0.0
    %2630 = vmatpush1.msra.mxu0 0.0
    %2631 = vmatprep.mubr.f32.mxu0 0.0
    %2632 = vmatmul.mubr.f32.gmra.mrb[0].mxu0 %v2439
    %v2633 = vpop.f32.mrb[0].mxu0
    %v2634 = vadd.f32 0.0, %v2633
    %v2635 = vpop.f32.mrb[0].mxu0
    %2636 = vmatprep.mubr.f32.mxu0 0.0
    %2637 = vmatmul.mubr.f32.gmra.mrb[0].mxu0 %v2442
    %v2638 = vpop.f32.mrb[0].mxu0
    %v2639 = vadd.f32 0.0, %v2638
    %v2640 = vpop.f32.mrb[0].mxu0
    %2641 = vmatprep.mubr.f32.mxu0 0.0
    %2642 = vmatmul.mubr.f32.gmra.mrb[0].mxu0 %v2445
    %v2643 = vpop.f32.mrb[0].mxu0
    %v2644 = vadd.f32 0.0, %v2643
    %v2645 = vpop.f32.mrb[0].mxu0
    %2646 = vmatprep.mubr.f32.mxu0 0.0
    %2647 = vmatmul.mubr.f32.gmra.mrb[0].mxu0 %v2448
    %v2648 = vpop.f32.mrb[0].mxu0
    %v2649 = vadd.f32 0.0, %v2648
    %v2650 = vpop.f32.mrb[0].mxu0
    %2651 = vmatprep.mubr.f32.mxu0 0.0
    %2652 = vmatmul.mubr.f32.gmra.mrb[0].mxu0 %v2451
    %v2653 = vpop.f32.mrb[0].mxu0
    %v2654 = vadd.f32 0.0, %v2653
    %v2655 = vpop.f32.mrb[0].mxu0
    %2656 = vmatprep.mubr.f32.mxu0 0.0
    %2657 = vmatmul.mubr.f32.gmra.mrb[0].mxu0 %v2454
    %v2658 = vpop.f32.mrb[0].mxu0
    %v2659 = vadd.f32 0.0, %v2658
    %v2660 = vpop.f32.mrb[0].mxu0
    %2661 = vmatprep.mubr.f32.mxu0 0.0
    %2662 = vmatmul.mubr.f32.gmra.mrb[0].mxu0 %v2457
    %v2663 = vpop.f32.mrb[0].mxu0
    %v2664 = vadd.f32 0.0, %v2663
    %v2665 = vpop.f32.mrb[0].mxu0
    %2666 = vmatprep.mubr.f32.mxu0 0.0
    %2667 = vmatmul.mubr.f32.gmra.mrb[0].mxu0 %v2460
    %v2668 = vpop.f32.mrb[0].mxu0
    %v2669 = vadd.f32 0.0, %v2668
    %v2670 = vpop.f32.mrb[0].mxu0
    %2671 = vmatprep.mubr.f32.mxu0 0.0
    %2672 = vmatmul.mubr.f32.gmra.mrb[0].mxu0 %v2463
    %v2673 = vpop.f32.mrb[0].mxu0
    %v2674 = vadd.f32 0.0, %v2673
    %v2675 = vpop.f32.mrb[0].mxu0
    %2676 = vmatprep.mubr.f32.mxu0 0.0
    %2677 = vmatmul.mubr.f32.gmra.mrb[0].mxu0 %v2466
    %v2678 = vpop.f32.mrb[0].mxu0
    %v2679 = vadd.f32 0.0, %v2678
    %v2680 = vpop.f32.mrb[0].mxu0
    %2681 = vmatprep.mubr.f32.mxu0 0.0
    %2682 = vmatmul.mubr.f32.gmra.mrb[0].mxu0 %v2469
    %v2683 = vpop.f32.mrb[0].mxu0
    %v2684 = vadd.f32 0.0, %v2683
    %v2685 = vpop.f32.mrb[0].mxu0
    %2686 = vmatprep.mubr.f32.mxu0 0.0
    %2687 = vmatmul.mubr.f32.gmra.mrb[0].mxu0 %v2472
    %v2688 = vpop.f32.mrb[0].mxu0
    %v2689 = vadd.f32 0.0, %v2688
    %v2690 = vpop.f32.mrb[0].mxu0
    %2691 = vmatprep.mubr.f32.mxu0 0.0
    %2692 = vmatmul.mubr.f32.gmra.mrb[0].mxu0 %v2475
    %v2693 = vpop.f32.mrb[0].mxu0
    %v2694 = vadd.f32 0.0, %v2693
    %v2695 = vpop.f32.mrb[0].mxu0
    %2696 = vmatprep.mubr.f32.mxu0 0.0
    %2697 = vmatmul.mubr.f32.gmra.mrb[0].mxu0 %v2478
    %v2698 = vpop.f32.mrb[0].mxu0
    %v2699 = vadd.f32 0.0, %v2698
    %v2700 = vpop.f32.mrb[0].mxu0
    %2701 = vmatprep.mubr.f32.mxu0 0.0
    %2702 = vmatmul.mubr.f32.gmra.mrb[0].mxu0 %v2481
    %v2703 = vpop.f32.mrb[0].mxu0
    %v2704 = vadd.f32 0.0, %v2703
    %v2705 = vpop.f32.mrb[0].mxu0
    %2706 = vmatprep.mubr.f32.mxu0 0.0
    %2707 = vmatmul.mubr.f32.gmra.mrb[0].mxu0 %v2484
    %v2708 = vpop.f32.mrb[0].mxu0
    %v2709 = vadd.f32 0.0, %v2708
    %v2710 = vpop.f32.mrb[0].mxu0
    %2711 = vmatprep.mubr.f32.mxu0 0.0
    %2712 = vmatmul.mubr.f32.gmra.mrb[0].mxu0 %v2487
    %v2713 = vpop.f32.mrb[0].mxu0
    %v2714 = vadd.f32 0.0, %v2713
    %v2715 = vpop.f32.mrb[0].mxu0
    %2716 = vmatprep.mubr.f32.mxu0 0.0
    %2717 = vmatmul.mubr.f32.gmra.mrb[0].mxu0 %v2490
    %v2718 = vpop.f32.mrb[0].mxu0
    %v2719 = vadd.f32 0.0, %v2718
    %v2720 = vpop.f32.mrb[0].mxu0
    %2721 = vmatprep.mubr.f32.mxu0 0.0
    %2722 = vmatmul.mubr.f32.gmra.mrb[0].mxu0 %v2493
    %v2723 = vpop.f32.mrb[0].mxu0
    %v2724 = vadd.f32 0.0, %v2723
    %v2725 = vpop.f32.mrb[0].mxu0
    %2726 = vmatprep.mubr.f32.mxu0 0.0
    %2727 = vmatmul.mubr.f32.gmra.mrb[0].mxu0 %v2496
    %v2728 = vpop.f32.mrb[0].mxu0
    %v2729 = vadd.f32 0.0, %v2728
    %v2730 = vpop.f32.mrb[0].mxu0
    %2731 = vmatprep.mubr.f32.mxu0 0.0
    %2732 = vmatmul.mubr.f32.gmra.mrb[0].mxu0 %v2499
    %v2733 = vpop.f32.mrb[0].mxu0
    %v2734 = vadd.f32 0.0, %v2733
    %v2735 = vpop.f32.mrb[0].mxu0
    %2736 = vmatprep.mubr.f32.mxu0 0.0
    %2737 = vmatmul.mubr.f32.gmra.mrb[0].mxu0 %v2502
    %v2738 = vpop.f32.mrb[0].mxu0
    %v2739 = vadd.f32 0.0, %v2738
    %v2740 = vpop.f32.mrb[0].mxu0
    %2741 = vmatprep.mubr.f32.mxu0 0.0
    %2742 = vmatmul.mubr.f32.gmra.mrb[0].mxu0 %v2505
    %v2743 = vpop.f32.mrb[0].mxu0
    %v2744 = vadd.f32 0.0, %v2743
    %v2745 = vpop.f32.mrb[0].mxu0
    %2746 = vmatprep.mubr.f32.mxu0 0.0
    %2747 = vmatmul.mubr.f32.gmra.mrb[0].mxu0 %v2508
    %v2748 = vpop.f32.mrb[0].mxu0
    %v2749 = vadd.f32 0.0, %v2748
    %v2750 = vpop.f32.mrb[0].mxu0
    %2751 = vmatprep.mubr.f32.mxu0 0.0
    %2752 = vmatmul.mubr.f32.gmra.mrb[0].mxu0 %v2511
    %v2753 = vpop.f32.mrb[0].mxu0
    %v2754 = vadd.f32 0.0, %v2753
    %v2755 = vpop.f32.mrb[0].mxu0
    %2756 = vmatprep.mubr.f32.mxu0 0.0
    %2757 = vmatmul.mubr.f32.gmra.mrb[0].mxu0 %v2514
    %v2758 = vpop.f32.mrb[0].mxu0
    %v2759 = vadd.f32 0.0, %v2758
    %v2760 = vpop.f32.mrb[0].mxu0
    %2761 = vmatprep.mubr.f32.mxu0 0.0
    %2762 = vmatmul.mubr.f32.gmra.mrb[0].mxu0 %v2517
    %v2763 = vpop.f32.mrb[0].mxu0
    %v2764 = vadd.f32 0.0, %v2763
    %v2765 = vpop.f32.mrb[0].mxu0
    %2766 = vmatprep.mubr.f32.mxu0 0.0
    %2767 = vmatmul.mubr.f32.gmra.mrb[0].mxu0 %v2520
    %v2768 = vpop.f32.mrb[0].mxu0
    %v2769 = vadd.f32 0.0, %v2768
    %v2770 = vpop.f32.mrb[0].mxu0
    %2771 = vmatprep.mubr.f32.mxu0 0.0
    %2772 = vmatmul.mubr.f32.gmra.mrb[0].mxu0 %v2523
    %v2773 = vpop.f32.mrb[0].mxu0
    %v2774 = vadd.f32 0.0, %v2773
    %v2775 = vpop.f32.mrb[0].mxu0
    %2776 = vmatprep.mubr.f32.mxu0 0.0
    %2777 = vmatmul.mubr.f32.gmra.mrb[0].mxu0 %v2526
    %v2778 = vpop.f32.mrb[0].mxu0
    %v2779 = vadd.f32 0.0, %v2778
    %v2780 = vpop.f32.mrb[0].mxu0
    %2781 = vmatprep.mubr.f32.mxu0 0.0
    %2782 = vmatmul.mubr.f32.gmra.mrb[0].mxu0 %v2529
    %v2783 = vpop.f32.mrb[0].mxu0
    %v2784 = vadd.f32 0.0, %v2783
    %v2785 = vpop.f32.mrb[0].mxu0
    %2786 = vmatprep.mubr.f32.mxu0 0.0
    %2787 = vmatmul.mubr.f32.gmra.mrb[0].mxu0 %v2532
    %v2788 = vpop.f32.mrb[0].mxu0
    %v2789 = vadd.f32 0.0, %v2788
    %v2790 = vpop.f32.mrb[0].mxu0
    %2791 = vmatprep.mubr.f32.mxu0 0.0
    %2792 = vmatmul.mubr.f32.gmra.mrb[0].mxu0 %v2535
    %v2793 = vpop.f32.mrb[0].mxu0
    %v2794 = vadd.f32 0.0, %v2793
    %v2795 = vpop.f32.mrb[0].mxu0
    %2796 = vmatprep.mubr.f32.mxu0 0.0
    %2797 = vmatmul.mubr.f32.gmra.mrb[0].mxu0 %v2538
    %v2798 = vpop.f32.mrb[0].mxu0
    %v2799 = vadd.f32 0.0, %v2798
    %v2800 = vpop.f32.mrb[0].mxu0
    %2801 = vmatprep.mubr.f32.mxu0 0.0
    %2802 = vmatmul.mubr.f32.gmra.mrb[0].mxu0 %v2541
    %v2803 = vpop.f32.mrb[0].mxu0
    %v2804 = vadd.f32 0.0, %v2803
    %v2805 = vpop.f32.mrb[0].mxu0
    %2806 = vmatprep.mubr.f32.mxu0 0.0
    %2807 = vmatmul.mubr.f32.gmra.mrb[0].mxu0 %v2544
    %v2808 = vpop.f32.mrb[0].mxu0
    %v2809 = vadd.f32 0.0, %v2808
    %v2810 = vpop.f32.mrb[0].mxu0
    %2811 = vmatprep.mubr.f32.mxu0 0.0
    %2812 = vmatmul.mubr.f32.gmra.mrb[0].mxu0 %v2547
    %v2813 = vpop.f32.mrb[0].mxu0
    %v2814 = vadd.f32 0.0, %v2813
    %v2815 = vpop.f32.mrb[0].mxu0
    %2816 = vmatprep.mubr.f32.mxu0 0.0
    %2817 = vmatmul.mubr.f32.gmra.mrb[0].mxu0 %v2550
    %v2818 = vpop.f32.mrb[0].mxu0
    %v2819 = vadd.f32 0.0, %v2818
    %v2820 = vpop.f32.mrb[0].mxu0
    %2821 = vmatprep.mubr.f32.mxu0 0.0
    %2822 = vmatmul.mubr.f32.gmra.mrb[0].mxu0 %v2553
    %v2823 = vpop.f32.mrb[0].mxu0
    %v2824 = vadd.f32 0.0, %v2823
    %v2825 = vpop.f32.mrb[0].mxu0
    %2826 = vmatprep.mubr.f32.mxu0 0.0
    %2827 = vmatmul.mubr.f32.gmra.mrb[0].mxu0 %v2556
    %v2828 = vpop.f32.mrb[0].mxu0
    %v2829 = vadd.f32 0.0, %v2828
    %v2830 = vpop.f32.mrb[0].mxu0
    %2831 = vmatprep.mubr.f32.mxu0 0.0
    %2832 = vmatmul.mubr.f32.gmra.mrb[0].mxu0 %v2559
    %v2833 = vpop.f32.mrb[0].mxu0
    %v2834 = vadd.f32 0.0, %v2833
    %v2835 = vpop.f32.mrb[0].mxu0
    %2836 = vmatprep.mubr.f32.mxu0 0.0
    %2837 = vmatmul.mubr.f32.gmra.mrb[0].mxu0 %v2562
    %v2838 = vpop.f32.mrb[0].mxu0
    %v2839 = vadd.f32 0.0, %v2838
    %v2840 = vpop.f32.mrb[0].mxu0
    %2841 = vmatprep.mubr.f32.mxu0 0.0
    %2842 = vmatmul.mubr.f32.gmra.mrb[0].mxu0 %v2565
    %v2843 = vpop.f32.mrb[0].mxu0
    %v2844 = vadd.f32 0.0, %v2843
    %v2845 = vpop.f32.mrb[0].mxu0
    %2846 = vdwg.mxu0
    %v2848 = vsel %vm201, %v2343, 0
    %v2851 = vsel %vm201, %v2344, 0
    %v2854 = vsel %vm201, %v2345, 0
    %v2857 = vsel %vm201, %v2346, 0
    %v2860 = vsel %vm201, %v2347, 0
    %v2863 = vsel %vm201, %v2348, 0
    %v2866 = vsel %vm201, %v2349, 0
    %v2869 = vsel %vm201, %v2350, 0
    %v2872 = vsel %vm201, %v2351, 0
    %v2875 = vsel %vm201, %v2352, 0
    %v2878 = vsel %vm201, %v2353, 0
    %v2881 = vsel %vm201, %v2354, 0
    %v2884 = vsel %vm201, %v2355, 0
    %v2887 = vsel %vm201, %v2356, 0
    %v2890 = vsel %vm201, %v2357, 0
    %v2893 = vsel %vm201, %v2358, 0
    %v2896 = vsel %vm201, %v2359, 0
    %v2899 = vsel %vm201, %v2360, 0
    %v2902 = vsel %vm201, %v2361, 0
    %v2905 = vsel %vm201, %v2362, 0
    %v2908 = vsel %vm201, %v2363, 0
    %v2911 = vsel %vm201, %v2364, 0
    %v2914 = vsel %vm201, %v2365, 0
    %v2917 = vsel %vm201, %v2366, 0
    %v2920 = vsel %vm201, %v2367, 0
    %v2923 = vsel %vm201, %v2368, 0
    %v2926 = vsel %vm201, %v2369, 0
    %v2929 = vsel %vm201, %v2370, 0
    %v2932 = vsel %vm201, %v2371, 0
    %v2935 = vsel %vm201, %v2372, 0
    %v2938 = vsel %vm201, %v2373, 0
    %v2941 = vsel %vm201, %v2374, 0
    %v2944 = vsel %vm201, %v2375, 0
    %v2947 = vsel %vm201, %v2376, 0
    %v2950 = vsel %vm201, %v2377, 0
    %v2953 = vsel %vm201, %v2378, 0
    %v2956 = vsel %vm201, %v2379, 0
    %v2959 = vsel %vm201, %v2380, 0
    %v2962 = vsel %vm201, %v2381, 0
    %v2965 = vsel %vm201, %v2382, 0
    %v2968 = vsel %vm201, %v2383, 0
    %v2971 = vsel %vm201, %v2384, 0
    %v2974 = vsel %vm201, %v2385, 0
    %2976 = vmatprep.subr.mxu0 0.0
    %2977 = vmatpush1.msra.mxu0 %v2386
    %2978 = vmatprep.subr.mxu0 0.0
    %2979 = vmatpush1.msra.mxu0 %v2387
    %2980 = vmatprep.subr.mxu0 0.0
    %2981 = vmatpush1.msra.mxu0 %v2388
    %2982 = vmatprep.subr.mxu0 0.0
    %2983 = vmatpush1.msra.mxu0 %v2389
    %2984 = vmatprep.subr.mxu0 0.0
    %2985 = vmatpush1.msra.mxu0 0.0
    %2986 = vmatprep.subr.mxu0 0.0
    %2987 = vmatpush1.msra.mxu0 0.0
    %2988 = vmatprep.subr.mxu0 0.0
    %2989 = vmatpush1.msra.mxu0 0.0
    %2990 = vmatprep.subr.mxu0 0.0
    %2991 = vmatpush1.msra.mxu0 0.0
    %2992 = vmatprep.subr.mxu0 0.0
    %2993 = vmatpush1.msra.mxu0 0.0
    %2994 = vmatprep.subr.mxu0 0.0
    %2995 = vmatpush1.msra.mxu0 0.0
    %2996 = vmatprep.subr.mxu0 0.0
    %2997 = vmatpush1.msra.mxu0 0.0
    %2998 = vmatprep.subr.mxu0 0.0
    %2999 = vmatpush1.msra.mxu0 0.0
    %3000 = vmatprep.subr.mxu0 0.0
    %3001 = vmatpush1.msra.mxu0 0.0
    %3002 = vmatprep.subr.mxu0 0.0
    %3003 = vmatpush1.msra.mxu0 0.0
    %3004 = vmatprep.subr.mxu0 0.0
    %3005 = vmatpush1.msra.mxu0 0.0
    %3006 = vmatprep.subr.mxu0 0.0
    %3007 = vmatpush1.msra.mxu0 0.0
    %3008 = vmatprep.subr.mxu0 0.0
    %3009 = vmatpush1.msra.mxu0 0.0
    %3010 = vmatprep.subr.mxu0 0.0
    %3011 = vmatpush1.msra.mxu0 0.0
    %3012 = vmatprep.subr.mxu0 0.0
    %3013 = vmatpush1.msra.mxu0 0.0
    %3014 = vmatprep.subr.mxu0 0.0
    %3015 = vmatpush1.msra.mxu0 0.0
    %3016 = vmatprep.subr.mxu0 0.0
    %3017 = vmatpush1.msra.mxu0 0.0
    %3018 = vmatprep.subr.mxu0 0.0
    %3019 = vmatpush1.msra.mxu0 0.0
    %3020 = vmatprep.subr.mxu0 0.0
    %3021 = vmatpush1.msra.mxu0 0.0
    %3022 = vmatprep.subr.mxu0 0.0
    %3023 = vmatpush1.msra.mxu0 0.0
    %3024 = vmatprep.subr.mxu0 0.0
    %3025 = vmatpush1.msra.mxu0 0.0
    %3026 = vmatprep.subr.mxu0 0.0
    %3027 = vmatpush1.msra.mxu0 0.0
    %3028 = vmatprep.subr.mxu0 0.0
    %3029 = vmatpush1.msra.mxu0 0.0
    %3030 = vmatprep.subr.mxu0 0.0
    %3031 = vmatpush1.msra.mxu0 0.0
    %3032 = vmatprep.subr.mxu0 0.0
    %3033 = vmatpush1.msra.mxu0 0.0
    %3034 = vmatprep.subr.mxu0 0.0
    %3035 = vmatpush1.msra.mxu0 0.0
    %3036 = vmatprep.subr.mxu0 0.0
    %3037 = vmatpush1.msra.mxu0 0.0
    %3038 = vmatprep.subr.mxu0 0.0
    %3039 = vmatpush1.msra.mxu0 0.0
    %3040 = vmatprep.mubr.f32.mxu0 0.0
    %3041 = vmatmul.mubr.f32.gmra.mrb[0].mxu0 %v2848
    %v3042 = vpop.f32.mrb[0].mxu0
    %v3043 = vadd.f32 %v2634, %v3042
    %v3044 = vpop.f32.mrb[0].mxu0
    %3045 = vmatprep.mubr.f32.mxu0 0.0
    %3046 = vmatmul.mubr.f32.gmra.mrb[0].mxu0 %v2851
    %v3047 = vpop.f32.mrb[0].mxu0
    %v3048 = vadd.f32 %v2639, %v3047
    %v3049 = vpop.f32.mrb[0].mxu0
    %3050 = vmatprep.mubr.f32.mxu0 0.0
    %3051 = vmatmul.mubr.f32.gmra.mrb[0].mxu0 %v2854
    %v3052 = vpop.f32.mrb[0].mxu0
    %v3053 = vadd.f32 %v2644, %v3052
    %v3054 = vpop.f32.mrb[0].mxu0
    %3055 = vmatprep.mubr.f32.mxu0 0.0
    %3056 = vmatmul.mubr.f32.gmra.mrb[0].mxu0 %v2857
    %v3057 = vpop.f32.mrb[0].mxu0
    %v3058 = vadd.f32 %v2649, %v3057
    %v3059 = vpop.f32.mrb[0].mxu0
    %3060 = vmatprep.mubr.f32.mxu0 0.0
    %3061 = vmatmul.mubr.f32.gmra.mrb[0].mxu0 %v2860
    %v3062 = vpop.f32.mrb[0].mxu0
    %v3063 = vadd.f32 %v2654, %v3062
    %v3064 = vpop.f32.mrb[0].mxu0
    %3065 = vmatprep.mubr.f32.mxu0 0.0
    %3066 = vmatmul.mubr.f32.gmra.mrb[0].mxu0 %v2863
    %v3067 = vpop.f32.mrb[0].mxu0
    %v3068 = vadd.f32 %v2659, %v3067
    %v3069 = vpop.f32.mrb[0].mxu0
    %3070 = vmatprep.mubr.f32.mxu0 0.0
    %3071 = vmatmul.mubr.f32.gmra.mrb[0].mxu0 %v2866
    %v3072 = vpop.f32.mrb[0].mxu0
    %v3073 = vadd.f32 %v2664, %v3072
    %v3074 = vpop.f32.mrb[0].mxu0
    %3075 = vmatprep.mubr.f32.mxu0 0.0
    %3076 = vmatmul.mubr.f32.gmra.mrb[0].mxu0 %v2869
    %v3077 = vpop.f32.mrb[0].mxu0
    %v3078 = vadd.f32 %v2669, %v3077
    %v3079 = vpop.f32.mrb[0].mxu0
    %3080 = vmatprep.mubr.f32.mxu0 0.0
    %3081 = vmatmul.mubr.f32.gmra.mrb[0].mxu0 %v2872
    %v3082 = vpop.f32.mrb[0].mxu0
    %v3083 = vadd.f32 %v2674, %v3082
    %v3084 = vpop.f32.mrb[0].mxu0
    %3085 = vmatprep.mubr.f32.mxu0 0.0
    %3086 = vmatmul.mubr.f32.gmra.mrb[0].mxu0 %v2875
    %v3087 = vpop.f32.mrb[0].mxu0
    %v3088 = vadd.f32 %v2679, %v3087
    %v3089 = vpop.f32.mrb[0].mxu0
    %3090 = vmatprep.mubr.f32.mxu0 0.0
    %3091 = vmatmul.mubr.f32.gmra.mrb[0].mxu0 %v2878
    %v3092 = vpop.f32.mrb[0].mxu0
    %v3093 = vadd.f32 %v2684, %v3092
    %v3094 = vpop.f32.mrb[0].mxu0
    %3095 = vmatprep.mubr.f32.mxu0 0.0
    %3096 = vmatmul.mubr.f32.gmra.mrb[0].mxu0 %v2881
    %v3097 = vpop.f32.mrb[0].mxu0
    %v3098 = vadd.f32 %v2689, %v3097
    %v3099 = vpop.f32.mrb[0].mxu0
    %3100 = vmatprep.mubr.f32.mxu0 0.0
    %3101 = vmatmul.mubr.f32.gmra.mrb[0].mxu0 %v2884
    %v3102 = vpop.f32.mrb[0].mxu0
    %v3103 = vadd.f32 %v2694, %v3102
    %v3104 = vpop.f32.mrb[0].mxu0
    %3105 = vmatprep.mubr.f32.mxu0 0.0
    %3106 = vmatmul.mubr.f32.gmra.mrb[0].mxu0 %v2887
    %v3107 = vpop.f32.mrb[0].mxu0
    %v3108 = vadd.f32 %v2699, %v3107
    %v3109 = vpop.f32.mrb[0].mxu0
    %3110 = vmatprep.mubr.f32.mxu0 0.0
    %3111 = vmatmul.mubr.f32.gmra.mrb[0].mxu0 %v2890
    %v3112 = vpop.f32.mrb[0].mxu0
    %v3113 = vadd.f32 %v2704, %v3112
    %v3114 = vpop.f32.mrb[0].mxu0
    %3115 = vmatprep.mubr.f32.mxu0 0.0
    %3116 = vmatmul.mubr.f32.gmra.mrb[0].mxu0 %v2893
    %v3117 = vpop.f32.mrb[0].mxu0
    %v3118 = vadd.f32 %v2709, %v3117
    %v3119 = vpop.f32.mrb[0].mxu0
    %3120 = vmatprep.mubr.f32.mxu0 0.0
    %3121 = vmatmul.mubr.f32.gmra.mrb[0].mxu0 %v2896
    %v3122 = vpop.f32.mrb[0].mxu0
    %v3123 = vadd.f32 %v2714, %v3122
    %v3124 = vpop.f32.mrb[0].mxu0
    %3125 = vmatprep.mubr.f32.mxu0 0.0
    %3126 = vmatmul.mubr.f32.gmra.mrb[0].mxu0 %v2899
    %v3127 = vpop.f32.mrb[0].mxu0
    %v3128 = vadd.f32 %v2719, %v3127
    %v3129 = vpop.f32.mrb[0].mxu0
    %3130 = vmatprep.mubr.f32.mxu0 0.0
    %3131 = vmatmul.mubr.f32.gmra.mrb[0].mxu0 %v2902
    %v3132 = vpop.f32.mrb[0].mxu0
    %v3133 = vadd.f32 %v2724, %v3132
    %v3134 = vpop.f32.mrb[0].mxu0
    %3135 = vmatprep.mubr.f32.mxu0 0.0
    %3136 = vmatmul.mubr.f32.gmra.mrb[0].mxu0 %v2905
    %v3137 = vpop.f32.mrb[0].mxu0
    %v3138 = vadd.f32 %v2729, %v3137
    %v3139 = vpop.f32.mrb[0].mxu0
    %3140 = vmatprep.mubr.f32.mxu0 0.0
    %3141 = vmatmul.mubr.f32.gmra.mrb[0].mxu0 %v2908
    %v3142 = vpop.f32.mrb[0].mxu0
    %v3143 = vadd.f32 %v2734, %v3142
    %v3144 = vpop.f32.mrb[0].mxu0
    %3145 = vmatprep.mubr.f32.mxu0 0.0
    %3146 = vmatmul.mubr.f32.gmra.mrb[0].mxu0 %v2911
    %v3147 = vpop.f32.mrb[0].mxu0
    %v3148 = vadd.f32 %v2739, %v3147
    %v3149 = vpop.f32.mrb[0].mxu0
    %3150 = vmatprep.mubr.f32.mxu0 0.0
    %3151 = vmatmul.mubr.f32.gmra.mrb[0].mxu0 %v2914
    %v3152 = vpop.f32.mrb[0].mxu0
    %v3153 = vadd.f32 %v2744, %v3152
    %v3154 = vpop.f32.mrb[0].mxu0
    %3155 = vmatprep.mubr.f32.mxu0 0.0
    %3156 = vmatmul.mubr.f32.gmra.mrb[0].mxu0 %v2917
    %v3157 = vpop.f32.mrb[0].mxu0
    %v3158 = vadd.f32 %v2749, %v3157
    %v3159 = vpop.f32.mrb[0].mxu0
    %3160 = vmatprep.mubr.f32.mxu0 0.0
    %3161 = vmatmul.mubr.f32.gmra.mrb[0].mxu0 %v2920
    %v3162 = vpop.f32.mrb[0].mxu0
    %v3163 = vadd.f32 %v2754, %v3162
    %v3164 = vpop.f32.mrb[0].mxu0
    %3165 = vmatprep.mubr.f32.mxu0 0.0
    %3166 = vmatmul.mubr.f32.gmra.mrb[0].mxu0 %v2923
    %v3167 = vpop.f32.mrb[0].mxu0
    %v3168 = vadd.f32 %v2759, %v3167
    %v3169 = vpop.f32.mrb[0].mxu0
    %3170 = vmatprep.mubr.f32.mxu0 0.0
    %3171 = vmatmul.mubr.f32.gmra.mrb[0].mxu0 %v2926
    %v3172 = vpop.f32.mrb[0].mxu0
    %v3173 = vadd.f32 %v2764, %v3172
    %v3174 = vpop.f32.mrb[0].mxu0
    %3175 = vmatprep.mubr.f32.mxu0 0.0
    %3176 = vmatmul.mubr.f32.gmra.mrb[0].mxu0 %v2929
    %v3177 = vpop.f32.mrb[0].mxu0
    %v3178 = vadd.f32 %v2769, %v3177
    %v3179 = vpop.f32.mrb[0].mxu0
    %3180 = vmatprep.mubr.f32.mxu0 0.0
    %3181 = vmatmul.mubr.f32.gmra.mrb[0].mxu0 %v2932
    %v3182 = vpop.f32.mrb[0].mxu0
    %v3183 = vadd.f32 %v2774, %v3182
    %v3184 = vpop.f32.mrb[0].mxu0
    %3185 = vmatprep.mubr.f32.mxu0 0.0
    %3186 = vmatmul.mubr.f32.gmra.mrb[0].mxu0 %v2935
    %v3187 = vpop.f32.mrb[0].mxu0
    %v3188 = vadd.f32 %v2779, %v3187
    %v3189 = vpop.f32.mrb[0].mxu0
    %3190 = vmatprep.mubr.f32.mxu0 0.0
    %3191 = vmatmul.mubr.f32.gmra.mrb[0].mxu0 %v2938
    %v3192 = vpop.f32.mrb[0].mxu0
    %v3193 = vadd.f32 %v2784, %v3192
    %v3194 = vpop.f32.mrb[0].mxu0
    %3195 = vmatprep.mubr.f32.mxu0 0.0
    %3196 = vmatmul.mubr.f32.gmra.mrb[0].mxu0 %v2941
    %v3197 = vpop.f32.mrb[0].mxu0
    %v3198 = vadd.f32 %v2789, %v3197
    %v3199 = vpop.f32.mrb[0].mxu0
    %3200 = vmatprep.mubr.f32.mxu0 0.0
    %3201 = vmatmul.mubr.f32.gmra.mrb[0].mxu0 %v2944
    %v3202 = vpop.f32.mrb[0].mxu0
    %v3203 = vadd.f32 %v2794, %v3202
    %v3204 = vpop.f32.mrb[0].mxu0
    %3205 = vmatprep.mubr.f32.mxu0 0.0
    %3206 = vmatmul.mubr.f32.gmra.mrb[0].mxu0 %v2947
    %v3207 = vpop.f32.mrb[0].mxu0
    %v3208 = vadd.f32 %v2799, %v3207
    %v3209 = vpop.f32.mrb[0].mxu0
    %3210 = vmatprep.mubr.f32.mxu0 0.0
    %3211 = vmatmul.mubr.f32.gmra.mrb[0].mxu0 %v2950
    %v3212 = vpop.f32.mrb[0].mxu0
    %v3213 = vadd.f32 %v2804, %v3212
    %v3214 = vpop.f32.mrb[0].mxu0
    %3215 = vmatprep.mubr.f32.mxu0 0.0
    %3216 = vmatmul.mubr.f32.gmra.mrb[0].mxu0 %v2953
    %v3217 = vpop.f32.mrb[0].mxu0
    %v3218 = vadd.f32 %v2809, %v3217
    %v3219 = vpop.f32.mrb[0].mxu0
    %3220 = vmatprep.mubr.f32.mxu0 0.0
    %3221 = vmatmul.mubr.f32.gmra.mrb[0].mxu0 %v2956
    %v3222 = vpop.f32.mrb[0].mxu0
    %v3223 = vadd.f32 %v2814, %v3222
    %v3224 = vpop.f32.mrb[0].mxu0
    %3225 = vmatprep.mubr.f32.mxu0 0.0
    %3226 = vmatmul.mubr.f32.gmra.mrb[0].mxu0 %v2959
    %v3227 = vpop.f32.mrb[0].mxu0
    %v3228 = vadd.f32 %v2819, %v3227
    %v3229 = vpop.f32.mrb[0].mxu0
    %3230 = vmatprep.mubr.f32.mxu0 0.0
    %3231 = vmatmul.mubr.f32.gmra.mrb[0].mxu0 %v2962
    %v3232 = vpop.f32.mrb[0].mxu0
    %v3233 = vadd.f32 %v2824, %v3232
    %v3234 = vpop.f32.mrb[0].mxu0
    %3235 = vmatprep.mubr.f32.mxu0 0.0
    %3236 = vmatmul.mubr.f32.gmra.mrb[0].mxu0 %v2965
    %v3237 = vpop.f32.mrb[0].mxu0
    %v3238 = vadd.f32 %v2829, %v3237
    %v3239 = vpop.f32.mrb[0].mxu0
    %3240 = vmatprep.mubr.f32.mxu0 0.0
    %3241 = vmatmul.mubr.f32.gmra.mrb[0].mxu0 %v2968
    %v3242 = vpop.f32.mrb[0].mxu0
    %v3243 = vadd.f32 %v2834, %v3242
    %v3244 = vpop.f32.mrb[0].mxu0
    %3245 = vmatprep.mubr.f32.mxu0 0.0
    %3246 = vmatmul.mubr.f32.gmra.mrb[0].mxu0 %v2971
    %v3247 = vpop.f32.mrb[0].mxu0
    %v3248 = vadd.f32 %v2839, %v3247
    %v3249 = vpop.f32.mrb[0].mxu0
    %3250 = vmatprep.mubr.f32.mxu0 0.0
    %3251 = vmatmul.mubr.f32.gmra.mrb[0].mxu0 %v2974
    %v3252 = vpop.f32.mrb[0].mxu0
    %v3253 = vadd.f32 %v2844, %v3252
    %v3254 = vpop.f32.mrb[0].mxu0
    %3255 = vdwg.mxu0
    %v3256 = vld [vmem:[#allocation4 + $0xd] sm:$0xff]
    %v3257 = vld [vmem:[#allocation4 + $0x15] sm:$0xff]
    %v3258 = vld [vmem:[#allocation4 + $0x1d] sm:$0xff]
    %v3259 = vld [vmem:[#allocation4 + $0x25] sm:$0xff]
    %v3260 = vld [vmem:[#allocation4 + $0x2d] sm:$0xff]
    %v3261 = vld [vmem:[#allocation4 + $0x35] sm:$0xff]
    %v3262 = vld [vmem:[#allocation4 + $0x3d] sm:$0xff]
    %v3263 = vld [vmem:[#allocation4 + $0x45] sm:$0xff]
    %v3264 = vld [vmem:[#allocation4 + $0x4d] sm:$0xff]
    %v3265 = vld [vmem:[#allocation4 + $0x55] sm:$0xff]
    %v3266 = vld [vmem:[#allocation4 + $0x5d] sm:$0xff]
    %v3267 = vld [vmem:[#allocation4 + $0x65] sm:$0xff]
    %v3268 = vld [vmem:[#allocation4 + $0x6d] sm:$0xff]
    %v3269 = vld [vmem:[#allocation4 + $0x75] sm:$0xff]
    %v3270 = vld [vmem:[#allocation4 + $0x7d] sm:$0xff]
    %v3271 = vld [vmem:[#allocation4 + $0x85] sm:$0xff]
    %v3272 = vld [vmem:[#allocation4 + $0x8d] sm:$0xff]
    %v3273 = vld [vmem:[#allocation4 + $0x95] sm:$0xff]
    %v3274 = vld [vmem:[#allocation4 + $0x9d] sm:$0xff]
    %v3275 = vld [vmem:[#allocation4 + $0xa5] sm:$0xff]
    %v3276 = vld [vmem:[#allocation4 + $0xad] sm:$0xff]
    %v3277 = vld [vmem:[#allocation4 + $0xb5] sm:$0xff]
    %v3278 = vld [vmem:[#allocation4 + $0xbd] sm:$0xff]
    %v3279 = vld [vmem:[#allocation4 + $0xc5] sm:$0xff]
    %v3280 = vld [vmem:[#allocation4 + $0xcd] sm:$0xff]
    %v3281 = vld [vmem:[#allocation4 + $0xd5] sm:$0xff]
    %v3282 = vld [vmem:[#allocation4 + $0xdd] sm:$0xff]
    %v3283 = vld [vmem:[#allocation4 + $0xe5] sm:$0xff]
    %v3284 = vld [vmem:[#allocation4 + $0xed] sm:$0xff]
    %v3285 = vld [vmem:[#allocation4 + $0xf5] sm:$0xff]
    %v3286 = vld [vmem:[#allocation4 + $0xfd] sm:$0xff]
    %v3287 = vld [vmem:[#allocation4 + $0x105] sm:$0xff]
    %v3288 = vld [vmem:[#allocation4 + $0x10d] sm:$0xff]
    %v3289 = vld [vmem:[#allocation4 + $0x115] sm:$0xff]
    %v3290 = vld [vmem:[#allocation4 + $0x11d] sm:$0xff]
    %v3291 = vld [vmem:[#allocation4 + $0x125] sm:$0xff]
    %v3292 = vld [vmem:[#allocation4 + $0x12d] sm:$0xff]
    %v3293 = vld [vmem:[#allocation4 + $0x135] sm:$0xff]
    %v3294 = vld [vmem:[#allocation4 + $0x13d] sm:$0xff]
    %v3295 = vld [vmem:[#allocation4 + $0x145] sm:$0xff]
    %v3296 = vld [vmem:[#allocation4 + $0x14d] sm:$0xff]
    %v3297 = vld [vmem:[#allocation4 + $0x155] sm:$0xff]
    %v3298 = vld [vmem:[#allocation4 + $0x15d] sm:$0x3]
    %s3299 = scalar_lea.vmem [#allocation11], 64
    %v3300 = vld [vmem:[%s3299] sm:$0xff]
    %v3301 = vld [vmem:[%s3299 + $0x8] sm:$0xff]
    %v3302 = vld [vmem:[%s3299 + $0x10] sm:$0xff]
    %v3303 = vld [vmem:[%s3299 + $0x18] sm:$0xff]
    %v3305 = vsel %vm201, %v3256, 0
    %v3308 = vsel %vm201, %v3257, 0
    %v3311 = vsel %vm201, %v3258, 0
    %v3314 = vsel %vm201, %v3259, 0
    %v3317 = vsel %vm201, %v3260, 0
    %v3320 = vsel %vm201, %v3261, 0
    %v3323 = vsel %vm201, %v3262, 0
    %v3326 = vsel %vm201, %v3263, 0
    %v3329 = vsel %vm201, %v3264, 0
    %v3332 = vsel %vm201, %v3265, 0
    %v3335 = vsel %vm201, %v3266, 0
    %v3338 = vsel %vm201, %v3267, 0
    %v3341 = vsel %vm201, %v3268, 0
    %v3344 = vsel %vm201, %v3269, 0
    %v3347 = vsel %vm201, %v3270, 0
    %v3350 = vsel %vm201, %v3271, 0
    %v3353 = vsel %vm201, %v3272, 0
    %v3356 = vsel %vm201, %v3273, 0
    %v3359 = vsel %vm201, %v3274, 0
    %v3362 = vsel %vm201, %v3275, 0
    %v3365 = vsel %vm201, %v3276, 0
    %v3368 = vsel %vm201, %v3277, 0
    %v3371 = vsel %vm201, %v3278, 0
    %v3374 = vsel %vm201, %v3279, 0
    %v3377 = vsel %vm201, %v3280, 0
    %v3380 = vsel %vm201, %v3281, 0
    %v3383 = vsel %vm201, %v3282, 0
    %v3386 = vsel %vm201, %v3283, 0
    %v3389 = vsel %vm201, %v3284, 0
    %v3392 = vsel %vm201, %v3285, 0
    %v3395 = vsel %vm201, %v3286, 0
    %v3398 = vsel %vm201, %v3287, 0
    %v3401 = vsel %vm201, %v3288, 0
    %v3404 = vsel %vm201, %v3289, 0
    %v3407 = vsel %vm201, %v3290, 0
    %v3410 = vsel %vm201, %v3291, 0
    %v3413 = vsel %vm201, %v3292, 0
    %v3416 = vsel %vm201, %v3293, 0
    %v3419 = vsel %vm201, %v3294, 0
    %v3422 = vsel %vm201, %v3295, 0
    %v3425 = vsel %vm201, %v3296, 0
    %v3428 = vsel %vm201, %v3297, 0
    %v3431 = vsel %vm201, %v3298, 0
    %3433 = vmatprep.subr.mxu0 0.0
    %3434 = vmatpush1.msra.mxu0 %v3300
    %3435 = vmatprep.subr.mxu0 0.0
    %3436 = vmatpush1.msra.mxu0 %v3301
    %3437 = vmatprep.subr.mxu0 0.0
    %3438 = vmatpush1.msra.mxu0 %v3302
    %3439 = vmatprep.subr.mxu0 0.0
    %3440 = vmatpush1.msra.mxu0 %v3303
    %3441 = vmatprep.subr.mxu0 0.0
    %3442 = vmatpush1.msra.mxu0 0.0
    %3443 = vmatprep.subr.mxu0 0.0
    %3444 = vmatpush1.msra.mxu0 0.0
    %3445 = vmatprep.subr.mxu0 0.0
    %3446 = vmatpush1.msra.mxu0 0.0
    %3447 = vmatprep.subr.mxu0 0.0
    %3448 = vmatpush1.msra.mxu0 0.0
    %3449 = vmatprep.subr.mxu0 0.0
    %3450 = vmatpush1.msra.mxu0 0.0
    %3451 = vmatprep.subr.mxu0 0.0
    %3452 = vmatpush1.msra.mxu0 0.0
    %3453 = vmatprep.subr.mxu0 0.0
    %3454 = vmatpush1.msra.mxu0 0.0
    %3455 = vmatprep.subr.mxu0 0.0
    %3456 = vmatpush1.msra.mxu0 0.0
    %3457 = vmatprep.subr.mxu0 0.0
    %3458 = vmatpush1.msra.mxu0 0.0
    %3459 = vmatprep.subr.mxu0 0.0
    %3460 = vmatpush1.msra.mxu0 0.0
    %3461 = vmatprep.subr.mxu0 0.0
    %3462 = vmatpush1.msra.mxu0 0.0
    %3463 = vmatprep.subr.mxu0 0.0
    %3464 = vmatpush1.msra.mxu0 0.0
    %3465 = vmatprep.subr.mxu0 0.0
    %3466 = vmatpush1.msra.mxu0 0.0
    %3467 = vmatprep.subr.mxu0 0.0
    %3468 = vmatpush1.msra.mxu0 0.0
    %3469 = vmatprep.subr.mxu0 0.0
    %3470 = vmatpush1.msra.mxu0 0.0
    %3471 = vmatprep.subr.mxu0 0.0
    %3472 = vmatpush1.msra.mxu0 0.0
    %3473 = vmatprep.subr.mxu0 0.0
    %3474 = vmatpush1.msra.mxu0 0.0
    %3475 = vmatprep.subr.mxu0 0.0
    %3476 = vmatpush1.msra.mxu0 0.0
    %3477 = vmatprep.subr.mxu0 0.0
    %3478 = vmatpush1.msra.mxu0 0.0
    %3479 = vmatprep.subr.mxu0 0.0
    %3480 = vmatpush1.msra.mxu0 0.0
    %3481 = vmatprep.subr.mxu0 0.0
    %3482 = vmatpush1.msra.mxu0 0.0
    %3483 = vmatprep.subr.mxu0 0.0
    %3484 = vmatpush1.msra.mxu0 0.0
    %3485 = vmatprep.subr.mxu0 0.0
    %3486 = vmatpush1.msra.mxu0 0.0
    %3487 = vmatprep.subr.mxu0 0.0
    %3488 = vmatpush1.msra.mxu0 0.0
    %3489 = vmatprep.subr.mxu0 0.0
    %3490 = vmatpush1.msra.mxu0 0.0
    %3491 = vmatprep.subr.mxu0 0.0
    %3492 = vmatpush1.msra.mxu0 0.0
    %3493 = vmatprep.subr.mxu0 0.0
    %3494 = vmatpush1.msra.mxu0 0.0
    %3495 = vmatprep.subr.mxu0 0.0
    %3496 = vmatpush1.msra.mxu0 0.0
    %3497 = vmatprep.mubr.f32.mxu0 0.0
    %3498 = vmatmul.mubr.f32.gmra.mrb[0].mxu0 %v3305
    %v3499 = vpop.f32.mrb[0].mxu0
    %v3500 = vadd.f32 0.0, %v3499
    %v3501 = vpop.f32.mrb[0].mxu0
    %3502 = vmatprep.mubr.f32.mxu0 0.0
    %3503 = vmatmul.mubr.f32.gmra.mrb[0].mxu0 %v3308
    %v3504 = vpop.f32.mrb[0].mxu0
    %v3505 = vadd.f32 0.0, %v3504
    %v3506 = vpop.f32.mrb[0].mxu0
    %3507 = vmatprep.mubr.f32.mxu0 0.0
    %3508 = vmatmul.mubr.f32.gmra.mrb[0].mxu0 %v3311
    %v3509 = vpop.f32.mrb[0].mxu0
    %v3510 = vadd.f32 0.0, %v3509
    %v3511 = vpop.f32.mrb[0].mxu0
    %3512 = vmatprep.mubr.f32.mxu0 0.0
    %3513 = vmatmul.mubr.f32.gmra.mrb[0].mxu0 %v3314
    %v3514 = vpop.f32.mrb[0].mxu0
    %v3515 = vadd.f32 0.0, %v3514
    %v3516 = vpop.f32.mrb[0].mxu0
    %3517 = vmatprep.mubr.f32.mxu0 0.0
    %3518 = vmatmul.mubr.f32.gmra.mrb[0].mxu0 %v3317
    %v3519 = vpop.f32.mrb[0].mxu0
    %v3520 = vadd.f32 0.0, %v3519
    %v3521 = vpop.f32.mrb[0].mxu0
    %3522 = vmatprep.mubr.f32.mxu0 0.0
    %3523 = vmatmul.mubr.f32.gmra.mrb[0].mxu0 %v3320
    %v3524 = vpop.f32.mrb[0].mxu0
    %v3525 = vadd.f32 0.0, %v3524
    %v3526 = vpop.f32.mrb[0].mxu0
    %3527 = vmatprep.mubr.f32.mxu0 0.0
    %3528 = vmatmul.mubr.f32.gmra.mrb[0].mxu0 %v3323
    %v3529 = vpop.f32.mrb[0].mxu0
    %v3530 = vadd.f32 0.0, %v3529
    %v3531 = vpop.f32.mrb[0].mxu0
    %3532 = vmatprep.mubr.f32.mxu0 0.0
    %3533 = vmatmul.mubr.f32.gmra.mrb[0].mxu0 %v3326
    %v3534 = vpop.f32.mrb[0].mxu0
    %v3535 = vadd.f32 0.0, %v3534
    %v3536 = vpop.f32.mrb[0].mxu0
    %3537 = vmatprep.mubr.f32.mxu0 0.0
    %3538 = vmatmul.mubr.f32.gmra.mrb[0].mxu0 %v3329
    %v3539 = vpop.f32.mrb[0].mxu0
    %v3540 = vadd.f32 0.0, %v3539
    %v3541 = vpop.f32.mrb[0].mxu0
    %3542 = vmatprep.mubr.f32.mxu0 0.0
    %3543 = vmatmul.mubr.f32.gmra.mrb[0].mxu0 %v3332
    %v3544 = vpop.f32.mrb[0].mxu0
    %v3545 = vadd.f32 0.0, %v3544
    %v3546 = vpop.f32.mrb[0].mxu0
    %3547 = vmatprep.mubr.f32.mxu0 0.0
    %3548 = vmatmul.mubr.f32.gmra.mrb[0].mxu0 %v3335
    %v3549 = vpop.f32.mrb[0].mxu0
    %v3550 = vadd.f32 0.0, %v3549
    %v3551 = vpop.f32.mrb[0].mxu0
    %3552 = vmatprep.mubr.f32.mxu0 0.0
    %3553 = vmatmul.mubr.f32.gmra.mrb[0].mxu0 %v3338
    %v3554 = vpop.f32.mrb[0].mxu0
    %v3555 = vadd.f32 0.0, %v3554
    %v3556 = vpop.f32.mrb[0].mxu0
    %3557 = vmatprep.mubr.f32.mxu0 0.0
    %3558 = vmatmul.mubr.f32.gmra.mrb[0].mxu0 %v3341
    %v3559 = vpop.f32.mrb[0].mxu0
    %v3560 = vadd.f32 0.0, %v3559
    %v3561 = vpop.f32.mrb[0].mxu0
    %3562 = vmatprep.mubr.f32.mxu0 0.0
    %3563 = vmatmul.mubr.f32.gmra.mrb[0].mxu0 %v3344
    %v3564 = vpop.f32.mrb[0].mxu0
    %v3565 = vadd.f32 0.0, %v3564
    %v3566 = vpop.f32.mrb[0].mxu0
    %3567 = vmatprep.mubr.f32.mxu0 0.0
    %3568 = vmatmul.mubr.f32.gmra.mrb[0].mxu0 %v3347
    %v3569 = vpop.f32.mrb[0].mxu0
    %v3570 = vadd.f32 0.0, %v3569
    %v3571 = vpop.f32.mrb[0].mxu0
    %3572 = vmatprep.mubr.f32.mxu0 0.0
    %3573 = vmatmul.mubr.f32.gmra.mrb[0].mxu0 %v3350
    %v3574 = vpop.f32.mrb[0].mxu0
    %v3575 = vadd.f32 0.0, %v3574
    %v3576 = vpop.f32.mrb[0].mxu0
    %3577 = vmatprep.mubr.f32.mxu0 0.0
    %3578 = vmatmul.mubr.f32.gmra.mrb[0].mxu0 %v3353
    %v3579 = vpop.f32.mrb[0].mxu0
    %v3580 = vadd.f32 0.0, %v3579
    %v3581 = vpop.f32.mrb[0].mxu0
    %3582 = vmatprep.mubr.f32.mxu0 0.0
    %3583 = vmatmul.mubr.f32.gmra.mrb[0].mxu0 %v3356
    %v3584 = vpop.f32.mrb[0].mxu0
    %v3585 = vadd.f32 0.0, %v3584
    %v3586 = vpop.f32.mrb[0].mxu0
    %3587 = vmatprep.mubr.f32.mxu0 0.0
    %3588 = vmatmul.mubr.f32.gmra.mrb[0].mxu0 %v3359
    %v3589 = vpop.f32.mrb[0].mxu0
    %v3590 = vadd.f32 0.0, %v3589
    %v3591 = vpop.f32.mrb[0].mxu0
    %3592 = vmatprep.mubr.f32.mxu0 0.0
    %3593 = vmatmul.mubr.f32.gmra.mrb[0].mxu0 %v3362
    %v3594 = vpop.f32.mrb[0].mxu0
    %v3595 = vadd.f32 0.0, %v3594
    %v3596 = vpop.f32.mrb[0].mxu0
    %3597 = vmatprep.mubr.f32.mxu0 0.0
    %3598 = vmatmul.mubr.f32.gmra.mrb[0].mxu0 %v3365
    %v3599 = vpop.f32.mrb[0].mxu0
    %v3600 = vadd.f32 0.0, %v3599
    %v3601 = vpop.f32.mrb[0].mxu0
    %3602 = vmatprep.mubr.f32.mxu0 0.0
    %3603 = vmatmul.mubr.f32.gmra.mrb[0].mxu0 %v3368
    %v3604 = vpop.f32.mrb[0].mxu0
    %v3605 = vadd.f32 0.0, %v3604
    %v3606 = vpop.f32.mrb[0].mxu0
    %3607 = vmatprep.mubr.f32.mxu0 0.0
    %3608 = vmatmul.mubr.f32.gmra.mrb[0].mxu0 %v3371
    %v3609 = vpop.f32.mrb[0].mxu0
    %v3610 = vadd.f32 0.0, %v3609
    %v3611 = vpop.f32.mrb[0].mxu0
    %3612 = vmatprep.mubr.f32.mxu0 0.0
    %3613 = vmatmul.mubr.f32.gmra.mrb[0].mxu0 %v3374
    %v3614 = vpop.f32.mrb[0].mxu0
    %v3615 = vadd.f32 0.0, %v3614
    %v3616 = vpop.f32.mrb[0].mxu0
    %3617 = vmatprep.mubr.f32.mxu0 0.0
    %3618 = vmatmul.mubr.f32.gmra.mrb[0].mxu0 %v3377
    %v3619 = vpop.f32.mrb[0].mxu0
    %v3620 = vadd.f32 0.0, %v3619
    %v3621 = vpop.f32.mrb[0].mxu0
    %3622 = vmatprep.mubr.f32.mxu0 0.0
    %3623 = vmatmul.mubr.f32.gmra.mrb[0].mxu0 %v3380
    %v3624 = vpop.f32.mrb[0].mxu0
    %v3625 = vadd.f32 0.0, %v3624
    %v3626 = vpop.f32.mrb[0].mxu0
    %3627 = vmatprep.mubr.f32.mxu0 0.0
    %3628 = vmatmul.mubr.f32.gmra.mrb[0].mxu0 %v3383
    %v3629 = vpop.f32.mrb[0].mxu0
    %v3630 = vadd.f32 0.0, %v3629
    %v3631 = vpop.f32.mrb[0].mxu0
    %3632 = vmatprep.mubr.f32.mxu0 0.0
    %3633 = vmatmul.mubr.f32.gmra.mrb[0].mxu0 %v3386
    %v3634 = vpop.f32.mrb[0].mxu0
    %v3635 = vadd.f32 0.0, %v3634
    %v3636 = vpop.f32.mrb[0].mxu0
    %3637 = vmatprep.mubr.f32.mxu0 0.0
    %3638 = vmatmul.mubr.f32.gmra.mrb[0].mxu0 %v3389
    %v3639 = vpop.f32.mrb[0].mxu0
    %v3640 = vadd.f32 0.0, %v3639
    %v3641 = vpop.f32.mrb[0].mxu0
    %3642 = vmatprep.mubr.f32.mxu0 0.0
    %3643 = vmatmul.mubr.f32.gmra.mrb[0].mxu0 %v3392
    %v3644 = vpop.f32.mrb[0].mxu0
    %v3645 = vadd.f32 0.0, %v3644
    %v3646 = vpop.f32.mrb[0].mxu0
    %3647 = vmatprep.mubr.f32.mxu0 0.0
    %3648 = vmatmul.mubr.f32.gmra.mrb[0].mxu0 %v3395
    %v3649 = vpop.f32.mrb[0].mxu0
    %v3650 = vadd.f32 0.0, %v3649
    %v3651 = vpop.f32.mrb[0].mxu0
    %3652 = vmatprep.mubr.f32.mxu0 0.0
    %3653 = vmatmul.mubr.f32.gmra.mrb[0].mxu0 %v3398
    %v3654 = vpop.f32.mrb[0].mxu0
    %v3655 = vadd.f32 0.0, %v3654
    %v3656 = vpop.f32.mrb[0].mxu0
    %3657 = vmatprep.mubr.f32.mxu0 0.0
    %3658 = vmatmul.mubr.f32.gmra.mrb[0].mxu0 %v3401
    %v3659 = vpop.f32.mrb[0].mxu0
    %v3660 = vadd.f32 0.0, %v3659
    %v3661 = vpop.f32.mrb[0].mxu0
    %3662 = vmatprep.mubr.f32.mxu0 0.0
    %3663 = vmatmul.mubr.f32.gmra.mrb[0].mxu0 %v3404
    %v3664 = vpop.f32.mrb[0].mxu0
    %v3665 = vadd.f32 0.0, %v3664
    %v3666 = vpop.f32.mrb[0].mxu0
    %3667 = vmatprep.mubr.f32.mxu0 0.0
    %3668 = vmatmul.mubr.f32.gmra.mrb[0].mxu0 %v3407
    %v3669 = vpop.f32.mrb[0].mxu0
    %v3670 = vadd.f32 0.0, %v3669
    %v3671 = vpop.f32.mrb[0].mxu0
    %3672 = vmatprep.mubr.f32.mxu0 0.0
    %3673 = vmatmul.mubr.f32.gmra.mrb[0].mxu0 %v3410
    %v3674 = vpop.f32.mrb[0].mxu0
    %v3675 = vadd.f32 0.0, %v3674
    %v3676 = vpop.f32.mrb[0].mxu0
    %3677 = vmatprep.mubr.f32.mxu0 0.0
    %3678 = vmatmul.mubr.f32.gmra.mrb[0].mxu0 %v3413
    %v3679 = vpop.f32.mrb[0].mxu0
    %v3680 = vadd.f32 0.0, %v3679
    %v3681 = vpop.f32.mrb[0].mxu0
    %3682 = vmatprep.mubr.f32.mxu0 0.0
    %3683 = vmatmul.mubr.f32.gmra.mrb[0].mxu0 %v3416
    %v3684 = vpop.f32.mrb[0].mxu0
    %v3685 = vadd.f32 0.0, %v3684
    %v3686 = vpop.f32.mrb[0].mxu0
    %3687 = vmatprep.mubr.f32.mxu0 0.0
    %3688 = vmatmul.mubr.f32.gmra.mrb[0].mxu0 %v3419
    %v3689 = vpop.f32.mrb[0].mxu0
    %v3690 = vadd.f32 0.0, %v3689
    %v3691 = vpop.f32.mrb[0].mxu0
    %3692 = vmatprep.mubr.f32.mxu0 0.0
    %3693 = vmatmul.mubr.f32.gmra.mrb[0].mxu0 %v3422
    %v3694 = vpop.f32.mrb[0].mxu0
    %v3695 = vadd.f32 0.0, %v3694
    %v3696 = vpop.f32.mrb[0].mxu0
    %3697 = vmatprep.mubr.f32.mxu0 0.0
    %3698 = vmatmul.mubr.f32.gmra.mrb[0].mxu0 %v3425
    %v3699 = vpop.f32.mrb[0].mxu0
    %v3700 = vadd.f32 0.0, %v3699
    %v3701 = vpop.f32.mrb[0].mxu0
    %3702 = vmatprep.mubr.f32.mxu0 0.0
    %3703 = vmatmul.mubr.f32.gmra.mrb[0].mxu0 %v3428
    %v3704 = vpop.f32.mrb[0].mxu0
    %v3705 = vadd.f32 0.0, %v3704
    %v3706 = vpop.f32.mrb[0].mxu0
    %3707 = vmatprep.mubr.f32.mxu0 0.0
    %3708 = vmatmul.mubr.f32.gmra.mrb[0].mxu0 %v3431
    %v3709 = vpop.f32.mrb[0].mxu0
    %v3710 = vadd.f32 0.0, %v3709
    %v3711 = vpop.f32.mrb[0].mxu0
    %3712 = vdwg.mxu0
    %v3713 = vadd.f32 %v3043, %v3500
    %v3714 = vadd.f32 %v3048, %v3505
    %v3715 = vadd.f32 %v3053, %v3510
    %v3716 = vadd.f32 %v3058, %v3515
    %v3717 = vadd.f32 %v3063, %v3520
    %v3718 = vadd.f32 %v3068, %v3525
    %v3719 = vadd.f32 %v3073, %v3530
    %v3720 = vadd.f32 %v3078, %v3535
    %v3721 = vadd.f32 %v3083, %v3540
    %v3722 = vadd.f32 %v3088, %v3545
    %v3723 = vadd.f32 %v3093, %v3550
    %v3724 = vadd.f32 %v3098, %v3555
    %v3725 = vadd.f32 %v3103, %v3560
    %v3726 = vadd.f32 %v3108, %v3565
    %v3727 = vadd.f32 %v3113, %v3570
    %v3728 = vadd.f32 %v3118, %v3575
    %v3729 = vadd.f32 %v3123, %v3580
    %v3730 = vadd.f32 %v3128, %v3585
    %v3731 = vadd.f32 %v3133, %v3590
    %v3732 = vadd.f32 %v3138, %v3595
    %v3733 = vadd.f32 %v3143, %v3600
    %v3734 = vadd.f32 %v3148, %v3605
    %v3735 = vadd.f32 %v3153, %v3610
    %v3736 = vadd.f32 %v3158, %v3615
    %v3737 = vadd.f32 %v3163, %v3620
    %v3738 = vadd.f32 %v3168, %v3625
    %v3739 = vadd.f32 %v3173, %v3630
    %v3740 = vadd.f32 %v3178, %v3635
    %v3741 = vadd.f32 %v3183, %v3640
    %v3742 = vadd.f32 %v3188, %v3645
    %v3743 = vadd.f32 %v3193, %v3650
    %v3744 = vadd.f32 %v3198, %v3655
    %v3745 = vadd.f32 %v3203, %v3660
    %v3746 = vadd.f32 %v3208, %v3665
    %v3747 = vadd.f32 %v3213, %v3670
    %v3748 = vadd.f32 %v3218, %v3675
    %v3749 = vadd.f32 %v3223, %v3680
    %v3750 = vadd.f32 %v3228, %v3685
    %v3751 = vadd.f32 %v3233, %v3690
    %v3752 = vadd.f32 %v3238, %v3695
    %v3753 = vadd.f32 %v3243, %v3700
    %v3754 = vadd.f32 %v3248, %v3705
    %v3755 = vadd.f32 %v3253, %v3710
    %v3756 = vld [vmem:[#allocation4 + $0xe] sm:$0xff]
    %v3757 = vld [vmem:[#allocation4 + $0x16] sm:$0xff]
    %v3758 = vld [vmem:[#allocation4 + $0x1e] sm:$0xff]
    %v3759 = vld [vmem:[#allocation4 + $0x26] sm:$0xff]
    %v3760 = vld [vmem:[#allocation4 + $0x2e] sm:$0xff]
    %v3761 = vld [vmem:[#allocation4 + $0x36] sm:$0xff]
    %v3762 = vld [vmem:[#allocation4 + $0x3e] sm:$0xff]
    %v3763 = vld [vmem:[#allocation4 + $0x46] sm:$0xff]
    %v3764 = vld [vmem:[#allocation4 + $0x4e] sm:$0xff]
    %v3765 = vld [vmem:[#allocation4 + $0x56] sm:$0xff]
    %v3766 = vld [vmem:[#allocation4 + $0x5e] sm:$0xff]
    %v3767 = vld [vmem:[#allocation4 + $0x66] sm:$0xff]
    %v3768 = vld [vmem:[#allocation4 + $0x6e] sm:$0xff]
    %v3769 = vld [vmem:[#allocation4 + $0x76] sm:$0xff]
    %v3770 = vld [vmem:[#allocation4 + $0x7e] sm:$0xff]
    %v3771 = vld [vmem:[#allocation4 + $0x86] sm:$0xff]
    %v3772 = vld [vmem:[#allocation4 + $0x8e] sm:$0xff]
    %v3773 = vld [vmem:[#allocation4 + $0x96] sm:$0xff]
    %v3774 = vld [vmem:[#allocation4 + $0x9e] sm:$0xff]
    %v3775 = vld [vmem:[#allocation4 + $0xa6] sm:$0xff]
    %v3776 = vld [vmem:[#allocation4 + $0xae] sm:$0xff]
    %v3777 = vld [vmem:[#allocation4 + $0xb6] sm:$0xff]
    %v3778 = vld [vmem:[#allocation4 + $0xbe] sm:$0xff]
    %v3779 = vld [vmem:[#allocation4 + $0xc6] sm:$0xff]
    %v3780 = vld [vmem:[#allocation4 + $0xce] sm:$0xff]
    %v3781 = vld [vmem:[#allocation4 + $0xd6] sm:$0xff]
    %v3782 = vld [vmem:[#allocation4 + $0xde] sm:$0xff]
    %v3783 = vld [vmem:[#allocation4 + $0xe6] sm:$0xff]
    %v3784 = vld [vmem:[#allocation4 + $0xee] sm:$0xff]
    %v3785 = vld [vmem:[#allocation4 + $0xf6] sm:$0xff]
    %v3786 = vld [vmem:[#allocation4 + $0xfe] sm:$0xff]
    %v3787 = vld [vmem:[#allocation4 + $0x106] sm:$0xff]
    %v3788 = vld [vmem:[#allocation4 + $0x10e] sm:$0xff]
    %v3789 = vld [vmem:[#allocation4 + $0x116] sm:$0xff]
    %v3790 = vld [vmem:[#allocation4 + $0x11e] sm:$0xff]
    %v3791 = vld [vmem:[#allocation4 + $0x126] sm:$0xff]
    %v3792 = vld [vmem:[#allocation4 + $0x12e] sm:$0xff]
    %v3793 = vld [vmem:[#allocation4 + $0x136] sm:$0xff]
    %v3794 = vld [vmem:[#allocation4 + $0x13e] sm:$0xff]
    %v3795 = vld [vmem:[#allocation4 + $0x146] sm:$0xff]
    %v3796 = vld [vmem:[#allocation4 + $0x14e] sm:$0xff]
    %v3797 = vld [vmem:[#allocation4 + $0x156] sm:$0xff]
    %v3798 = vld [vmem:[#allocation4 + $0x15e] sm:$0x3]
    %s3799 = scalar_lea.vmem [#allocation11], 96
    %v3800 = vld [vmem:[%s3799] sm:$0xff]
    %v3801 = vld [vmem:[%s3799 + $0x8] sm:$0xff]
    %v3802 = vld [vmem:[%s3799 + $0x10] sm:$0xff]
    %v3803 = vld [vmem:[%s3799 + $0x18] sm:$0xff]
    %v3805 = vsel %vm201, %v3756, 0
    %v3808 = vsel %vm201, %v3757, 0
    %v3811 = vsel %vm201, %v3758, 0
    %v3814 = vsel %vm201, %v3759, 0
    %v3817 = vsel %vm201, %v3760, 0
    %v3820 = vsel %vm201, %v3761, 0
    %v3823 = vsel %vm201, %v3762, 0
    %v3826 = vsel %vm201, %v3763, 0
    %v3829 = vsel %vm201, %v3764, 0
    %v3832 = vsel %vm201, %v3765, 0
    %v3835 = vsel %vm201, %v3766, 0
    %v3838 = vsel %vm201, %v3767, 0
    %v3841 = vsel %vm201, %v3768, 0
    %v3844 = vsel %vm201, %v3769, 0
    %v3847 = vsel %vm201, %v3770, 0
    %v3850 = vsel %vm201, %v3771, 0
    %v3853 = vsel %vm201, %v3772, 0
    %v3856 = vsel %vm201, %v3773, 0
    %v3859 = vsel %vm201, %v3774, 0
    %v3862 = vsel %vm201, %v3775, 0
    %v3865 = vsel %vm201, %v3776, 0
    %v3868 = vsel %vm201, %v3777, 0
    %v3871 = vsel %vm201, %v3778, 0
    %v3874 = vsel %vm201, %v3779, 0
    %v3877 = vsel %vm201, %v3780, 0
    %v3880 = vsel %vm201, %v3781, 0
    %v3883 = vsel %vm201, %v3782, 0
    %v3886 = vsel %vm201, %v3783, 0
    %v3889 = vsel %vm201, %v3784, 0
    %v3892 = vsel %vm201, %v3785, 0
    %v3895 = vsel %vm201, %v3786, 0
    %v3898 = vsel %vm201, %v3787, 0
    %v3901 = vsel %vm201, %v3788, 0
    %v3904 = vsel %vm201, %v3789, 0
    %v3907 = vsel %vm201, %v3790, 0
    %v3910 = vsel %vm201, %v3791, 0
    %v3913 = vsel %vm201, %v3792, 0
    %v3916 = vsel %vm201, %v3793, 0
    %v3919 = vsel %vm201, %v3794, 0
    %v3922 = vsel %vm201, %v3795, 0
    %v3925 = vsel %vm201, %v3796, 0
    %v3928 = vsel %vm201, %v3797, 0
    %v3931 = vsel %vm201, %v3798, 0
    %3933 = vmatprep.subr.mxu0 0.0
    %3934 = vmatpush1.msra.mxu0 %v3800
    %3935 = vmatprep.subr.mxu0 0.0
    %3936 = vmatpush1.msra.mxu0 %v3801
    %3937 = vmatprep.subr.mxu0 0.0
    %3938 = vmatpush1.msra.mxu0 %v3802
    %3939 = vmatprep.subr.mxu0 0.0
    %3940 = vmatpush1.msra.mxu0 %v3803
    %3941 = vmatprep.subr.mxu0 0.0
    %3942 = vmatpush1.msra.mxu0 0.0
    %3943 = vmatprep.subr.mxu0 0.0
    %3944 = vmatpush1.msra.mxu0 0.0
    %3945 = vmatprep.subr.mxu0 0.0
    %3946 = vmatpush1.msra.mxu0 0.0
    %3947 = vmatprep.subr.mxu0 0.0
    %3948 = vmatpush1.msra.mxu0 0.0
    %3949 = vmatprep.subr.mxu0 0.0
    %3950 = vmatpush1.msra.mxu0 0.0
    %3951 = vmatprep.subr.mxu0 0.0
    %3952 = vmatpush1.msra.mxu0 0.0
    %3953 = vmatprep.subr.mxu0 0.0
    %3954 = vmatpush1.msra.mxu0 0.0
    %3955 = vmatprep.subr.mxu0 0.0
    %3956 = vmatpush1.msra.mxu0 0.0
    %3957 = vmatprep.subr.mxu0 0.0
    %3958 = vmatpush1.msra.mxu0 0.0
    %3959 = vmatprep.subr.mxu0 0.0
    %3960 = vmatpush1.msra.mxu0 0.0
    %3961 = vmatprep.subr.mxu0 0.0
    %3962 = vmatpush1.msra.mxu0 0.0
    %3963 = vmatprep.subr.mxu0 0.0
    %3964 = vmatpush1.msra.mxu0 0.0
    %3965 = vmatprep.subr.mxu0 0.0
    %3966 = vmatpush1.msra.mxu0 0.0
    %3967 = vmatprep.subr.mxu0 0.0
    %3968 = vmatpush1.msra.mxu0 0.0
    %3969 = vmatprep.subr.mxu0 0.0
    %3970 = vmatpush1.msra.mxu0 0.0
    %3971 = vmatprep.subr.mxu0 0.0
    %3972 = vmatpush1.msra.mxu0 0.0
    %3973 = vmatprep.subr.mxu0 0.0
    %3974 = vmatpush1.msra.mxu0 0.0
    %3975 = vmatprep.subr.mxu0 0.0
    %3976 = vmatpush1.msra.mxu0 0.0
    %3977 = vmatprep.subr.mxu0 0.0
    %3978 = vmatpush1.msra.mxu0 0.0
    %3979 = vmatprep.subr.mxu0 0.0
    %3980 = vmatpush1.msra.mxu0 0.0
    %3981 = vmatprep.subr.mxu0 0.0
    %3982 = vmatpush1.msra.mxu0 0.0
    %3983 = vmatprep.subr.mxu0 0.0
    %3984 = vmatpush1.msra.mxu0 0.0
    %3985 = vmatprep.subr.mxu0 0.0
    %3986 = vmatpush1.msra.mxu0 0.0
    %3987 = vmatprep.subr.mxu0 0.0
    %3988 = vmatpush1.msra.mxu0 0.0
    %3989 = vmatprep.subr.mxu0 0.0
    %3990 = vmatpush1.msra.mxu0 0.0
    %3991 = vmatprep.subr.mxu0 0.0
    %3992 = vmatpush1.msra.mxu0 0.0
    %3993 = vmatprep.subr.mxu0 0.0
    %3994 = vmatpush1.msra.mxu0 0.0
    %3995 = vmatprep.subr.mxu0 0.0
    %3996 = vmatpush1.msra.mxu0 0.0
    %3997 = vmatprep.mubr.f32.mxu0 0.0
    %3998 = vmatmul.mubr.f32.gmra.mrb[0].mxu0 %v3805
    %v3999 = vpop.f32.mrb[0].mxu0
    %v4000 = vadd.f32 0.0, %v3999
    %v4001 = vpop.f32.mrb[0].mxu0
    %4002 = vmatprep.mubr.f32.mxu0 0.0
    %4003 = vmatmul.mubr.f32.gmra.mrb[0].mxu0 %v3808
    %v4004 = vpop.f32.mrb[0].mxu0
    %v4005 = vadd.f32 0.0, %v4004
    %v4006 = vpop.f32.mrb[0].mxu0
    %4007 = vmatprep.mubr.f32.mxu0 0.0
    %4008 = vmatmul.mubr.f32.gmra.mrb[0].mxu0 %v3811
    %v4009 = vpop.f32.mrb[0].mxu0
    %v4010 = vadd.f32 0.0, %v4009
    %v4011 = vpop.f32.mrb[0].mxu0
    %4012 = vmatprep.mubr.f32.mxu0 0.0
    %4013 = vmatmul.mubr.f32.gmra.mrb[0].mxu0 %v3814
    %v4014 = vpop.f32.mrb[0].mxu0
    %v4015 = vadd.f32 0.0, %v4014
    %v4016 = vpop.f32.mrb[0].mxu0
    %4017 = vmatprep.mubr.f32.mxu0 0.0
    %4018 = vmatmul.mubr.f32.gmra.mrb[0].mxu0 %v3817
    %v4019 = vpop.f32.mrb[0].mxu0
    %v4020 = vadd.f32 0.0, %v4019
    %v4021 = vpop.f32.mrb[0].mxu0
    %4022 = vmatprep.mubr.f32.mxu0 0.0
    %4023 = vmatmul.mubr.f32.gmra.mrb[0].mxu0 %v3820
    %v4024 = vpop.f32.mrb[0].mxu0
    %v4025 = vadd.f32 0.0, %v4024
    %v4026 = vpop.f32.mrb[0].mxu0
    %4027 = vmatprep.mubr.f32.mxu0 0.0
    %4028 = vmatmul.mubr.f32.gmra.mrb[0].mxu0 %v3823
    %v4029 = vpop.f32.mrb[0].mxu0
    %v4030 = vadd.f32 0.0, %v4029
    %v4031 = vpop.f32.mrb[0].mxu0
    %4032 = vmatprep.mubr.f32.mxu0 0.0
    %4033 = vmatmul.mubr.f32.gmra.mrb[0].mxu0 %v3826
    %v4034 = vpop.f32.mrb[0].mxu0
    %v4035 = vadd.f32 0.0, %v4034
    %v4036 = vpop.f32.mrb[0].mxu0
    %4037 = vmatprep.mubr.f32.mxu0 0.0
    %4038 = vmatmul.mubr.f32.gmra.mrb[0].mxu0 %v3829
    %v4039 = vpop.f32.mrb[0].mxu0
    %v4040 = vadd.f32 0.0, %v4039
    %v4041 = vpop.f32.mrb[0].mxu0
    %4042 = vmatprep.mubr.f32.mxu0 0.0
    %4043 = vmatmul.mubr.f32.gmra.mrb[0].mxu0 %v3832
    %v4044 = vpop.f32.mrb[0].mxu0
    %v4045 = vadd.f32 0.0, %v4044
    %v4046 = vpop.f32.mrb[0].mxu0
    %4047 = vmatprep.mubr.f32.mxu0 0.0
    %4048 = vmatmul.mubr.f32.gmra.mrb[0].mxu0 %v3835
    %v4049 = vpop.f32.mrb[0].mxu0
    %v4050 = vadd.f32 0.0, %v4049
    %v4051 = vpop.f32.mrb[0].mxu0
    %4052 = vmatprep.mubr.f32.mxu0 0.0
    %4053 = vmatmul.mubr.f32.gmra.mrb[0].mxu0 %v3838
    %v4054 = vpop.f32.mrb[0].mxu0
    %v4055 = vadd.f32 0.0, %v4054
    %v4056 = vpop.f32.mrb[0].mxu0
    %4057 = vmatprep.mubr.f32.mxu0 0.0
    %4058 = vmatmul.mubr.f32.gmra.mrb[0].mxu0 %v3841
    %v4059 = vpop.f32.mrb[0].mxu0
    %v4060 = vadd.f32 0.0, %v4059
    %v4061 = vpop.f32.mrb[0].mxu0
    %4062 = vmatprep.mubr.f32.mxu0 0.0
    %4063 = vmatmul.mubr.f32.gmra.mrb[0].mxu0 %v3844
    %v4064 = vpop.f32.mrb[0].mxu0
    %v4065 = vadd.f32 0.0, %v4064
    %v4066 = vpop.f32.mrb[0].mxu0
    %4067 = vmatprep.mubr.f32.mxu0 0.0
    %4068 = vmatmul.mubr.f32.gmra.mrb[0].mxu0 %v3847
    %v4069 = vpop.f32.mrb[0].mxu0
    %v4070 = vadd.f32 0.0, %v4069
    %v4071 = vpop.f32.mrb[0].mxu0
    %4072 = vmatprep.mubr.f32.mxu0 0.0
    %4073 = vmatmul.mubr.f32.gmra.mrb[0].mxu0 %v3850
    %v4074 = vpop.f32.mrb[0].mxu0
    %v4075 = vadd.f32 0.0, %v4074
    %v4076 = vpop.f32.mrb[0].mxu0
    %4077 = vmatprep.mubr.f32.mxu0 0.0
    %4078 = vmatmul.mubr.f32.gmra.mrb[0].mxu0 %v3853
    %v4079 = vpop.f32.mrb[0].mxu0
    %v4080 = vadd.f32 0.0, %v4079
    %v4081 = vpop.f32.mrb[0].mxu0
    %4082 = vmatprep.mubr.f32.mxu0 0.0
    %4083 = vmatmul.mubr.f32.gmra.mrb[0].mxu0 %v3856
    %v4084 = vpop.f32.mrb[0].mxu0
    %v4085 = vadd.f32 0.0, %v4084
    %v4086 = vpop.f32.mrb[0].mxu0
    %4087 = vmatprep.mubr.f32.mxu0 0.0
    %4088 = vmatmul.mubr.f32.gmra.mrb[0].mxu0 %v3859
    %v4089 = vpop.f32.mrb[0].mxu0
    %v4090 = vadd.f32 0.0, %v4089
    %v4091 = vpop.f32.mrb[0].mxu0
    %4092 = vmatprep.mubr.f32.mxu0 0.0
    %4093 = vmatmul.mubr.f32.gmra.mrb[0].mxu0 %v3862
    %v4094 = vpop.f32.mrb[0].mxu0
    %v4095 = vadd.f32 0.0, %v4094
    %v4096 = vpop.f32.mrb[0].mxu0
    %4097 = vmatprep.mubr.f32.mxu0 0.0
    %4098 = vmatmul.mubr.f32.gmra.mrb[0].mxu0 %v3865
    %v4099 = vpop.f32.mrb[0].mxu0
    %v4100 = vadd.f32 0.0, %v4099
    %v4101 = vpop.f32.mrb[0].mxu0
    %4102 = vmatprep.mubr.f32.mxu0 0.0
    %4103 = vmatmul.mubr.f32.gmra.mrb[0].mxu0 %v3868
    %v4104 = vpop.f32.mrb[0].mxu0
    %v4105 = vadd.f32 0.0, %v4104
    %v4106 = vpop.f32.mrb[0].mxu0
    %4107 = vmatprep.mubr.f32.mxu0 0.0
    %4108 = vmatmul.mubr.f32.gmra.mrb[0].mxu0 %v3871
    %v4109 = vpop.f32.mrb[0].mxu0
    %v4110 = vadd.f32 0.0, %v4109
    %v4111 = vpop.f32.mrb[0].mxu0
    %4112 = vmatprep.mubr.f32.mxu0 0.0
    %4113 = vmatmul.mubr.f32.gmra.mrb[0].mxu0 %v3874
    %v4114 = vpop.f32.mrb[0].mxu0
    %v4115 = vadd.f32 0.0, %v4114
    %v4116 = vpop.f32.mrb[0].mxu0
    %4117 = vmatprep.mubr.f32.mxu0 0.0
    %4118 = vmatmul.mubr.f32.gmra.mrb[0].mxu0 %v3877
    %v4119 = vpop.f32.mrb[0].mxu0
    %v4120 = vadd.f32 0.0, %v4119
    %v4121 = vpop.f32.mrb[0].mxu0
    %4122 = vmatprep.mubr.f32.mxu0 0.0
    %4123 = vmatmul.mubr.f32.gmra.mrb[0].mxu0 %v3880
    %v4124 = vpop.f32.mrb[0].mxu0
    %v4125 = vadd.f32 0.0, %v4124
    %v4126 = vpop.f32.mrb[0].mxu0
    %4127 = vmatprep.mubr.f32.mxu0 0.0
    %4128 = vmatmul.mubr.f32.gmra.mrb[0].mxu0 %v3883
    %v4129 = vpop.f32.mrb[0].mxu0
    %v4130 = vadd.f32 0.0, %v4129
    %v4131 = vpop.f32.mrb[0].mxu0
    %4132 = vmatprep.mubr.f32.mxu0 0.0
    %4133 = vmatmul.mubr.f32.gmra.mrb[0].mxu0 %v3886
    %v4134 = vpop.f32.mrb[0].mxu0
    %v4135 = vadd.f32 0.0, %v4134
    %v4136 = vpop.f32.mrb[0].mxu0
    %4137 = vmatprep.mubr.f32.mxu0 0.0
    %4138 = vmatmul.mubr.f32.gmra.mrb[0].mxu0 %v3889
    %v4139 = vpop.f32.mrb[0].mxu0
    %v4140 = vadd.f32 0.0, %v4139
    %v4141 = vpop.f32.mrb[0].mxu0
    %4142 = vmatprep.mubr.f32.mxu0 0.0
    %4143 = vmatmul.mubr.f32.gmra.mrb[0].mxu0 %v3892
    %v4144 = vpop.f32.mrb[0].mxu0
    %v4145 = vadd.f32 0.0, %v4144
    %v4146 = vpop.f32.mrb[0].mxu0
    %4147 = vmatprep.mubr.f32.mxu0 0.0
    %4148 = vmatmul.mubr.f32.gmra.mrb[0].mxu0 %v3895
    %v4149 = vpop.f32.mrb[0].mxu0
    %v4150 = vadd.f32 0.0, %v4149
    %v4151 = vpop.f32.mrb[0].mxu0
    %4152 = vmatprep.mubr.f32.mxu0 0.0
    %4153 = vmatmul.mubr.f32.gmra.mrb[0].mxu0 %v3898
    %v4154 = vpop.f32.mrb[0].mxu0
    %v4155 = vadd.f32 0.0, %v4154
    %v4156 = vpop.f32.mrb[0].mxu0
    %4157 = vmatprep.mubr.f32.mxu0 0.0
    %4158 = vmatmul.mubr.f32.gmra.mrb[0].mxu0 %v3901
    %v4159 = vpop.f32.mrb[0].mxu0
    %v4160 = vadd.f32 0.0, %v4159
    %v4161 = vpop.f32.mrb[0].mxu0
    %4162 = vmatprep.mubr.f32.mxu0 0.0
    %4163 = vmatmul.mubr.f32.gmra.mrb[0].mxu0 %v3904
    %v4164 = vpop.f32.mrb[0].mxu0
    %v4165 = vadd.f32 0.0, %v4164
    %v4166 = vpop.f32.mrb[0].mxu0
    %4167 = vmatprep.mubr.f32.mxu0 0.0
    %4168 = vmatmul.mubr.f32.gmra.mrb[0].mxu0 %v3907
    %v4169 = vpop.f32.mrb[0].mxu0
    %v4170 = vadd.f32 0.0, %v4169
    %v4171 = vpop.f32.mrb[0].mxu0
    %4172 = vmatprep.mubr.f32.mxu0 0.0
    %4173 = vmatmul.mubr.f32.gmra.mrb[0].mxu0 %v3910
    %v4174 = vpop.f32.mrb[0].mxu0
    %v4175 = vadd.f32 0.0, %v4174
    %v4176 = vpop.f32.mrb[0].mxu0
    %4177 = vmatprep.mubr.f32.mxu0 0.0
    %4178 = vmatmul.mubr.f32.gmra.mrb[0].mxu0 %v3913
    %v4179 = vpop.f32.mrb[0].mxu0
    %v4180 = vadd.f32 0.0, %v4179
    %v4181 = vpop.f32.mrb[0].mxu0
    %4182 = vmatprep.mubr.f32.mxu0 0.0
    %4183 = vmatmul.mubr.f32.gmra.mrb[0].mxu0 %v3916
    %v4184 = vpop.f32.mrb[0].mxu0
    %v4185 = vadd.f32 0.0, %v4184
    %v4186 = vpop.f32.mrb[0].mxu0
    %4187 = vmatprep.mubr.f32.mxu0 0.0
    %4188 = vmatmul.mubr.f32.gmra.mrb[0].mxu0 %v3919
    %v4189 = vpop.f32.mrb[0].mxu0
    %v4190 = vadd.f32 0.0, %v4189
    %v4191 = vpop.f32.mrb[0].mxu0
    %4192 = vmatprep.mubr.f32.mxu0 0.0
    %4193 = vmatmul.mubr.f32.gmra.mrb[0].mxu0 %v3922
    %v4194 = vpop.f32.mrb[0].mxu0
    %v4195 = vadd.f32 0.0, %v4194
    %v4196 = vpop.f32.mrb[0].mxu0
    %4197 = vmatprep.mubr.f32.mxu0 0.0
    %4198 = vmatmul.mubr.f32.gmra.mrb[0].mxu0 %v3925
    %v4199 = vpop.f32.mrb[0].mxu0
    %v4200 = vadd.f32 0.0, %v4199
    %v4201 = vpop.f32.mrb[0].mxu0
    %4202 = vmatprep.mubr.f32.mxu0 0.0
    %4203 = vmatmul.mubr.f32.gmra.mrb[0].mxu0 %v3928
    %v4204 = vpop.f32.mrb[0].mxu0
    %v4205 = vadd.f32 0.0, %v4204
    %v4206 = vpop.f32.mrb[0].mxu0
    %4207 = vmatprep.mubr.f32.mxu0 0.0
    %4208 = vmatmul.mubr.f32.gmra.mrb[0].mxu0 %v3931
    %v4209 = vpop.f32.mrb[0].mxu0
    %v4210 = vadd.f32 0.0, %v4209
    %v4211 = vpop.f32.mrb[0].mxu0
    %4212 = vdwg.mxu0
    %v4213 = vadd.f32 %v3713, %v4000
    %v4214 = vadd.f32 %v3714, %v4005
    %v4215 = vadd.f32 %v3715, %v4010
    %v4216 = vadd.f32 %v3716, %v4015
    %v4217 = vadd.f32 %v3717, %v4020
    %v4218 = vadd.f32 %v3718, %v4025
    %v4219 = vadd.f32 %v3719, %v4030
    %v4220 = vadd.f32 %v3720, %v4035
    %v4221 = vadd.f32 %v3721, %v4040
    %v4222 = vadd.f32 %v3722, %v4045
    %v4223 = vadd.f32 %v3723, %v4050
    %v4224 = vadd.f32 %v3724, %v4055
    %v4225 = vadd.f32 %v3725, %v4060
    %v4226 = vadd.f32 %v3726, %v4065
    %v4227 = vadd.f32 %v3727, %v4070
    %v4228 = vadd.f32 %v3728, %v4075
    %v4229 = vadd.f32 %v3729, %v4080
    %v4230 = vadd.f32 %v3730, %v4085
    %v4231 = vadd.f32 %v3731, %v4090
    %v4232 = vadd.f32 %v3732, %v4095
    %v4233 = vadd.f32 %v3733, %v4100
    %v4234 = vadd.f32 %v3734, %v4105
    %v4235 = vadd.f32 %v3735, %v4110
    %v4236 = vadd.f32 %v3736, %v4115
    %v4237 = vadd.f32 %v3737, %v4120
    %v4238 = vadd.f32 %v3738, %v4125
    %v4239 = vadd.f32 %v3739, %v4130
    %v4240 = vadd.f32 %v3740, %v4135
    %v4241 = vadd.f32 %v3741, %v4140
    %v4242 = vadd.f32 %v3742, %v4145
    %v4243 = vadd.f32 %v3743, %v4150
    %v4244 = vadd.f32 %v3744, %v4155
    %v4245 = vadd.f32 %v3745, %v4160
    %v4246 = vadd.f32 %v3746, %v4165
    %v4247 = vadd.f32 %v3747, %v4170
    %v4248 = vadd.f32 %v3748, %v4175
    %v4249 = vadd.f32 %v3749, %v4180
    %v4250 = vadd.f32 %v3750, %v4185
    %v4251 = vadd.f32 %v3751, %v4190
    %v4252 = vadd.f32 %v3752, %v4195
    %v4253 = vadd.f32 %v3753, %v4200
    %v4254 = vadd.f32 %v3754, %v4205
    %v4255 = vadd.f32 %v3755, %v4210
    %v4256 = vld [vmem:[#allocation13] sm:$0x1]
    %v4258 = vlaneseq
    %v4259 = vshrl.u32 %v4258, 7
    %v4260 = vsub.s32 0, %v4259
    %v4261 = vrot.slane %v4256, %v4260
    %v4263 = vadd.f32 %v4213, %v4261
    %v4264 = vadd.f32 %v4214, %v4261
    %v4265 = vadd.f32 %v4215, %v4261
    %v4266 = vadd.f32 %v4216, %v4261
    %v4267 = vadd.f32 %v4217, %v4261
    %v4268 = vadd.f32 %v4218, %v4261
    %v4269 = vadd.f32 %v4219, %v4261
    %v4270 = vadd.f32 %v4220, %v4261
    %v4271 = vadd.f32 %v4221, %v4261
    %v4272 = vadd.f32 %v4222, %v4261
    %v4273 = vadd.f32 %v4223, %v4261
    %v4274 = vadd.f32 %v4224, %v4261
    %v4275 = vadd.f32 %v4225, %v4261
    %v4276 = vadd.f32 %v4226, %v4261
    %v4277 = vadd.f32 %v4227, %v4261
    %v4278 = vadd.f32 %v4228, %v4261
    %v4279 = vadd.f32 %v4229, %v4261
    %v4280 = vadd.f32 %v4230, %v4261
    %v4281 = vadd.f32 %v4231, %v4261
    %v4282 = vadd.f32 %v4232, %v4261
    %v4283 = vadd.f32 %v4233, %v4261
    %v4284 = vadd.f32 %v4234, %v4261
    %v4285 = vadd.f32 %v4235, %v4261
    %v4286 = vadd.f32 %v4236, %v4261
    %v4287 = vadd.f32 %v4237, %v4261
    %v4288 = vadd.f32 %v4238, %v4261
    %v4289 = vadd.f32 %v4239, %v4261
    %v4290 = vadd.f32 %v4240, %v4261
    %v4291 = vadd.f32 %v4241, %v4261
    %v4292 = vadd.f32 %v4242, %v4261
    %v4293 = vadd.f32 %v4243, %v4261
    %v4294 = vadd.f32 %v4244, %v4261
    %v4295 = vadd.f32 %v4245, %v4261
    %v4296 = vadd.f32 %v4246, %v4261
    %v4297 = vadd.f32 %v4247, %v4261
    %v4298 = vadd.f32 %v4248, %v4261
    %v4299 = vadd.f32 %v4249, %v4261
    %v4300 = vadd.f32 %v4250, %v4261
    %v4301 = vadd.f32 %v4251, %v4261
    %v4302 = vadd.f32 %v4252, %v4261
    %v4303 = vadd.f32 %v4253, %v4261
    %v4304 = vadd.f32 %v4254, %v4261
    %v4305 = vadd.f32 %v4255, %v4261
    %v4306 = vmax.f32 %v4263, 0.0
    %v4307 = vmax.f32 %v4264, 0.0
    %v4308 = vmax.f32 %v4265, 0.0
    %v4309 = vmax.f32 %v4266, 0.0
    %v4310 = vmax.f32 %v4267, 0.0
    %v4311 = vmax.f32 %v4268, 0.0
    %v4312 = vmax.f32 %v4269, 0.0
    %v4313 = vmax.f32 %v4270, 0.0
    %v4314 = vmax.f32 %v4271, 0.0
    %v4315 = vmax.f32 %v4272, 0.0
    %v4316 = vmax.f32 %v4273, 0.0
    %v4317 = vmax.f32 %v4274, 0.0
    %v4318 = vmax.f32 %v4275, 0.0
    %v4319 = vmax.f32 %v4276, 0.0
    %v4320 = vmax.f32 %v4277, 0.0
    %v4321 = vmax.f32 %v4278, 0.0
    %v4322 = vmax.f32 %v4279, 0.0
    %v4323 = vmax.f32 %v4280, 0.0
    %v4324 = vmax.f32 %v4281, 0.0
    %v4325 = vmax.f32 %v4282, 0.0
    %v4326 = vmax.f32 %v4283, 0.0
    %v4327 = vmax.f32 %v4284, 0.0
    %v4328 = vmax.f32 %v4285, 0.0
    %v4329 = vmax.f32 %v4286, 0.0
    %v4330 = vmax.f32 %v4287, 0.0
    %v4331 = vmax.f32 %v4288, 0.0
    %v4332 = vmax.f32 %v4289, 0.0
    %v4333 = vmax.f32 %v4290, 0.0
    %v4334 = vmax.f32 %v4291, 0.0
    %v4335 = vmax.f32 %v4292, 0.0
    %v4336 = vmax.f32 %v4293, 0.0
    %v4337 = vmax.f32 %v4294, 0.0
    %v4338 = vmax.f32 %v4295, 0.0
    %v4339 = vmax.f32 %v4296, 0.0
    %v4340 = vmax.f32 %v4297, 0.0
    %v4341 = vmax.f32 %v4298, 0.0
    %v4342 = vmax.f32 %v4299, 0.0
    %v4343 = vmax.f32 %v4300, 0.0
    %v4344 = vmax.f32 %v4301, 0.0
    %v4345 = vmax.f32 %v4302, 0.0
    %v4346 = vmax.f32 %v4303, 0.0
    %v4347 = vmax.f32 %v4304, 0.0
    %v4348 = vmax.f32 %v4305, 0.0
    %4349 = vst.msk [vmem:[#allocation5] sm:$0xff] %vm246, %v4306
    %4350 = vst.msk [vmem:[#allocation5 + $0x8] sm:$0xff] %vm246, %v4307
    %4351 = vst.msk [vmem:[#allocation5 + $0x10] sm:$0xff] %vm246, %v4308
    %4352 = vst.msk [vmem:[#allocation5 + $0x18] sm:$0xff] %vm246, %v4309
    %4353 = vst.msk [vmem:[#allocation5 + $0x20] sm:$0xff] %vm246, %v4310
    %4354 = vst.msk [vmem:[#allocation5 + $0x28] sm:$0xff] %vm246, %v4311
    %4355 = vst.msk [vmem:[#allocation5 + $0x30] sm:$0xff] %vm246, %v4312
    %4356 = vst.msk [vmem:[#allocation5 + $0x38] sm:$0xff] %vm246, %v4313
    %4357 = vst.msk [vmem:[#allocation5 + $0x40] sm:$0xff] %vm246, %v4314
    %4358 = vst.msk [vmem:[#allocation5 + $0x48] sm:$0xff] %vm246, %v4315
    %4359 = vst.msk [vmem:[#allocation5 + $0x50] sm:$0xff] %vm246, %v4316
    %4360 = vst.msk [vmem:[#allocation5 + $0x58] sm:$0xff] %vm246, %v4317
    %4361 = vst.msk [vmem:[#allocation5 + $0x60] sm:$0xff] %vm246, %v4318
    %4362 = vst.msk [vmem:[#allocation5 + $0x68] sm:$0xff] %vm246, %v4319
    %4363 = vst.msk [vmem:[#allocation5 + $0x70] sm:$0xff] %vm246, %v4320
    %4364 = vst.msk [vmem:[#allocation5 + $0x78] sm:$0xff] %vm246, %v4321
    %4365 = vst.msk [vmem:[#allocation5 + $0x80] sm:$0xff] %vm246, %v4322
    %4366 = vst.msk [vmem:[#allocation5 + $0x88] sm:$0xff] %vm246, %v4323
    %4367 = vst.msk [vmem:[#allocation5 + $0x90] sm:$0xff] %vm246, %v4324
    %4368 = vst.msk [vmem:[#allocation5 + $0x98] sm:$0xff] %vm246, %v4325
    %4369 = vst.msk [vmem:[#allocation5 + $0xa0] sm:$0xff] %vm246, %v4326
    %4370 = vst.msk [vmem:[#allocation5 + $0xa8] sm:$0xff] %vm246, %v4327
    %4371 = vst.msk [vmem:[#allocation5 + $0xb0] sm:$0xff] %vm246, %v4328
    %4372 = vst.msk [vmem:[#allocation5 + $0xb8] sm:$0xff] %vm246, %v4329
    %4373 = vst.msk [vmem:[#allocation5 + $0xc0] sm:$0xff] %vm246, %v4330
    %4374 = vst.msk [vmem:[#allocation5 + $0xc8] sm:$0xff] %vm246, %v4331
    %4375 = vst.msk [vmem:[#allocation5 + $0xd0] sm:$0xff] %vm246, %v4332
    %4376 = vst.msk [vmem:[#allocation5 + $0xd8] sm:$0xff] %vm246, %v4333
    %4377 = vst.msk [vmem:[#allocation5 + $0xe0] sm:$0xff] %vm246, %v4334
    %4378 = vst.msk [vmem:[#allocation5 + $0xe8] sm:$0xff] %vm246, %v4335
    %4379 = vst.msk [vmem:[#allocation5 + $0xf0] sm:$0xff] %vm246, %v4336
    %4380 = vst.msk [vmem:[#allocation5 + $0xf8] sm:$0xff] %vm246, %v4337
    %4381 = vst.msk [vmem:[#allocation5 + $0x100] sm:$0xff] %vm246, %v4338
    %4382 = vst.msk [vmem:[#allocation5 + $0x108] sm:$0xff] %vm246, %v4339
    %4383 = vst.msk [vmem:[#allocation5 + $0x110] sm:$0xff] %vm246, %v4340
    %4384 = vst.msk [vmem:[#allocation5 + $0x118] sm:$0xff] %vm246, %v4341
    %4385 = vst.msk [vmem:[#allocation5 + $0x120] sm:$0xff] %vm246, %v4342
    %4386 = vst.msk [vmem:[#allocation5 + $0x128] sm:$0xff] %vm246, %v4343
    %4387 = vst.msk [vmem:[#allocation5 + $0x130] sm:$0xff] %vm246, %v4344
    %4388 = vst.msk [vmem:[#allocation5 + $0x138] sm:$0xff] %vm246, %v4345
    %4389 = vst.msk [vmem:[#allocation5 + $0x140] sm:$0xff] %vm246, %v4346
    %4390 = vst.msk [vmem:[#allocation5 + $0x148] sm:$0xff] %vm246, %v4347
    %vm4391 = vcmask 517120
    %4392 = vst.msk [vmem:[#allocation5 + $0x150] sm:$0x3] %vm4391, %v4348
    %v4393 = vld [vmem:[#allocation5] sm:$0xff]
    %v4394 = vld [vmem:[#allocation5 + $0x8] sm:$0xff]
    %v4395 = vld [vmem:[#allocation5 + $0x10] sm:$0xff]
    %v4396 = vld [vmem:[#allocation5 + $0x18] sm:$0xff]
    %v4397 = vld [vmem:[#allocation5 + $0x20] sm:$0xff]
    %v4398 = vld [vmem:[#allocation5 + $0x28] sm:$0xff]
    %v4399 = vld [vmem:[#allocation5 + $0x30] sm:$0xff]
    %v4400 = vld [vmem:[#allocation5 + $0x38] sm:$0xff]
    %v4401 = vld [vmem:[#allocation5 + $0x40] sm:$0xff]
    %v4402 = vld [vmem:[#allocation5 + $0x48] sm:$0xff]
    %v4403 = vld [vmem:[#allocation5 + $0x50] sm:$0xff]
    %v4404 = vld [vmem:[#allocation5 + $0x58] sm:$0xff]
    %v4405 = vld [vmem:[#allocation5 + $0x60] sm:$0xff]
    %v4406 = vld [vmem:[#allocation5 + $0x68] sm:$0xff]
    %v4407 = vld [vmem:[#allocation5 + $0x70] sm:$0xff]
    %v4408 = vld [vmem:[#allocation5 + $0x78] sm:$0xff]
    %v4409 = vld [vmem:[#allocation5 + $0x80] sm:$0xff]
    %v4410 = vld [vmem:[#allocation5 + $0x88] sm:$0xff]
    %v4411 = vld [vmem:[#allocation5 + $0x90] sm:$0xff]
    %v4412 = vld [vmem:[#allocation5 + $0x98] sm:$0xff]
    %v4413 = vld [vmem:[#allocation5 + $0xa0] sm:$0xff]
    %v4414 = vld [vmem:[#allocation5 + $0xa8] sm:$0xff]
    %v4415 = vld [vmem:[#allocation5 + $0xb0] sm:$0xff]
    %v4416 = vld [vmem:[#allocation5 + $0xb8] sm:$0xff]
    %v4417 = vld [vmem:[#allocation5 + $0xc0] sm:$0xff]
    %v4418 = vld [vmem:[#allocation5 + $0xc8] sm:$0xff]
    %v4419 = vld [vmem:[#allocation5 + $0xd0] sm:$0xff]
    %v4420 = vld [vmem:[#allocation5 + $0xd8] sm:$0xff]
    %v4421 = vld [vmem:[#allocation5 + $0xe0] sm:$0xff]
    %v4422 = vld [vmem:[#allocation5 + $0xe8] sm:$0xff]
    %v4423 = vld [vmem:[#allocation5 + $0xf0] sm:$0xff]
    %v4424 = vld [vmem:[#allocation5 + $0xf8] sm:$0xff]
    %v4425 = vld [vmem:[#allocation5 + $0x100] sm:$0xff]
    %v4426 = vld [vmem:[#allocation5 + $0x108] sm:$0xff]
    %v4427 = vld [vmem:[#allocation5 + $0x110] sm:$0xff]
    %v4428 = vld [vmem:[#allocation5 + $0x118] sm:$0xff]
    %v4429 = vld [vmem:[#allocation5 + $0x120] sm:$0xff]
    %v4430 = vld [vmem:[#allocation5 + $0x128] sm:$0xff]
    %v4431 = vld [vmem:[#allocation5 + $0x130] sm:$0xff]
    %v4432 = vld [vmem:[#allocation5 + $0x138] sm:$0xff]
    %v4433 = vld [vmem:[#allocation5 + $0x140] sm:$0xff]
    %v4434 = vld [vmem:[#allocation5 + $0x148] sm:$0xff]
    %v4435 = vld [vmem:[#allocation5 + $0x150] sm:$0x3]
    %v4436 = vld [vmem:[#allocation14] sm:$0xff]
    %v4437 = vld [vmem:[#allocation14 + $0x8] sm:$0xff]
    %v4438 = vld [vmem:[#allocation14 + $0x10] sm:$0xff]
    %v4439 = vld [vmem:[#allocation14 + $0x18] sm:$0xff]
    %v4440 = vld [vmem:[#allocation14 + $0x20] sm:$0xff]
    %v4441 = vld [vmem:[#allocation14 + $0x28] sm:$0xff]
    %v4442 = vld [vmem:[#allocation14 + $0x30] sm:$0xff]
    %v4443 = vld [vmem:[#allocation14 + $0x38] sm:$0xff]
    %v4444 = vld [vmem:[#allocation5 + $0x1] sm:$0xff]
    %v4445 = vld [vmem:[#allocation5 + $0x9] sm:$0xff]
    %v4446 = vld [vmem:[#allocation5 + $0x11] sm:$0xff]
    %v4447 = vld [vmem:[#allocation5 + $0x19] sm:$0xff]
    %v4448 = vld [vmem:[#allocation5 + $0x21] sm:$0xff]
    %v4449 = vld [vmem:[#allocation5 + $0x29] sm:$0xff]
    %v4450 = vld [vmem:[#allocation5 + $0x31] sm:$0xff]
    %v4451 = vld [vmem:[#allocation5 + $0x39] sm:$0xff]
    %v4452 = vld [vmem:[#allocation5 + $0x41] sm:$0xff]
    %v4453 = vld [vmem:[#allocation5 + $0x49] sm:$0xff]
    %v4454 = vld [vmem:[#allocation5 + $0x51] sm:$0xff]
    %v4455 = vld [vmem:[#allocation5 + $0x59] sm:$0xff]
    %v4456 = vld [vmem:[#allocation5 + $0x61] sm:$0xff]
    %v4457 = vld [vmem:[#allocation5 + $0x69] sm:$0xff]
    %v4458 = vld [vmem:[#allocation5 + $0x71] sm:$0xff]
    %v4459 = vld [vmem:[#allocation5 + $0x79] sm:$0xff]
    %v4460 = vld [vmem:[#allocation5 + $0x81] sm:$0xff]
    %v4461 = vld [vmem:[#allocation5 + $0x89] sm:$0xff]
    %v4462 = vld [vmem:[#allocation5 + $0x91] sm:$0xff]
    %v4463 = vld [vmem:[#allocation5 + $0x99] sm:$0xff]
    %v4464 = vld [vmem:[#allocation5 + $0xa1] sm:$0xff]
    %v4465 = vld [vmem:[#allocation5 + $0xa9] sm:$0xff]
    %v4466 = vld [vmem:[#allocation5 + $0xb1] sm:$0xff]
    %v4467 = vld [vmem:[#allocation5 + $0xb9] sm:$0xff]
    %v4468 = vld [vmem:[#allocation5 + $0xc1] sm:$0xff]
    %v4469 = vld [vmem:[#allocation5 + $0xc9] sm:$0xff]
    %v4470 = vld [vmem:[#allocation5 + $0xd1] sm:$0xff]
    %v4471 = vld [vmem:[#allocation5 + $0xd9] sm:$0xff]
    %v4472 = vld [vmem:[#allocation5 + $0xe1] sm:$0xff]
    %v4473 = vld [vmem:[#allocation5 + $0xe9] sm:$0xff]
    %v4474 = vld [vmem:[#allocation5 + $0xf1] sm:$0xff]
    %v4475 = vld [vmem:[#allocation5 + $0xf9] sm:$0xff]
    %v4476 = vld [vmem:[#allocation5 + $0x101] sm:$0xff]
    %v4477 = vld [vmem:[#allocation5 + $0x109] sm:$0xff]
    %v4478 = vld [vmem:[#allocation5 + $0x111] sm:$0xff]
    %v4479 = vld [vmem:[#allocation5 + $0x119] sm:$0xff]
    %v4480 = vld [vmem:[#allocation5 + $0x121] sm:$0xff]
    %v4481 = vld [vmem:[#allocation5 + $0x129] sm:$0xff]
    %v4482 = vld [vmem:[#allocation5 + $0x131] sm:$0xff]
    %v4483 = vld [vmem:[#allocation5 + $0x139] sm:$0xff]
    %v4484 = vld [vmem:[#allocation5 + $0x141] sm:$0xff]
    %v4485 = vld [vmem:[#allocation5 + $0x149] sm:$0xff]
    %v4486 = vld [vmem:[#allocation5 + $0x151] sm:$0x3]
    %s4487 = scalar_lea.vmem [#allocation14], 64
    %v4488 = vld [vmem:[%s4487] sm:$0xff]
    %v4489 = vld [vmem:[%s4487 + $0x8] sm:$0xff]
    %v4490 = vld [vmem:[%s4487 + $0x10] sm:$0xff]
    %v4491 = vld [vmem:[%s4487 + $0x18] sm:$0xff]
    %v4492 = vld [vmem:[%s4487 + $0x20] sm:$0xff]
    %v4493 = vld [vmem:[%s4487 + $0x28] sm:$0xff]
    %v4494 = vld [vmem:[%s4487 + $0x30] sm:$0xff]
    %v4495 = vld [vmem:[%s4487 + $0x38] sm:$0xff]
    %v4497 = vsel %vm246, %v4444, 0
    %v4500 = vsel %vm246, %v4445, 0
    %v4503 = vsel %vm246, %v4446, 0
    %v4506 = vsel %vm246, %v4447, 0
    %v4509 = vsel %vm246, %v4448, 0
    %v4512 = vsel %vm246, %v4449, 0
    %v4515 = vsel %vm246, %v4450, 0
    %v4518 = vsel %vm246, %v4451, 0
    %v4521 = vsel %vm246, %v4452, 0
    %v4524 = vsel %vm246, %v4453, 0
    %v4527 = vsel %vm246, %v4454, 0
    %v4530 = vsel %vm246, %v4455, 0
    %v4533 = vsel %vm246, %v4456, 0
    %v4536 = vsel %vm246, %v4457, 0
    %v4539 = vsel %vm246, %v4458, 0
    %v4542 = vsel %vm246, %v4459, 0
    %v4545 = vsel %vm246, %v4460, 0
    %v4548 = vsel %vm246, %v4461, 0
    %v4551 = vsel %vm246, %v4462, 0
    %v4554 = vsel %vm246, %v4463, 0
    %v4557 = vsel %vm246, %v4464, 0
    %v4560 = vsel %vm246, %v4465, 0
    %v4563 = vsel %vm246, %v4466, 0
    %v4566 = vsel %vm246, %v4467, 0
    %v4569 = vsel %vm246, %v4468, 0
    %v4572 = vsel %vm246, %v4469, 0
    %v4575 = vsel %vm246, %v4470, 0
    %v4578 = vsel %vm246, %v4471, 0
    %v4581 = vsel %vm246, %v4472, 0
    %v4584 = vsel %vm246, %v4473, 0
    %v4587 = vsel %vm246, %v4474, 0
    %v4590 = vsel %vm246, %v4475, 0
    %v4593 = vsel %vm246, %v4476, 0
    %v4596 = vsel %vm246, %v4477, 0
    %v4599 = vsel %vm246, %v4478, 0
    %v4602 = vsel %vm246, %v4479, 0
    %v4605 = vsel %vm246, %v4480, 0
    %v4608 = vsel %vm246, %v4481, 0
    %v4611 = vsel %vm246, %v4482, 0
    %v4614 = vsel %vm246, %v4483, 0
    %v4617 = vsel %vm246, %v4484, 0
    %v4620 = vsel %vm246, %v4485, 0
    %v4623 = vsel %vm246, %v4486, 0
    %4625 = vmatprep.subr.mxu0 0.0
    %4626 = vmatpush1.msra.mxu0 %v4488
    %4627 = vmatprep.subr.mxu0 0.0
    %4628 = vmatpush1.msra.mxu0 %v4489
    %4629 = vmatprep.subr.mxu0 0.0
    %4630 = vmatpush1.msra.mxu0 %v4490
    %4631 = vmatprep.subr.mxu0 0.0
    %4632 = vmatpush1.msra.mxu0 %v4491
    %4633 = vmatprep.subr.mxu0 0.0
    %4634 = vmatpush1.msra.mxu0 %v4492
    %4635 = vmatprep.subr.mxu0 0.0
    %4636 = vmatpush1.msra.mxu0 %v4493
    %4637 = vmatprep.subr.mxu0 0.0
    %4638 = vmatpush1.msra.mxu0 %v4494
    %4639 = vmatprep.subr.mxu0 0.0
    %4640 = vmatpush1.msra.mxu0 %v4495
    %4641 = vmatprep.subr.mxu0 0.0
    %4642 = vmatpush1.msra.mxu0 0.0
    %4643 = vmatprep.subr.mxu0 0.0
    %4644 = vmatpush1.msra.mxu0 0.0
    %4645 = vmatprep.subr.mxu0 0.0
    %4646 = vmatpush1.msra.mxu0 0.0
    %4647 = vmatprep.subr.mxu0 0.0
    %4648 = vmatpush1.msra.mxu0 0.0
    %4649 = vmatprep.subr.mxu0 0.0
    %4650 = vmatpush1.msra.mxu0 0.0
    %4651 = vmatprep.subr.mxu0 0.0
    %4652 = vmatpush1.msra.mxu0 0.0
    %4653 = vmatprep.subr.mxu0 0.0
    %4654 = vmatpush1.msra.mxu0 0.0
    %4655 = vmatprep.subr.mxu0 0.0
    %4656 = vmatpush1.msra.mxu0 0.0
    %4657 = vmatprep.subr.mxu0 0.0
    %4658 = vmatpush1.msra.mxu0 0.0
    %4659 = vmatprep.subr.mxu0 0.0
    %4660 = vmatpush1.msra.mxu0 0.0
    %4661 = vmatprep.subr.mxu0 0.0
    %4662 = vmatpush1.msra.mxu0 0.0
    %4663 = vmatprep.subr.mxu0 0.0
    %4664 = vmatpush1.msra.mxu0 0.0
    %4665 = vmatprep.subr.mxu0 0.0
    %4666 = vmatpush1.msra.mxu0 0.0
    %4667 = vmatprep.subr.mxu0 0.0
    %4668 = vmatpush1.msra.mxu0 0.0
    %4669 = vmatprep.subr.mxu0 0.0
    %4670 = vmatpush1.msra.mxu0 0.0
    %4671 = vmatprep.subr.mxu0 0.0
    %4672 = vmatpush1.msra.mxu0 0.0
    %4673 = vmatprep.subr.mxu0 0.0
    %4674 = vmatpush1.msra.mxu0 0.0
    %4675 = vmatprep.subr.mxu0 0.0
    %4676 = vmatpush1.msra.mxu0 0.0
    %4677 = vmatprep.subr.mxu0 0.0
    %4678 = vmatpush1.msra.mxu0 0.0
    %4679 = vmatprep.subr.mxu0 0.0
    %4680 = vmatpush1.msra.mxu0 0.0
    %4681 = vmatprep.subr.mxu0 0.0
    %4682 = vmatpush1.msra.mxu0 0.0
    %4683 = vmatprep.subr.mxu0 0.0
    %4684 = vmatpush1.msra.mxu0 0.0
    %4685 = vmatprep.subr.mxu0 0.0
    %4686 = vmatpush1.msra.mxu0 0.0
    %4687 = vmatprep.subr.mxu0 0.0
    %4688 = vmatpush1.msra.mxu0 0.0
    %4689 = vmatprep.mubr.f32.mxu0 0.0
    %4690 = vmatmul.mubr.f32.gmra.mrb[0].mxu0 %v4497
    %v4691 = vpop.f32.mrb[0].mxu0
    %v4692 = vadd.f32 0.0, %v4691
    %v4693 = vpop.f32.mrb[0].mxu0
    %4694 = vmatprep.mubr.f32.mxu0 0.0
    %4695 = vmatmul.mubr.f32.gmra.mrb[0].mxu0 %v4500
    %v4696 = vpop.f32.mrb[0].mxu0
    %v4697 = vadd.f32 0.0, %v4696
    %v4698 = vpop.f32.mrb[0].mxu0
    %4699 = vmatprep.mubr.f32.mxu0 0.0
    %4700 = vmatmul.mubr.f32.gmra.mrb[0].mxu0 %v4503
    %v4701 = vpop.f32.mrb[0].mxu0
    %v4702 = vadd.f32 0.0, %v4701
    %v4703 = vpop.f32.mrb[0].mxu0
    %4704 = vmatprep.mubr.f32.mxu0 0.0
    %4705 = vmatmul.mubr.f32.gmra.mrb[0].mxu0 %v4506
    %v4706 = vpop.f32.mrb[0].mxu0
    %v4707 = vadd.f32 0.0, %v4706
    %v4708 = vpop.f32.mrb[0].mxu0
    %4709 = vmatprep.mubr.f32.mxu0 0.0
    %4710 = vmatmul.mubr.f32.gmra.mrb[0].mxu0 %v4509
    %v4711 = vpop.f32.mrb[0].mxu0
    %v4712 = vadd.f32 0.0, %v4711
    %v4713 = vpop.f32.mrb[0].mxu0
    %4714 = vmatprep.mubr.f32.mxu0 0.0
    %4715 = vmatmul.mubr.f32.gmra.mrb[0].mxu0 %v4512
    %v4716 = vpop.f32.mrb[0].mxu0
    %v4717 = vadd.f32 0.0, %v4716
    %v4718 = vpop.f32.mrb[0].mxu0
    %4719 = vmatprep.mubr.f32.mxu0 0.0
    %4720 = vmatmul.mubr.f32.gmra.mrb[0].mxu0 %v4515
    %v4721 = vpop.f32.mrb[0].mxu0
    %v4722 = vadd.f32 0.0, %v4721
    %v4723 = vpop.f32.mrb[0].mxu0
    %4724 = vmatprep.mubr.f32.mxu0 0.0
    %4725 = vmatmul.mubr.f32.gmra.mrb[0].mxu0 %v4518
    %v4726 = vpop.f32.mrb[0].mxu0
    %v4727 = vadd.f32 0.0, %v4726
    %v4728 = vpop.f32.mrb[0].mxu0
    %4729 = vmatprep.mubr.f32.mxu0 0.0
    %4730 = vmatmul.mubr.f32.gmra.mrb[0].mxu0 %v4521
    %v4731 = vpop.f32.mrb[0].mxu0
    %v4732 = vadd.f32 0.0, %v4731
    %v4733 = vpop.f32.mrb[0].mxu0
    %4734 = vmatprep.mubr.f32.mxu0 0.0
    %4735 = vmatmul.mubr.f32.gmra.mrb[0].mxu0 %v4524
    %v4736 = vpop.f32.mrb[0].mxu0
    %v4737 = vadd.f32 0.0, %v4736
    %v4738 = vpop.f32.mrb[0].mxu0
    %4739 = vmatprep.mubr.f32.mxu0 0.0
    %4740 = vmatmul.mubr.f32.gmra.mrb[0].mxu0 %v4527
    %v4741 = vpop.f32.mrb[0].mxu0
    %v4742 = vadd.f32 0.0, %v4741
    %v4743 = vpop.f32.mrb[0].mxu0
    %4744 = vmatprep.mubr.f32.mxu0 0.0
    %4745 = vmatmul.mubr.f32.gmra.mrb[0].mxu0 %v4530
    %v4746 = vpop.f32.mrb[0].mxu0
    %v4747 = vadd.f32 0.0, %v4746
    %v4748 = vpop.f32.mrb[0].mxu0
    %4749 = vmatprep.mubr.f32.mxu0 0.0
    %4750 = vmatmul.mubr.f32.gmra.mrb[0].mxu0 %v4533
    %v4751 = vpop.f32.mrb[0].mxu0
    %v4752 = vadd.f32 0.0, %v4751
    %v4753 = vpop.f32.mrb[0].mxu0
    %4754 = vmatprep.mubr.f32.mxu0 0.0
    %4755 = vmatmul.mubr.f32.gmra.mrb[0].mxu0 %v4536
    %v4756 = vpop.f32.mrb[0].mxu0
    %v4757 = vadd.f32 0.0, %v4756
    %v4758 = vpop.f32.mrb[0].mxu0
    %4759 = vmatprep.mubr.f32.mxu0 0.0
    %4760 = vmatmul.mubr.f32.gmra.mrb[0].mxu0 %v4539
    %v4761 = vpop.f32.mrb[0].mxu0
    %v4762 = vadd.f32 0.0, %v4761
    %v4763 = vpop.f32.mrb[0].mxu0
    %4764 = vmatprep.mubr.f32.mxu0 0.0
    %4765 = vmatmul.mubr.f32.gmra.mrb[0].mxu0 %v4542
    %v4766 = vpop.f32.mrb[0].mxu0
    %v4767 = vadd.f32 0.0, %v4766
    %v4768 = vpop.f32.mrb[0].mxu0
    %4769 = vmatprep.mubr.f32.mxu0 0.0
    %4770 = vmatmul.mubr.f32.gmra.mrb[0].mxu0 %v4545
    %v4771 = vpop.f32.mrb[0].mxu0
    %v4772 = vadd.f32 0.0, %v4771
    %v4773 = vpop.f32.mrb[0].mxu0
    %4774 = vmatprep.mubr.f32.mxu0 0.0
    %4775 = vmatmul.mubr.f32.gmra.mrb[0].mxu0 %v4548
    %v4776 = vpop.f32.mrb[0].mxu0
    %v4777 = vadd.f32 0.0, %v4776
    %v4778 = vpop.f32.mrb[0].mxu0
    %4779 = vmatprep.mubr.f32.mxu0 0.0
    %4780 = vmatmul.mubr.f32.gmra.mrb[0].mxu0 %v4551
    %v4781 = vpop.f32.mrb[0].mxu0
    %v4782 = vadd.f32 0.0, %v4781
    %v4783 = vpop.f32.mrb[0].mxu0
    %4784 = vmatprep.mubr.f32.mxu0 0.0
    %4785 = vmatmul.mubr.f32.gmra.mrb[0].mxu0 %v4554
    %v4786 = vpop.f32.mrb[0].mxu0
    %v4787 = vadd.f32 0.0, %v4786
    %v4788 = vpop.f32.mrb[0].mxu0
    %4789 = vmatprep.mubr.f32.mxu0 0.0
    %4790 = vmatmul.mubr.f32.gmra.mrb[0].mxu0 %v4557
    %v4791 = vpop.f32.mrb[0].mxu0
    %v4792 = vadd.f32 0.0, %v4791
    %v4793 = vpop.f32.mrb[0].mxu0
    %4794 = vmatprep.mubr.f32.mxu0 0.0
    %4795 = vmatmul.mubr.f32.gmra.mrb[0].mxu0 %v4560
    %v4796 = vpop.f32.mrb[0].mxu0
    %v4797 = vadd.f32 0.0, %v4796
    %v4798 = vpop.f32.mrb[0].mxu0
    %4799 = vmatprep.mubr.f32.mxu0 0.0
    %4800 = vmatmul.mubr.f32.gmra.mrb[0].mxu0 %v4563
    %v4801 = vpop.f32.mrb[0].mxu0
    %v4802 = vadd.f32 0.0, %v4801
    %v4803 = vpop.f32.mrb[0].mxu0
    %4804 = vmatprep.mubr.f32.mxu0 0.0
    %4805 = vmatmul.mubr.f32.gmra.mrb[0].mxu0 %v4566
    %v4806 = vpop.f32.mrb[0].mxu0
    %v4807 = vadd.f32 0.0, %v4806
    %v4808 = vpop.f32.mrb[0].mxu0
    %4809 = vmatprep.mubr.f32.mxu0 0.0
    %4810 = vmatmul.mubr.f32.gmra.mrb[0].mxu0 %v4569
    %v4811 = vpop.f32.mrb[0].mxu0
    %v4812 = vadd.f32 0.0, %v4811
    %v4813 = vpop.f32.mrb[0].mxu0
    %4814 = vmatprep.mubr.f32.mxu0 0.0
    %4815 = vmatmul.mubr.f32.gmra.mrb[0].mxu0 %v4572
    %v4816 = vpop.f32.mrb[0].mxu0
    %v4817 = vadd.f32 0.0, %v4816
    %v4818 = vpop.f32.mrb[0].mxu0
    %4819 = vmatprep.mubr.f32.mxu0 0.0
    %4820 = vmatmul.mubr.f32.gmra.mrb[0].mxu0 %v4575
    %v4821 = vpop.f32.mrb[0].mxu0
    %v4822 = vadd.f32 0.0, %v4821
    %v4823 = vpop.f32.mrb[0].mxu0
    %4824 = vmatprep.mubr.f32.mxu0 0.0
    %4825 = vmatmul.mubr.f32.gmra.mrb[0].mxu0 %v4578
    %v4826 = vpop.f32.mrb[0].mxu0
    %v4827 = vadd.f32 0.0, %v4826
    %v4828 = vpop.f32.mrb[0].mxu0
    %4829 = vmatprep.mubr.f32.mxu0 0.0
    %4830 = vmatmul.mubr.f32.gmra.mrb[0].mxu0 %v4581
    %v4831 = vpop.f32.mrb[0].mxu0
    %v4832 = vadd.f32 0.0, %v4831
    %v4833 = vpop.f32.mrb[0].mxu0
    %4834 = vmatprep.mubr.f32.mxu0 0.0
    %4835 = vmatmul.mubr.f32.gmra.mrb[0].mxu0 %v4584
    %v4836 = vpop.f32.mrb[0].mxu0
    %v4837 = vadd.f32 0.0, %v4836
    %v4838 = vpop.f32.mrb[0].mxu0
    %4839 = vmatprep.mubr.f32.mxu0 0.0
    %4840 = vmatmul.mubr.f32.gmra.mrb[0].mxu0 %v4587
    %v4841 = vpop.f32.mrb[0].mxu0
    %v4842 = vadd.f32 0.0, %v4841
    %v4843 = vpop.f32.mrb[0].mxu0
    %4844 = vmatprep.mubr.f32.mxu0 0.0
    %4845 = vmatmul.mubr.f32.gmra.mrb[0].mxu0 %v4590
    %v4846 = vpop.f32.mrb[0].mxu0
    %v4847 = vadd.f32 0.0, %v4846
    %v4848 = vpop.f32.mrb[0].mxu0
    %4849 = vmatprep.mubr.f32.mxu0 0.0
    %4850 = vmatmul.mubr.f32.gmra.mrb[0].mxu0 %v4593
    %v4851 = vpop.f32.mrb[0].mxu0
    %v4852 = vadd.f32 0.0, %v4851
    %v4853 = vpop.f32.mrb[0].mxu0
    %4854 = vmatprep.mubr.f32.mxu0 0.0
    %4855 = vmatmul.mubr.f32.gmra.mrb[0].mxu0 %v4596
    %v4856 = vpop.f32.mrb[0].mxu0
    %v4857 = vadd.f32 0.0, %v4856
    %v4858 = vpop.f32.mrb[0].mxu0
    %4859 = vmatprep.mubr.f32.mxu0 0.0
    %4860 = vmatmul.mubr.f32.gmra.mrb[0].mxu0 %v4599
    %v4861 = vpop.f32.mrb[0].mxu0
    %v4862 = vadd.f32 0.0, %v4861
    %v4863 = vpop.f32.mrb[0].mxu0
    %4864 = vmatprep.mubr.f32.mxu0 0.0
    %4865 = vmatmul.mubr.f32.gmra.mrb[0].mxu0 %v4602
    %v4866 = vpop.f32.mrb[0].mxu0
    %v4867 = vadd.f32 0.0, %v4866
    %v4868 = vpop.f32.mrb[0].mxu0
    %4869 = vmatprep.mubr.f32.mxu0 0.0
    %4870 = vmatmul.mubr.f32.gmra.mrb[0].mxu0 %v4605
    %v4871 = vpop.f32.mrb[0].mxu0
    %v4872 = vadd.f32 0.0, %v4871
    %v4873 = vpop.f32.mrb[0].mxu0
    %4874 = vmatprep.mubr.f32.mxu0 0.0
    %4875 = vmatmul.mubr.f32.gmra.mrb[0].mxu0 %v4608
    %v4876 = vpop.f32.mrb[0].mxu0
    %v4877 = vadd.f32 0.0, %v4876
    %v4878 = vpop.f32.mrb[0].mxu0
    %4879 = vmatprep.mubr.f32.mxu0 0.0
    %4880 = vmatmul.mubr.f32.gmra.mrb[0].mxu0 %v4611
    %v4881 = vpop.f32.mrb[0].mxu0
    %v4882 = vadd.f32 0.0, %v4881
    %v4883 = vpop.f32.mrb[0].mxu0
    %4884 = vmatprep.mubr.f32.mxu0 0.0
    %4885 = vmatmul.mubr.f32.gmra.mrb[0].mxu0 %v4614
    %v4886 = vpop.f32.mrb[0].mxu0
    %v4887 = vadd.f32 0.0, %v4886
    %v4888 = vpop.f32.mrb[0].mxu0
    %4889 = vmatprep.mubr.f32.mxu0 0.0
    %4890 = vmatmul.mubr.f32.gmra.mrb[0].mxu0 %v4617
    %v4891 = vpop.f32.mrb[0].mxu0
    %v4892 = vadd.f32 0.0, %v4891
    %v4893 = vpop.f32.mrb[0].mxu0
    %4894 = vmatprep.mubr.f32.mxu0 0.0
    %4895 = vmatmul.mubr.f32.gmra.mrb[0].mxu0 %v4620
    %v4896 = vpop.f32.mrb[0].mxu0
    %v4897 = vadd.f32 0.0, %v4896
    %v4898 = vpop.f32.mrb[0].mxu0
    %4899 = vmatprep.mubr.f32.mxu0 0.0
    %4900 = vmatmul.mubr.f32.gmra.mrb[0].mxu0 %v4623
    %v4901 = vpop.f32.mrb[0].mxu0
    %v4902 = vadd.f32 0.0, %v4901
    %v4903 = vpop.f32.mrb[0].mxu0
    %4904 = vdwg.mxu0
    %v4906 = vsel %vm246, %v4393, 0
    %v4909 = vsel %vm246, %v4394, 0
    %v4912 = vsel %vm246, %v4395, 0
    %v4915 = vsel %vm246, %v4396, 0
    %v4918 = vsel %vm246, %v4397, 0
    %v4921 = vsel %vm246, %v4398, 0
    %v4924 = vsel %vm246, %v4399, 0
    %v4927 = vsel %vm246, %v4400, 0
    %v4930 = vsel %vm246, %v4401, 0
    %v4933 = vsel %vm246, %v4402, 0
    %v4936 = vsel %vm246, %v4403, 0
    %v4939 = vsel %vm246, %v4404, 0
    %v4942 = vsel %vm246, %v4405, 0
    %v4945 = vsel %vm246, %v4406, 0
    %v4948 = vsel %vm246, %v4407, 0
    %v4951 = vsel %vm246, %v4408, 0
    %v4954 = vsel %vm246, %v4409, 0
    %v4957 = vsel %vm246, %v4410, 0
    %v4960 = vsel %vm246, %v4411, 0
    %v4963 = vsel %vm246, %v4412, 0
    %v4966 = vsel %vm246, %v4413, 0
    %v4969 = vsel %vm246, %v4414, 0
    %v4972 = vsel %vm246, %v4415, 0
    %v4975 = vsel %vm246, %v4416, 0
    %v4978 = vsel %vm246, %v4417, 0
    %v4981 = vsel %vm246, %v4418, 0
    %v4984 = vsel %vm246, %v4419, 0
    %v4987 = vsel %vm246, %v4420, 0
    %v4990 = vsel %vm246, %v4421, 0
    %v4993 = vsel %vm246, %v4422, 0
    %v4996 = vsel %vm246, %v4423, 0
    %v4999 = vsel %vm246, %v4424, 0
    %v5002 = vsel %vm246, %v4425, 0
    %v5005 = vsel %vm246, %v4426, 0
    %v5008 = vsel %vm246, %v4427, 0
    %v5011 = vsel %vm246, %v4428, 0
    %v5014 = vsel %vm246, %v4429, 0
    %v5017 = vsel %vm246, %v4430, 0
    %v5020 = vsel %vm246, %v4431, 0
    %v5023 = vsel %vm246, %v4432, 0
    %v5026 = vsel %vm246, %v4433, 0
    %v5029 = vsel %vm246, %v4434, 0
    %v5032 = vsel %vm246, %v4435, 0
    %5034 = vmatprep.subr.mxu0 0.0
    %5035 = vmatpush1.msra.mxu0 %v4436
    %5036 = vmatprep.subr.mxu0 0.0
    %5037 = vmatpush1.msra.mxu0 %v4437
    %5038 = vmatprep.subr.mxu0 0.0
    %5039 = vmatpush1.msra.mxu0 %v4438
    %5040 = vmatprep.subr.mxu0 0.0
    %5041 = vmatpush1.msra.mxu0 %v4439
    %5042 = vmatprep.subr.mxu0 0.0
    %5043 = vmatpush1.msra.mxu0 %v4440
    %5044 = vmatprep.subr.mxu0 0.0
    %5045 = vmatpush1.msra.mxu0 %v4441
    %5046 = vmatprep.subr.mxu0 0.0
    %5047 = vmatpush1.msra.mxu0 %v4442
    %5048 = vmatprep.subr.mxu0 0.0
    %5049 = vmatpush1.msra.mxu0 %v4443
    %5050 = vmatprep.subr.mxu0 0.0
    %5051 = vmatpush1.msra.mxu0 0.0
    %5052 = vmatprep.subr.mxu0 0.0
    %5053 = vmatpush1.msra.mxu0 0.0
    %5054 = vmatprep.subr.mxu0 0.0
    %5055 = vmatpush1.msra.mxu0 0.0
    %5056 = vmatprep.subr.mxu0 0.0
    %5057 = vmatpush1.msra.mxu0 0.0
    %5058 = vmatprep.subr.mxu0 0.0
    %5059 = vmatpush1.msra.mxu0 0.0
    %5060 = vmatprep.subr.mxu0 0.0
    %5061 = vmatpush1.msra.mxu0 0.0
    %5062 = vmatprep.subr.mxu0 0.0
    %5063 = vmatpush1.msra.mxu0 0.0
    %5064 = vmatprep.subr.mxu0 0.0
    %5065 = vmatpush1.msra.mxu0 0.0
    %5066 = vmatprep.subr.mxu0 0.0
    %5067 = vmatpush1.msra.mxu0 0.0
    %5068 = vmatprep.subr.mxu0 0.0
    %5069 = vmatpush1.msra.mxu0 0.0
    %5070 = vmatprep.subr.mxu0 0.0
    %5071 = vmatpush1.msra.mxu0 0.0
    %5072 = vmatprep.subr.mxu0 0.0
    %5073 = vmatpush1.msra.mxu0 0.0
    %5074 = vmatprep.subr.mxu0 0.0
    %5075 = vmatpush1.msra.mxu0 0.0
    %5076 = vmatprep.subr.mxu0 0.0
    %5077 = vmatpush1.msra.mxu0 0.0
    %5078 = vmatprep.subr.mxu0 0.0
    %5079 = vmatpush1.msra.mxu0 0.0
    %5080 = vmatprep.subr.mxu0 0.0
    %5081 = vmatpush1.msra.mxu0 0.0
    %5082 = vmatprep.subr.mxu0 0.0
    %5083 = vmatpush1.msra.mxu0 0.0
    %5084 = vmatprep.subr.mxu0 0.0
    %5085 = vmatpush1.msra.mxu0 0.0
    %5086 = vmatprep.subr.mxu0 0.0
    %5087 = vmatpush1.msra.mxu0 0.0
    %5088 = vmatprep.subr.mxu0 0.0
    %5089 = vmatpush1.msra.mxu0 0.0
    %5090 = vmatprep.subr.mxu0 0.0
    %5091 = vmatpush1.msra.mxu0 0.0
    %5092 = vmatprep.subr.mxu0 0.0
    %5093 = vmatpush1.msra.mxu0 0.0
    %5094 = vmatprep.subr.mxu0 0.0
    %5095 = vmatpush1.msra.mxu0 0.0
    %5096 = vmatprep.subr.mxu0 0.0
    %5097 = vmatpush1.msra.mxu0 0.0
    %5098 = vmatprep.mubr.f32.mxu0 0.0
    %5099 = vmatmul.mubr.f32.gmra.mrb[0].mxu0 %v4906
    %v5100 = vpop.f32.mrb[0].mxu0
    %v5101 = vadd.f32 %v4692, %v5100
    %v5102 = vpop.f32.mrb[0].mxu0
    %5103 = vmatprep.mubr.f32.mxu0 0.0
    %5104 = vmatmul.mubr.f32.gmra.mrb[0].mxu0 %v4909
    %v5105 = vpop.f32.mrb[0].mxu0
    %v5106 = vadd.f32 %v4697, %v5105
    %v5107 = vpop.f32.mrb[0].mxu0
    %5108 = vmatprep.mubr.f32.mxu0 0.0
    %5109 = vmatmul.mubr.f32.gmra.mrb[0].mxu0 %v4912
    %v5110 = vpop.f32.mrb[0].mxu0
    %v5111 = vadd.f32 %v4702, %v5110
    %v5112 = vpop.f32.mrb[0].mxu0
    %5113 = vmatprep.mubr.f32.mxu0 0.0
    %5114 = vmatmul.mubr.f32.gmra.mrb[0].mxu0 %v4915
    %v5115 = vpop.f32.mrb[0].mxu0
    %v5116 = vadd.f32 %v4707, %v5115
    %v5117 = vpop.f32.mrb[0].mxu0
    %5118 = vmatprep.mubr.f32.mxu0 0.0
    %5119 = vmatmul.mubr.f32.gmra.mrb[0].mxu0 %v4918
    %v5120 = vpop.f32.mrb[0].mxu0
    %v5121 = vadd.f32 %v4712, %v5120
    %v5122 = vpop.f32.mrb[0].mxu0
    %5123 = vmatprep.mubr.f32.mxu0 0.0
    %5124 = vmatmul.mubr.f32.gmra.mrb[0].mxu0 %v4921
    %v5125 = vpop.f32.mrb[0].mxu0
    %v5126 = vadd.f32 %v4717, %v5125
    %v5127 = vpop.f32.mrb[0].mxu0
    %5128 = vmatprep.mubr.f32.mxu0 0.0
    %5129 = vmatmul.mubr.f32.gmra.mrb[0].mxu0 %v4924
    %v5130 = vpop.f32.mrb[0].mxu0
    %v5131 = vadd.f32 %v4722, %v5130
    %v5132 = vpop.f32.mrb[0].mxu0
    %5133 = vmatprep.mubr.f32.mxu0 0.0
    %5134 = vmatmul.mubr.f32.gmra.mrb[0].mxu0 %v4927
    %v5135 = vpop.f32.mrb[0].mxu0
    %v5136 = vadd.f32 %v4727, %v5135
    %v5137 = vpop.f32.mrb[0].mxu0
    %5138 = vmatprep.mubr.f32.mxu0 0.0
    %5139 = vmatmul.mubr.f32.gmra.mrb[0].mxu0 %v4930
    %v5140 = vpop.f32.mrb[0].mxu0
    %v5141 = vadd.f32 %v4732, %v5140
    %v5142 = vpop.f32.mrb[0].mxu0
    %5143 = vmatprep.mubr.f32.mxu0 0.0
    %5144 = vmatmul.mubr.f32.gmra.mrb[0].mxu0 %v4933
    %v5145 = vpop.f32.mrb[0].mxu0
    %v5146 = vadd.f32 %v4737, %v5145
    %v5147 = vpop.f32.mrb[0].mxu0
    %5148 = vmatprep.mubr.f32.mxu0 0.0
    %5149 = vmatmul.mubr.f32.gmra.mrb[0].mxu0 %v4936
    %v5150 = vpop.f32.mrb[0].mxu0
    %v5151 = vadd.f32 %v4742, %v5150
    %v5152 = vpop.f32.mrb[0].mxu0
    %5153 = vmatprep.mubr.f32.mxu0 0.0
    %5154 = vmatmul.mubr.f32.gmra.mrb[0].mxu0 %v4939
    %v5155 = vpop.f32.mrb[0].mxu0
    %v5156 = vadd.f32 %v4747, %v5155
    %v5157 = vpop.f32.mrb[0].mxu0
    %5158 = vmatprep.mubr.f32.mxu0 0.0
    %5159 = vmatmul.mubr.f32.gmra.mrb[0].mxu0 %v4942
    %v5160 = vpop.f32.mrb[0].mxu0
    %v5161 = vadd.f32 %v4752, %v5160
    %v5162 = vpop.f32.mrb[0].mxu0
    %5163 = vmatprep.mubr.f32.mxu0 0.0
    %5164 = vmatmul.mubr.f32.gmra.mrb[0].mxu0 %v4945
    %v5165 = vpop.f32.mrb[0].mxu0
    %v5166 = vadd.f32 %v4757, %v5165
    %v5167 = vpop.f32.mrb[0].mxu0
    %5168 = vmatprep.mubr.f32.mxu0 0.0
    %5169 = vmatmul.mubr.f32.gmra.mrb[0].mxu0 %v4948
    %v5170 = vpop.f32.mrb[0].mxu0
    %v5171 = vadd.f32 %v4762, %v5170
    %v5172 = vpop.f32.mrb[0].mxu0
    %5173 = vmatprep.mubr.f32.mxu0 0.0
    %5174 = vmatmul.mubr.f32.gmra.mrb[0].mxu0 %v4951
    %v5175 = vpop.f32.mrb[0].mxu0
    %v5176 = vadd.f32 %v4767, %v5175
    %v5177 = vpop.f32.mrb[0].mxu0
    %5178 = vmatprep.mubr.f32.mxu0 0.0
    %5179 = vmatmul.mubr.f32.gmra.mrb[0].mxu0 %v4954
    %v5180 = vpop.f32.mrb[0].mxu0
    %v5181 = vadd.f32 %v4772, %v5180
    %v5182 = vpop.f32.mrb[0].mxu0
    %5183 = vmatprep.mubr.f32.mxu0 0.0
    %5184 = vmatmul.mubr.f32.gmra.mrb[0].mxu0 %v4957
    %v5185 = vpop.f32.mrb[0].mxu0
    %v5186 = vadd.f32 %v4777, %v5185
    %v5187 = vpop.f32.mrb[0].mxu0
    %5188 = vmatprep.mubr.f32.mxu0 0.0
    %5189 = vmatmul.mubr.f32.gmra.mrb[0].mxu0 %v4960
    %v5190 = vpop.f32.mrb[0].mxu0
    %v5191 = vadd.f32 %v4782, %v5190
    %v5192 = vpop.f32.mrb[0].mxu0
    %5193 = vmatprep.mubr.f32.mxu0 0.0
    %5194 = vmatmul.mubr.f32.gmra.mrb[0].mxu0 %v4963
    %v5195 = vpop.f32.mrb[0].mxu0
    %v5196 = vadd.f32 %v4787, %v5195
    %v5197 = vpop.f32.mrb[0].mxu0
    %5198 = vmatprep.mubr.f32.mxu0 0.0
    %5199 = vmatmul.mubr.f32.gmra.mrb[0].mxu0 %v4966
    %v5200 = vpop.f32.mrb[0].mxu0
    %v5201 = vadd.f32 %v4792, %v5200
    %v5202 = vpop.f32.mrb[0].mxu0
    %5203 = vmatprep.mubr.f32.mxu0 0.0
    %5204 = vmatmul.mubr.f32.gmra.mrb[0].mxu0 %v4969
    %v5205 = vpop.f32.mrb[0].mxu0
    %v5206 = vadd.f32 %v4797, %v5205
    %v5207 = vpop.f32.mrb[0].mxu0
    %5208 = vmatprep.mubr.f32.mxu0 0.0
    %5209 = vmatmul.mubr.f32.gmra.mrb[0].mxu0 %v4972
    %v5210 = vpop.f32.mrb[0].mxu0
    %v5211 = vadd.f32 %v4802, %v5210
    %v5212 = vpop.f32.mrb[0].mxu0
    %5213 = vmatprep.mubr.f32.mxu0 0.0
    %5214 = vmatmul.mubr.f32.gmra.mrb[0].mxu0 %v4975
    %v5215 = vpop.f32.mrb[0].mxu0
    %v5216 = vadd.f32 %v4807, %v5215
    %v5217 = vpop.f32.mrb[0].mxu0
    %5218 = vmatprep.mubr.f32.mxu0 0.0
    %5219 = vmatmul.mubr.f32.gmra.mrb[0].mxu0 %v4978
    %v5220 = vpop.f32.mrb[0].mxu0
    %v5221 = vadd.f32 %v4812, %v5220
    %v5222 = vpop.f32.mrb[0].mxu0
    %5223 = vmatprep.mubr.f32.mxu0 0.0
    %5224 = vmatmul.mubr.f32.gmra.mrb[0].mxu0 %v4981
    %v5225 = vpop.f32.mrb[0].mxu0
    %v5226 = vadd.f32 %v4817, %v5225
    %v5227 = vpop.f32.mrb[0].mxu0
    %5228 = vmatprep.mubr.f32.mxu0 0.0
    %5229 = vmatmul.mubr.f32.gmra.mrb[0].mxu0 %v4984
    %v5230 = vpop.f32.mrb[0].mxu0
    %v5231 = vadd.f32 %v4822, %v5230
    %v5232 = vpop.f32.mrb[0].mxu0
    %5233 = vmatprep.mubr.f32.mxu0 0.0
    %5234 = vmatmul.mubr.f32.gmra.mrb[0].mxu0 %v4987
    %v5235 = vpop.f32.mrb[0].mxu0
    %v5236 = vadd.f32 %v4827, %v5235
    %v5237 = vpop.f32.mrb[0].mxu0
    %5238 = vmatprep.mubr.f32.mxu0 0.0
    %5239 = vmatmul.mubr.f32.gmra.mrb[0].mxu0 %v4990
    %v5240 = vpop.f32.mrb[0].mxu0
    %v5241 = vadd.f32 %v4832, %v5240
    %v5242 = vpop.f32.mrb[0].mxu0
    %5243 = vmatprep.mubr.f32.mxu0 0.0
    %5244 = vmatmul.mubr.f32.gmra.mrb[0].mxu0 %v4993
    %v5245 = vpop.f32.mrb[0].mxu0
    %v5246 = vadd.f32 %v4837, %v5245
    %v5247 = vpop.f32.mrb[0].mxu0
    %5248 = vmatprep.mubr.f32.mxu0 0.0
    %5249 = vmatmul.mubr.f32.gmra.mrb[0].mxu0 %v4996
    %v5250 = vpop.f32.mrb[0].mxu0
    %v5251 = vadd.f32 %v4842, %v5250
    %v5252 = vpop.f32.mrb[0].mxu0
    %5253 = vmatprep.mubr.f32.mxu0 0.0
    %5254 = vmatmul.mubr.f32.gmra.mrb[0].mxu0 %v4999
    %v5255 = vpop.f32.mrb[0].mxu0
    %v5256 = vadd.f32 %v4847, %v5255
    %v5257 = vpop.f32.mrb[0].mxu0
    %5258 = vmatprep.mubr.f32.mxu0 0.0
    %5259 = vmatmul.mubr.f32.gmra.mrb[0].mxu0 %v5002
    %v5260 = vpop.f32.mrb[0].mxu0
    %v5261 = vadd.f32 %v4852, %v5260
    %v5262 = vpop.f32.mrb[0].mxu0
    %5263 = vmatprep.mubr.f32.mxu0 0.0
    %5264 = vmatmul.mubr.f32.gmra.mrb[0].mxu0 %v5005
    %v5265 = vpop.f32.mrb[0].mxu0
    %v5266 = vadd.f32 %v4857, %v5265
    %v5267 = vpop.f32.mrb[0].mxu0
    %5268 = vmatprep.mubr.f32.mxu0 0.0
    %5269 = vmatmul.mubr.f32.gmra.mrb[0].mxu0 %v5008
    %v5270 = vpop.f32.mrb[0].mxu0
    %v5271 = vadd.f32 %v4862, %v5270
    %v5272 = vpop.f32.mrb[0].mxu0
    %5273 = vmatprep.mubr.f32.mxu0 0.0
    %5274 = vmatmul.mubr.f32.gmra.mrb[0].mxu0 %v5011
    %v5275 = vpop.f32.mrb[0].mxu0
    %v5276 = vadd.f32 %v4867, %v5275
    %v5277 = vpop.f32.mrb[0].mxu0
    %5278 = vmatprep.mubr.f32.mxu0 0.0
    %5279 = vmatmul.mubr.f32.gmra.mrb[0].mxu0 %v5014
    %v5280 = vpop.f32.mrb[0].mxu0
    %v5281 = vadd.f32 %v4872, %v5280
    %v5282 = vpop.f32.mrb[0].mxu0
    %5283 = vmatprep.mubr.f32.mxu0 0.0
    %5284 = vmatmul.mubr.f32.gmra.mrb[0].mxu0 %v5017
    %v5285 = vpop.f32.mrb[0].mxu0
    %v5286 = vadd.f32 %v4877, %v5285
    %v5287 = vpop.f32.mrb[0].mxu0
    %5288 = vmatprep.mubr.f32.mxu0 0.0
    %5289 = vmatmul.mubr.f32.gmra.mrb[0].mxu0 %v5020
    %v5290 = vpop.f32.mrb[0].mxu0
    %v5291 = vadd.f32 %v4882, %v5290
    %v5292 = vpop.f32.mrb[0].mxu0
    %5293 = vmatprep.mubr.f32.mxu0 0.0
    %5294 = vmatmul.mubr.f32.gmra.mrb[0].mxu0 %v5023
    %v5295 = vpop.f32.mrb[0].mxu0
    %v5296 = vadd.f32 %v4887, %v5295
    %v5297 = vpop.f32.mrb[0].mxu0
    %5298 = vmatprep.mubr.f32.mxu0 0.0
    %5299 = vmatmul.mubr.f32.gmra.mrb[0].mxu0 %v5026
    %v5300 = vpop.f32.mrb[0].mxu0
    %v5301 = vadd.f32 %v4892, %v5300
    %v5302 = vpop.f32.mrb[0].mxu0
    %5303 = vmatprep.mubr.f32.mxu0 0.0
    %5304 = vmatmul.mubr.f32.gmra.mrb[0].mxu0 %v5029
    %v5305 = vpop.f32.mrb[0].mxu0
    %v5306 = vadd.f32 %v4897, %v5305
    %v5307 = vpop.f32.mrb[0].mxu0
    %5308 = vmatprep.mubr.f32.mxu0 0.0
    %5309 = vmatmul.mubr.f32.gmra.mrb[0].mxu0 %v5032
    %v5310 = vpop.f32.mrb[0].mxu0
    %v5311 = vadd.f32 %v4902, %v5310
    %v5312 = vpop.f32.mrb[0].mxu0
    %5313 = vdwg.mxu0
    %v5314 = vld [vmem:[#allocation5 + $0xd] sm:$0xff]
    %v5315 = vld [vmem:[#allocation5 + $0x15] sm:$0xff]
    %v5316 = vld [vmem:[#allocation5 + $0x1d] sm:$0xff]
    %v5317 = vld [vmem:[#allocation5 + $0x25] sm:$0xff]
    %v5318 = vld [vmem:[#allocation5 + $0x2d] sm:$0xff]
    %v5319 = vld [vmem:[#allocation5 + $0x35] sm:$0xff]
    %v5320 = vld [vmem:[#allocation5 + $0x3d] sm:$0xff]
    %v5321 = vld [vmem:[#allocation5 + $0x45] sm:$0xff]
    %v5322 = vld [vmem:[#allocation5 + $0x4d] sm:$0xff]
    %v5323 = vld [vmem:[#allocation5 + $0x55] sm:$0xff]
    %v5324 = vld [vmem:[#allocation5 + $0x5d] sm:$0xff]
    %v5325 = vld [vmem:[#allocation5 + $0x65] sm:$0xff]
    %v5326 = vld [vmem:[#allocation5 + $0x6d] sm:$0xff]
    %v5327 = vld [vmem:[#allocation5 + $0x75] sm:$0xff]
    %v5328 = vld [vmem:[#allocation5 + $0x7d] sm:$0xff]
    %v5329 = vld [vmem:[#allocation5 + $0x85] sm:$0xff]
    %v5330 = vld [vmem:[#allocation5 + $0x8d] sm:$0xff]
    %v5331 = vld [vmem:[#allocation5 + $0x95] sm:$0xff]
    %v5332 = vld [vmem:[#allocation5 + $0x9d] sm:$0xff]
    %v5333 = vld [vmem:[#allocation5 + $0xa5] sm:$0xff]
    %v5334 = vld [vmem:[#allocation5 + $0xad] sm:$0xff]
    %v5335 = vld [vmem:[#allocation5 + $0xb5] sm:$0xff]
    %v5336 = vld [vmem:[#allocation5 + $0xbd] sm:$0xff]
    %v5337 = vld [vmem:[#allocation5 + $0xc5] sm:$0xff]
    %v5338 = vld [vmem:[#allocation5 + $0xcd] sm:$0xff]
    %v5339 = vld [vmem:[#allocation5 + $0xd5] sm:$0xff]
    %v5340 = vld [vmem:[#allocation5 + $0xdd] sm:$0xff]
    %v5341 = vld [vmem:[#allocation5 + $0xe5] sm:$0xff]
    %v5342 = vld [vmem:[#allocation5 + $0xed] sm:$0xff]
    %v5343 = vld [vmem:[#allocation5 + $0xf5] sm:$0xff]
    %v5344 = vld [vmem:[#allocation5 + $0xfd] sm:$0xff]
    %v5345 = vld [vmem:[#allocation5 + $0x105] sm:$0xff]
    %v5346 = vld [vmem:[#allocation5 + $0x10d] sm:$0xff]
    %v5347 = vld [vmem:[#allocation5 + $0x115] sm:$0xff]
    %v5348 = vld [vmem:[#allocation5 + $0x11d] sm:$0xff]
    %v5349 = vld [vmem:[#allocation5 + $0x125] sm:$0xff]
    %v5350 = vld [vmem:[#allocation5 + $0x12d] sm:$0xff]
    %v5351 = vld [vmem:[#allocation5 + $0x135] sm:$0xff]
    %v5352 = vld [vmem:[#allocation5 + $0x13d] sm:$0xff]
    %v5353 = vld [vmem:[#allocation5 + $0x145] sm:$0xff]
    %v5354 = vld [vmem:[#allocation5 + $0x14d] sm:$0xff]
    %v5355 = vld [vmem:[#allocation5 + $0x155] sm:$0xff]
    %v5356 = vld [vmem:[#allocation5 + $0x15d] sm:$0x3]
    %s5357 = scalar_lea.vmem [#allocation14], 128
    %v5358 = vld [vmem:[%s5357] sm:$0xff]
    %v5359 = vld [vmem:[%s5357 + $0x8] sm:$0xff]
    %v5360 = vld [vmem:[%s5357 + $0x10] sm:$0xff]
    %v5361 = vld [vmem:[%s5357 + $0x18] sm:$0xff]
    %v5362 = vld [vmem:[%s5357 + $0x20] sm:$0xff]
    %v5363 = vld [vmem:[%s5357 + $0x28] sm:$0xff]
    %v5364 = vld [vmem:[%s5357 + $0x30] sm:$0xff]
    %v5365 = vld [vmem:[%s5357 + $0x38] sm:$0xff]
    %v5367 = vsel %vm246, %v5314, 0
    %v5370 = vsel %vm246, %v5315, 0
    %v5373 = vsel %vm246, %v5316, 0
    %v5376 = vsel %vm246, %v5317, 0
    %v5379 = vsel %vm246, %v5318, 0
    %v5382 = vsel %vm246, %v5319, 0
    %v5385 = vsel %vm246, %v5320, 0
    %v5388 = vsel %vm246, %v5321, 0
    %v5391 = vsel %vm246, %v5322, 0
    %v5394 = vsel %vm246, %v5323, 0
    %v5397 = vsel %vm246, %v5324, 0
    %v5400 = vsel %vm246, %v5325, 0
    %v5403 = vsel %vm246, %v5326, 0
    %v5406 = vsel %vm246, %v5327, 0
    %v5409 = vsel %vm246, %v5328, 0
    %v5412 = vsel %vm246, %v5329, 0
    %v5415 = vsel %vm246, %v5330, 0
    %v5418 = vsel %vm246, %v5331, 0
    %v5421 = vsel %vm246, %v5332, 0
    %v5424 = vsel %vm246, %v5333, 0
    %v5427 = vsel %vm246, %v5334, 0
    %v5430 = vsel %vm246, %v5335, 0
    %v5433 = vsel %vm246, %v5336, 0
    %v5436 = vsel %vm246, %v5337, 0
    %v5439 = vsel %vm246, %v5338, 0
    %v5442 = vsel %vm246, %v5339, 0
    %v5445 = vsel %vm246, %v5340, 0
    %v5448 = vsel %vm246, %v5341, 0
    %v5451 = vsel %vm246, %v5342, 0
    %v5454 = vsel %vm246, %v5343, 0
    %v5457 = vsel %vm246, %v5344, 0
    %v5460 = vsel %vm246, %v5345, 0
    %v5463 = vsel %vm246, %v5346, 0
    %v5466 = vsel %vm246, %v5347, 0
    %v5469 = vsel %vm246, %v5348, 0
    %v5472 = vsel %vm246, %v5349, 0
    %v5475 = vsel %vm246, %v5350, 0
    %v5478 = vsel %vm246, %v5351, 0
    %v5481 = vsel %vm246, %v5352, 0
    %v5484 = vsel %vm246, %v5353, 0
    %v5487 = vsel %vm246, %v5354, 0
    %v5490 = vsel %vm246, %v5355, 0
    %v5493 = vsel %vm246, %v5356, 0
    %5495 = vmatprep.subr.mxu0 0.0
    %5496 = vmatpush1.msra.mxu0 %v5358
    %5497 = vmatprep.subr.mxu0 0.0
    %5498 = vmatpush1.msra.mxu0 %v5359
    %5499 = vmatprep.subr.mxu0 0.0
    %5500 = vmatpush1.msra.mxu0 %v5360
    %5501 = vmatprep.subr.mxu0 0.0
    %5502 = vmatpush1.msra.mxu0 %v5361
    %5503 = vmatprep.subr.mxu0 0.0
    %5504 = vmatpush1.msra.mxu0 %v5362
    %5505 = vmatprep.subr.mxu0 0.0
    %5506 = vmatpush1.msra.mxu0 %v5363
    %5507 = vmatprep.subr.mxu0 0.0
    %5508 = vmatpush1.msra.mxu0 %v5364
    %5509 = vmatprep.subr.mxu0 0.0
    %5510 = vmatpush1.msra.mxu0 %v5365
    %5511 = vmatprep.subr.mxu0 0.0
    %5512 = vmatpush1.msra.mxu0 0.0
    %5513 = vmatprep.subr.mxu0 0.0
    %5514 = vmatpush1.msra.mxu0 0.0
    %5515 = vmatprep.subr.mxu0 0.0
    %5516 = vmatpush1.msra.mxu0 0.0
    %5517 = vmatprep.subr.mxu0 0.0
    %5518 = vmatpush1.msra.mxu0 0.0
    %5519 = vmatprep.subr.mxu0 0.0
    %5520 = vmatpush1.msra.mxu0 0.0
    %5521 = vmatprep.subr.mxu0 0.0
    %5522 = vmatpush1.msra.mxu0 0.0
    %5523 = vmatprep.subr.mxu0 0.0
    %5524 = vmatpush1.msra.mxu0 0.0
    %5525 = vmatprep.subr.mxu0 0.0
    %5526 = vmatpush1.msra.mxu0 0.0
    %5527 = vmatprep.subr.mxu0 0.0
    %5528 = vmatpush1.msra.mxu0 0.0
    %5529 = vmatprep.subr.mxu0 0.0
    %5530 = vmatpush1.msra.mxu0 0.0
    %5531 = vmatprep.subr.mxu0 0.0
    %5532 = vmatpush1.msra.mxu0 0.0
    %5533 = vmatprep.subr.mxu0 0.0
    %5534 = vmatpush1.msra.mxu0 0.0
    %5535 = vmatprep.subr.mxu0 0.0
    %5536 = vmatpush1.msra.mxu0 0.0
    %5537 = vmatprep.subr.mxu0 0.0
    %5538 = vmatpush1.msra.mxu0 0.0
    %5539 = vmatprep.subr.mxu0 0.0
    %5540 = vmatpush1.msra.mxu0 0.0
    %5541 = vmatprep.subr.mxu0 0.0
    %5542 = vmatpush1.msra.mxu0 0.0
    %5543 = vmatprep.subr.mxu0 0.0
    %5544 = vmatpush1.msra.mxu0 0.0
    %5545 = vmatprep.subr.mxu0 0.0
    %5546 = vmatpush1.msra.mxu0 0.0
    %5547 = vmatprep.subr.mxu0 0.0
    %5548 = vmatpush1.msra.mxu0 0.0
    %5549 = vmatprep.subr.mxu0 0.0
    %5550 = vmatpush1.msra.mxu0 0.0
    %5551 = vmatprep.subr.mxu0 0.0
    %5552 = vmatpush1.msra.mxu0 0.0
    %5553 = vmatprep.subr.mxu0 0.0
    %5554 = vmatpush1.msra.mxu0 0.0
    %5555 = vmatprep.subr.mxu0 0.0
    %5556 = vmatpush1.msra.mxu0 0.0
    %5557 = vmatprep.subr.mxu0 0.0
    %5558 = vmatpush1.msra.mxu0 0.0
    %5559 = vmatprep.mubr.f32.mxu0 0.0
    %5560 = vmatmul.mubr.f32.gmra.mrb[0].mxu0 %v5367
    %v5561 = vpop.f32.mrb[0].mxu0
    %v5562 = vadd.f32 0.0, %v5561
    %v5563 = vpop.f32.mrb[0].mxu0
    %5564 = vmatprep.mubr.f32.mxu0 0.0
    %5565 = vmatmul.mubr.f32.gmra.mrb[0].mxu0 %v5370
    %v5566 = vpop.f32.mrb[0].mxu0
    %v5567 = vadd.f32 0.0, %v5566
    %v5568 = vpop.f32.mrb[0].mxu0
    %5569 = vmatprep.mubr.f32.mxu0 0.0
    %5570 = vmatmul.mubr.f32.gmra.mrb[0].mxu0 %v5373
    %v5571 = vpop.f32.mrb[0].mxu0
    %v5572 = vadd.f32 0.0, %v5571
    %v5573 = vpop.f32.mrb[0].mxu0
    %5574 = vmatprep.mubr.f32.mxu0 0.0
    %5575 = vmatmul.mubr.f32.gmra.mrb[0].mxu0 %v5376
    %v5576 = vpop.f32.mrb[0].mxu0
    %v5577 = vadd.f32 0.0, %v5576
    %v5578 = vpop.f32.mrb[0].mxu0
    %5579 = vmatprep.mubr.f32.mxu0 0.0
    %5580 = vmatmul.mubr.f32.gmra.mrb[0].mxu0 %v5379
    %v5581 = vpop.f32.mrb[0].mxu0
    %v5582 = vadd.f32 0.0, %v5581
    %v5583 = vpop.f32.mrb[0].mxu0
    %5584 = vmatprep.mubr.f32.mxu0 0.0
    %5585 = vmatmul.mubr.f32.gmra.mrb[0].mxu0 %v5382
    %v5586 = vpop.f32.mrb[0].mxu0
    %v5587 = vadd.f32 0.0, %v5586
    %v5588 = vpop.f32.mrb[0].mxu0
    %5589 = vmatprep.mubr.f32.mxu0 0.0
    %5590 = vmatmul.mubr.f32.gmra.mrb[0].mxu0 %v5385
    %v5591 = vpop.f32.mrb[0].mxu0
    %v5592 = vadd.f32 0.0, %v5591
    %v5593 = vpop.f32.mrb[0].mxu0
    %5594 = vmatprep.mubr.f32.mxu0 0.0
    %5595 = vmatmul.mubr.f32.gmra.mrb[0].mxu0 %v5388
    %v5596 = vpop.f32.mrb[0].mxu0
    %v5597 = vadd.f32 0.0, %v5596
    %v5598 = vpop.f32.mrb[0].mxu0
    %5599 = vmatprep.mubr.f32.mxu0 0.0
    %5600 = vmatmul.mubr.f32.gmra.mrb[0].mxu0 %v5391
    %v5601 = vpop.f32.mrb[0].mxu0
    %v5602 = vadd.f32 0.0, %v5601
    %v5603 = vpop.f32.mrb[0].mxu0
    %5604 = vmatprep.mubr.f32.mxu0 0.0
    %5605 = vmatmul.mubr.f32.gmra.mrb[0].mxu0 %v5394
    %v5606 = vpop.f32.mrb[0].mxu0
    %v5607 = vadd.f32 0.0, %v5606
    %v5608 = vpop.f32.mrb[0].mxu0
    %5609 = vmatprep.mubr.f32.mxu0 0.0
    %5610 = vmatmul.mubr.f32.gmra.mrb[0].mxu0 %v5397
    %v5611 = vpop.f32.mrb[0].mxu0
    %v5612 = vadd.f32 0.0, %v5611
    %v5613 = vpop.f32.mrb[0].mxu0
    %5614 = vmatprep.mubr.f32.mxu0 0.0
    %5615 = vmatmul.mubr.f32.gmra.mrb[0].mxu0 %v5400
    %v5616 = vpop.f32.mrb[0].mxu0
    %v5617 = vadd.f32 0.0, %v5616
    %v5618 = vpop.f32.mrb[0].mxu0
    %5619 = vmatprep.mubr.f32.mxu0 0.0
    %5620 = vmatmul.mubr.f32.gmra.mrb[0].mxu0 %v5403
    %v5621 = vpop.f32.mrb[0].mxu0
    %v5622 = vadd.f32 0.0, %v5621
    %v5623 = vpop.f32.mrb[0].mxu0
    %5624 = vmatprep.mubr.f32.mxu0 0.0
    %5625 = vmatmul.mubr.f32.gmra.mrb[0].mxu0 %v5406
    %v5626 = vpop.f32.mrb[0].mxu0
    %v5627 = vadd.f32 0.0, %v5626
    %v5628 = vpop.f32.mrb[0].mxu0
    %5629 = vmatprep.mubr.f32.mxu0 0.0
    %5630 = vmatmul.mubr.f32.gmra.mrb[0].mxu0 %v5409
    %v5631 = vpop.f32.mrb[0].mxu0
    %v5632 = vadd.f32 0.0, %v5631
    %v5633 = vpop.f32.mrb[0].mxu0
    %5634 = vmatprep.mubr.f32.mxu0 0.0
    %5635 = vmatmul.mubr.f32.gmra.mrb[0].mxu0 %v5412
    %v5636 = vpop.f32.mrb[0].mxu0
    %v5637 = vadd.f32 0.0, %v5636
    %v5638 = vpop.f32.mrb[0].mxu0
    %5639 = vmatprep.mubr.f32.mxu0 0.0
    %5640 = vmatmul.mubr.f32.gmra.mrb[0].mxu0 %v5415
    %v5641 = vpop.f32.mrb[0].mxu0
    %v5642 = vadd.f32 0.0, %v5641
    %v5643 = vpop.f32.mrb[0].mxu0
    %5644 = vmatprep.mubr.f32.mxu0 0.0
    %5645 = vmatmul.mubr.f32.gmra.mrb[0].mxu0 %v5418
    %v5646 = vpop.f32.mrb[0].mxu0
    %v5647 = vadd.f32 0.0, %v5646
    %v5648 = vpop.f32.mrb[0].mxu0
    %5649 = vmatprep.mubr.f32.mxu0 0.0
    %5650 = vmatmul.mubr.f32.gmra.mrb[0].mxu0 %v5421
    %v5651 = vpop.f32.mrb[0].mxu0
    %v5652 = vadd.f32 0.0, %v5651
    %v5653 = vpop.f32.mrb[0].mxu0
    %5654 = vmatprep.mubr.f32.mxu0 0.0
    %5655 = vmatmul.mubr.f32.gmra.mrb[0].mxu0 %v5424
    %v5656 = vpop.f32.mrb[0].mxu0
    %v5657 = vadd.f32 0.0, %v5656
    %v5658 = vpop.f32.mrb[0].mxu0
    %5659 = vmatprep.mubr.f32.mxu0 0.0
    %5660 = vmatmul.mubr.f32.gmra.mrb[0].mxu0 %v5427
    %v5661 = vpop.f32.mrb[0].mxu0
    %v5662 = vadd.f32 0.0, %v5661
    %v5663 = vpop.f32.mrb[0].mxu0
    %5664 = vmatprep.mubr.f32.mxu0 0.0
    %5665 = vmatmul.mubr.f32.gmra.mrb[0].mxu0 %v5430
    %v5666 = vpop.f32.mrb[0].mxu0
    %v5667 = vadd.f32 0.0, %v5666
    %v5668 = vpop.f32.mrb[0].mxu0
    %5669 = vmatprep.mubr.f32.mxu0 0.0
    %5670 = vmatmul.mubr.f32.gmra.mrb[0].mxu0 %v5433
    %v5671 = vpop.f32.mrb[0].mxu0
    %v5672 = vadd.f32 0.0, %v5671
    %v5673 = vpop.f32.mrb[0].mxu0
    %5674 = vmatprep.mubr.f32.mxu0 0.0
    %5675 = vmatmul.mubr.f32.gmra.mrb[0].mxu0 %v5436
    %v5676 = vpop.f32.mrb[0].mxu0
    %v5677 = vadd.f32 0.0, %v5676
    %v5678 = vpop.f32.mrb[0].mxu0
    %5679 = vmatprep.mubr.f32.mxu0 0.0
    %5680 = vmatmul.mubr.f32.gmra.mrb[0].mxu0 %v5439
    %v5681 = vpop.f32.mrb[0].mxu0
    %v5682 = vadd.f32 0.0, %v5681
    %v5683 = vpop.f32.mrb[0].mxu0
    %5684 = vmatprep.mubr.f32.mxu0 0.0
    %5685 = vmatmul.mubr.f32.gmra.mrb[0].mxu0 %v5442
    %v5686 = vpop.f32.mrb[0].mxu0
    %v5687 = vadd.f32 0.0, %v5686
    %v5688 = vpop.f32.mrb[0].mxu0
    %5689 = vmatprep.mubr.f32.mxu0 0.0
    %5690 = vmatmul.mubr.f32.gmra.mrb[0].mxu0 %v5445
    %v5691 = vpop.f32.mrb[0].mxu0
    %v5692 = vadd.f32 0.0, %v5691
    %v5693 = vpop.f32.mrb[0].mxu0
    %5694 = vmatprep.mubr.f32.mxu0 0.0
    %5695 = vmatmul.mubr.f32.gmra.mrb[0].mxu0 %v5448
    %v5696 = vpop.f32.mrb[0].mxu0
    %v5697 = vadd.f32 0.0, %v5696
    %v5698 = vpop.f32.mrb[0].mxu0
    %5699 = vmatprep.mubr.f32.mxu0 0.0
    %5700 = vmatmul.mubr.f32.gmra.mrb[0].mxu0 %v5451
    %v5701 = vpop.f32.mrb[0].mxu0
    %v5702 = vadd.f32 0.0, %v5701
    %v5703 = vpop.f32.mrb[0].mxu0
    %5704 = vmatprep.mubr.f32.mxu0 0.0
    %5705 = vmatmul.mubr.f32.gmra.mrb[0].mxu0 %v5454
    %v5706 = vpop.f32.mrb[0].mxu0
    %v5707 = vadd.f32 0.0, %v5706
    %v5708 = vpop.f32.mrb[0].mxu0
    %5709 = vmatprep.mubr.f32.mxu0 0.0
    %5710 = vmatmul.mubr.f32.gmra.mrb[0].mxu0 %v5457
    %v5711 = vpop.f32.mrb[0].mxu0
    %v5712 = vadd.f32 0.0, %v5711
    %v5713 = vpop.f32.mrb[0].mxu0
    %5714 = vmatprep.mubr.f32.mxu0 0.0
    %5715 = vmatmul.mubr.f32.gmra.mrb[0].mxu0 %v5460
    %v5716 = vpop.f32.mrb[0].mxu0
    %v5717 = vadd.f32 0.0, %v5716
    %v5718 = vpop.f32.mrb[0].mxu0
    %5719 = vmatprep.mubr.f32.mxu0 0.0
    %5720 = vmatmul.mubr.f32.gmra.mrb[0].mxu0 %v5463
    %v5721 = vpop.f32.mrb[0].mxu0
    %v5722 = vadd.f32 0.0, %v5721
    %v5723 = vpop.f32.mrb[0].mxu0
    %5724 = vmatprep.mubr.f32.mxu0 0.0
    %5725 = vmatmul.mubr.f32.gmra.mrb[0].mxu0 %v5466
    %v5726 = vpop.f32.mrb[0].mxu0
    %v5727 = vadd.f32 0.0, %v5726
    %v5728 = vpop.f32.mrb[0].mxu0
    %5729 = vmatprep.mubr.f32.mxu0 0.0
    %5730 = vmatmul.mubr.f32.gmra.mrb[0].mxu0 %v5469
    %v5731 = vpop.f32.mrb[0].mxu0
    %v5732 = vadd.f32 0.0, %v5731
    %v5733 = vpop.f32.mrb[0].mxu0
    %5734 = vmatprep.mubr.f32.mxu0 0.0
    %5735 = vmatmul.mubr.f32.gmra.mrb[0].mxu0 %v5472
    %v5736 = vpop.f32.mrb[0].mxu0
    %v5737 = vadd.f32 0.0, %v5736
    %v5738 = vpop.f32.mrb[0].mxu0
    %5739 = vmatprep.mubr.f32.mxu0 0.0
    %5740 = vmatmul.mubr.f32.gmra.mrb[0].mxu0 %v5475
    %v5741 = vpop.f32.mrb[0].mxu0
    %v5742 = vadd.f32 0.0, %v5741
    %v5743 = vpop.f32.mrb[0].mxu0
    %5744 = vmatprep.mubr.f32.mxu0 0.0
    %5745 = vmatmul.mubr.f32.gmra.mrb[0].mxu0 %v5478
    %v5746 = vpop.f32.mrb[0].mxu0
    %v5747 = vadd.f32 0.0, %v5746
    %v5748 = vpop.f32.mrb[0].mxu0
    %5749 = vmatprep.mubr.f32.mxu0 0.0
    %5750 = vmatmul.mubr.f32.gmra.mrb[0].mxu0 %v5481
    %v5751 = vpop.f32.mrb[0].mxu0
    %v5752 = vadd.f32 0.0, %v5751
    %v5753 = vpop.f32.mrb[0].mxu0
    %5754 = vmatprep.mubr.f32.mxu0 0.0
    %5755 = vmatmul.mubr.f32.gmra.mrb[0].mxu0 %v5484
    %v5756 = vpop.f32.mrb[0].mxu0
    %v5757 = vadd.f32 0.0, %v5756
    %v5758 = vpop.f32.mrb[0].mxu0
    %5759 = vmatprep.mubr.f32.mxu0 0.0
    %5760 = vmatmul.mubr.f32.gmra.mrb[0].mxu0 %v5487
    %v5761 = vpop.f32.mrb[0].mxu0
    %v5762 = vadd.f32 0.0, %v5761
    %v5763 = vpop.f32.mrb[0].mxu0
    %5764 = vmatprep.mubr.f32.mxu0 0.0
    %5765 = vmatmul.mubr.f32.gmra.mrb[0].mxu0 %v5490
    %v5766 = vpop.f32.mrb[0].mxu0
    %v5767 = vadd.f32 0.0, %v5766
    %v5768 = vpop.f32.mrb[0].mxu0
    %5769 = vmatprep.mubr.f32.mxu0 0.0
    %5770 = vmatmul.mubr.f32.gmra.mrb[0].mxu0 %v5493
    %v5771 = vpop.f32.mrb[0].mxu0
    %v5772 = vadd.f32 0.0, %v5771
    %v5773 = vpop.f32.mrb[0].mxu0
    %5774 = vdwg.mxu0
    %v5775 = vadd.f32 %v5101, %v5562
    %v5776 = vadd.f32 %v5106, %v5567
    %v5777 = vadd.f32 %v5111, %v5572
    %v5778 = vadd.f32 %v5116, %v5577
    %v5779 = vadd.f32 %v5121, %v5582
    %v5780 = vadd.f32 %v5126, %v5587
    %v5781 = vadd.f32 %v5131, %v5592
    %v5782 = vadd.f32 %v5136, %v5597
    %v5783 = vadd.f32 %v5141, %v5602
    %v5784 = vadd.f32 %v5146, %v5607
    %v5785 = vadd.f32 %v5151, %v5612
    %v5786 = vadd.f32 %v5156, %v5617
    %v5787 = vadd.f32 %v5161, %v5622
    %v5788 = vadd.f32 %v5166, %v5627
    %v5789 = vadd.f32 %v5171, %v5632
    %v5790 = vadd.f32 %v5176, %v5637
    %v5791 = vadd.f32 %v5181, %v5642
    %v5792 = vadd.f32 %v5186, %v5647
    %v5793 = vadd.f32 %v5191, %v5652
    %v5794 = vadd.f32 %v5196, %v5657
    %v5795 = vadd.f32 %v5201, %v5662
    %v5796 = vadd.f32 %v5206, %v5667
    %v5797 = vadd.f32 %v5211, %v5672
    %v5798 = vadd.f32 %v5216, %v5677
    %v5799 = vadd.f32 %v5221, %v5682
    %v5800 = vadd.f32 %v5226, %v5687
    %v5801 = vadd.f32 %v5231, %v5692
    %v5802 = vadd.f32 %v5236, %v5697
    %v5803 = vadd.f32 %v5241, %v5702
    %v5804 = vadd.f32 %v5246, %v5707
    %v5805 = vadd.f32 %v5251, %v5712
    %v5806 = vadd.f32 %v5256, %v5717
    %v5807 = vadd.f32 %v5261, %v5722
    %v5808 = vadd.f32 %v5266, %v5727
    %v5809 = vadd.f32 %v5271, %v5732
    %v5810 = vadd.f32 %v5276, %v5737
    %v5811 = vadd.f32 %v5281, %v5742
    %v5812 = vadd.f32 %v5286, %v5747
    %v5813 = vadd.f32 %v5291, %v5752
    %v5814 = vadd.f32 %v5296, %v5757
    %v5815 = vadd.f32 %v5301, %v5762
    %v5816 = vadd.f32 %v5306, %v5767
    %v5817 = vadd.f32 %v5311, %v5772
    %v5818 = vld [vmem:[#allocation5 + $0xe] sm:$0xff]
    %v5819 = vld [vmem:[#allocation5 + $0x16] sm:$0xff]
    %v5820 = vld [vmem:[#allocation5 + $0x1e] sm:$0xff]
    %v5821 = vld [vmem:[#allocation5 + $0x26] sm:$0xff]
    %v5822 = vld [vmem:[#allocation5 + $0x2e] sm:$0xff]
    %v5823 = vld [vmem:[#allocation5 + $0x36] sm:$0xff]
    %v5824 = vld [vmem:[#allocation5 + $0x3e] sm:$0xff]
    %v5825 = vld [vmem:[#allocation5 + $0x46] sm:$0xff]
    %v5826 = vld [vmem:[#allocation5 + $0x4e] sm:$0xff]
    %v5827 = vld [vmem:[#allocation5 + $0x56] sm:$0xff]
    %v5828 = vld [vmem:[#allocation5 + $0x5e] sm:$0xff]
    %v5829 = vld [vmem:[#allocation5 + $0x66] sm:$0xff]
    %v5830 = vld [vmem:[#allocation5 + $0x6e] sm:$0xff]
    %v5831 = vld [vmem:[#allocation5 + $0x76] sm:$0xff]
    %v5832 = vld [vmem:[#allocation5 + $0x7e] sm:$0xff]
    %v5833 = vld [vmem:[#allocation5 + $0x86] sm:$0xff]
    %v5834 = vld [vmem:[#allocation5 + $0x8e] sm:$0xff]
    %v5835 = vld [vmem:[#allocation5 + $0x96] sm:$0xff]
    %v5836 = vld [vmem:[#allocation5 + $0x9e] sm:$0xff]
    %v5837 = vld [vmem:[#allocation5 + $0xa6] sm:$0xff]
    %v5838 = vld [vmem:[#allocation5 + $0xae] sm:$0xff]
    %v5839 = vld [vmem:[#allocation5 + $0xb6] sm:$0xff]
    %v5840 = vld [vmem:[#allocation5 + $0xbe] sm:$0xff]
    %v5841 = vld [vmem:[#allocation5 + $0xc6] sm:$0xff]
    %v5842 = vld [vmem:[#allocation5 + $0xce] sm:$0xff]
    %v5843 = vld [vmem:[#allocation5 + $0xd6] sm:$0xff]
    %v5844 = vld [vmem:[#allocation5 + $0xde] sm:$0xff]
    %v5845 = vld [vmem:[#allocation5 + $0xe6] sm:$0xff]
    %v5846 = vld [vmem:[#allocation5 + $0xee] sm:$0xff]
    %v5847 = vld [vmem:[#allocation5 + $0xf6] sm:$0xff]
    %v5848 = vld [vmem:[#allocation5 + $0xfe] sm:$0xff]
    %v5849 = vld [vmem:[#allocation5 + $0x106] sm:$0xff]
    %v5850 = vld [vmem:[#allocation5 + $0x10e] sm:$0xff]
    %v5851 = vld [vmem:[#allocation5 + $0x116] sm:$0xff]
    %v5852 = vld [vmem:[#allocation5 + $0x11e] sm:$0xff]
    %v5853 = vld [vmem:[#allocation5 + $0x126] sm:$0xff]
    %v5854 = vld [vmem:[#allocation5 + $0x12e] sm:$0xff]
    %v5855 = vld [vmem:[#allocation5 + $0x136] sm:$0xff]
    %v5856 = vld [vmem:[#allocation5 + $0x13e] sm:$0xff]
    %v5857 = vld [vmem:[#allocation5 + $0x146] sm:$0xff]
    %v5858 = vld [vmem:[#allocation5 + $0x14e] sm:$0xff]
    %v5859 = vld [vmem:[#allocation5 + $0x156] sm:$0xff]
    %v5860 = vld [vmem:[#allocation5 + $0x15e] sm:$0x3]
    %s5861 = scalar_lea.vmem [#allocation14], 192
    %v5862 = vld [vmem:[%s5861] sm:$0xff]
    %v5863 = vld [vmem:[%s5861 + $0x8] sm:$0xff]
    %v5864 = vld [vmem:[%s5861 + $0x10] sm:$0xff]
    %v5865 = vld [vmem:[%s5861 + $0x18] sm:$0xff]
    %v5866 = vld [vmem:[%s5861 + $0x20] sm:$0xff]
    %v5867 = vld [vmem:[%s5861 + $0x28] sm:$0xff]
    %v5868 = vld [vmem:[%s5861 + $0x30] sm:$0xff]
    %v5869 = vld [vmem:[%s5861 + $0x38] sm:$0xff]
    %v5871 = vsel %vm246, %v5818, 0
    %v5874 = vsel %vm246, %v5819, 0
    %v5877 = vsel %vm246, %v5820, 0
    %v5880 = vsel %vm246, %v5821, 0
    %v5883 = vsel %vm246, %v5822, 0
    %v5886 = vsel %vm246, %v5823, 0
    %v5889 = vsel %vm246, %v5824, 0
    %v5892 = vsel %vm246, %v5825, 0
    %v5895 = vsel %vm246, %v5826, 0
    %v5898 = vsel %vm246, %v5827, 0
    %v5901 = vsel %vm246, %v5828, 0
    %v5904 = vsel %vm246, %v5829, 0
    %v5907 = vsel %vm246, %v5830, 0
    %v5910 = vsel %vm246, %v5831, 0
    %v5913 = vsel %vm246, %v5832, 0
    %v5916 = vsel %vm246, %v5833, 0
    %v5919 = vsel %vm246, %v5834, 0
    %v5922 = vsel %vm246, %v5835, 0
    %v5925 = vsel %vm246, %v5836, 0
    %v5928 = vsel %vm246, %v5837, 0
    %v5931 = vsel %vm246, %v5838, 0
    %v5934 = vsel %vm246, %v5839, 0
    %v5937 = vsel %vm246, %v5840, 0
    %v5940 = vsel %vm246, %v5841, 0
    %v5943 = vsel %vm246, %v5842, 0
    %v5946 = vsel %vm246, %v5843, 0
    %v5949 = vsel %vm246, %v5844, 0
    %v5952 = vsel %vm246, %v5845, 0
    %v5955 = vsel %vm246, %v5846, 0
    %v5958 = vsel %vm246, %v5847, 0
    %v5961 = vsel %vm246, %v5848, 0
    %v5964 = vsel %vm246, %v5849, 0
    %v5967 = vsel %vm246, %v5850, 0
    %v5970 = vsel %vm246, %v5851, 0
    %v5973 = vsel %vm246, %v5852, 0
    %v5976 = vsel %vm246, %v5853, 0
    %v5979 = vsel %vm246, %v5854, 0
    %v5982 = vsel %vm246, %v5855, 0
    %v5985 = vsel %vm246, %v5856, 0
    %v5988 = vsel %vm246, %v5857, 0
    %v5991 = vsel %vm246, %v5858, 0
    %v5994 = vsel %vm246, %v5859, 0
    %v5997 = vsel %vm246, %v5860, 0
    %5999 = vmatprep.subr.mxu0 0.0
    %6000 = vmatpush1.msra.mxu0 %v5862
    %6001 = vmatprep.subr.mxu0 0.0
    %6002 = vmatpush1.msra.mxu0 %v5863
    %6003 = vmatprep.subr.mxu0 0.0
    %6004 = vmatpush1.msra.mxu0 %v5864
    %6005 = vmatprep.subr.mxu0 0.0
    %6006 = vmatpush1.msra.mxu0 %v5865
    %6007 = vmatprep.subr.mxu0 0.0
    %6008 = vmatpush1.msra.mxu0 %v5866
    %6009 = vmatprep.subr.mxu0 0.0
    %6010 = vmatpush1.msra.mxu0 %v5867
    %6011 = vmatprep.subr.mxu0 0.0
    %6012 = vmatpush1.msra.mxu0 %v5868
    %6013 = vmatprep.subr.mxu0 0.0
    %6014 = vmatpush1.msra.mxu0 %v5869
    %6015 = vmatprep.subr.mxu0 0.0
    %6016 = vmatpush1.msra.mxu0 0.0
    %6017 = vmatprep.subr.mxu0 0.0
    %6018 = vmatpush1.msra.mxu0 0.0
    %6019 = vmatprep.subr.mxu0 0.0
    %6020 = vmatpush1.msra.mxu0 0.0
    %6021 = vmatprep.subr.mxu0 0.0
    %6022 = vmatpush1.msra.mxu0 0.0
    %6023 = vmatprep.subr.mxu0 0.0
    %6024 = vmatpush1.msra.mxu0 0.0
    %6025 = vmatprep.subr.mxu0 0.0
    %6026 = vmatpush1.msra.mxu0 0.0
    %6027 = vmatprep.subr.mxu0 0.0
    %6028 = vmatpush1.msra.mxu0 0.0
    %6029 = vmatprep.subr.mxu0 0.0
    %6030 = vmatpush1.msra.mxu0 0.0
    %6031 = vmatprep.subr.mxu0 0.0
    %6032 = vmatpush1.msra.mxu0 0.0
    %6033 = vmatprep.subr.mxu0 0.0
    %6034 = vmatpush1.msra.mxu0 0.0
    %6035 = vmatprep.subr.mxu0 0.0
    %6036 = vmatpush1.msra.mxu0 0.0
    %6037 = vmatprep.subr.mxu0 0.0
    %6038 = vmatpush1.msra.mxu0 0.0
    %6039 = vmatprep.subr.mxu0 0.0
    %6040 = vmatpush1.msra.mxu0 0.0
    %6041 = vmatprep.subr.mxu0 0.0
    %6042 = vmatpush1.msra.mxu0 0.0
    %6043 = vmatprep.subr.mxu0 0.0
    %6044 = vmatpush1.msra.mxu0 0.0
    %6045 = vmatprep.subr.mxu0 0.0
    %6046 = vmatpush1.msra.mxu0 0.0
    %6047 = vmatprep.subr.mxu0 0.0
    %6048 = vmatpush1.msra.mxu0 0.0
    %6049 = vmatprep.subr.mxu0 0.0
    %6050 = vmatpush1.msra.mxu0 0.0
    %6051 = vmatprep.subr.mxu0 0.0
    %6052 = vmatpush1.msra.mxu0 0.0
    %6053 = vmatprep.subr.mxu0 0.0
    %6054 = vmatpush1.msra.mxu0 0.0
    %6055 = vmatprep.subr.mxu0 0.0
    %6056 = vmatpush1.msra.mxu0 0.0
    %6057 = vmatprep.subr.mxu0 0.0
    %6058 = vmatpush1.msra.mxu0 0.0
    %6059 = vmatprep.subr.mxu0 0.0
    %6060 = vmatpush1.msra.mxu0 0.0
    %6061 = vmatprep.subr.mxu0 0.0
    %6062 = vmatpush1.msra.mxu0 0.0
    %6063 = vmatprep.mubr.f32.mxu0 0.0
    %6064 = vmatmul.mubr.f32.gmra.mrb[0].mxu0 %v5871
    %v6065 = vpop.f32.mrb[0].mxu0
    %v6066 = vadd.f32 0.0, %v6065
    %v6067 = vpop.f32.mrb[0].mxu0
    %6068 = vmatprep.mubr.f32.mxu0 0.0
    %6069 = vmatmul.mubr.f32.gmra.mrb[0].mxu0 %v5874
    %v6070 = vpop.f32.mrb[0].mxu0
    %v6071 = vadd.f32 0.0, %v6070
    %v6072 = vpop.f32.mrb[0].mxu0
    %6073 = vmatprep.mubr.f32.mxu0 0.0
    %6074 = vmatmul.mubr.f32.gmra.mrb[0].mxu0 %v5877
    %v6075 = vpop.f32.mrb[0].mxu0
    %v6076 = vadd.f32 0.0, %v6075
    %v6077 = vpop.f32.mrb[0].mxu0
    %6078 = vmatprep.mubr.f32.mxu0 0.0
    %6079 = vmatmul.mubr.f32.gmra.mrb[0].mxu0 %v5880
    %v6080 = vpop.f32.mrb[0].mxu0
    %v6081 = vadd.f32 0.0, %v6080
    %v6082 = vpop.f32.mrb[0].mxu0
    %6083 = vmatprep.mubr.f32.mxu0 0.0
    %6084 = vmatmul.mubr.f32.gmra.mrb[0].mxu0 %v5883
    %v6085 = vpop.f32.mrb[0].mxu0
    %v6086 = vadd.f32 0.0, %v6085
    %v6087 = vpop.f32.mrb[0].mxu0
    %6088 = vmatprep.mubr.f32.mxu0 0.0
    %6089 = vmatmul.mubr.f32.gmra.mrb[0].mxu0 %v5886
    %v6090 = vpop.f32.mrb[0].mxu0
    %v6091 = vadd.f32 0.0, %v6090
    %v6092 = vpop.f32.mrb[0].mxu0
    %6093 = vmatprep.mubr.f32.mxu0 0.0
    %6094 = vmatmul.mubr.f32.gmra.mrb[0].mxu0 %v5889
    %v6095 = vpop.f32.mrb[0].mxu0
    %v6096 = vadd.f32 0.0, %v6095
    %v6097 = vpop.f32.mrb[0].mxu0
    %6098 = vmatprep.mubr.f32.mxu0 0.0
    %6099 = vmatmul.mubr.f32.gmra.mrb[0].mxu0 %v5892
    %v6100 = vpop.f32.mrb[0].mxu0
    %v6101 = vadd.f32 0.0, %v6100
    %v6102 = vpop.f32.mrb[0].mxu0
    %6103 = vmatprep.mubr.f32.mxu0 0.0
    %6104 = vmatmul.mubr.f32.gmra.mrb[0].mxu0 %v5895
    %v6105 = vpop.f32.mrb[0].mxu0
    %v6106 = vadd.f32 0.0, %v6105
    %v6107 = vpop.f32.mrb[0].mxu0
    %6108 = vmatprep.mubr.f32.mxu0 0.0
    %6109 = vmatmul.mubr.f32.gmra.mrb[0].mxu0 %v5898
    %v6110 = vpop.f32.mrb[0].mxu0
    %v6111 = vadd.f32 0.0, %v6110
    %v6112 = vpop.f32.mrb[0].mxu0
    %6113 = vmatprep.mubr.f32.mxu0 0.0
    %6114 = vmatmul.mubr.f32.gmra.mrb[0].mxu0 %v5901
    %v6115 = vpop.f32.mrb[0].mxu0
    %v6116 = vadd.f32 0.0, %v6115
    %v6117 = vpop.f32.mrb[0].mxu0
    %6118 = vmatprep.mubr.f32.mxu0 0.0
    %6119 = vmatmul.mubr.f32.gmra.mrb[0].mxu0 %v5904
    %v6120 = vpop.f32.mrb[0].mxu0
    %v6121 = vadd.f32 0.0, %v6120
    %v6122 = vpop.f32.mrb[0].mxu0
    %6123 = vmatprep.mubr.f32.mxu0 0.0
    %6124 = vmatmul.mubr.f32.gmra.mrb[0].mxu0 %v5907
    %v6125 = vpop.f32.mrb[0].mxu0
    %v6126 = vadd.f32 0.0, %v6125
    %v6127 = vpop.f32.mrb[0].mxu0
    %6128 = vmatprep.mubr.f32.mxu0 0.0
    %6129 = vmatmul.mubr.f32.gmra.mrb[0].mxu0 %v5910
    %v6130 = vpop.f32.mrb[0].mxu0
    %v6131 = vadd.f32 0.0, %v6130
    %v6132 = vpop.f32.mrb[0].mxu0
    %6133 = vmatprep.mubr.f32.mxu0 0.0
    %6134 = vmatmul.mubr.f32.gmra.mrb[0].mxu0 %v5913
    %v6135 = vpop.f32.mrb[0].mxu0
    %v6136 = vadd.f32 0.0, %v6135
    %v6137 = vpop.f32.mrb[0].mxu0
    %6138 = vmatprep.mubr.f32.mxu0 0.0
    %6139 = vmatmul.mubr.f32.gmra.mrb[0].mxu0 %v5916
    %v6140 = vpop.f32.mrb[0].mxu0
    %v6141 = vadd.f32 0.0, %v6140
    %v6142 = vpop.f32.mrb[0].mxu0
    %6143 = vmatprep.mubr.f32.mxu0 0.0
    %6144 = vmatmul.mubr.f32.gmra.mrb[0].mxu0 %v5919
    %v6145 = vpop.f32.mrb[0].mxu0
    %v6146 = vadd.f32 0.0, %v6145
    %v6147 = vpop.f32.mrb[0].mxu0
    %6148 = vmatprep.mubr.f32.mxu0 0.0
    %6149 = vmatmul.mubr.f32.gmra.mrb[0].mxu0 %v5922
    %v6150 = vpop.f32.mrb[0].mxu0
    %v6151 = vadd.f32 0.0, %v6150
    %v6152 = vpop.f32.mrb[0].mxu0
    %6153 = vmatprep.mubr.f32.mxu0 0.0
    %6154 = vmatmul.mubr.f32.gmra.mrb[0].mxu0 %v5925
    %v6155 = vpop.f32.mrb[0].mxu0
    %v6156 = vadd.f32 0.0, %v6155
    %v6157 = vpop.f32.mrb[0].mxu0
    %6158 = vmatprep.mubr.f32.mxu0 0.0
    %6159 = vmatmul.mubr.f32.gmra.mrb[0].mxu0 %v5928
    %v6160 = vpop.f32.mrb[0].mxu0
    %v6161 = vadd.f32 0.0, %v6160
    %v6162 = vpop.f32.mrb[0].mxu0
    %6163 = vmatprep.mubr.f32.mxu0 0.0
    %6164 = vmatmul.mubr.f32.gmra.mrb[0].mxu0 %v5931
    %v6165 = vpop.f32.mrb[0].mxu0
    %v6166 = vadd.f32 0.0, %v6165
    %v6167 = vpop.f32.mrb[0].mxu0
    %6168 = vmatprep.mubr.f32.mxu0 0.0
    %6169 = vmatmul.mubr.f32.gmra.mrb[0].mxu0 %v5934
    %v6170 = vpop.f32.mrb[0].mxu0
    %v6171 = vadd.f32 0.0, %v6170
    %v6172 = vpop.f32.mrb[0].mxu0
    %6173 = vmatprep.mubr.f32.mxu0 0.0
    %6174 = vmatmul.mubr.f32.gmra.mrb[0].mxu0 %v5937
    %v6175 = vpop.f32.mrb[0].mxu0
    %v6176 = vadd.f32 0.0, %v6175
    %v6177 = vpop.f32.mrb[0].mxu0
    %6178 = vmatprep.mubr.f32.mxu0 0.0
    %6179 = vmatmul.mubr.f32.gmra.mrb[0].mxu0 %v5940
    %v6180 = vpop.f32.mrb[0].mxu0
    %v6181 = vadd.f32 0.0, %v6180
    %v6182 = vpop.f32.mrb[0].mxu0
    %6183 = vmatprep.mubr.f32.mxu0 0.0
    %6184 = vmatmul.mubr.f32.gmra.mrb[0].mxu0 %v5943
    %v6185 = vpop.f32.mrb[0].mxu0
    %v6186 = vadd.f32 0.0, %v6185
    %v6187 = vpop.f32.mrb[0].mxu0
    %6188 = vmatprep.mubr.f32.mxu0 0.0
    %6189 = vmatmul.mubr.f32.gmra.mrb[0].mxu0 %v5946
    %v6190 = vpop.f32.mrb[0].mxu0
    %v6191 = vadd.f32 0.0, %v6190
    %v6192 = vpop.f32.mrb[0].mxu0
    %6193 = vmatprep.mubr.f32.mxu0 0.0
    %6194 = vmatmul.mubr.f32.gmra.mrb[0].mxu0 %v5949
    %v6195 = vpop.f32.mrb[0].mxu0
    %v6196 = vadd.f32 0.0, %v6195
    %v6197 = vpop.f32.mrb[0].mxu0
    %6198 = vmatprep.mubr.f32.mxu0 0.0
    %6199 = vmatmul.mubr.f32.gmra.mrb[0].mxu0 %v5952
    %v6200 = vpop.f32.mrb[0].mxu0
    %v6201 = vadd.f32 0.0, %v6200
    %v6202 = vpop.f32.mrb[0].mxu0
    %6203 = vmatprep.mubr.f32.mxu0 0.0
    %6204 = vmatmul.mubr.f32.gmra.mrb[0].mxu0 %v5955
    %v6205 = vpop.f32.mrb[0].mxu0
    %v6206 = vadd.f32 0.0, %v6205
    %v6207 = vpop.f32.mrb[0].mxu0
    %6208 = vmatprep.mubr.f32.mxu0 0.0
    %6209 = vmatmul.mubr.f32.gmra.mrb[0].mxu0 %v5958
    %v6210 = vpop.f32.mrb[0].mxu0
    %v6211 = vadd.f32 0.0, %v6210
    %v6212 = vpop.f32.mrb[0].mxu0
    %6213 = vmatprep.mubr.f32.mxu0 0.0
    %6214 = vmatmul.mubr.f32.gmra.mrb[0].mxu0 %v5961
    %v6215 = vpop.f32.mrb[0].mxu0
    %v6216 = vadd.f32 0.0, %v6215
    %v6217 = vpop.f32.mrb[0].mxu0
    %6218 = vmatprep.mubr.f32.mxu0 0.0
    %6219 = vmatmul.mubr.f32.gmra.mrb[0].mxu0 %v5964
    %v6220 = vpop.f32.mrb[0].mxu0
    %v6221 = vadd.f32 0.0, %v6220
    %v6222 = vpop.f32.mrb[0].mxu0
    %6223 = vmatprep.mubr.f32.mxu0 0.0
    %6224 = vmatmul.mubr.f32.gmra.mrb[0].mxu0 %v5967
    %v6225 = vpop.f32.mrb[0].mxu0
    %v6226 = vadd.f32 0.0, %v6225
    %v6227 = vpop.f32.mrb[0].mxu0
    %6228 = vmatprep.mubr.f32.mxu0 0.0
    %6229 = vmatmul.mubr.f32.gmra.mrb[0].mxu0 %v5970
    %v6230 = vpop.f32.mrb[0].mxu0
    %v6231 = vadd.f32 0.0, %v6230
    %v6232 = vpop.f32.mrb[0].mxu0
    %6233 = vmatprep.mubr.f32.mxu0 0.0
    %6234 = vmatmul.mubr.f32.gmra.mrb[0].mxu0 %v5973
    %v6235 = vpop.f32.mrb[0].mxu0
    %v6236 = vadd.f32 0.0, %v6235
    %v6237 = vpop.f32.mrb[0].mxu0
    %6238 = vmatprep.mubr.f32.mxu0 0.0
    %6239 = vmatmul.mubr.f32.gmra.mrb[0].mxu0 %v5976
    %v6240 = vpop.f32.mrb[0].mxu0
    %v6241 = vadd.f32 0.0, %v6240
    %v6242 = vpop.f32.mrb[0].mxu0
    %6243 = vmatprep.mubr.f32.mxu0 0.0
    %6244 = vmatmul.mubr.f32.gmra.mrb[0].mxu0 %v5979
    %v6245 = vpop.f32.mrb[0].mxu0
    %v6246 = vadd.f32 0.0, %v6245
    %v6247 = vpop.f32.mrb[0].mxu0
    %6248 = vmatprep.mubr.f32.mxu0 0.0
    %6249 = vmatmul.mubr.f32.gmra.mrb[0].mxu0 %v5982
    %v6250 = vpop.f32.mrb[0].mxu0
    %v6251 = vadd.f32 0.0, %v6250
    %v6252 = vpop.f32.mrb[0].mxu0
    %6253 = vmatprep.mubr.f32.mxu0 0.0
    %6254 = vmatmul.mubr.f32.gmra.mrb[0].mxu0 %v5985
    %v6255 = vpop.f32.mrb[0].mxu0
    %v6256 = vadd.f32 0.0, %v6255
    %v6257 = vpop.f32.mrb[0].mxu0
    %6258 = vmatprep.mubr.f32.mxu0 0.0
    %6259 = vmatmul.mubr.f32.gmra.mrb[0].mxu0 %v5988
    %v6260 = vpop.f32.mrb[0].mxu0
    %v6261 = vadd.f32 0.0, %v6260
    %v6262 = vpop.f32.mrb[0].mxu0
    %6263 = vmatprep.mubr.f32.mxu0 0.0
    %6264 = vmatmul.mubr.f32.gmra.mrb[0].mxu0 %v5991
    %v6265 = vpop.f32.mrb[0].mxu0
    %v6266 = vadd.f32 0.0, %v6265
    %v6267 = vpop.f32.mrb[0].mxu0
    %6268 = vmatprep.mubr.f32.mxu0 0.0
    %6269 = vmatmul.mubr.f32.gmra.mrb[0].mxu0 %v5994
    %v6270 = vpop.f32.mrb[0].mxu0
    %v6271 = vadd.f32 0.0, %v6270
    %v6272 = vpop.f32.mrb[0].mxu0
    %6273 = vmatprep.mubr.f32.mxu0 0.0
    %6274 = vmatmul.mubr.f32.gmra.mrb[0].mxu0 %v5997
    %v6275 = vpop.f32.mrb[0].mxu0
    %v6276 = vadd.f32 0.0, %v6275
    %v6277 = vpop.f32.mrb[0].mxu0
    %6278 = vdwg.mxu0
    %v6279 = vadd.f32 %v5775, %v6066
    %v6280 = vadd.f32 %v5776, %v6071
    %v6281 = vadd.f32 %v5777, %v6076
    %v6282 = vadd.f32 %v5778, %v6081
    %v6283 = vadd.f32 %v5779, %v6086
    %v6284 = vadd.f32 %v5780, %v6091
    %v6285 = vadd.f32 %v5781, %v6096
    %v6286 = vadd.f32 %v5782, %v6101
    %v6287 = vadd.f32 %v5783, %v6106
    %v6288 = vadd.f32 %v5784, %v6111
    %v6289 = vadd.f32 %v5785, %v6116
    %v6290 = vadd.f32 %v5786, %v6121
    %v6291 = vadd.f32 %v5787, %v6126
    %v6292 = vadd.f32 %v5788, %v6131
    %v6293 = vadd.f32 %v5789, %v6136
    %v6294 = vadd.f32 %v5790, %v6141
    %v6295 = vadd.f32 %v5791, %v6146
    %v6296 = vadd.f32 %v5792, %v6151
    %v6297 = vadd.f32 %v5793, %v6156
    %v6298 = vadd.f32 %v5794, %v6161
    %v6299 = vadd.f32 %v5795, %v6166
    %v6300 = vadd.f32 %v5796, %v6171
    %v6301 = vadd.f32 %v5797, %v6176
    %v6302 = vadd.f32 %v5798, %v6181
    %v6303 = vadd.f32 %v5799, %v6186
    %v6304 = vadd.f32 %v5800, %v6191
    %v6305 = vadd.f32 %v5801, %v6196
    %v6306 = vadd.f32 %v5802, %v6201
    %v6307 = vadd.f32 %v5803, %v6206
    %v6308 = vadd.f32 %v5804, %v6211
    %v6309 = vadd.f32 %v5805, %v6216
    %v6310 = vadd.f32 %v5806, %v6221
    %v6311 = vadd.f32 %v5807, %v6226
    %v6312 = vadd.f32 %v5808, %v6231
    %v6313 = vadd.f32 %v5809, %v6236
    %v6314 = vadd.f32 %v5810, %v6241
    %v6315 = vadd.f32 %v5811, %v6246
    %v6316 = vadd.f32 %v5812, %v6251
    %v6317 = vadd.f32 %v5813, %v6256
    %v6318 = vadd.f32 %v5814, %v6261
    %v6319 = vadd.f32 %v5815, %v6266
    %v6320 = vadd.f32 %v5816, %v6271
    %v6321 = vadd.f32 %v5817, %v6276
    %v6322 = vld [vmem:[#allocation16] sm:$0x1]
    %v6324 = vlaneseq
    %v6325 = vshrl.u32 %v6324, 7
    %v6326 = vsub.s32 0, %v6325
    %v6327 = vrot.slane %v6322, %v6326
    %v6329 = vadd.f32 %v6279, %v6327
    %v6330 = vadd.f32 %v6280, %v6327
    %v6331 = vadd.f32 %v6281, %v6327
    %v6332 = vadd.f32 %v6282, %v6327
    %v6333 = vadd.f32 %v6283, %v6327
    %v6334 = vadd.f32 %v6284, %v6327
    %v6335 = vadd.f32 %v6285, %v6327
    %v6336 = vadd.f32 %v6286, %v6327
    %v6337 = vadd.f32 %v6287, %v6327
    %v6338 = vadd.f32 %v6288, %v6327
    %v6339 = vadd.f32 %v6289, %v6327
    %v6340 = vadd.f32 %v6290, %v6327
    %v6341 = vadd.f32 %v6291, %v6327
    %v6342 = vadd.f32 %v6292, %v6327
    %v6343 = vadd.f32 %v6293, %v6327
    %v6344 = vadd.f32 %v6294, %v6327
    %v6345 = vadd.f32 %v6295, %v6327
    %v6346 = vadd.f32 %v6296, %v6327
    %v6347 = vadd.f32 %v6297, %v6327
    %v6348 = vadd.f32 %v6298, %v6327
    %v6349 = vadd.f32 %v6299, %v6327
    %v6350 = vadd.f32 %v6300, %v6327
    %v6351 = vadd.f32 %v6301, %v6327
    %v6352 = vadd.f32 %v6302, %v6327
    %v6353 = vadd.f32 %v6303, %v6327
    %v6354 = vadd.f32 %v6304, %v6327
    %v6355 = vadd.f32 %v6305, %v6327
    %v6356 = vadd.f32 %v6306, %v6327
    %v6357 = vadd.f32 %v6307, %v6327
    %v6358 = vadd.f32 %v6308, %v6327
    %v6359 = vadd.f32 %v6309, %v6327
    %v6360 = vadd.f32 %v6310, %v6327
    %v6361 = vadd.f32 %v6311, %v6327
    %v6362 = vadd.f32 %v6312, %v6327
    %v6363 = vadd.f32 %v6313, %v6327
    %v6364 = vadd.f32 %v6314, %v6327
    %v6365 = vadd.f32 %v6315, %v6327
    %v6366 = vadd.f32 %v6316, %v6327
    %v6367 = vadd.f32 %v6317, %v6327
    %v6368 = vadd.f32 %v6318, %v6327
    %v6369 = vadd.f32 %v6319, %v6327
    %v6370 = vadd.f32 %v6320, %v6327
    %v6371 = vadd.f32 %v6321, %v6327
    %v6372 = vmax.f32 %v6329, 0.0
    %v6373 = vmax.f32 %v6330, 0.0
    %v6374 = vmax.f32 %v6331, 0.0
    %v6375 = vmax.f32 %v6332, 0.0
    %v6376 = vmax.f32 %v6333, 0.0
    %v6377 = vmax.f32 %v6334, 0.0
    %v6378 = vmax.f32 %v6335, 0.0
    %v6379 = vmax.f32 %v6336, 0.0
    %v6380 = vmax.f32 %v6337, 0.0
    %v6381 = vmax.f32 %v6338, 0.0
    %v6382 = vmax.f32 %v6339, 0.0
    %v6383 = vmax.f32 %v6340, 0.0
    %v6384 = vmax.f32 %v6341, 0.0
    %v6385 = vmax.f32 %v6342, 0.0
    %v6386 = vmax.f32 %v6343, 0.0
    %v6387 = vmax.f32 %v6344, 0.0
    %v6388 = vmax.f32 %v6345, 0.0
    %v6389 = vmax.f32 %v6346, 0.0
    %v6390 = vmax.f32 %v6347, 0.0
    %v6391 = vmax.f32 %v6348, 0.0
    %v6392 = vmax.f32 %v6349, 0.0
    %v6393 = vmax.f32 %v6350, 0.0
    %v6394 = vmax.f32 %v6351, 0.0
    %v6395 = vmax.f32 %v6352, 0.0
    %v6396 = vmax.f32 %v6353, 0.0
    %v6397 = vmax.f32 %v6354, 0.0
    %v6398 = vmax.f32 %v6355, 0.0
    %v6399 = vmax.f32 %v6356, 0.0
    %v6400 = vmax.f32 %v6357, 0.0
    %v6401 = vmax.f32 %v6358, 0.0
    %v6402 = vmax.f32 %v6359, 0.0
    %v6403 = vmax.f32 %v6360, 0.0
    %v6404 = vmax.f32 %v6361, 0.0
    %v6405 = vmax.f32 %v6362, 0.0
    %v6406 = vmax.f32 %v6363, 0.0
    %v6407 = vmax.f32 %v6364, 0.0
    %v6408 = vmax.f32 %v6365, 0.0
    %v6409 = vmax.f32 %v6366, 0.0
    %v6410 = vmax.f32 %v6367, 0.0
    %v6411 = vmax.f32 %v6368, 0.0
    %v6412 = vmax.f32 %v6369, 0.0
    %v6413 = vmax.f32 %v6370, 0.0
    %v6414 = vmax.f32 %v6371, 0.0
    %6415 = vst.msk [vmem:[#allocation6] sm:$0xff] %vm246, %v6372
    %6416 = vst.msk [vmem:[#allocation6 + $0x8] sm:$0xff] %vm246, %v6373
    %6417 = vst.msk [vmem:[#allocation6 + $0x10] sm:$0xff] %vm246, %v6374
    %6418 = vst.msk [vmem:[#allocation6 + $0x18] sm:$0xff] %vm246, %v6375
    %6419 = vst.msk [vmem:[#allocation6 + $0x20] sm:$0xff] %vm246, %v6376
    %6420 = vst.msk [vmem:[#allocation6 + $0x28] sm:$0xff] %vm246, %v6377
    %6421 = vst.msk [vmem:[#allocation6 + $0x30] sm:$0xff] %vm246, %v6378
    %6422 = vst.msk [vmem:[#allocation6 + $0x38] sm:$0xff] %vm246, %v6379
    %6423 = vst.msk [vmem:[#allocation6 + $0x40] sm:$0xff] %vm246, %v6380
    %6424 = vst.msk [vmem:[#allocation6 + $0x48] sm:$0xff] %vm246, %v6381
    %6425 = vst.msk [vmem:[#allocation6 + $0x50] sm:$0xff] %vm246, %v6382
    %6426 = vst.msk [vmem:[#allocation6 + $0x58] sm:$0xff] %vm246, %v6383
    %6427 = vst.msk [vmem:[#allocation6 + $0x60] sm:$0xff] %vm246, %v6384
    %6428 = vst.msk [vmem:[#allocation6 + $0x68] sm:$0xff] %vm246, %v6385
    %6429 = vst.msk [vmem:[#allocation6 + $0x70] sm:$0xff] %vm246, %v6386
    %6430 = vst.msk [vmem:[#allocation6 + $0x78] sm:$0xff] %vm246, %v6387
    %6431 = vst.msk [vmem:[#allocation6 + $0x80] sm:$0xff] %vm246, %v6388
    %6432 = vst.msk [vmem:[#allocation6 + $0x88] sm:$0xff] %vm246, %v6389
    %6433 = vst.msk [vmem:[#allocation6 + $0x90] sm:$0xff] %vm246, %v6390
    %6434 = vst.msk [vmem:[#allocation6 + $0x98] sm:$0xff] %vm246, %v6391
    %6435 = vst.msk [vmem:[#allocation6 + $0xa0] sm:$0xff] %vm246, %v6392
    %6436 = vst.msk [vmem:[#allocation6 + $0xa8] sm:$0xff] %vm246, %v6393
    %6437 = vst.msk [vmem:[#allocation6 + $0xb0] sm:$0xff] %vm246, %v6394
    %6438 = vst.msk [vmem:[#allocation6 + $0xb8] sm:$0xff] %vm246, %v6395
    %6439 = vst.msk [vmem:[#allocation6 + $0xc0] sm:$0xff] %vm246, %v6396
    %6440 = vst.msk [vmem:[#allocation6 + $0xc8] sm:$0xff] %vm246, %v6397
    %6441 = vst.msk [vmem:[#allocation6 + $0xd0] sm:$0xff] %vm246, %v6398
    %6442 = vst.msk [vmem:[#allocation6 + $0xd8] sm:$0xff] %vm246, %v6399
    %6443 = vst.msk [vmem:[#allocation6 + $0xe0] sm:$0xff] %vm246, %v6400
    %6444 = vst.msk [vmem:[#allocation6 + $0xe8] sm:$0xff] %vm246, %v6401
    %6445 = vst.msk [vmem:[#allocation6 + $0xf0] sm:$0xff] %vm246, %v6402
    %6446 = vst.msk [vmem:[#allocation6 + $0xf8] sm:$0xff] %vm246, %v6403
    %6447 = vst.msk [vmem:[#allocation6 + $0x100] sm:$0xff] %vm246, %v6404
    %6448 = vst.msk [vmem:[#allocation6 + $0x108] sm:$0xff] %vm246, %v6405
    %6449 = vst.msk [vmem:[#allocation6 + $0x110] sm:$0xff] %vm246, %v6406
    %6450 = vst.msk [vmem:[#allocation6 + $0x118] sm:$0xff] %vm246, %v6407
    %6451 = vst.msk [vmem:[#allocation6 + $0x120] sm:$0xff] %vm246, %v6408
    %6452 = vst.msk [vmem:[#allocation6 + $0x128] sm:$0xff] %vm246, %v6409
    %6453 = vst.msk [vmem:[#allocation6 + $0x130] sm:$0xff] %vm246, %v6410
    %6454 = vst.msk [vmem:[#allocation6 + $0x138] sm:$0xff] %vm246, %v6411
    %6455 = vst.msk [vmem:[#allocation6 + $0x140] sm:$0xff] %vm246, %v6412
    %6456 = vst.msk [vmem:[#allocation6 + $0x148] sm:$0xff] %vm246, %v6413
    %6457 = vst.msk [vmem:[#allocation6 + $0x150] sm:$0x3] %vm4391, %v6414
    %v6458 = vld [vmem:[#allocation6] sm:$0x1]
    %v6459 = vld [vmem:[#allocation6 + $0x1] sm:$0x1]
    %6461 = vrot.lane.b32.xlu0 %v6459, 64
    %v6462 = vpop.permute.xlu0 %6461
    %v6464 = vsel %vm246, %v6458, %v6462
    %6465 = vst [vmem:[#allocation7] sm:$0x1] %v6464
    %v6466 = vld [vmem:[#allocation6 + $0x2] sm:$0x1]
    %v6467 = vld [vmem:[#allocation6 + $0x3] sm:$0x1]
    %6469 = vrot.lane.b32.xlu0 %v6467, 64
    %v6470 = vpop.permute.xlu0 %6469
    %v6472 = vsel %vm246, %v6466, %v6470
    %6473 = vst [vmem:[#allocation7 + $0x2] sm:$0x1] %v6472
    %v6474 = vld [vmem:[#allocation6 + $0x4] sm:$0x1]
    %v6475 = vld [vmem:[#allocation6 + $0x5] sm:$0x1]
    %6477 = vrot.lane.b32.xlu0 %v6475, 64
    %v6478 = vpop.permute.xlu0 %6477
    %v6480 = vsel %vm246, %v6474, %v6478
    %6481 = vst [vmem:[#allocation7 + $0x4] sm:$0x1] %v6480
    %v6482 = vld [vmem:[#allocation6 + $0x6] sm:$0x1]
    %v6483 = vld [vmem:[#allocation6 + $0x7] sm:$0x1]
    %6485 = vrot.lane.b32.xlu0 %v6483, 64
    %v6486 = vpop.permute.xlu0 %6485
    %v6488 = vsel %vm246, %v6482, %v6486
    %6489 = vst [vmem:[#allocation7 + $0x6] sm:$0x1] %v6488
    %v6490 = vld [vmem:[#allocation6 + $0x8] sm:$0x1]
    %v6491 = vld [vmem:[#allocation6 + $0x9] sm:$0x1]
    %6493 = vrot.lane.b32.xlu0 %v6491, 64
    %v6494 = vpop.permute.xlu0 %6493
    %v6496 = vsel %vm246, %v6490, %v6494
    %6497 = vst [vmem:[#allocation7 + $0x8] sm:$0x1] %v6496
    %v6498 = vld [vmem:[#allocation6 + $0xd] sm:$0x1]
    %v6499 = vld [vmem:[#allocation6 + $0xe] sm:$0x1]
    %6501 = vrot.lane.b32.xlu0 %v6499, 64
    %v6502 = vpop.permute.xlu0 %6501
    %v6504 = vsel %vm246, %v6498, %v6502
    %6505 = vst [vmem:[#allocation7 + $0xa] sm:$0x1] %v6504
    %v6506 = vld [vmem:[#allocation6 + $0xf] sm:$0x1]
    %v6507 = vld [vmem:[#allocation6 + $0x10] sm:$0x1]
    %6509 = vrot.lane.b32.xlu0 %v6507, 64
    %v6510 = vpop.permute.xlu0 %6509
    %v6512 = vsel %vm246, %v6506, %v6510
    %6513 = vst [vmem:[#allocation7 + $0xc] sm:$0x1] %v6512
    %v6514 = vld [vmem:[#allocation6 + $0x11] sm:$0x1]
    %v6515 = vld [vmem:[#allocation6 + $0x12] sm:$0x1]
    %6517 = vrot.lane.b32.xlu0 %v6515, 64
    %v6518 = vpop.permute.xlu0 %6517
    %v6520 = vsel %vm246, %v6514, %v6518
    %6521 = vst [vmem:[#allocation7 + $0xe] sm:$0x1] %v6520
    %v6522 = vld [vmem:[#allocation6 + $0x13] sm:$0x1]
    %v6523 = vld [vmem:[#allocation6 + $0x14] sm:$0x1]
    %6525 = vrot.lane.b32.xlu0 %v6523, 64
    %v6526 = vpop.permute.xlu0 %6525
    %v6528 = vsel %vm246, %v6522, %v6526
    %6529 = vst [vmem:[#allocation7 + $0x10] sm:$0x1] %v6528
    %v6530 = vld [vmem:[#allocation6 + $0x15] sm:$0x1]
    %v6531 = vld [vmem:[#allocation6 + $0x16] sm:$0x1]
    %6533 = vrot.lane.b32.xlu0 %v6531, 64
    %v6534 = vpop.permute.xlu0 %6533
    %v6536 = vsel %vm246, %v6530, %v6534
    %6537 = vst [vmem:[#allocation7 + $0x12] sm:$0x1] %v6536
    %v6538 = vld [vmem:[#allocation6 + $0x1a] sm:$0x1]
    %v6539 = vld [vmem:[#allocation6 + $0x1b] sm:$0x1]
    %6541 = vrot.lane.b32.xlu0 %v6539, 64
    %v6542 = vpop.permute.xlu0 %6541
    %v6544 = vsel %vm246, %v6538, %v6542
    %6545 = vst [vmem:[#allocation7 + $0x14] sm:$0x1] %v6544
    %v6546 = vld [vmem:[#allocation6 + $0x1c] sm:$0x1]
    %v6547 = vld [vmem:[#allocation6 + $0x1d] sm:$0x1]
    %6549 = vrot.lane.b32.xlu0 %v6547, 64
    %v6550 = vpop.permute.xlu0 %6549
    %v6552 = vsel %vm246, %v6546, %v6550
    %6553 = vst [vmem:[#allocation7 + $0x16] sm:$0x1] %v6552
    %v6554 = vld [vmem:[#allocation6 + $0x1e] sm:$0x1]
    %v6555 = vld [vmem:[#allocation6 + $0x1f] sm:$0x1]
    %6557 = vrot.lane.b32.xlu0 %v6555, 64
    %v6558 = vpop.permute.xlu0 %6557
    %v6560 = vsel %vm246, %v6554, %v6558
    %6561 = vst [vmem:[#allocation7 + $0x18] sm:$0x1] %v6560
    %v6562 = vld [vmem:[#allocation6 + $0x20] sm:$0x1]
    %v6563 = vld [vmem:[#allocation6 + $0x21] sm:$0x1]
    %6565 = vrot.lane.b32.xlu0 %v6563, 64
    %v6566 = vpop.permute.xlu0 %6565
    %v6568 = vsel %vm246, %v6562, %v6566
    %6569 = vst [vmem:[#allocation7 + $0x1a] sm:$0x1] %v6568
    %v6570 = vld [vmem:[#allocation6 + $0x22] sm:$0x1]
    %v6571 = vld [vmem:[#allocation6 + $0x23] sm:$0x1]
    %6573 = vrot.lane.b32.xlu0 %v6571, 64
    %v6574 = vpop.permute.xlu0 %6573
    %v6576 = vsel %vm246, %v6570, %v6574
    %6577 = vst [vmem:[#allocation7 + $0x1c] sm:$0x1] %v6576
    %v6578 = vld [vmem:[#allocation6 + $0x27] sm:$0x1]
    %v6579 = vld [vmem:[#allocation6 + $0x28] sm:$0x1]
    %6581 = vrot.lane.b32.xlu0 %v6579, 64
    %v6582 = vpop.permute.xlu0 %6581
    %v6584 = vsel %vm246, %v6578, %v6582
    %6585 = vst [vmem:[#allocation7 + $0x1e] sm:$0x1] %v6584
    %v6586 = vld [vmem:[#allocation6 + $0x29] sm:$0x1]
    %v6587 = vld [vmem:[#allocation6 + $0x2a] sm:$0x1]
    %6589 = vrot.lane.b32.xlu0 %v6587, 64
    %v6590 = vpop.permute.xlu0 %6589
    %v6592 = vsel %vm246, %v6586, %v6590
    %6593 = vst [vmem:[#allocation7 + $0x20] sm:$0x1] %v6592
    %v6594 = vld [vmem:[#allocation6 + $0x2b] sm:$0x1]
    %v6595 = vld [vmem:[#allocation6 + $0x2c] sm:$0x1]
    %6597 = vrot.lane.b32.xlu0 %v6595, 64
    %v6598 = vpop.permute.xlu0 %6597
    %v6600 = vsel %vm246, %v6594, %v6598
    %6601 = vst [vmem:[#allocation7 + $0x22] sm:$0x1] %v6600
    %v6602 = vld [vmem:[#allocation6 + $0x2d] sm:$0x1]
    %v6603 = vld [vmem:[#allocation6 + $0x2e] sm:$0x1]
    %6605 = vrot.lane.b32.xlu0 %v6603, 64
    %v6606 = vpop.permute.xlu0 %6605
    %v6608 = vsel %vm246, %v6602, %v6606
    %6609 = vst [vmem:[#allocation7 + $0x24] sm:$0x1] %v6608
    %v6610 = vld [vmem:[#allocation6 + $0x2f] sm:$0x1]
    %v6611 = vld [vmem:[#allocation6 + $0x30] sm:$0x1]
    %6613 = vrot.lane.b32.xlu0 %v6611, 64
    %v6614 = vpop.permute.xlu0 %6613
    %v6616 = vsel %vm246, %v6610, %v6614
    %6617 = vst [vmem:[#allocation7 + $0x26] sm:$0x1] %v6616
    %v6618 = vld [vmem:[#allocation6 + $0x34] sm:$0x1]
    %v6619 = vld [vmem:[#allocation6 + $0x35] sm:$0x1]
    %6621 = vrot.lane.b32.xlu0 %v6619, 64
    %v6622 = vpop.permute.xlu0 %6621
    %v6624 = vsel %vm246, %v6618, %v6622
    %6625 = vst [vmem:[#allocation7 + $0x28] sm:$0x1] %v6624
    %v6626 = vld [vmem:[#allocation6 + $0x36] sm:$0x1]
    %v6627 = vld [vmem:[#allocation6 + $0x37] sm:$0x1]
    %6629 = vrot.lane.b32.xlu0 %v6627, 64
    %v6630 = vpop.permute.xlu0 %6629
    %v6632 = vsel %vm246, %v6626, %v6630
    %6633 = vst [vmem:[#allocation7 + $0x2a] sm:$0x1] %v6632
    %v6634 = vld [vmem:[#allocation6 + $0x38] sm:$0x1]
    %v6635 = vld [vmem:[#allocation6 + $0x39] sm:$0x1]
    %6637 = vrot.lane.b32.xlu0 %v6635, 64
    %v6638 = vpop.permute.xlu0 %6637
    %v6640 = vsel %vm246, %v6634, %v6638
    %6641 = vst [vmem:[#allocation7 + $0x2c] sm:$0x1] %v6640
    %v6642 = vld [vmem:[#allocation6 + $0x3a] sm:$0x1]
    %v6643 = vld [vmem:[#allocation6 + $0x3b] sm:$0x1]
    %6645 = vrot.lane.b32.xlu0 %v6643, 64
    %v6646 = vpop.permute.xlu0 %6645
    %v6648 = vsel %vm246, %v6642, %v6646
    %6649 = vst [vmem:[#allocation7 + $0x2e] sm:$0x1] %v6648
    %v6650 = vld [vmem:[#allocation6 + $0x3c] sm:$0x1]
    %v6651 = vld [vmem:[#allocation6 + $0x3d] sm:$0x1]
    %6653 = vrot.lane.b32.xlu0 %v6651, 64
    %v6654 = vpop.permute.xlu0 %6653
    %v6656 = vsel %vm246, %v6650, %v6654
    %6657 = vst [vmem:[#allocation7 + $0x30] sm:$0x1] %v6656
    %v6658 = vld [vmem:[#allocation6 + $0x41] sm:$0x1]
    %v6659 = vld [vmem:[#allocation6 + $0x42] sm:$0x1]
    %6661 = vrot.lane.b32.xlu0 %v6659, 64
    %v6662 = vpop.permute.xlu0 %6661
    %v6664 = vsel %vm246, %v6658, %v6662
    %6665 = vst [vmem:[#allocation7 + $0x32] sm:$0x1] %v6664
    %v6666 = vld [vmem:[#allocation6 + $0x43] sm:$0x1]
    %v6667 = vld [vmem:[#allocation6 + $0x44] sm:$0x1]
    %6669 = vrot.lane.b32.xlu0 %v6667, 64
    %v6670 = vpop.permute.xlu0 %6669
    %v6672 = vsel %vm246, %v6666, %v6670
    %6673 = vst [vmem:[#allocation7 + $0x34] sm:$0x1] %v6672
    %v6674 = vld [vmem:[#allocation6 + $0x45] sm:$0x1]
    %v6675 = vld [vmem:[#allocation6 + $0x46] sm:$0x1]
    %6677 = vrot.lane.b32.xlu0 %v6675, 64
    %v6678 = vpop.permute.xlu0 %6677
    %v6680 = vsel %vm246, %v6674, %v6678
    %6681 = vst [vmem:[#allocation7 + $0x36] sm:$0x1] %v6680
    %v6682 = vld [vmem:[#allocation6 + $0x47] sm:$0x1]
    %v6683 = vld [vmem:[#allocation6 + $0x48] sm:$0x1]
    %6685 = vrot.lane.b32.xlu0 %v6683, 64
    %v6686 = vpop.permute.xlu0 %6685
    %v6688 = vsel %vm246, %v6682, %v6686
    %6689 = vst [vmem:[#allocation7 + $0x38] sm:$0x1] %v6688
    %v6690 = vld [vmem:[#allocation6 + $0x49] sm:$0x1]
    %v6691 = vld [vmem:[#allocation6 + $0x4a] sm:$0x1]
    %6693 = vrot.lane.b32.xlu0 %v6691, 64
    %v6694 = vpop.permute.xlu0 %6693
    %v6696 = vsel %vm246, %v6690, %v6694
    %6697 = vst [vmem:[#allocation7 + $0x3a] sm:$0x1] %v6696
    %v6698 = vld [vmem:[#allocation6 + $0x4e] sm:$0x1]
    %v6699 = vld [vmem:[#allocation6 + $0x4f] sm:$0x1]
    %6701 = vrot.lane.b32.xlu0 %v6699, 64
    %v6702 = vpop.permute.xlu0 %6701
    %v6704 = vsel %vm246, %v6698, %v6702
    %6705 = vst [vmem:[#allocation7 + $0x3c] sm:$0x1] %v6704
    %v6706 = vld [vmem:[#allocation6 + $0x50] sm:$0x1]
    %v6707 = vld [vmem:[#allocation6 + $0x51] sm:$0x1]
    %6709 = vrot.lane.b32.xlu0 %v6707, 64
    %v6710 = vpop.permute.xlu0 %6709
    %v6712 = vsel %vm246, %v6706, %v6710
    %6713 = vst [vmem:[#allocation7 + $0x3e] sm:$0x1] %v6712
    %v6714 = vld [vmem:[#allocation6 + $0x52] sm:$0x1]
    %v6715 = vld [vmem:[#allocation6 + $0x53] sm:$0x1]
    %6717 = vrot.lane.b32.xlu0 %v6715, 64
    %v6718 = vpop.permute.xlu0 %6717
    %v6720 = vsel %vm246, %v6714, %v6718
    %6721 = vst [vmem:[#allocation7 + $0x40] sm:$0x1] %v6720
    %v6722 = vld [vmem:[#allocation6 + $0x54] sm:$0x1]
    %v6723 = vld [vmem:[#allocation6 + $0x55] sm:$0x1]
    %6725 = vrot.lane.b32.xlu0 %v6723, 64
    %v6726 = vpop.permute.xlu0 %6725
    %v6728 = vsel %vm246, %v6722, %v6726
    %6729 = vst [vmem:[#allocation7 + $0x42] sm:$0x1] %v6728
    %v6730 = vld [vmem:[#allocation6 + $0x56] sm:$0x1]
    %v6731 = vld [vmem:[#allocation6 + $0x57] sm:$0x1]
    %6733 = vrot.lane.b32.xlu0 %v6731, 64
    %v6734 = vpop.permute.xlu0 %6733
    %v6736 = vsel %vm246, %v6730, %v6734
    %6737 = vst [vmem:[#allocation7 + $0x44] sm:$0x1] %v6736
    %v6738 = vld [vmem:[#allocation6 + $0x5b] sm:$0x1]
    %v6739 = vld [vmem:[#allocation6 + $0x5c] sm:$0x1]
    %6741 = vrot.lane.b32.xlu0 %v6739, 64
    %v6742 = vpop.permute.xlu0 %6741
    %v6744 = vsel %vm246, %v6738, %v6742
    %6745 = vst [vmem:[#allocation7 + $0x46] sm:$0x1] %v6744
    %v6746 = vld [vmem:[#allocation6 + $0x5d] sm:$0x1]
    %v6747 = vld [vmem:[#allocation6 + $0x5e] sm:$0x1]
    %6749 = vrot.lane.b32.xlu0 %v6747, 64
    %v6750 = vpop.permute.xlu0 %6749
    %v6752 = vsel %vm246, %v6746, %v6750
    %6753 = vst [vmem:[#allocation7 + $0x48] sm:$0x1] %v6752
    %v6754 = vld [vmem:[#allocation6 + $0x5f] sm:$0x1]
    %v6755 = vld [vmem:[#allocation6 + $0x60] sm:$0x1]
    %6757 = vrot.lane.b32.xlu0 %v6755, 64
    %v6758 = vpop.permute.xlu0 %6757
    %v6760 = vsel %vm246, %v6754, %v6758
    %6761 = vst [vmem:[#allocation7 + $0x4a] sm:$0x1] %v6760
    %v6762 = vld [vmem:[#allocation6 + $0x61] sm:$0x1]
    %v6763 = vld [vmem:[#allocation6 + $0x62] sm:$0x1]
    %6765 = vrot.lane.b32.xlu0 %v6763, 64
    %v6766 = vpop.permute.xlu0 %6765
    %v6768 = vsel %vm246, %v6762, %v6766
    %6769 = vst [vmem:[#allocation7 + $0x4c] sm:$0x1] %v6768
    %v6770 = vld [vmem:[#allocation6 + $0x63] sm:$0x1]
    %v6771 = vld [vmem:[#allocation6 + $0x64] sm:$0x1]
    %6773 = vrot.lane.b32.xlu0 %v6771, 64
    %v6774 = vpop.permute.xlu0 %6773
    %v6776 = vsel %vm246, %v6770, %v6774
    %6777 = vst [vmem:[#allocation7 + $0x4e] sm:$0x1] %v6776
    %v6778 = vld [vmem:[#allocation6 + $0x68] sm:$0x1]
    %v6779 = vld [vmem:[#allocation6 + $0x69] sm:$0x1]
    %6781 = vrot.lane.b32.xlu0 %v6779, 64
    %v6782 = vpop.permute.xlu0 %6781
    %v6784 = vsel %vm246, %v6778, %v6782
    %6785 = vst [vmem:[#allocation7 + $0x50] sm:$0x1] %v6784
    %v6786 = vld [vmem:[#allocation6 + $0x6a] sm:$0x1]
    %v6787 = vld [vmem:[#allocation6 + $0x6b] sm:$0x1]
    %6789 = vrot.lane.b32.xlu0 %v6787, 64
    %v6790 = vpop.permute.xlu0 %6789
    %v6792 = vsel %vm246, %v6786, %v6790
    %6793 = vst [vmem:[#allocation7 + $0x52] sm:$0x1] %v6792
    %v6794 = vld [vmem:[#allocation6 + $0x6c] sm:$0x1]
    %v6795 = vld [vmem:[#allocation6 + $0x6d] sm:$0x1]
    %6797 = vrot.lane.b32.xlu0 %v6795, 64
    %v6798 = vpop.permute.xlu0 %6797
    %v6800 = vsel %vm246, %v6794, %v6798
    %6801 = vst [vmem:[#allocation7 + $0x54] sm:$0x1] %v6800
    %v6802 = vld [vmem:[#allocation6 + $0x6e] sm:$0x1]
    %v6803 = vld [vmem:[#allocation6 + $0x6f] sm:$0x1]
    %6805 = vrot.lane.b32.xlu0 %v6803, 64
    %v6806 = vpop.permute.xlu0 %6805
    %v6808 = vsel %vm246, %v6802, %v6806
    %6809 = vst [vmem:[#allocation7 + $0x56] sm:$0x1] %v6808
    %v6810 = vld [vmem:[#allocation6 + $0x70] sm:$0x1]
    %v6811 = vld [vmem:[#allocation6 + $0x71] sm:$0x1]
    %6813 = vrot.lane.b32.xlu0 %v6811, 64
    %v6814 = vpop.permute.xlu0 %6813
    %v6816 = vsel %vm246, %v6810, %v6814
    %6817 = vst [vmem:[#allocation7 + $0x58] sm:$0x1] %v6816
    %v6818 = vld [vmem:[#allocation6 + $0x75] sm:$0x1]
    %v6819 = vld [vmem:[#allocation6 + $0x76] sm:$0x1]
    %6821 = vrot.lane.b32.xlu0 %v6819, 64
    %v6822 = vpop.permute.xlu0 %6821
    %v6824 = vsel %vm246, %v6818, %v6822
    %6825 = vst [vmem:[#allocation7 + $0x5a] sm:$0x1] %v6824
    %v6826 = vld [vmem:[#allocation6 + $0x77] sm:$0x1]
    %v6827 = vld [vmem:[#allocation6 + $0x78] sm:$0x1]
    %6829 = vrot.lane.b32.xlu0 %v6827, 64
    %v6830 = vpop.permute.xlu0 %6829
    %v6832 = vsel %vm246, %v6826, %v6830
    %6833 = vst [vmem:[#allocation7 + $0x5c] sm:$0x1] %v6832
    %v6834 = vld [vmem:[#allocation6 + $0x79] sm:$0x1]
    %v6835 = vld [vmem:[#allocation6 + $0x7a] sm:$0x1]
    %6837 = vrot.lane.b32.xlu0 %v6835, 64
    %v6838 = vpop.permute.xlu0 %6837
    %v6840 = vsel %vm246, %v6834, %v6838
    %6841 = vst [vmem:[#allocation7 + $0x5e] sm:$0x1] %v6840
    %v6842 = vld [vmem:[#allocation6 + $0x7b] sm:$0x1]
    %v6843 = vld [vmem:[#allocation6 + $0x7c] sm:$0x1]
    %6845 = vrot.lane.b32.xlu0 %v6843, 64
    %v6846 = vpop.permute.xlu0 %6845
    %v6848 = vsel %vm246, %v6842, %v6846
    %6849 = vst [vmem:[#allocation7 + $0x60] sm:$0x1] %v6848
    %v6850 = vld [vmem:[#allocation6 + $0x7d] sm:$0x1]
    %v6851 = vld [vmem:[#allocation6 + $0x7e] sm:$0x1]
    %6853 = vrot.lane.b32.xlu0 %v6851, 64
    %v6854 = vpop.permute.xlu0 %6853
    %v6856 = vsel %vm246, %v6850, %v6854
    %6857 = vst [vmem:[#allocation7 + $0x62] sm:$0x1] %v6856
    %v6858 = vld [vmem:[#allocation6 + $0xa9] sm:$0x1]
    %v6859 = vld [vmem:[#allocation6 + $0xaa] sm:$0x1]
    %6861 = vrot.lane.b32.xlu0 %v6859, 64
    %v6862 = vpop.permute.xlu0 %6861
    %v6864 = vsel %vm246, %v6858, %v6862
    %6865 = vst [vmem:[#allocation7 + $0x1] sm:$0x1] %v6864
    %v6866 = vld [vmem:[#allocation6 + $0xab] sm:$0x1]
    %v6867 = vld [vmem:[#allocation6 + $0xac] sm:$0x1]
    %6869 = vrot.lane.b32.xlu0 %v6867, 64
    %v6870 = vpop.permute.xlu0 %6869
    %v6872 = vsel %vm246, %v6866, %v6870
    %6873 = vst [vmem:[#allocation7 + $0x3] sm:$0x1] %v6872
    %v6874 = vld [vmem:[#allocation6 + $0xad] sm:$0x1]
    %v6875 = vld [vmem:[#allocation6 + $0xae] sm:$0x1]
    %6877 = vrot.lane.b32.xlu0 %v6875, 64
    %v6878 = vpop.permute.xlu0 %6877
    %v6880 = vsel %vm246, %v6874, %v6878
    %6881 = vst [vmem:[#allocation7 + $0x5] sm:$0x1] %v6880
    %v6882 = vld [vmem:[#allocation6 + $0xaf] sm:$0x1]
    %v6883 = vld [vmem:[#allocation6 + $0xb0] sm:$0x1]
    %6885 = vrot.lane.b32.xlu0 %v6883, 64
    %v6886 = vpop.permute.xlu0 %6885
    %v6888 = vsel %vm246, %v6882, %v6886
    %6889 = vst [vmem:[#allocation7 + $0x7] sm:$0x1] %v6888
    %v6890 = vld [vmem:[#allocation6 + $0xb1] sm:$0x1]
    %v6891 = vld [vmem:[#allocation6 + $0xb2] sm:$0x1]
    %6893 = vrot.lane.b32.xlu0 %v6891, 64
    %v6894 = vpop.permute.xlu0 %6893
    %v6896 = vsel %vm246, %v6890, %v6894
    %6897 = vst [vmem:[#allocation7 + $0x9] sm:$0x1] %v6896
    %v6898 = vld [vmem:[#allocation6 + $0xb6] sm:$0x1]
    %v6899 = vld [vmem:[#allocation6 + $0xb7] sm:$0x1]
    %6901 = vrot.lane.b32.xlu0 %v6899, 64
    %v6902 = vpop.permute.xlu0 %6901
    %v6904 = vsel %vm246, %v6898, %v6902
    %6905 = vst [vmem:[#allocation7 + $0xb] sm:$0x1] %v6904
    %v6906 = vld [vmem:[#allocation6 + $0xb8] sm:$0x1]
    %v6907 = vld [vmem:[#allocation6 + $0xb9] sm:$0x1]
    %6909 = vrot.lane.b32.xlu0 %v6907, 64
    %v6910 = vpop.permute.xlu0 %6909
    %v6912 = vsel %vm246, %v6906, %v6910
    %6913 = vst [vmem:[#allocation7 + $0xd] sm:$0x1] %v6912
    %v6914 = vld [vmem:[#allocation6 + $0xba] sm:$0x1]
    %v6915 = vld [vmem:[#allocation6 + $0xbb] sm:$0x1]
    %6917 = vrot.lane.b32.xlu0 %v6915, 64
    %v6918 = vpop.permute.xlu0 %6917
    %v6920 = vsel %vm246, %v6914, %v6918
    %6921 = vst [vmem:[#allocation7 + $0xf] sm:$0x1] %v6920
    %v6922 = vld [vmem:[#allocation6 + $0xbc] sm:$0x1]
    %v6923 = vld [vmem:[#allocation6 + $0xbd] sm:$0x1]
    %6925 = vrot.lane.b32.xlu0 %v6923, 64
    %v6926 = vpop.permute.xlu0 %6925
    %v6928 = vsel %vm246, %v6922, %v6926
    %6929 = vst [vmem:[#allocation7 + $0x11] sm:$0x1] %v6928
    %v6930 = vld [vmem:[#allocation6 + $0xbe] sm:$0x1]
    %v6931 = vld [vmem:[#allocation6 + $0xbf] sm:$0x1]
    %6933 = vrot.lane.b32.xlu0 %v6931, 64
    %v6934 = vpop.permute.xlu0 %6933
    %v6936 = vsel %vm246, %v6930, %v6934
    %6937 = vst [vmem:[#allocation7 + $0x13] sm:$0x1] %v6936
    %v6938 = vld [vmem:[#allocation6 + $0xc3] sm:$0x1]
    %v6939 = vld [vmem:[#allocation6 + $0xc4] sm:$0x1]
    %6941 = vrot.lane.b32.xlu0 %v6939, 64
    %v6942 = vpop.permute.xlu0 %6941
    %v6944 = vsel %vm246, %v6938, %v6942
    %6945 = vst [vmem:[#allocation7 + $0x15] sm:$0x1] %v6944
    %v6946 = vld [vmem:[#allocation6 + $0xc5] sm:$0x1]
    %v6947 = vld [vmem:[#allocation6 + $0xc6] sm:$0x1]
    %6949 = vrot.lane.b32.xlu0 %v6947, 64
    %v6950 = vpop.permute.xlu0 %6949
    %v6952 = vsel %vm246, %v6946, %v6950
    %6953 = vst [vmem:[#allocation7 + $0x17] sm:$0x1] %v6952
    %v6954 = vld [vmem:[#allocation6 + $0xc7] sm:$0x1]
    %v6955 = vld [vmem:[#allocation6 + $0xc8] sm:$0x1]
    %6957 = vrot.lane.b32.xlu0 %v6955, 64
    %v6958 = vpop.permute.xlu0 %6957
    %v6960 = vsel %vm246, %v6954, %v6958
    %6961 = vst [vmem:[#allocation7 + $0x19] sm:$0x1] %v6960
    %v6962 = vld [vmem:[#allocation6 + $0xc9] sm:$0x1]
    %v6963 = vld [vmem:[#allocation6 + $0xca] sm:$0x1]
    %6965 = vrot.lane.b32.xlu0 %v6963, 64
    %v6966 = vpop.permute.xlu0 %6965
    %v6968 = vsel %vm246, %v6962, %v6966
    %6969 = vst [vmem:[#allocation7 + $0x1b] sm:$0x1] %v6968
    %v6970 = vld [vmem:[#allocation6 + $0xcb] sm:$0x1]
    %v6971 = vld [vmem:[#allocation6 + $0xcc] sm:$0x1]
    %6973 = vrot.lane.b32.xlu0 %v6971, 64
    %v6974 = vpop.permute.xlu0 %6973
    %v6976 = vsel %vm246, %v6970, %v6974
    %6977 = vst [vmem:[#allocation7 + $0x1d] sm:$0x1] %v6976
    %v6978 = vld [vmem:[#allocation6 + $0xd0] sm:$0x1]
    %v6979 = vld [vmem:[#allocation6 + $0xd1] sm:$0x1]
    %6981 = vrot.lane.b32.xlu0 %v6979, 64
    %v6982 = vpop.permute.xlu0 %6981
    %v6984 = vsel %vm246, %v6978, %v6982
    %6985 = vst [vmem:[#allocation7 + $0x1f] sm:$0x1] %v6984
    %v6986 = vld [vmem:[#allocation6 + $0xd2] sm:$0x1]
    %v6987 = vld [vmem:[#allocation6 + $0xd3] sm:$0x1]
    %6989 = vrot.lane.b32.xlu0 %v6987, 64
    %v6990 = vpop.permute.xlu0 %6989
    %v6992 = vsel %vm246, %v6986, %v6990
    %6993 = vst [vmem:[#allocation7 + $0x21] sm:$0x1] %v6992
    %v6994 = vld [vmem:[#allocation6 + $0xd4] sm:$0x1]
    %v6995 = vld [vmem:[#allocation6 + $0xd5] sm:$0x1]
    %6997 = vrot.lane.b32.xlu0 %v6995, 64
    %v6998 = vpop.permute.xlu0 %6997
    %v7000 = vsel %vm246, %v6994, %v6998
    %7001 = vst [vmem:[#allocation7 + $0x23] sm:$0x1] %v7000
    %v7002 = vld [vmem:[#allocation6 + $0xd6] sm:$0x1]
    %v7003 = vld [vmem:[#allocation6 + $0xd7] sm:$0x1]
    %7005 = vrot.lane.b32.xlu0 %v7003, 64
    %v7006 = vpop.permute.xlu0 %7005
    %v7008 = vsel %vm246, %v7002, %v7006
    %7009 = vst [vmem:[#allocation7 + $0x25] sm:$0x1] %v7008
    %v7010 = vld [vmem:[#allocation6 + $0xd8] sm:$0x1]
    %v7011 = vld [vmem:[#allocation6 + $0xd9] sm:$0x1]
    %7013 = vrot.lane.b32.xlu0 %v7011, 64
    %v7014 = vpop.permute.xlu0 %7013
    %v7016 = vsel %vm246, %v7010, %v7014
    %7017 = vst [vmem:[#allocation7 + $0x27] sm:$0x1] %v7016
    %v7018 = vld [vmem:[#allocation6 + $0xdd] sm:$0x1]
    %v7019 = vld [vmem:[#allocation6 + $0xde] sm:$0x1]
    %7021 = vrot.lane.b32.xlu0 %v7019, 64
    %v7022 = vpop.permute.xlu0 %7021
    %v7024 = vsel %vm246, %v7018, %v7022
    %7025 = vst [vmem:[#allocation7 + $0x29] sm:$0x1] %v7024
    %v7026 = vld [vmem:[#allocation6 + $0xdf] sm:$0x1]
    %v7027 = vld [vmem:[#allocation6 + $0xe0] sm:$0x1]
    %7029 = vrot.lane.b32.xlu0 %v7027, 64
    %v7030 = vpop.permute.xlu0 %7029
    %v7032 = vsel %vm246, %v7026, %v7030
    %7033 = vst [vmem:[#allocation7 + $0x2b] sm:$0x1] %v7032
    %v7034 = vld [vmem:[#allocation6 + $0xe1] sm:$0x1]
    %v7035 = vld [vmem:[#allocation6 + $0xe2] sm:$0x1]
    %7037 = vrot.lane.b32.xlu0 %v7035, 64
    %v7038 = vpop.permute.xlu0 %7037
    %v7040 = vsel %vm246, %v7034, %v7038
    %7041 = vst [vmem:[#allocation7 + $0x2d] sm:$0x1] %v7040
    %v7042 = vld [vmem:[#allocation6 + $0xe3] sm:$0x1]
    %v7043 = vld [vmem:[#allocation6 + $0xe4] sm:$0x1]
    %7045 = vrot.lane.b32.xlu0 %v7043, 64
    %v7046 = vpop.permute.xlu0 %7045
    %v7048 = vsel %vm246, %v7042, %v7046
    %7049 = vst [vmem:[#allocation7 + $0x2f] sm:$0x1] %v7048
    %v7050 = vld [vmem:[#allocation6 + $0xe5] sm:$0x1]
    %v7051 = vld [vmem:[#allocation6 + $0xe6] sm:$0x1]
    %7053 = vrot.lane.b32.xlu0 %v7051, 64
    %v7054 = vpop.permute.xlu0 %7053
    %v7056 = vsel %vm246, %v7050, %v7054
    %7057 = vst [vmem:[#allocation7 + $0x31] sm:$0x1] %v7056
    %v7058 = vld [vmem:[#allocation6 + $0xea] sm:$0x1]
    %v7059 = vld [vmem:[#allocation6 + $0xeb] sm:$0x1]
    %7061 = vrot.lane.b32.xlu0 %v7059, 64
    %v7062 = vpop.permute.xlu0 %7061
    %v7064 = vsel %vm246, %v7058, %v7062
    %7065 = vst [vmem:[#allocation7 + $0x33] sm:$0x1] %v7064
    %v7066 = vld [vmem:[#allocation6 + $0xec] sm:$0x1]
    %v7067 = vld [vmem:[#allocation6 + $0xed] sm:$0x1]
    %7069 = vrot.lane.b32.xlu0 %v7067, 64
    %v7070 = vpop.permute.xlu0 %7069
    %v7072 = vsel %vm246, %v7066, %v7070
    %7073 = vst [vmem:[#allocation7 + $0x35] sm:$0x1] %v7072
    %v7074 = vld [vmem:[#allocation6 + $0xee] sm:$0x1]
    %v7075 = vld [vmem:[#allocation6 + $0xef] sm:$0x1]
    %7077 = vrot.lane.b32.xlu0 %v7075, 64
    %v7078 = vpop.permute.xlu0 %7077
    %v7080 = vsel %vm246, %v7074, %v7078
    %7081 = vst [vmem:[#allocation7 + $0x37] sm:$0x1] %v7080
    %v7082 = vld [vmem:[#allocation6 + $0xf0] sm:$0x1]
    %v7083 = vld [vmem:[#allocation6 + $0xf1] sm:$0x1]
    %7085 = vrot.lane.b32.xlu0 %v7083, 64
    %v7086 = vpop.permute.xlu0 %7085
    %v7088 = vsel %vm246, %v7082, %v7086
    %7089 = vst [vmem:[#allocation7 + $0x39] sm:$0x1] %v7088
    %v7090 = vld [vmem:[#allocation6 + $0xf2] sm:$0x1]
    %v7091 = vld [vmem:[#allocation6 + $0xf3] sm:$0x1]
    %7093 = vrot.lane.b32.xlu0 %v7091, 64
    %v7094 = vpop.permute.xlu0 %7093
    %v7096 = vsel %vm246, %v7090, %v7094
    %7097 = vst [vmem:[#allocation7 + $0x3b] sm:$0x1] %v7096
    %v7098 = vld [vmem:[#allocation6 + $0xf7] sm:$0x1]
    %v7099 = vld [vmem:[#allocation6 + $0xf8] sm:$0x1]
    %7101 = vrot.lane.b32.xlu0 %v7099, 64
    %v7102 = vpop.permute.xlu0 %7101
    %v7104 = vsel %vm246, %v7098, %v7102
    %7105 = vst [vmem:[#allocation7 + $0x3d] sm:$0x1] %v7104
    %v7106 = vld [vmem:[#allocation6 + $0xf9] sm:$0x1]
    %v7107 = vld [vmem:[#allocation6 + $0xfa] sm:$0x1]
    %7109 = vrot.lane.b32.xlu0 %v7107, 64
    %v7110 = vpop.permute.xlu0 %7109
    %v7112 = vsel %vm246, %v7106, %v7110
    %7113 = vst [vmem:[#allocation7 + $0x3f] sm:$0x1] %v7112
    %v7114 = vld [vmem:[#allocation6 + $0xfb] sm:$0x1]
    %v7115 = vld [vmem:[#allocation6 + $0xfc] sm:$0x1]
    %7117 = vrot.lane.b32.xlu0 %v7115, 64
    %v7118 = vpop.permute.xlu0 %7117
    %v7120 = vsel %vm246, %v7114, %v7118
    %7121 = vst [vmem:[#allocation7 + $0x41] sm:$0x1] %v7120
    %v7122 = vld [vmem:[#allocation6 + $0xfd] sm:$0x1]
    %v7123 = vld [vmem:[#allocation6 + $0xfe] sm:$0x1]
    %7125 = vrot.lane.b32.xlu0 %v7123, 64
    %v7126 = vpop.permute.xlu0 %7125
    %v7128 = vsel %vm246, %v7122, %v7126
    %7129 = vst [vmem:[#allocation7 + $0x43] sm:$0x1] %v7128
    %v7130 = vld [vmem:[#allocation6 + $0xff] sm:$0x1]
    %v7131 = vld [vmem:[#allocation6 + $0x100] sm:$0x1]
    %7133 = vrot.lane.b32.xlu0 %v7131, 64
    %v7134 = vpop.permute.xlu0 %7133
    %v7136 = vsel %vm246, %v7130, %v7134
    %7137 = vst [vmem:[#allocation7 + $0x45] sm:$0x1] %v7136
    %v7138 = vld [vmem:[#allocation6 + $0x104] sm:$0x1]
    %v7139 = vld [vmem:[#allocation6 + $0x105] sm:$0x1]
    %7141 = vrot.lane.b32.xlu0 %v7139, 64
    %v7142 = vpop.permute.xlu0 %7141
    %v7144 = vsel %vm246, %v7138, %v7142
    %7145 = vst [vmem:[#allocation7 + $0x47] sm:$0x1] %v7144
    %v7146 = vld [vmem:[#allocation6 + $0x106] sm:$0x1]
    %v7147 = vld [vmem:[#allocation6 + $0x107] sm:$0x1]
    %7149 = vrot.lane.b32.xlu0 %v7147, 64
    %v7150 = vpop.permute.xlu0 %7149
    %v7152 = vsel %vm246, %v7146, %v7150
    %7153 = vst [vmem:[#allocation7 + $0x49] sm:$0x1] %v7152
    %v7154 = vld [vmem:[#allocation6 + $0x108] sm:$0x1]
    %v7155 = vld [vmem:[#allocation6 + $0x109] sm:$0x1]
    %7157 = vrot.lane.b32.xlu0 %v7155, 64
    %v7158 = vpop.permute.xlu0 %7157
    %v7160 = vsel %vm246, %v7154, %v7158
    %7161 = vst [vmem:[#allocation7 + $0x4b] sm:$0x1] %v7160
    %v7162 = vld [vmem:[#allocation6 + $0x10a] sm:$0x1]
    %v7163 = vld [vmem:[#allocation6 + $0x10b] sm:$0x1]
    %7165 = vrot.lane.b32.xlu0 %v7163, 64
    %v7166 = vpop.permute.xlu0 %7165
    %v7168 = vsel %vm246, %v7162, %v7166
    %7169 = vst [vmem:[#allocation7 + $0x4d] sm:$0x1] %v7168
    %v7170 = vld [vmem:[#allocation6 + $0x10c] sm:$0x1]
    %v7171 = vld [vmem:[#allocation6 + $0x10d] sm:$0x1]
    %7173 = vrot.lane.b32.xlu0 %v7171, 64
    %v7174 = vpop.permute.xlu0 %7173
    %v7176 = vsel %vm246, %v7170, %v7174
    %7177 = vst [vmem:[#allocation7 + $0x4f] sm:$0x1] %v7176
    %v7178 = vld [vmem:[#allocation6 + $0x111] sm:$0x1]
    %v7179 = vld [vmem:[#allocation6 + $0x112] sm:$0x1]
    %7181 = vrot.lane.b32.xlu0 %v7179, 64
    %v7182 = vpop.permute.xlu0 %7181
    %v7184 = vsel %vm246, %v7178, %v7182
    %7185 = vst [vmem:[#allocation7 + $0x51] sm:$0x1] %v7184
    %v7186 = vld [vmem:[#allocation6 + $0x113] sm:$0x1]
    %v7187 = vld [vmem:[#allocation6 + $0x114] sm:$0x1]
    %7189 = vrot.lane.b32.xlu0 %v7187, 64
    %v7190 = vpop.permute.xlu0 %7189
    %v7192 = vsel %vm246, %v7186, %v7190
    %7193 = vst [vmem:[#allocation7 + $0x53] sm:$0x1] %v7192
    %v7194 = vld [vmem:[#allocation6 + $0x115] sm:$0x1]
    %v7195 = vld [vmem:[#allocation6 + $0x116] sm:$0x1]
    %7197 = vrot.lane.b32.xlu0 %v7195, 64
    %v7198 = vpop.permute.xlu0 %7197
    %v7200 = vsel %vm246, %v7194, %v7198
    %7201 = vst [vmem:[#allocation7 + $0x55] sm:$0x1] %v7200
    %v7202 = vld [vmem:[#allocation6 + $0x117] sm:$0x1]
    %v7203 = vld [vmem:[#allocation6 + $0x118] sm:$0x1]
    %7205 = vrot.lane.b32.xlu0 %v7203, 64
    %v7206 = vpop.permute.xlu0 %7205
    %v7208 = vsel %vm246, %v7202, %v7206
    %7209 = vst [vmem:[#allocation7 + $0x57] sm:$0x1] %v7208
    %v7210 = vld [vmem:[#allocation6 + $0x119] sm:$0x1]
    %v7211 = vld [vmem:[#allocation6 + $0x11a] sm:$0x1]
    %7213 = vrot.lane.b32.xlu0 %v7211, 64
    %v7214 = vpop.permute.xlu0 %7213
    %v7216 = vsel %vm246, %v7210, %v7214
    %7217 = vst [vmem:[#allocation7 + $0x59] sm:$0x1] %v7216
    %v7218 = vld [vmem:[#allocation6 + $0x11e] sm:$0x1]
    %v7219 = vld [vmem:[#allocation6 + $0x11f] sm:$0x1]
    %7221 = vrot.lane.b32.xlu0 %v7219, 64
    %v7222 = vpop.permute.xlu0 %7221
    %v7224 = vsel %vm246, %v7218, %v7222
    %7225 = vst [vmem:[#allocation7 + $0x5b] sm:$0x1] %v7224
    %v7226 = vld [vmem:[#allocation6 + $0x120] sm:$0x1]
    %v7227 = vld [vmem:[#allocation6 + $0x121] sm:$0x1]
    %7229 = vrot.lane.b32.xlu0 %v7227, 64
    %v7230 = vpop.permute.xlu0 %7229
    %v7232 = vsel %vm246, %v7226, %v7230
    %7233 = vst [vmem:[#allocation7 + $0x5d] sm:$0x1] %v7232
    %v7234 = vld [vmem:[#allocation6 + $0x122] sm:$0x1]
    %v7235 = vld [vmem:[#allocation6 + $0x123] sm:$0x1]
    %7237 = vrot.lane.b32.xlu0 %v7235, 64
    %v7238 = vpop.permute.xlu0 %7237
    %v7240 = vsel %vm246, %v7234, %v7238
    %7241 = vst [vmem:[#allocation7 + $0x5f] sm:$0x1] %v7240
    %v7242 = vld [vmem:[#allocation6 + $0x124] sm:$0x1]
    %v7243 = vld [vmem:[#allocation6 + $0x125] sm:$0x1]
    %7245 = vrot.lane.b32.xlu0 %v7243, 64
    %v7246 = vpop.permute.xlu0 %7245
    %v7248 = vsel %vm246, %v7242, %v7246
    %7249 = vst [vmem:[#allocation7 + $0x61] sm:$0x1] %v7248
    %v7250 = vld [vmem:[#allocation6 + $0x126] sm:$0x1]
    %v7251 = vld [vmem:[#allocation6 + $0x127] sm:$0x1]
    %7253 = vrot.lane.b32.xlu0 %v7251, 64
    %v7254 = vpop.permute.xlu0 %7253
    %v7256 = vsel %vm246, %v7250, %v7254
    %7257 = vst [vmem:[#allocation7 + $0x63] sm:$0x1] %v7256
    %s7258 = smul.u32 4, 800
    %s7259 = smul.u32 %s7258, 2
    %s7260 = sshll.u32 %s7259, 4
    %7261 = dma.done [#allocation3], %s7260
    %v7262 = vld [vmem:[#allocation7] sm:$0xff]
    %v7263 = vld [vmem:[#allocation7 + $0x8] sm:$0xff]
    %v7264 = vld [vmem:[#allocation7 + $0x10] sm:$0xff]
    %v7265 = vld [vmem:[#allocation7 + $0x18] sm:$0xff]
    %v7266 = vld [vmem:[#allocation7 + $0x20] sm:$0xff]
    %v7267 = vld [vmem:[#allocation7 + $0x28] sm:$0xff]
    %v7268 = vld [vmem:[#allocation7 + $0x30] sm:$0xff]
    %v7269 = vld [vmem:[#allocation7 + $0x38] sm:$0xff]
    %v7270 = vld [vmem:[#allocation7 + $0x40] sm:$0xff]
    %v7271 = vld [vmem:[#allocation7 + $0x48] sm:$0xff]
    %v7272 = vld [vmem:[#allocation7 + $0x50] sm:$0xff]
    %v7273 = vld [vmem:[#allocation7 + $0x58] sm:$0xff]
    %v7274 = vld [vmem:[#allocation7 + $0x60] sm:$0xf]
    %v7288 = vcombine.high %v7262, %v7262
    %v7290 = vunpack.c.l.s4 1983009808
    %v7291 = vunpack.c.0.s8 %v7290
    %v7292 = vlaneseq
    %v7293 = vshrl.u32 %v7292, 7
    %v7294 = vsub.s32 %v7291, %v7293
    %v7295 = vrot.slane %v7262, %v7294
    %v7297 = vunpack.c.l.s4 1983009808
    %v7298 = vunpack.c.0.s8 %v7297
    %v7299 = vlaneseq
    %v7300 = vshrl.u32 %v7299, 7
    %v7301 = vsub.s32 %v7298, %v7300
    %v7302 = vrot.slane %v7288, %v7301
    %v7303 = vcombine.high %v7295, %v7295
    %v7304 = vcombine.high %v7302, %v7302
    %v7305 = vcombine.high %v7263, %v7263
    %v7307 = vunpack.c.l.s4 1983009808
    %v7308 = vunpack.c.0.s8 %v7307
    %v7309 = vlaneseq
    %v7310 = vshrl.u32 %v7309, 7
    %v7311 = vsub.s32 %v7308, %v7310
    %v7312 = vrot.slane %v7263, %v7311
    %v7314 = vunpack.c.l.s4 1983009808
    %v7315 = vunpack.c.0.s8 %v7314
    %v7316 = vlaneseq
    %v7317 = vshrl.u32 %v7316, 7
    %v7318 = vsub.s32 %v7315, %v7317
    %v7319 = vrot.slane %v7305, %v7318
    %v7320 = vcombine.high %v7312, %v7312
    %v7321 = vcombine.high %v7319, %v7319
    %v7322 = vcombine.high %v7264, %v7264
    %v7324 = vunpack.c.l.s4 1983009808
    %v7325 = vunpack.c.0.s8 %v7324
    %v7326 = vlaneseq
    %v7327 = vshrl.u32 %v7326, 7
    %v7328 = vsub.s32 %v7325, %v7327
    %v7329 = vrot.slane %v7264, %v7328
    %v7331 = vunpack.c.l.s4 1983009808
    %v7332 = vunpack.c.0.s8 %v7331
    %v7333 = vlaneseq
    %v7334 = vshrl.u32 %v7333, 7
    %v7335 = vsub.s32 %v7332, %v7334
    %v7336 = vrot.slane %v7322, %v7335
    %v7337 = vcombine.high %v7329, %v7329
    %v7338 = vcombine.high %v7336, %v7336
    %v7339 = vcombine.high %v7265, %v7265
    %v7341 = vunpack.c.l.s4 1983009808
    %v7342 = vunpack.c.0.s8 %v7341
    %v7343 = vlaneseq
    %v7344 = vshrl.u32 %v7343, 7
    %v7345 = vsub.s32 %v7342, %v7344
    %v7346 = vrot.slane %v7265, %v7345
    %v7348 = vunpack.c.l.s4 1983009808
    %v7349 = vunpack.c.0.s8 %v7348
    %v7350 = vlaneseq
    %v7351 = vshrl.u32 %v7350, 7
    %v7352 = vsub.s32 %v7349, %v7351
    %v7353 = vrot.slane %v7339, %v7352
    %v7354 = vcombine.high %v7346, %v7346
    %v7355 = vcombine.high %v7353, %v7353
    %v7356 = vcombine.high %v7266, %v7266
    %v7358 = vunpack.c.l.s4 1983009808
    %v7359 = vunpack.c.0.s8 %v7358
    %v7360 = vlaneseq
    %v7361 = vshrl.u32 %v7360, 7
    %v7362 = vsub.s32 %v7359, %v7361
    %v7363 = vrot.slane %v7266, %v7362
    %v7365 = vunpack.c.l.s4 1983009808
    %v7366 = vunpack.c.0.s8 %v7365
    %v7367 = vlaneseq
    %v7368 = vshrl.u32 %v7367, 7
    %v7369 = vsub.s32 %v7366, %v7368
    %v7370 = vrot.slane %v7356, %v7369
    %v7371 = vcombine.high %v7363, %v7363
    %v7372 = vcombine.high %v7370, %v7370
    %v7373 = vcombine.high %v7267, %v7267
    %v7375 = vunpack.c.l.s4 1983009808
    %v7376 = vunpack.c.0.s8 %v7375
    %v7377 = vlaneseq
    %v7378 = vshrl.u32 %v7377, 7
    %v7379 = vsub.s32 %v7376, %v7378
    %v7380 = vrot.slane %v7267, %v7379
    %v7382 = vunpack.c.l.s4 1983009808
    %v7383 = vunpack.c.0.s8 %v7382
    %v7384 = vlaneseq
    %v7385 = vshrl.u32 %v7384, 7
    %v7386 = vsub.s32 %v7383, %v7385
    %v7387 = vrot.slane %v7373, %v7386
    %v7388 = vcombine.high %v7380, %v7380
    %v7389 = vcombine.high %v7387, %v7387
    %v7390 = vcombine.high %v7268, %v7268
    %v7392 = vunpack.c.l.s4 1983009808
    %v7393 = vunpack.c.0.s8 %v7392
    %v7394 = vlaneseq
    %v7395 = vshrl.u32 %v7394, 7
    %v7396 = vsub.s32 %v7393, %v7395
    %v7397 = vrot.slane %v7268, %v7396
    %v7399 = vunpack.c.l.s4 1983009808
    %v7400 = vunpack.c.0.s8 %v7399
    %v7401 = vlaneseq
    %v7402 = vshrl.u32 %v7401, 7
    %v7403 = vsub.s32 %v7400, %v7402
    %v7404 = vrot.slane %v7390, %v7403
    %v7405 = vcombine.high %v7397, %v7397
    %v7406 = vcombine.high %v7404, %v7404
    %v7407 = vcombine.high %v7269, %v7269
    %v7409 = vunpack.c.l.s4 1983009808
    %v7410 = vunpack.c.0.s8 %v7409
    %v7411 = vlaneseq
    %v7412 = vshrl.u32 %v7411, 7
    %v7413 = vsub.s32 %v7410, %v7412
    %v7414 = vrot.slane %v7269, %v7413
    %v7416 = vunpack.c.l.s4 1983009808
    %v7417 = vunpack.c.0.s8 %v7416
    %v7418 = vlaneseq
    %v7419 = vshrl.u32 %v7418, 7
    %v7420 = vsub.s32 %v7417, %v7419
    %v7421 = vrot.slane %v7407, %v7420
    %v7422 = vcombine.high %v7414, %v7414
    %v7423 = vcombine.high %v7421, %v7421
    %v7424 = vcombine.high %v7270, %v7270
    %v7426 = vunpack.c.l.s4 1983009808
    %v7427 = vunpack.c.0.s8 %v7426
    %v7428 = vlaneseq
    %v7429 = vshrl.u32 %v7428, 7
    %v7430 = vsub.s32 %v7427, %v7429
    %v7431 = vrot.slane %v7270, %v7430
    %v7433 = vunpack.c.l.s4 1983009808
    %v7434 = vunpack.c.0.s8 %v7433
    %v7435 = vlaneseq
    %v7436 = vshrl.u32 %v7435, 7
    %v7437 = vsub.s32 %v7434, %v7436
    %v7438 = vrot.slane %v7424, %v7437
    %v7439 = vcombine.high %v7431, %v7431
    %v7440 = vcombine.high %v7438, %v7438
    %v7441 = vcombine.high %v7271, %v7271
    %v7443 = vunpack.c.l.s4 1983009808
    %v7444 = vunpack.c.0.s8 %v7443
    %v7445 = vlaneseq
    %v7446 = vshrl.u32 %v7445, 7
    %v7447 = vsub.s32 %v7444, %v7446
    %v7448 = vrot.slane %v7271, %v7447
    %v7450 = vunpack.c.l.s4 1983009808
    %v7451 = vunpack.c.0.s8 %v7450
    %v7452 = vlaneseq
    %v7453 = vshrl.u32 %v7452, 7
    %v7454 = vsub.s32 %v7451, %v7453
    %v7455 = vrot.slane %v7441, %v7454
    %v7456 = vcombine.high %v7448, %v7448
    %v7457 = vcombine.high %v7455, %v7455
    %v7458 = vcombine.high %v7272, %v7272
    %v7460 = vunpack.c.l.s4 1983009808
    %v7461 = vunpack.c.0.s8 %v7460
    %v7462 = vlaneseq
    %v7463 = vshrl.u32 %v7462, 7
    %v7464 = vsub.s32 %v7461, %v7463
    %v7465 = vrot.slane %v7272, %v7464
    %v7467 = vunpack.c.l.s4 1983009808
    %v7468 = vunpack.c.0.s8 %v7467
    %v7469 = vlaneseq
    %v7470 = vshrl.u32 %v7469, 7
    %v7471 = vsub.s32 %v7468, %v7470
    %v7472 = vrot.slane %v7458, %v7471
    %v7473 = vcombine.high %v7465, %v7465
    %v7474 = vcombine.high %v7472, %v7472
    %v7475 = vcombine.high %v7273, %v7273
    %v7477 = vunpack.c.l.s4 1983009808
    %v7478 = vunpack.c.0.s8 %v7477
    %v7479 = vlaneseq
    %v7480 = vshrl.u32 %v7479, 7
    %v7481 = vsub.s32 %v7478, %v7480
    %v7482 = vrot.slane %v7273, %v7481
    %v7484 = vunpack.c.l.s4 1983009808
    %v7485 = vunpack.c.0.s8 %v7484
    %v7486 = vlaneseq
    %v7487 = vshrl.u32 %v7486, 7
    %v7488 = vsub.s32 %v7485, %v7487
    %v7489 = vrot.slane %v7475, %v7488
    %v7490 = vcombine.high %v7482, %v7482
    %v7491 = vcombine.high %v7489, %v7489
    %v7493 = vunpack.c.l.s4 1983009808
    %v7494 = vunpack.c.0.s8 %v7493
    %v7495 = vlaneseq
    %v7496 = vshrl.u32 %v7495, 7
    %v7497 = vsub.s32 %v7494, %v7496
    %v7498 = vrot.slane %v7274, %v7497
    %v7499 = vcombine.high %v7498, %v7498
    %v7550 = vpack.c.bf16 %v7295, %v7295
    %v7551 = vpack.c.bf16 %v7303, %v7303
    %v7552 = vpack.c.bf16 %v7302, %v7302
    %v7553 = vpack.c.bf16 %v7304, %v7304
    %v7554 = vpack.c.bf16 %v7312, %v7312
    %v7555 = vpack.c.bf16 %v7320, %v7320
    %v7556 = vpack.c.bf16 %v7319, %v7319
    %v7557 = vpack.c.bf16 %v7321, %v7321
    %v7558 = vpack.c.bf16 %v7329, %v7329
    %v7559 = vpack.c.bf16 %v7337, %v7337
    %v7560 = vpack.c.bf16 %v7336, %v7336
    %v7561 = vpack.c.bf16 %v7338, %v7338
    %v7562 = vpack.c.bf16 %v7346, %v7346
    %v7563 = vpack.c.bf16 %v7354, %v7354
    %v7564 = vpack.c.bf16 %v7353, %v7353
    %v7565 = vpack.c.bf16 %v7355, %v7355
    %v7566 = vpack.c.bf16 %v7363, %v7363
    %v7567 = vpack.c.bf16 %v7371, %v7371
    %v7568 = vpack.c.bf16 %v7370, %v7370
    %v7569 = vpack.c.bf16 %v7372, %v7372
    %v7570 = vpack.c.bf16 %v7380, %v7380
    %v7571 = vpack.c.bf16 %v7388, %v7388
    %v7572 = vpack.c.bf16 %v7387, %v7387
    %v7573 = vpack.c.bf16 %v7389, %v7389
    %v7574 = vpack.c.bf16 %v7397, %v7397
    %v7575 = vpack.c.bf16 %v7405, %v7405
    %v7576 = vpack.c.bf16 %v7404, %v7404
    %v7577 = vpack.c.bf16 %v7406, %v7406
    %v7578 = vpack.c.bf16 %v7414, %v7414
    %v7579 = vpack.c.bf16 %v7422, %v7422
    %v7580 = vpack.c.bf16 %v7421, %v7421
    %v7581 = vpack.c.bf16 %v7423, %v7423
    %v7582 = vpack.c.bf16 %v7431, %v7431
    %v7583 = vpack.c.bf16 %v7439, %v7439
    %v7584 = vpack.c.bf16 %v7438, %v7438
    %v7585 = vpack.c.bf16 %v7440, %v7440
    %v7586 = vpack.c.bf16 %v7448, %v7448
    %v7587 = vpack.c.bf16 %v7456, %v7456
    %v7588 = vpack.c.bf16 %v7455, %v7455
    %v7589 = vpack.c.bf16 %v7457, %v7457
    %v7590 = vpack.c.bf16 %v7465, %v7465
    %v7591 = vpack.c.bf16 %v7473, %v7473
    %v7592 = vpack.c.bf16 %v7472, %v7472
    %v7593 = vpack.c.bf16 %v7474, %v7474
    %v7594 = vpack.c.bf16 %v7482, %v7482
    %v7595 = vpack.c.bf16 %v7490, %v7490
    %v7596 = vpack.c.bf16 %v7489, %v7489
    %v7597 = vpack.c.bf16 %v7491, %v7491
    %v7598 = vpack.c.bf16 %v7498, %v7498
    %v7599 = vpack.c.bf16 %v7499, %v7499
    %v7600 = vld [vmem:[#allocation2] sm:$0xff]
    %v7601 = vld [vmem:[#allocation2 + $0x8] sm:$0xff]
    %v7602 = vld [vmem:[#allocation2 + $0x10] sm:$0xff]
    %v7603 = vld [vmem:[#allocation2 + $0x18] sm:$0xff]
    %v7604 = vld [vmem:[#allocation2 + $0x20] sm:$0xff]
    %v7605 = vld [vmem:[#allocation2 + $0x28] sm:$0xff]
    %v7606 = vld [vmem:[#allocation2 + $0x30] sm:$0xff]
    %v7607 = vld [vmem:[#allocation2 + $0x38] sm:$0xff]
    %v7608 = vld [vmem:[#allocation2 + $0x40] sm:$0xff]
    %v7609 = vld [vmem:[#allocation2 + $0x48] sm:$0xff]
    %v7610 = vld [vmem:[#allocation2 + $0x50] sm:$0xff]
    %v7611 = vld [vmem:[#allocation2 + $0x58] sm:$0xff]
    %v7612 = vld [vmem:[#allocation2 + $0x60] sm:$0xff]
    %v7613 = vld [vmem:[#allocation2 + $0x68] sm:$0xff]
    %v7614 = vld [vmem:[#allocation2 + $0x70] sm:$0xff]
    %v7615 = vld [vmem:[#allocation2 + $0x78] sm:$0xff]
    %v7616 = vld [vmem:[#allocation2 + $0x80] sm:$0xff]
    %v7617 = vld [vmem:[#allocation2 + $0x88] sm:$0xff]
    %v7618 = vld [vmem:[#allocation2 + $0x90] sm:$0xff]
    %v7619 = vld [vmem:[#allocation2 + $0x98] sm:$0xff]
    %v7620 = vld [vmem:[#allocation2 + $0xa0] sm:$0xff]
    %v7621 = vld [vmem:[#allocation2 + $0xa8] sm:$0xff]
    %v7622 = vld [vmem:[#allocation2 + $0xb0] sm:$0xff]
    %v7623 = vld [vmem:[#allocation2 + $0xb8] sm:$0xff]
    %v7624 = vld [vmem:[#allocation2 + $0xc0] sm:$0xff]
    %v7625 = vld [vmem:[#allocation2 + $0xc8] sm:$0xff]
    %v7626 = vld [vmem:[#allocation2 + $0xd0] sm:$0xff]
    %v7627 = vld [vmem:[#allocation2 + $0xd8] sm:$0xff]
    %v7628 = vld [vmem:[#allocation2 + $0xe0] sm:$0xff]
    %v7629 = vld [vmem:[#allocation2 + $0xe8] sm:$0xff]
    %v7630 = vld [vmem:[#allocation2 + $0xf0] sm:$0xff]
    %v7631 = vld [vmem:[#allocation2 + $0xf8] sm:$0xff]
    %v7632 = vld [vmem:[#allocation2 + $0x100] sm:$0xff]
    %v7633 = vld [vmem:[#allocation2 + $0x108] sm:$0xff]
    %v7634 = vld [vmem:[#allocation2 + $0x110] sm:$0xff]
    %v7635 = vld [vmem:[#allocation2 + $0x118] sm:$0xff]
    %v7636 = vld [vmem:[#allocation2 + $0x120] sm:$0xff]
    %v7637 = vld [vmem:[#allocation2 + $0x128] sm:$0xff]
    %v7638 = vld [vmem:[#allocation2 + $0x130] sm:$0xff]
    %v7639 = vld [vmem:[#allocation2 + $0x138] sm:$0xff]
    %v7640 = vld [vmem:[#allocation2 + $0x140] sm:$0xff]
    %v7641 = vld [vmem:[#allocation2 + $0x148] sm:$0xff]
    %v7642 = vld [vmem:[#allocation2 + $0x150] sm:$0xff]
    %v7643 = vld [vmem:[#allocation2 + $0x158] sm:$0xff]
    %v7644 = vld [vmem:[#allocation2 + $0x160] sm:$0xff]
    %v7645 = vld [vmem:[#allocation2 + $0x168] sm:$0xff]
    %v7646 = vld [vmem:[#allocation2 + $0x170] sm:$0xff]
    %v7647 = vld [vmem:[#allocation2 + $0x178] sm:$0xff]
    %v7648 = vld [vmem:[#allocation2 + $0x180] sm:$0xff]
    %v7649 = vld [vmem:[#allocation2 + $0x188] sm:$0xff]
    %v7650 = vld [vmem:[#allocation2 + $0x190] sm:$0xff]
    %v7651 = vld [vmem:[#allocation2 + $0x198] sm:$0xff]
    %v7652 = vld [vmem:[#allocation2 + $0x1a0] sm:$0xff]
    %v7653 = vld [vmem:[#allocation2 + $0x1a8] sm:$0xff]
    %v7654 = vld [vmem:[#allocation2 + $0x1b0] sm:$0xff]
    %v7655 = vld [vmem:[#allocation2 + $0x1b8] sm:$0xff]
    %v7656 = vld [vmem:[#allocation2 + $0x1c0] sm:$0xff]
    %v7657 = vld [vmem:[#allocation2 + $0x1c8] sm:$0xff]
    %v7658 = vld [vmem:[#allocation2 + $0x1d0] sm:$0xff]
    %v7659 = vld [vmem:[#allocation2 + $0x1d8] sm:$0xff]
    %v7660 = vld [vmem:[#allocation2 + $0x1e0] sm:$0xff]
    %v7661 = vld [vmem:[#allocation2 + $0x1e8] sm:$0xff]
    %v7662 = vld [vmem:[#allocation2 + $0x1f0] sm:$0xff]
    %v7663 = vld [vmem:[#allocation2 + $0x1f8] sm:$0xff]
    %v7664 = vld [vmem:[#allocation2 + $0x200] sm:$0xff]
    %v7665 = vld [vmem:[#allocation2 + $0x208] sm:$0xff]
    %v7666 = vld [vmem:[#allocation2 + $0x210] sm:$0xff]
    %v7667 = vld [vmem:[#allocation2 + $0x218] sm:$0xff]
    %v7668 = vld [vmem:[#allocation2 + $0x220] sm:$0xff]
    %v7669 = vld [vmem:[#allocation2 + $0x228] sm:$0xff]
    %v7670 = vld [vmem:[#allocation2 + $0x230] sm:$0xff]
    %v7671 = vld [vmem:[#allocation2 + $0x238] sm:$0xff]
    %v7672 = vld [vmem:[#allocation2 + $0x240] sm:$0xff]
    %v7673 = vld [vmem:[#allocation2 + $0x248] sm:$0xff]
    %v7674 = vld [vmem:[#allocation2 + $0x250] sm:$0xff]
    %v7675 = vld [vmem:[#allocation2 + $0x258] sm:$0xff]
    %v7676 = vld [vmem:[#allocation2 + $0x260] sm:$0xff]
    %v7677 = vld [vmem:[#allocation2 + $0x268] sm:$0xff]
    %v7678 = vld [vmem:[#allocation2 + $0x270] sm:$0xff]
    %v7679 = vld [vmem:[#allocation2 + $0x278] sm:$0xff]
    %v7680 = vld [vmem:[#allocation2 + $0x280] sm:$0xff]
    %v7681 = vld [vmem:[#allocation2 + $0x288] sm:$0xff]
    %v7682 = vld [vmem:[#allocation2 + $0x290] sm:$0xff]
    %v7683 = vld [vmem:[#allocation2 + $0x298] sm:$0xff]
    %v7684 = vld [vmem:[#allocation2 + $0x2a0] sm:$0xff]
    %v7685 = vld [vmem:[#allocation2 + $0x2a8] sm:$0xff]
    %v7686 = vld [vmem:[#allocation2 + $0x2b0] sm:$0xff]
    %v7687 = vld [vmem:[#allocation2 + $0x2b8] sm:$0xff]
    %v7688 = vld [vmem:[#allocation2 + $0x2c0] sm:$0xff]
    %v7689 = vld [vmem:[#allocation2 + $0x2c8] sm:$0xff]
    %v7690 = vld [vmem:[#allocation2 + $0x2d0] sm:$0xff]
    %v7691 = vld [vmem:[#allocation2 + $0x2d8] sm:$0xff]
    %v7692 = vld [vmem:[#allocation2 + $0x2e0] sm:$0xff]
    %v7693 = vld [vmem:[#allocation2 + $0x2e8] sm:$0xff]
    %v7694 = vld [vmem:[#allocation2 + $0x2f0] sm:$0xff]
    %v7695 = vld [vmem:[#allocation2 + $0x2f8] sm:$0xff]
    %v7696 = vld [vmem:[#allocation2 + $0x300] sm:$0xff]
    %v7697 = vld [vmem:[#allocation2 + $0x308] sm:$0xff]
    %v7698 = vld [vmem:[#allocation2 + $0x310] sm:$0xff]
    %v7699 = vld [vmem:[#allocation2 + $0x318] sm:$0xff]
    %v7700 = vld [vmem:[#allocation2 + $0x320] sm:$0xff]
    %v7701 = vld [vmem:[#allocation2 + $0x328] sm:$0xff]
    %v7702 = vld [vmem:[#allocation2 + $0x330] sm:$0xff]
    %v7703 = vld [vmem:[#allocation2 + $0x338] sm:$0xff]
    %v7704 = vld [vmem:[#allocation2 + $0x340] sm:$0xff]
    %v7705 = vld [vmem:[#allocation2 + $0x348] sm:$0xff]
    %v7706 = vld [vmem:[#allocation2 + $0x350] sm:$0xff]
    %v7707 = vld [vmem:[#allocation2 + $0x358] sm:$0xff]
    %v7708 = vld [vmem:[#allocation2 + $0x360] sm:$0xff]
    %v7709 = vld [vmem:[#allocation2 + $0x368] sm:$0xff]
    %v7710 = vld [vmem:[#allocation2 + $0x370] sm:$0xff]
    %v7711 = vld [vmem:[#allocation2 + $0x378] sm:$0xff]
    %v7712 = vld [vmem:[#allocation2 + $0x380] sm:$0xff]
    %v7713 = vld [vmem:[#allocation2 + $0x388] sm:$0xff]
    %v7714 = vld [vmem:[#allocation2 + $0x390] sm:$0xff]
    %v7715 = vld [vmem:[#allocation2 + $0x398] sm:$0xff]
    %v7716 = vld [vmem:[#allocation2 + $0x3a0] sm:$0xff]
    %v7717 = vld [vmem:[#allocation2 + $0x3a8] sm:$0xff]
    %v7718 = vld [vmem:[#allocation2 + $0x3b0] sm:$0xff]
    %v7719 = vld [vmem:[#allocation2 + $0x3b8] sm:$0xff]
    %v7720 = vld [vmem:[#allocation2 + $0x3c0] sm:$0xff]
    %v7721 = vld [vmem:[#allocation2 + $0x3c8] sm:$0xff]
    %v7722 = vld [vmem:[#allocation2 + $0x3d0] sm:$0xff]
    %v7723 = vld [vmem:[#allocation2 + $0x3d8] sm:$0xff]
    %v7724 = vld [vmem:[#allocation2 + $0x3e0] sm:$0xff]
    %v7725 = vld [vmem:[#allocation2 + $0x3e8] sm:$0xff]
    %v7726 = vld [vmem:[#allocation2 + $0x3f0] sm:$0xff]
    %v7727 = vld [vmem:[#allocation2 + $0x3f8] sm:$0xff]
    %v7728 = vld [vmem:[#allocation2 + $0x400] sm:$0xff]
    %v7729 = vld [vmem:[#allocation2 + $0x408] sm:$0xff]
    %v7730 = vld [vmem:[#allocation2 + $0x410] sm:$0xff]
    %v7731 = vld [vmem:[#allocation2 + $0x418] sm:$0xff]
    %v7732 = vld [vmem:[#allocation2 + $0x420] sm:$0xff]
    %v7733 = vld [vmem:[#allocation2 + $0x428] sm:$0xff]
    %v7734 = vld [vmem:[#allocation2 + $0x430] sm:$0xff]
    %v7735 = vld [vmem:[#allocation2 + $0x438] sm:$0xff]
    %v7736 = vld [vmem:[#allocation2 + $0x440] sm:$0xff]
    %v7737 = vld [vmem:[#allocation2 + $0x448] sm:$0xff]
    %v7738 = vld [vmem:[#allocation2 + $0x450] sm:$0xff]
    %v7739 = vld [vmem:[#allocation2 + $0x458] sm:$0xff]
    %v7740 = vld [vmem:[#allocation2 + $0x460] sm:$0xff]
    %v7741 = vld [vmem:[#allocation2 + $0x468] sm:$0xff]
    %v7742 = vld [vmem:[#allocation2 + $0x470] sm:$0xff]
    %v7743 = vld [vmem:[#allocation2 + $0x478] sm:$0xff]
    %v7744 = vld [vmem:[#allocation2 + $0x480] sm:$0xff]
    %v7745 = vld [vmem:[#allocation2 + $0x488] sm:$0xff]
    %v7746 = vld [vmem:[#allocation2 + $0x490] sm:$0xff]
    %v7747 = vld [vmem:[#allocation2 + $0x498] sm:$0xff]
    %v7748 = vld [vmem:[#allocation2 + $0x4a0] sm:$0xff]
    %v7749 = vld [vmem:[#allocation2 + $0x4a8] sm:$0xff]
    %v7750 = vld [vmem:[#allocation2 + $0x4b0] sm:$0xff]
    %v7751 = vld [vmem:[#allocation2 + $0x4b8] sm:$0xff]
    %v7752 = vld [vmem:[#allocation2 + $0x4c0] sm:$0xff]
    %v7753 = vld [vmem:[#allocation2 + $0x4c8] sm:$0xff]
    %v7754 = vld [vmem:[#allocation2 + $0x4d0] sm:$0xff]
    %v7755 = vld [vmem:[#allocation2 + $0x4d8] sm:$0xff]
    %v7756 = vld [vmem:[#allocation2 + $0x4e0] sm:$0xff]
    %v7757 = vld [vmem:[#allocation2 + $0x4e8] sm:$0xff]
    %v7758 = vld [vmem:[#allocation2 + $0x4f0] sm:$0xff]
    %v7759 = vld [vmem:[#allocation2 + $0x4f8] sm:$0xff]
    %v7760 = vld [vmem:[#allocation2 + $0x500] sm:$0xff]
    %v7761 = vld [vmem:[#allocation2 + $0x508] sm:$0xff]
    %v7762 = vld [vmem:[#allocation2 + $0x510] sm:$0xff]
    %v7763 = vld [vmem:[#allocation2 + $0x518] sm:$0xff]
    %v7764 = vld [vmem:[#allocation2 + $0x520] sm:$0xff]
    %v7765 = vld [vmem:[#allocation2 + $0x528] sm:$0xff]
    %v7766 = vld [vmem:[#allocation2 + $0x530] sm:$0xff]
    %v7767 = vld [vmem:[#allocation2 + $0x538] sm:$0xff]
    %v7768 = vld [vmem:[#allocation2 + $0x540] sm:$0xff]
    %v7769 = vld [vmem:[#allocation2 + $0x548] sm:$0xff]
    %v7770 = vld [vmem:[#allocation2 + $0x550] sm:$0xff]
    %v7771 = vld [vmem:[#allocation2 + $0x558] sm:$0xff]
    %v7772 = vld [vmem:[#allocation2 + $0x560] sm:$0xff]
    %v7773 = vld [vmem:[#allocation2 + $0x568] sm:$0xff]
    %v7774 = vld [vmem:[#allocation2 + $0x570] sm:$0xff]
    %v7775 = vld [vmem:[#allocation2 + $0x578] sm:$0xff]
    %v7776 = vld [vmem:[#allocation2 + $0x580] sm:$0xff]
    %v7777 = vld [vmem:[#allocation2 + $0x588] sm:$0xff]
    %v7778 = vld [vmem:[#allocation2 + $0x590] sm:$0xff]
    %v7779 = vld [vmem:[#allocation2 + $0x598] sm:$0xff]
    %v7780 = vld [vmem:[#allocation2 + $0x5a0] sm:$0xff]
    %v7781 = vld [vmem:[#allocation2 + $0x5a8] sm:$0xff]
    %v7782 = vld [vmem:[#allocation2 + $0x5b0] sm:$0xff]
    %v7783 = vld [vmem:[#allocation2 + $0x5b8] sm:$0xff]
    %v7784 = vld [vmem:[#allocation2 + $0x5c0] sm:$0xff]
    %v7785 = vld [vmem:[#allocation2 + $0x5c8] sm:$0xff]
    %v7786 = vld [vmem:[#allocation2 + $0x5d0] sm:$0xff]
    %v7787 = vld [vmem:[#allocation2 + $0x5d8] sm:$0xff]
    %v7788 = vld [vmem:[#allocation2 + $0x5e0] sm:$0xff]
    %v7789 = vld [vmem:[#allocation2 + $0x5e8] sm:$0xff]
    %v7790 = vld [vmem:[#allocation2 + $0x5f0] sm:$0xff]
    %v7791 = vld [vmem:[#allocation2 + $0x5f8] sm:$0xff]
    %v7792 = vld [vmem:[#allocation2 + $0x600] sm:$0xff]
    %v7793 = vld [vmem:[#allocation2 + $0x608] sm:$0xff]
    %v7794 = vld [vmem:[#allocation2 + $0x610] sm:$0xff]
    %v7795 = vld [vmem:[#allocation2 + $0x618] sm:$0xff]
    %v7796 = vld [vmem:[#allocation2 + $0x620] sm:$0xff]
    %v7797 = vld [vmem:[#allocation2 + $0x628] sm:$0xff]
    %v7798 = vld [vmem:[#allocation2 + $0x630] sm:$0xff]
    %v7799 = vld [vmem:[#allocation2 + $0x638] sm:$0xff]
    %v7800 = vld [vmem:[#allocation2 + $0x640] sm:$0xff]
    %v7801 = vld [vmem:[#allocation2 + $0x648] sm:$0xff]
    %v7802 = vld [vmem:[#allocation2 + $0x650] sm:$0xff]
    %v7803 = vld [vmem:[#allocation2 + $0x658] sm:$0xff]
    %v7804 = vld [vmem:[#allocation2 + $0x660] sm:$0xff]
    %v7805 = vld [vmem:[#allocation2 + $0x668] sm:$0xff]
    %v7806 = vld [vmem:[#allocation2 + $0x670] sm:$0xff]
    %v7807 = vld [vmem:[#allocation2 + $0x678] sm:$0xff]
    %v7808 = vld [vmem:[#allocation2 + $0x680] sm:$0xff]
    %v7809 = vld [vmem:[#allocation2 + $0x688] sm:$0xff]
    %v7810 = vld [vmem:[#allocation2 + $0x690] sm:$0xff]
    %v7811 = vld [vmem:[#allocation2 + $0x698] sm:$0xff]
    %v7812 = vld [vmem:[#allocation2 + $0x6a0] sm:$0xff]
    %v7813 = vld [vmem:[#allocation2 + $0x6a8] sm:$0xff]
    %v7814 = vld [vmem:[#allocation2 + $0x6b0] sm:$0xff]
    %v7815 = vld [vmem:[#allocation2 + $0x6b8] sm:$0xff]
    %v7816 = vld [vmem:[#allocation2 + $0x6c0] sm:$0xff]
    %v7817 = vld [vmem:[#allocation2 + $0x6c8] sm:$0xff]
    %v7818 = vld [vmem:[#allocation2 + $0x6d0] sm:$0xff]
    %v7819 = vld [vmem:[#allocation2 + $0x6d8] sm:$0xff]
    %v7820 = vld [vmem:[#allocation2 + $0x6e0] sm:$0xff]
    %v7821 = vld [vmem:[#allocation2 + $0x6e8] sm:$0xff]
    %v7822 = vld [vmem:[#allocation2 + $0x6f0] sm:$0xff]
    %v7823 = vld [vmem:[#allocation2 + $0x6f8] sm:$0xff]
    %v7824 = vld [vmem:[#allocation2 + $0x700] sm:$0xff]
    %v7825 = vld [vmem:[#allocation2 + $0x708] sm:$0xff]
    %v7826 = vld [vmem:[#allocation2 + $0x710] sm:$0xff]
    %v7827 = vld [vmem:[#allocation2 + $0x718] sm:$0xff]
    %v7828 = vld [vmem:[#allocation2 + $0x720] sm:$0xff]
    %v7829 = vld [vmem:[#allocation2 + $0x728] sm:$0xff]
    %v7830 = vld [vmem:[#allocation2 + $0x730] sm:$0xff]
    %v7831 = vld [vmem:[#allocation2 + $0x738] sm:$0xff]
    %v7832 = vld [vmem:[#allocation2 + $0x740] sm:$0xff]
    %v7833 = vld [vmem:[#allocation2 + $0x748] sm:$0xff]
    %v7834 = vld [vmem:[#allocation2 + $0x750] sm:$0xff]
    %v7835 = vld [vmem:[#allocation2 + $0x758] sm:$0xff]
    %v7836 = vld [vmem:[#allocation2 + $0x760] sm:$0xff]
    %v7837 = vld [vmem:[#allocation2 + $0x768] sm:$0xff]
    %v7838 = vld [vmem:[#allocation2 + $0x770] sm:$0xff]
    %v7839 = vld [vmem:[#allocation2 + $0x778] sm:$0xff]
    %v7840 = vld [vmem:[#allocation2 + $0x780] sm:$0xff]
    %v7841 = vld [vmem:[#allocation2 + $0x788] sm:$0xff]
    %v7842 = vld [vmem:[#allocation2 + $0x790] sm:$0xff]
    %v7843 = vld [vmem:[#allocation2 + $0x798] sm:$0xff]
    %v7844 = vld [vmem:[#allocation2 + $0x7a0] sm:$0xff]
    %v7845 = vld [vmem:[#allocation2 + $0x7a8] sm:$0xff]
    %v7846 = vld [vmem:[#allocation2 + $0x7b0] sm:$0xff]
    %v7847 = vld [vmem:[#allocation2 + $0x7b8] sm:$0xff]
    %v7848 = vld [vmem:[#allocation2 + $0x7c0] sm:$0xff]
    %v7849 = vld [vmem:[#allocation2 + $0x7c8] sm:$0xff]
    %v7850 = vld [vmem:[#allocation2 + $0x7d0] sm:$0xff]
    %v7851 = vld [vmem:[#allocation2 + $0x7d8] sm:$0xff]
    %v7852 = vld [vmem:[#allocation2 + $0x7e0] sm:$0xff]
    %v7853 = vld [vmem:[#allocation2 + $0x7e8] sm:$0xff]
    %v7854 = vld [vmem:[#allocation2 + $0x7f0] sm:$0xff]
    %v7855 = vld [vmem:[#allocation2 + $0x7f8] sm:$0xff]
    %v7856 = vld [vmem:[#allocation2 + $0x800] sm:$0xff]
    %v7857 = vld [vmem:[#allocation2 + $0x808] sm:$0xff]
    %v7858 = vld [vmem:[#allocation2 + $0x810] sm:$0xff]
    %v7859 = vld [vmem:[#allocation2 + $0x818] sm:$0xff]
    %v7860 = vld [vmem:[#allocation2 + $0x820] sm:$0xff]
    %v7861 = vld [vmem:[#allocation2 + $0x828] sm:$0xff]
    %v7862 = vld [vmem:[#allocation2 + $0x830] sm:$0xff]
    %v7863 = vld [vmem:[#allocation2 + $0x838] sm:$0xff]
    %v7864 = vld [vmem:[#allocation2 + $0x840] sm:$0xff]
    %v7865 = vld [vmem:[#allocation2 + $0x848] sm:$0xff]
    %v7866 = vld [vmem:[#allocation2 + $0x850] sm:$0xff]
    %v7867 = vld [vmem:[#allocation2 + $0x858] sm:$0xff]
    %v7868 = vld [vmem:[#allocation2 + $0x860] sm:$0xff]
    %v7869 = vld [vmem:[#allocation2 + $0x868] sm:$0xff]
    %v7870 = vld [vmem:[#allocation2 + $0x870] sm:$0xff]
    %v7871 = vld [vmem:[#allocation2 + $0x878] sm:$0xff]
    %v7872 = vld [vmem:[#allocation2 + $0x880] sm:$0xff]
    %v7873 = vld [vmem:[#allocation2 + $0x888] sm:$0xff]
    %v7874 = vld [vmem:[#allocation2 + $0x890] sm:$0xff]
    %v7875 = vld [vmem:[#allocation2 + $0x898] sm:$0xff]
    %v7876 = vld [vmem:[#allocation2 + $0x8a0] sm:$0xff]
    %v7877 = vld [vmem:[#allocation2 + $0x8a8] sm:$0xff]
    %v7878 = vld [vmem:[#allocation2 + $0x8b0] sm:$0xff]
    %v7879 = vld [vmem:[#allocation2 + $0x8b8] sm:$0xff]
    %v7880 = vld [vmem:[#allocation2 + $0x8c0] sm:$0xff]
    %v7881 = vld [vmem:[#allocation2 + $0x8c8] sm:$0xff]
    %v7882 = vld [vmem:[#allocation2 + $0x8d0] sm:$0xff]
    %v7883 = vld [vmem:[#allocation2 + $0x8d8] sm:$0xff]
    %v7884 = vld [vmem:[#allocation2 + $0x8e0] sm:$0xff]
    %v7885 = vld [vmem:[#allocation2 + $0x8e8] sm:$0xff]
    %v7886 = vld [vmem:[#allocation2 + $0x8f0] sm:$0xff]
    %v7887 = vld [vmem:[#allocation2 + $0x8f8] sm:$0xff]
    %v7888 = vld [vmem:[#allocation2 + $0x900] sm:$0xff]
    %v7889 = vld [vmem:[#allocation2 + $0x908] sm:$0xff]
    %v7890 = vld [vmem:[#allocation2 + $0x910] sm:$0xff]
    %v7891 = vld [vmem:[#allocation2 + $0x918] sm:$0xff]
    %v7892 = vld [vmem:[#allocation2 + $0x920] sm:$0xff]
    %v7893 = vld [vmem:[#allocation2 + $0x928] sm:$0xff]
    %v7894 = vld [vmem:[#allocation2 + $0x930] sm:$0xff]
    %v7895 = vld [vmem:[#allocation2 + $0x938] sm:$0xff]
    %v7896 = vld [vmem:[#allocation2 + $0x940] sm:$0xff]
    %v7897 = vld [vmem:[#allocation2 + $0x948] sm:$0xff]
    %v7898 = vld [vmem:[#allocation2 + $0x950] sm:$0xff]
    %v7899 = vld [vmem:[#allocation2 + $0x958] sm:$0xff]
    %v7900 = vld [vmem:[#allocation2 + $0x960] sm:$0xff]
    %v7901 = vld [vmem:[#allocation2 + $0x968] sm:$0xff]
    %v7902 = vld [vmem:[#allocation2 + $0x970] sm:$0xff]
    %v7903 = vld [vmem:[#allocation2 + $0x978] sm:$0xff]
    %v7904 = vld [vmem:[#allocation2 + $0x980] sm:$0xff]
    %v7905 = vld [vmem:[#allocation2 + $0x988] sm:$0xff]
    %v7906 = vld [vmem:[#allocation2 + $0x990] sm:$0xff]
    %v7907 = vld [vmem:[#allocation2 + $0x998] sm:$0xff]
    %v7908 = vld [vmem:[#allocation2 + $0x9a0] sm:$0xff]
    %v7909 = vld [vmem:[#allocation2 + $0x9a8] sm:$0xff]
    %v7910 = vld [vmem:[#allocation2 + $0x9b0] sm:$0xff]
    %v7911 = vld [vmem:[#allocation2 + $0x9b8] sm:$0xff]
    %v7912 = vld [vmem:[#allocation2 + $0x9c0] sm:$0xff]
    %v7913 = vld [vmem:[#allocation2 + $0x9c8] sm:$0xff]
    %v7914 = vld [vmem:[#allocation2 + $0x9d0] sm:$0xff]
    %v7915 = vld [vmem:[#allocation2 + $0x9d8] sm:$0xff]
    %v7916 = vld [vmem:[#allocation2 + $0x9e0] sm:$0xff]
    %v7917 = vld [vmem:[#allocation2 + $0x9e8] sm:$0xff]
    %v7918 = vld [vmem:[#allocation2 + $0x9f0] sm:$0xff]
    %v7919 = vld [vmem:[#allocation2 + $0x9f8] sm:$0xff]
    %v7920 = vld [vmem:[#allocation2 + $0xa00] sm:$0xff]
    %v7921 = vld [vmem:[#allocation2 + $0xa08] sm:$0xff]
    %v7922 = vld [vmem:[#allocation2 + $0xa10] sm:$0xff]
    %v7923 = vld [vmem:[#allocation2 + $0xa18] sm:$0xff]
    %v7924 = vld [vmem:[#allocation2 + $0xa20] sm:$0xff]
    %v7925 = vld [vmem:[#allocation2 + $0xa28] sm:$0xff]
    %v7926 = vld [vmem:[#allocation2 + $0xa30] sm:$0xff]
    %v7927 = vld [vmem:[#allocation2 + $0xa38] sm:$0xff]
    %v7928 = vld [vmem:[#allocation2 + $0xa40] sm:$0xff]
    %v7929 = vld [vmem:[#allocation2 + $0xa48] sm:$0xff]
    %v7930 = vld [vmem:[#allocation2 + $0xa50] sm:$0xff]
    %v7931 = vld [vmem:[#allocation2 + $0xa58] sm:$0xff]
    %v7932 = vld [vmem:[#allocation2 + $0xa60] sm:$0xff]
    %v7933 = vld [vmem:[#allocation2 + $0xa68] sm:$0xff]
    %v7934 = vld [vmem:[#allocation2 + $0xa70] sm:$0xff]
    %v7935 = vld [vmem:[#allocation2 + $0xa78] sm:$0xff]
    %v7936 = vld [vmem:[#allocation2 + $0xa80] sm:$0xff]
    %v7937 = vld [vmem:[#allocation2 + $0xa88] sm:$0xff]
    %v7938 = vld [vmem:[#allocation2 + $0xa90] sm:$0xff]
    %v7939 = vld [vmem:[#allocation2 + $0xa98] sm:$0xff]
    %v7940 = vld [vmem:[#allocation2 + $0xaa0] sm:$0xff]
    %v7941 = vld [vmem:[#allocation2 + $0xaa8] sm:$0xff]
    %v7942 = vld [vmem:[#allocation2 + $0xab0] sm:$0xff]
    %v7943 = vld [vmem:[#allocation2 + $0xab8] sm:$0xff]
    %v7944 = vld [vmem:[#allocation2 + $0xac0] sm:$0xff]
    %v7945 = vld [vmem:[#allocation2 + $0xac8] sm:$0xff]
    %v7946 = vld [vmem:[#allocation2 + $0xad0] sm:$0xff]
    %v7947 = vld [vmem:[#allocation2 + $0xad8] sm:$0xff]
    %v7948 = vld [vmem:[#allocation2 + $0xae0] sm:$0xff]
    %v7949 = vld [vmem:[#allocation2 + $0xae8] sm:$0xff]
    %v7950 = vld [vmem:[#allocation2 + $0xaf0] sm:$0xff]
    %v7951 = vld [vmem:[#allocation2 + $0xaf8] sm:$0xff]
    %v7952 = vld [vmem:[#allocation2 + $0xb00] sm:$0xff]
    %v7953 = vld [vmem:[#allocation2 + $0xb08] sm:$0xff]
    %v7954 = vld [vmem:[#allocation2 + $0xb10] sm:$0xff]
    %v7955 = vld [vmem:[#allocation2 + $0xb18] sm:$0xff]
    %v7956 = vld [vmem:[#allocation2 + $0xb20] sm:$0xff]
    %v7957 = vld [vmem:[#allocation2 + $0xb28] sm:$0xff]
    %v7958 = vld [vmem:[#allocation2 + $0xb30] sm:$0xff]
    %v7959 = vld [vmem:[#allocation2 + $0xb38] sm:$0xff]
    %v7960 = vld [vmem:[#allocation2 + $0xb40] sm:$0xff]
    %v7961 = vld [vmem:[#allocation2 + $0xb48] sm:$0xff]
    %v7962 = vld [vmem:[#allocation2 + $0xb50] sm:$0xff]
    %v7963 = vld [vmem:[#allocation2 + $0xb58] sm:$0xff]
    %v7964 = vld [vmem:[#allocation2 + $0xb60] sm:$0xff]
    %v7965 = vld [vmem:[#allocation2 + $0xb68] sm:$0xff]
    %v7966 = vld [vmem:[#allocation2 + $0xb70] sm:$0xff]
    %v7967 = vld [vmem:[#allocation2 + $0xb78] sm:$0xff]
    %v7968 = vld [vmem:[#allocation2 + $0xb80] sm:$0xff]
    %v7969 = vld [vmem:[#allocation2 + $0xb88] sm:$0xff]
    %v7970 = vld [vmem:[#allocation2 + $0xb90] sm:$0xff]
    %v7971 = vld [vmem:[#allocation2 + $0xb98] sm:$0xff]
    %v7972 = vld [vmem:[#allocation2 + $0xba0] sm:$0xff]
    %v7973 = vld [vmem:[#allocation2 + $0xba8] sm:$0xff]
    %v7974 = vld [vmem:[#allocation2 + $0xbb0] sm:$0xff]
    %v7975 = vld [vmem:[#allocation2 + $0xbb8] sm:$0xff]
    %v7976 = vld [vmem:[#allocation2 + $0xbc0] sm:$0xff]
    %v7977 = vld [vmem:[#allocation2 + $0xbc8] sm:$0xff]
    %v7978 = vld [vmem:[#allocation2 + $0xbd0] sm:$0xff]
    %v7979 = vld [vmem:[#allocation2 + $0xbd8] sm:$0xff]
    %v7980 = vld [vmem:[#allocation2 + $0xbe0] sm:$0xff]
    %v7981 = vld [vmem:[#allocation2 + $0xbe8] sm:$0xff]
    %v7982 = vld [vmem:[#allocation2 + $0xbf0] sm:$0xff]
    %v7983 = vld [vmem:[#allocation2 + $0xbf8] sm:$0xff]
    %v7984 = vld [vmem:[#allocation2 + $0xc00] sm:$0xff]
    %v7985 = vld [vmem:[#allocation2 + $0xc08] sm:$0xff]
    %v7986 = vld [vmem:[#allocation2 + $0xc10] sm:$0xff]
    %v7987 = vld [vmem:[#allocation2 + $0xc18] sm:$0xff]
    %v7988 = vld [vmem:[#allocation2 + $0xc20] sm:$0xff]
    %v7989 = vld [vmem:[#allocation2 + $0xc28] sm:$0xff]
    %v7990 = vld [vmem:[#allocation2 + $0xc30] sm:$0xff]
    %v7991 = vld [vmem:[#allocation2 + $0xc38] sm:$0xff]
    %v7992 = vld [vmem:[#allocation2 + $0xc40] sm:$0xff]
    %v7993 = vld [vmem:[#allocation2 + $0xc48] sm:$0xff]
    %v7994 = vld [vmem:[#allocation2 + $0xc50] sm:$0xff]
    %v7995 = vld [vmem:[#allocation2 + $0xc58] sm:$0xff]
    %v7996 = vld [vmem:[#allocation2 + $0xc60] sm:$0xff]
    %v7997 = vld [vmem:[#allocation2 + $0xc68] sm:$0xff]
    %v7998 = vld [vmem:[#allocation2 + $0xc70] sm:$0xff]
    %v7999 = vld [vmem:[#allocation2 + $0xc78] sm:$0xff]
    %v8000 = vld [vmem:[#allocation2 + $0xc80] sm:$0xff]
    %v8001 = vld [vmem:[#allocation2 + $0xc88] sm:$0xff]
    %v8002 = vld [vmem:[#allocation2 + $0xc90] sm:$0xff]
    %v8003 = vld [vmem:[#allocation2 + $0xc98] sm:$0xff]
    %v8004 = vld [vmem:[#allocation2 + $0xca0] sm:$0xff]
    %v8005 = vld [vmem:[#allocation2 + $0xca8] sm:$0xff]
    %v8006 = vld [vmem:[#allocation2 + $0xcb0] sm:$0xff]
    %v8007 = vld [vmem:[#allocation2 + $0xcb8] sm:$0xff]
    %v8008 = vld [vmem:[#allocation2 + $0xcc0] sm:$0xff]
    %v8009 = vld [vmem:[#allocation2 + $0xcc8] sm:$0xff]
    %v8010 = vld [vmem:[#allocation2 + $0xcd0] sm:$0xff]
    %v8011 = vld [vmem:[#allocation2 + $0xcd8] sm:$0xff]
    %v8012 = vld [vmem:[#allocation2 + $0xce0] sm:$0xff]
    %v8013 = vld [vmem:[#allocation2 + $0xce8] sm:$0xff]
    %v8014 = vld [vmem:[#allocation2 + $0xcf0] sm:$0xff]
    %v8015 = vld [vmem:[#allocation2 + $0xcf8] sm:$0xff]
    %v8016 = vld [vmem:[#allocation2 + $0xd00] sm:$0xff]
    %v8017 = vld [vmem:[#allocation2 + $0xd08] sm:$0xff]
    %v8018 = vld [vmem:[#allocation2 + $0xd10] sm:$0xff]
    %v8019 = vld [vmem:[#allocation2 + $0xd18] sm:$0xff]
    %v8020 = vld [vmem:[#allocation2 + $0xd20] sm:$0xff]
    %v8021 = vld [vmem:[#allocation2 + $0xd28] sm:$0xff]
    %v8022 = vld [vmem:[#allocation2 + $0xd30] sm:$0xff]
    %v8023 = vld [vmem:[#allocation2 + $0xd38] sm:$0xff]
    %v8024 = vld [vmem:[#allocation2 + $0xd40] sm:$0xff]
    %v8025 = vld [vmem:[#allocation2 + $0xd48] sm:$0xff]
    %v8026 = vld [vmem:[#allocation2 + $0xd50] sm:$0xff]
    %v8027 = vld [vmem:[#allocation2 + $0xd58] sm:$0xff]
    %v8028 = vld [vmem:[#allocation2 + $0xd60] sm:$0xff]
    %v8029 = vld [vmem:[#allocation2 + $0xd68] sm:$0xff]
    %v8030 = vld [vmem:[#allocation2 + $0xd70] sm:$0xff]
    %v8031 = vld [vmem:[#allocation2 + $0xd78] sm:$0xff]
    %v8032 = vld [vmem:[#allocation2 + $0xd80] sm:$0xff]
    %v8033 = vld [vmem:[#allocation2 + $0xd88] sm:$0xff]
    %v8034 = vld [vmem:[#allocation2 + $0xd90] sm:$0xff]
    %v8035 = vld [vmem:[#allocation2 + $0xd98] sm:$0xff]
    %v8036 = vld [vmem:[#allocation2 + $0xda0] sm:$0xff]
    %v8037 = vld [vmem:[#allocation2 + $0xda8] sm:$0xff]
    %v8038 = vld [vmem:[#allocation2 + $0xdb0] sm:$0xff]
    %v8039 = vld [vmem:[#allocation2 + $0xdb8] sm:$0xff]
    %v8040 = vld [vmem:[#allocation2 + $0xdc0] sm:$0xff]
    %v8041 = vld [vmem:[#allocation2 + $0xdc8] sm:$0xff]
    %v8042 = vld [vmem:[#allocation2 + $0xdd0] sm:$0xff]
    %v8043 = vld [vmem:[#allocation2 + $0xdd8] sm:$0xff]
    %v8044 = vld [vmem:[#allocation2 + $0xde0] sm:$0xff]
    %v8045 = vld [vmem:[#allocation2 + $0xde8] sm:$0xff]
    %v8046 = vld [vmem:[#allocation2 + $0xdf0] sm:$0xff]
    %v8047 = vld [vmem:[#allocation2 + $0xdf8] sm:$0xff]
    %v8048 = vld [vmem:[#allocation2 + $0xe00] sm:$0xff]
    %v8049 = vld [vmem:[#allocation2 + $0xe08] sm:$0xff]
    %v8050 = vld [vmem:[#allocation2 + $0xe10] sm:$0xff]
    %v8051 = vld [vmem:[#allocation2 + $0xe18] sm:$0xff]
    %v8052 = vld [vmem:[#allocation2 + $0xe20] sm:$0xff]
    %v8053 = vld [vmem:[#allocation2 + $0xe28] sm:$0xff]
    %v8054 = vld [vmem:[#allocation2 + $0xe30] sm:$0xff]
    %v8055 = vld [vmem:[#allocation2 + $0xe38] sm:$0xff]
    %v8056 = vld [vmem:[#allocation2 + $0xe40] sm:$0xff]
    %v8057 = vld [vmem:[#allocation2 + $0xe48] sm:$0xff]
    %v8058 = vld [vmem:[#allocation2 + $0xe50] sm:$0xff]
    %v8059 = vld [vmem:[#allocation2 + $0xe58] sm:$0xff]
    %v8060 = vld [vmem:[#allocation2 + $0xe60] sm:$0xff]
    %v8061 = vld [vmem:[#allocation2 + $0xe68] sm:$0xff]
    %v8062 = vld [vmem:[#allocation2 + $0xe70] sm:$0xff]
    %v8063 = vld [vmem:[#allocation2 + $0xe78] sm:$0xff]
    %v8064 = vld [vmem:[#allocation2 + $0xe80] sm:$0xff]
    %v8065 = vld [vmem:[#allocation2 + $0xe88] sm:$0xff]
    %v8066 = vld [vmem:[#allocation2 + $0xe90] sm:$0xff]
    %v8067 = vld [vmem:[#allocation2 + $0xe98] sm:$0xff]
    %v8068 = vld [vmem:[#allocation2 + $0xea0] sm:$0xff]
    %v8069 = vld [vmem:[#allocation2 + $0xea8] sm:$0xff]
    %v8070 = vld [vmem:[#allocation2 + $0xeb0] sm:$0xff]
    %v8071 = vld [vmem:[#allocation2 + $0xeb8] sm:$0xff]
    %v8072 = vld [vmem:[#allocation2 + $0xec0] sm:$0xff]
    %v8073 = vld [vmem:[#allocation2 + $0xec8] sm:$0xff]
    %v8074 = vld [vmem:[#allocation2 + $0xed0] sm:$0xff]
    %v8075 = vld [vmem:[#allocation2 + $0xed8] sm:$0xff]
    %v8076 = vld [vmem:[#allocation2 + $0xee0] sm:$0xff]
    %v8077 = vld [vmem:[#allocation2 + $0xee8] sm:$0xff]
    %v8078 = vld [vmem:[#allocation2 + $0xef0] sm:$0xff]
    %v8079 = vld [vmem:[#allocation2 + $0xef8] sm:$0xff]
    %v8080 = vld [vmem:[#allocation2 + $0xf00] sm:$0xff]
    %v8081 = vld [vmem:[#allocation2 + $0xf08] sm:$0xff]
    %v8082 = vld [vmem:[#allocation2 + $0xf10] sm:$0xff]
    %v8083 = vld [vmem:[#allocation2 + $0xf18] sm:$0xff]
    %v8084 = vld [vmem:[#allocation2 + $0xf20] sm:$0xff]
    %v8085 = vld [vmem:[#allocation2 + $0xf28] sm:$0xff]
    %v8086 = vld [vmem:[#allocation2 + $0xf30] sm:$0xff]
    %v8087 = vld [vmem:[#allocation2 + $0xf38] sm:$0xff]
    %v8088 = vld [vmem:[#allocation2 + $0xf40] sm:$0xff]
    %v8089 = vld [vmem:[#allocation2 + $0xf48] sm:$0xff]
    %v8090 = vld [vmem:[#allocation2 + $0xf50] sm:$0xff]
    %v8091 = vld [vmem:[#allocation2 + $0xf58] sm:$0xff]
    %v8092 = vld [vmem:[#allocation2 + $0xf60] sm:$0xff]
    %v8093 = vld [vmem:[#allocation2 + $0xf68] sm:$0xff]
    %v8094 = vld [vmem:[#allocation2 + $0xf70] sm:$0xff]
    %v8095 = vld [vmem:[#allocation2 + $0xf78] sm:$0xff]
    %v8096 = vld [vmem:[#allocation2 + $0xf80] sm:$0xff]
    %v8097 = vld [vmem:[#allocation2 + $0xf88] sm:$0xff]
    %v8098 = vld [vmem:[#allocation2 + $0xf90] sm:$0xff]
    %v8099 = vld [vmem:[#allocation2 + $0xf98] sm:$0xff]
    %v8100 = vld [vmem:[#allocation2 + $0xfa0] sm:$0xff]
    %v8101 = vld [vmem:[#allocation2 + $0xfa8] sm:$0xff]
    %v8102 = vld [vmem:[#allocation2 + $0xfb0] sm:$0xff]
    %v8103 = vld [vmem:[#allocation2 + $0xfb8] sm:$0xff]
    %v8104 = vld [vmem:[#allocation2 + $0xfc0] sm:$0xff]
    %v8105 = vld [vmem:[#allocation2 + $0xfc8] sm:$0xff]
    %v8106 = vld [vmem:[#allocation2 + $0xfd0] sm:$0xff]
    %v8107 = vld [vmem:[#allocation2 + $0xfd8] sm:$0xff]
    %v8108 = vld [vmem:[#allocation2 + $0xfe0] sm:$0xff]
    %v8109 = vld [vmem:[#allocation2 + $0xfe8] sm:$0xff]
    %v8110 = vld [vmem:[#allocation2 + $0xff0] sm:$0xff]
    %v8111 = vld [vmem:[#allocation2 + $0xff8] sm:$0xff]
    %v8112 = vld [vmem:[#allocation2 + $0x1000] sm:$0xff]
    %v8113 = vld [vmem:[#allocation2 + $0x1008] sm:$0xff]
    %v8114 = vld [vmem:[#allocation2 + $0x1010] sm:$0xff]
    %v8115 = vld [vmem:[#allocation2 + $0x1018] sm:$0xff]
    %v8116 = vld [vmem:[#allocation2 + $0x1020] sm:$0xff]
    %v8117 = vld [vmem:[#allocation2 + $0x1028] sm:$0xff]
    %v8118 = vld [vmem:[#allocation2 + $0x1030] sm:$0xff]
    %v8119 = vld [vmem:[#allocation2 + $0x1038] sm:$0xff]
    %v8120 = vld [vmem:[#allocation2 + $0x1040] sm:$0xff]
    %v8121 = vld [vmem:[#allocation2 + $0x1048] sm:$0xff]
    %v8122 = vld [vmem:[#allocation2 + $0x1050] sm:$0xff]
    %v8123 = vld [vmem:[#allocation2 + $0x1058] sm:$0xff]
    %v8124 = vld [vmem:[#allocation2 + $0x1060] sm:$0xff]
    %v8125 = vld [vmem:[#allocation2 + $0x1068] sm:$0xff]
    %v8126 = vld [vmem:[#allocation2 + $0x1070] sm:$0xff]
    %v8127 = vld [vmem:[#allocation2 + $0x1078] sm:$0xff]
    %v8128 = vld [vmem:[#allocation2 + $0x1080] sm:$0xff]
    %v8129 = vld [vmem:[#allocation2 + $0x1088] sm:$0xff]
    %v8130 = vld [vmem:[#allocation2 + $0x1090] sm:$0xff]
    %v8131 = vld [vmem:[#allocation2 + $0x1098] sm:$0xff]
    %v8132 = vld [vmem:[#allocation2 + $0x10a0] sm:$0xff]
    %v8133 = vld [vmem:[#allocation2 + $0x10a8] sm:$0xff]
    %v8134 = vld [vmem:[#allocation2 + $0x10b0] sm:$0xff]
    %v8135 = vld [vmem:[#allocation2 + $0x10b8] sm:$0xff]
    %v8136 = vld [vmem:[#allocation2 + $0x10c0] sm:$0xff]
    %v8137 = vld [vmem:[#allocation2 + $0x10c8] sm:$0xff]
    %v8138 = vld [vmem:[#allocation2 + $0x10d0] sm:$0xff]
    %v8139 = vld [vmem:[#allocation2 + $0x10d8] sm:$0xff]
    %v8140 = vld [vmem:[#allocation2 + $0x10e0] sm:$0xff]
    %v8141 = vld [vmem:[#allocation2 + $0x10e8] sm:$0xff]
    %v8142 = vld [vmem:[#allocation2 + $0x10f0] sm:$0xff]
    %v8143 = vld [vmem:[#allocation2 + $0x10f8] sm:$0xff]
    %v8144 = vld [vmem:[#allocation2 + $0x1100] sm:$0xff]
    %v8145 = vld [vmem:[#allocation2 + $0x1108] sm:$0xff]
    %v8146 = vld [vmem:[#allocation2 + $0x1110] sm:$0xff]
    %v8147 = vld [vmem:[#allocation2 + $0x1118] sm:$0xff]
    %v8148 = vld [vmem:[#allocation2 + $0x1120] sm:$0xff]
    %v8149 = vld [vmem:[#allocation2 + $0x1128] sm:$0xff]
    %v8150 = vld [vmem:[#allocation2 + $0x1130] sm:$0xff]
    %v8151 = vld [vmem:[#allocation2 + $0x1138] sm:$0xff]
    %v8152 = vld [vmem:[#allocation2 + $0x1140] sm:$0xff]
    %v8153 = vld [vmem:[#allocation2 + $0x1148] sm:$0xff]
    %v8154 = vld [vmem:[#allocation2 + $0x1150] sm:$0xff]
    %v8155 = vld [vmem:[#allocation2 + $0x1158] sm:$0xff]
    %v8156 = vld [vmem:[#allocation2 + $0x1160] sm:$0xff]
    %v8157 = vld [vmem:[#allocation2 + $0x1168] sm:$0xff]
    %v8158 = vld [vmem:[#allocation2 + $0x1170] sm:$0xff]
    %v8159 = vld [vmem:[#allocation2 + $0x1178] sm:$0xff]
    %v8160 = vld [vmem:[#allocation2 + $0x1180] sm:$0xff]
    %v8161 = vld [vmem:[#allocation2 + $0x1188] sm:$0xff]
    %v8162 = vld [vmem:[#allocation2 + $0x1190] sm:$0xff]
    %v8163 = vld [vmem:[#allocation2 + $0x1198] sm:$0xff]
    %v8164 = vld [vmem:[#allocation2 + $0x11a0] sm:$0xff]
    %v8165 = vld [vmem:[#allocation2 + $0x11a8] sm:$0xff]
    %v8166 = vld [vmem:[#allocation2 + $0x11b0] sm:$0xff]
    %v8167 = vld [vmem:[#allocation2 + $0x11b8] sm:$0xff]
    %v8168 = vld [vmem:[#allocation2 + $0x11c0] sm:$0xff]
    %v8169 = vld [vmem:[#allocation2 + $0x11c8] sm:$0xff]
    %v8170 = vld [vmem:[#allocation2 + $0x11d0] sm:$0xff]
    %v8171 = vld [vmem:[#allocation2 + $0x11d8] sm:$0xff]
    %v8172 = vld [vmem:[#allocation2 + $0x11e0] sm:$0xff]
    %v8173 = vld [vmem:[#allocation2 + $0x11e8] sm:$0xff]
    %v8174 = vld [vmem:[#allocation2 + $0x11f0] sm:$0xff]
    %v8175 = vld [vmem:[#allocation2 + $0x11f8] sm:$0xff]
    %v8176 = vld [vmem:[#allocation2 + $0x1200] sm:$0xff]
    %v8177 = vld [vmem:[#allocation2 + $0x1208] sm:$0xff]
    %v8178 = vld [vmem:[#allocation2 + $0x1210] sm:$0xff]
    %v8179 = vld [vmem:[#allocation2 + $0x1218] sm:$0xff]
    %v8180 = vld [vmem:[#allocation2 + $0x1220] sm:$0xff]
    %v8181 = vld [vmem:[#allocation2 + $0x1228] sm:$0xff]
    %v8182 = vld [vmem:[#allocation2 + $0x1230] sm:$0xff]
    %v8183 = vld [vmem:[#allocation2 + $0x1238] sm:$0xff]
    %v8184 = vld [vmem:[#allocation2 + $0x1240] sm:$0xff]
    %v8185 = vld [vmem:[#allocation2 + $0x1248] sm:$0xff]
    %v8186 = vld [vmem:[#allocation2 + $0x1250] sm:$0xff]
    %v8187 = vld [vmem:[#allocation2 + $0x1258] sm:$0xff]
    %v8188 = vld [vmem:[#allocation2 + $0x1260] sm:$0xff]
    %v8189 = vld [vmem:[#allocation2 + $0x1268] sm:$0xff]
    %v8190 = vld [vmem:[#allocation2 + $0x1270] sm:$0xff]
    %v8191 = vld [vmem:[#allocation2 + $0x1278] sm:$0xff]
    %v8192 = vld [vmem:[#allocation2 + $0x1280] sm:$0xff]
    %v8193 = vld [vmem:[#allocation2 + $0x1288] sm:$0xff]
    %v8194 = vld [vmem:[#allocation2 + $0x1290] sm:$0xff]
    %v8195 = vld [vmem:[#allocation2 + $0x1298] sm:$0xff]
    %v8196 = vld [vmem:[#allocation2 + $0x12a0] sm:$0xff]
    %v8197 = vld [vmem:[#allocation2 + $0x12a8] sm:$0xff]
    %v8198 = vld [vmem:[#allocation2 + $0x12b0] sm:$0xff]
    %v8199 = vld [vmem:[#allocation2 + $0x12b8] sm:$0xff]
    %v8200 = vld [vmem:[#allocation2 + $0x12c0] sm:$0xff]
    %v8201 = vld [vmem:[#allocation2 + $0x12c8] sm:$0xff]
    %v8202 = vld [vmem:[#allocation2 + $0x12d0] sm:$0xff]
    %v8203 = vld [vmem:[#allocation2 + $0x12d8] sm:$0xff]
    %v8204 = vld [vmem:[#allocation2 + $0x12e0] sm:$0xff]
    %v8205 = vld [vmem:[#allocation2 + $0x12e8] sm:$0xff]
    %v8206 = vld [vmem:[#allocation2 + $0x12f0] sm:$0xff]
    %v8207 = vld [vmem:[#allocation2 + $0x12f8] sm:$0xff]
    %v8208 = vld [vmem:[#allocation2 + $0x1300] sm:$0xff]
    %v8209 = vld [vmem:[#allocation2 + $0x1308] sm:$0xff]
    %v8210 = vld [vmem:[#allocation2 + $0x1310] sm:$0xff]
    %v8211 = vld [vmem:[#allocation2 + $0x1318] sm:$0xff]
    %v8212 = vld [vmem:[#allocation2 + $0x1320] sm:$0xff]
    %v8213 = vld [vmem:[#allocation2 + $0x1328] sm:$0xff]
    %v8214 = vld [vmem:[#allocation2 + $0x1330] sm:$0xff]
    %v8215 = vld [vmem:[#allocation2 + $0x1338] sm:$0xff]
    %v8216 = vld [vmem:[#allocation2 + $0x1340] sm:$0xff]
    %v8217 = vld [vmem:[#allocation2 + $0x1348] sm:$0xff]
    %v8218 = vld [vmem:[#allocation2 + $0x1350] sm:$0xff]
    %v8219 = vld [vmem:[#allocation2 + $0x1358] sm:$0xff]
    %v8220 = vld [vmem:[#allocation2 + $0x1360] sm:$0xff]
    %v8221 = vld [vmem:[#allocation2 + $0x1368] sm:$0xff]
    %v8222 = vld [vmem:[#allocation2 + $0x1370] sm:$0xff]
    %v8223 = vld [vmem:[#allocation2 + $0x1378] sm:$0xff]
    %v8224 = vld [vmem:[#allocation2 + $0x1380] sm:$0xff]
    %v8225 = vld [vmem:[#allocation2 + $0x1388] sm:$0xff]
    %v8226 = vld [vmem:[#allocation2 + $0x1390] sm:$0xff]
    %v8227 = vld [vmem:[#allocation2 + $0x1398] sm:$0xff]
    %v8228 = vld [vmem:[#allocation2 + $0x13a0] sm:$0xff]
    %v8229 = vld [vmem:[#allocation2 + $0x13a8] sm:$0xff]
    %v8230 = vld [vmem:[#allocation2 + $0x13b0] sm:$0xff]
    %v8231 = vld [vmem:[#allocation2 + $0x13b8] sm:$0xff]
    %v8232 = vld [vmem:[#allocation2 + $0x13c0] sm:$0xff]
    %v8233 = vld [vmem:[#allocation2 + $0x13c8] sm:$0xff]
    %v8234 = vld [vmem:[#allocation2 + $0x13d0] sm:$0xff]
    %v8235 = vld [vmem:[#allocation2 + $0x13d8] sm:$0xff]
    %v8236 = vld [vmem:[#allocation2 + $0x13e0] sm:$0xff]
    %v8237 = vld [vmem:[#allocation2 + $0x13e8] sm:$0xff]
    %v8238 = vld [vmem:[#allocation2 + $0x13f0] sm:$0xff]
    %v8239 = vld [vmem:[#allocation2 + $0x13f8] sm:$0xff]
    %v8240 = vld [vmem:[#allocation2 + $0x1400] sm:$0xff]
    %v8241 = vld [vmem:[#allocation2 + $0x1408] sm:$0xff]
    %v8242 = vld [vmem:[#allocation2 + $0x1410] sm:$0xff]
    %v8243 = vld [vmem:[#allocation2 + $0x1418] sm:$0xff]
    %v8244 = vld [vmem:[#allocation2 + $0x1420] sm:$0xff]
    %v8245 = vld [vmem:[#allocation2 + $0x1428] sm:$0xff]
    %v8246 = vld [vmem:[#allocation2 + $0x1430] sm:$0xff]
    %v8247 = vld [vmem:[#allocation2 + $0x1438] sm:$0xff]
    %v8248 = vld [vmem:[#allocation2 + $0x1440] sm:$0xff]
    %v8249 = vld [vmem:[#allocation2 + $0x1448] sm:$0xff]
    %v8250 = vld [vmem:[#allocation2 + $0x1450] sm:$0xff]
    %v8251 = vld [vmem:[#allocation2 + $0x1458] sm:$0xff]
    %v8252 = vld [vmem:[#allocation2 + $0x1460] sm:$0xff]
    %v8253 = vld [vmem:[#allocation2 + $0x1468] sm:$0xff]
    %v8254 = vld [vmem:[#allocation2 + $0x1470] sm:$0xff]
    %v8255 = vld [vmem:[#allocation2 + $0x1478] sm:$0xff]
    %v8256 = vld [vmem:[#allocation2 + $0x1480] sm:$0xff]
    %v8257 = vld [vmem:[#allocation2 + $0x1488] sm:$0xff]
    %v8258 = vld [vmem:[#allocation2 + $0x1490] sm:$0xff]
    %v8259 = vld [vmem:[#allocation2 + $0x1498] sm:$0xff]
    %v8260 = vld [vmem:[#allocation2 + $0x14a0] sm:$0xff]
    %v8261 = vld [vmem:[#allocation2 + $0x14a8] sm:$0xff]
    %v8262 = vld [vmem:[#allocation2 + $0x14b0] sm:$0xff]
    %v8263 = vld [vmem:[#allocation2 + $0x14b8] sm:$0xff]
    %v8264 = vld [vmem:[#allocation2 + $0x14c0] sm:$0xff]
    %v8265 = vld [vmem:[#allocation2 + $0x14c8] sm:$0xff]
    %v8266 = vld [vmem:[#allocation2 + $0x14d0] sm:$0xff]
    %v8267 = vld [vmem:[#allocation2 + $0x14d8] sm:$0xff]
    %v8268 = vld [vmem:[#allocation2 + $0x14e0] sm:$0xff]
    %v8269 = vld [vmem:[#allocation2 + $0x14e8] sm:$0xff]
    %v8270 = vld [vmem:[#allocation2 + $0x14f0] sm:$0xff]
    %v8271 = vld [vmem:[#allocation2 + $0x14f8] sm:$0xff]
    %v8272 = vld [vmem:[#allocation2 + $0x1500] sm:$0xff]
    %v8273 = vld [vmem:[#allocation2 + $0x1508] sm:$0xff]
    %v8274 = vld [vmem:[#allocation2 + $0x1510] sm:$0xff]
    %v8275 = vld [vmem:[#allocation2 + $0x1518] sm:$0xff]
    %v8276 = vld [vmem:[#allocation2 + $0x1520] sm:$0xff]
    %v8277 = vld [vmem:[#allocation2 + $0x1528] sm:$0xff]
    %v8278 = vld [vmem:[#allocation2 + $0x1530] sm:$0xff]
    %v8279 = vld [vmem:[#allocation2 + $0x1538] sm:$0xff]
    %v8280 = vld [vmem:[#allocation2 + $0x1540] sm:$0xff]
    %v8281 = vld [vmem:[#allocation2 + $0x1548] sm:$0xff]
    %v8282 = vld [vmem:[#allocation2 + $0x1550] sm:$0xff]
    %v8283 = vld [vmem:[#allocation2 + $0x1558] sm:$0xff]
    %v8284 = vld [vmem:[#allocation2 + $0x1560] sm:$0xff]
    %v8285 = vld [vmem:[#allocation2 + $0x1568] sm:$0xff]
    %v8286 = vld [vmem:[#allocation2 + $0x1570] sm:$0xff]
    %v8287 = vld [vmem:[#allocation2 + $0x1578] sm:$0xff]
    %v8288 = vld [vmem:[#allocation2 + $0x1580] sm:$0xff]
    %v8289 = vld [vmem:[#allocation2 + $0x1588] sm:$0xff]
    %v8290 = vld [vmem:[#allocation2 + $0x1590] sm:$0xff]
    %v8291 = vld [vmem:[#allocation2 + $0x1598] sm:$0xff]
    %v8292 = vld [vmem:[#allocation2 + $0x15a0] sm:$0xff]
    %v8293 = vld [vmem:[#allocation2 + $0x15a8] sm:$0xff]
    %v8294 = vld [vmem:[#allocation2 + $0x15b0] sm:$0xff]
    %v8295 = vld [vmem:[#allocation2 + $0x15b8] sm:$0xff]
    %v8296 = vld [vmem:[#allocation2 + $0x15c0] sm:$0xff]
    %v8297 = vld [vmem:[#allocation2 + $0x15c8] sm:$0xff]
    %v8298 = vld [vmem:[#allocation2 + $0x15d0] sm:$0xff]
    %v8299 = vld [vmem:[#allocation2 + $0x15d8] sm:$0xff]
    %v8300 = vld [vmem:[#allocation2 + $0x15e0] sm:$0xff]
    %v8301 = vld [vmem:[#allocation2 + $0x15e8] sm:$0xff]
    %v8302 = vld [vmem:[#allocation2 + $0x15f0] sm:$0xff]
    %v8303 = vld [vmem:[#allocation2 + $0x15f8] sm:$0xff]
    %v8304 = vld [vmem:[#allocation2 + $0x1600] sm:$0xff]
    %v8305 = vld [vmem:[#allocation2 + $0x1608] sm:$0xff]
    %v8306 = vld [vmem:[#allocation2 + $0x1610] sm:$0xff]
    %v8307 = vld [vmem:[#allocation2 + $0x1618] sm:$0xff]
    %v8308 = vld [vmem:[#allocation2 + $0x1620] sm:$0xff]
    %v8309 = vld [vmem:[#allocation2 + $0x1628] sm:$0xff]
    %v8310 = vld [vmem:[#allocation2 + $0x1630] sm:$0xff]
    %v8311 = vld [vmem:[#allocation2 + $0x1638] sm:$0xff]
    %v8312 = vld [vmem:[#allocation2 + $0x1640] sm:$0xff]
    %v8313 = vld [vmem:[#allocation2 + $0x1648] sm:$0xff]
    %v8314 = vld [vmem:[#allocation2 + $0x1650] sm:$0xff]
    %v8315 = vld [vmem:[#allocation2 + $0x1658] sm:$0xff]
    %v8316 = vld [vmem:[#allocation2 + $0x1660] sm:$0xff]
    %v8317 = vld [vmem:[#allocation2 + $0x1668] sm:$0xff]
    %v8318 = vld [vmem:[#allocation2 + $0x1670] sm:$0xff]
    %v8319 = vld [vmem:[#allocation2 + $0x1678] sm:$0xff]
    %v8320 = vld [vmem:[#allocation2 + $0x1680] sm:$0xff]
    %v8321 = vld [vmem:[#allocation2 + $0x1688] sm:$0xff]
    %v8322 = vld [vmem:[#allocation2 + $0x1690] sm:$0xff]
    %v8323 = vld [vmem:[#allocation2 + $0x1698] sm:$0xff]
    %v8324 = vld [vmem:[#allocation2 + $0x16a0] sm:$0xff]
    %v8325 = vld [vmem:[#allocation2 + $0x16a8] sm:$0xff]
    %v8326 = vld [vmem:[#allocation2 + $0x16b0] sm:$0xff]
    %v8327 = vld [vmem:[#allocation2 + $0x16b8] sm:$0xff]
    %v8328 = vld [vmem:[#allocation2 + $0x16c0] sm:$0xff]
    %v8329 = vld [vmem:[#allocation2 + $0x16c8] sm:$0xff]
    %v8330 = vld [vmem:[#allocation2 + $0x16d0] sm:$0xff]
    %v8331 = vld [vmem:[#allocation2 + $0x16d8] sm:$0xff]
    %v8332 = vld [vmem:[#allocation2 + $0x16e0] sm:$0xff]
    %v8333 = vld [vmem:[#allocation2 + $0x16e8] sm:$0xff]
    %v8334 = vld [vmem:[#allocation2 + $0x16f0] sm:$0xff]
    %v8335 = vld [vmem:[#allocation2 + $0x16f8] sm:$0xff]
    %v8336 = vld [vmem:[#allocation2 + $0x1700] sm:$0xff]
    %v8337 = vld [vmem:[#allocation2 + $0x1708] sm:$0xff]
    %v8338 = vld [vmem:[#allocation2 + $0x1710] sm:$0xff]
    %v8339 = vld [vmem:[#allocation2 + $0x1718] sm:$0xff]
    %v8340 = vld [vmem:[#allocation2 + $0x1720] sm:$0xff]
    %v8341 = vld [vmem:[#allocation2 + $0x1728] sm:$0xff]
    %v8342 = vld [vmem:[#allocation2 + $0x1730] sm:$0xff]
    %v8343 = vld [vmem:[#allocation2 + $0x1738] sm:$0xff]
    %v8344 = vld [vmem:[#allocation2 + $0x1740] sm:$0xff]
    %v8345 = vld [vmem:[#allocation2 + $0x1748] sm:$0xff]
    %v8346 = vld [vmem:[#allocation2 + $0x1750] sm:$0xff]
    %v8347 = vld [vmem:[#allocation2 + $0x1758] sm:$0xff]
    %v8348 = vld [vmem:[#allocation2 + $0x1760] sm:$0xff]
    %v8349 = vld [vmem:[#allocation2 + $0x1768] sm:$0xff]
    %v8350 = vld [vmem:[#allocation2 + $0x1770] sm:$0xff]
    %v8351 = vld [vmem:[#allocation2 + $0x1778] sm:$0xff]
    %v8352 = vld [vmem:[#allocation2 + $0x1780] sm:$0xff]
    %v8353 = vld [vmem:[#allocation2 + $0x1788] sm:$0xff]
    %v8354 = vld [vmem:[#allocation2 + $0x1790] sm:$0xff]
    %v8355 = vld [vmem:[#allocation2 + $0x1798] sm:$0xff]
    %v8356 = vld [vmem:[#allocation2 + $0x17a0] sm:$0xff]
    %v8357 = vld [vmem:[#allocation2 + $0x17a8] sm:$0xff]
    %v8358 = vld [vmem:[#allocation2 + $0x17b0] sm:$0xff]
    %v8359 = vld [vmem:[#allocation2 + $0x17b8] sm:$0xff]
    %v8360 = vld [vmem:[#allocation2 + $0x17c0] sm:$0xff]
    %v8361 = vld [vmem:[#allocation2 + $0x17c8] sm:$0xff]
    %v8362 = vld [vmem:[#allocation2 + $0x17d0] sm:$0xff]
    %v8363 = vld [vmem:[#allocation2 + $0x17d8] sm:$0xff]
    %v8364 = vld [vmem:[#allocation2 + $0x17e0] sm:$0xff]
    %v8365 = vld [vmem:[#allocation2 + $0x17e8] sm:$0xff]
    %v8366 = vld [vmem:[#allocation2 + $0x17f0] sm:$0xff]
    %v8367 = vld [vmem:[#allocation2 + $0x17f8] sm:$0xff]
    %v8368 = vld [vmem:[#allocation2 + $0x1800] sm:$0xff]
    %v8369 = vld [vmem:[#allocation2 + $0x1808] sm:$0xff]
    %v8370 = vld [vmem:[#allocation2 + $0x1810] sm:$0xff]
    %v8371 = vld [vmem:[#allocation2 + $0x1818] sm:$0xff]
    %v8372 = vld [vmem:[#allocation2 + $0x1820] sm:$0xff]
    %v8373 = vld [vmem:[#allocation2 + $0x1828] sm:$0xff]
    %v8374 = vld [vmem:[#allocation2 + $0x1830] sm:$0xff]
    %v8375 = vld [vmem:[#allocation2 + $0x1838] sm:$0xff]
    %v8376 = vld [vmem:[#allocation2 + $0x1840] sm:$0xff]
    %v8377 = vld [vmem:[#allocation2 + $0x1848] sm:$0xff]
    %v8378 = vld [vmem:[#allocation2 + $0x1850] sm:$0xff]
    %v8379 = vld [vmem:[#allocation2 + $0x1858] sm:$0xff]
    %v8380 = vld [vmem:[#allocation2 + $0x1860] sm:$0xff]
    %v8381 = vld [vmem:[#allocation2 + $0x1868] sm:$0xff]
    %v8382 = vld [vmem:[#allocation2 + $0x1870] sm:$0xff]
    %v8383 = vld [vmem:[#allocation2 + $0x1878] sm:$0xff]
    %v8384 = vld [vmem:[#allocation2 + $0x1880] sm:$0xff]
    %v8385 = vld [vmem:[#allocation2 + $0x1888] sm:$0xff]
    %v8386 = vld [vmem:[#allocation2 + $0x1890] sm:$0xff]
    %v8387 = vld [vmem:[#allocation2 + $0x1898] sm:$0xff]
    %v8388 = vld [vmem:[#allocation2 + $0x18a0] sm:$0xff]
    %v8389 = vld [vmem:[#allocation2 + $0x18a8] sm:$0xff]
    %v8390 = vld [vmem:[#allocation2 + $0x18b0] sm:$0xff]
    %v8391 = vld [vmem:[#allocation2 + $0x18b8] sm:$0xff]
    %v8392 = vld [vmem:[#allocation2 + $0x18c0] sm:$0xff]
    %v8393 = vld [vmem:[#allocation2 + $0x18c8] sm:$0xff]
    %v8394 = vld [vmem:[#allocation2 + $0x18d0] sm:$0xff]
    %v8395 = vld [vmem:[#allocation2 + $0x18d8] sm:$0xff]
    %v8396 = vld [vmem:[#allocation2 + $0x18e0] sm:$0xff]
    %v8397 = vld [vmem:[#allocation2 + $0x18e8] sm:$0xff]
    %v8398 = vld [vmem:[#allocation2 + $0x18f0] sm:$0xff]
    %v8399 = vld [vmem:[#allocation2 + $0x18f8] sm:$0xff]
    %v8400 = vld [vmem:[#allocation17] sm:$0x3]
    %v8401 = vld [vmem:[#allocation19] sm:$0xff]
    %v8402 = vld [vmem:[#allocation19 + $0x8] sm:$0xff]
    %vm8403 = vcmask 64512
    %v8405 = vsel %vm8403, %v8400, 0
    %8407 = vmatprep.subr.mxu0 %v8402
    %8408 = vmatpush1.msra.mxu0 %v8401
    %8409 = vmatprep.subr.mxu0 0.0
    %8410 = vmatpush1.msra.mxu0 0.0
    %8411 = vmatprep.subr.mxu0 0.0
    %8412 = vmatpush1.msra.mxu0 0.0
    %8413 = vmatprep.subr.mxu0 0.0
    %8414 = vmatpush1.msra.mxu0 0.0
    %8415 = vmatprep.subr.mxu0 0.0
    %8416 = vmatpush1.msra.mxu0 0.0
    %8417 = vmatprep.subr.mxu0 0.0
    %8418 = vmatpush1.msra.mxu0 0.0
    %8419 = vmatprep.subr.mxu0 0.0
    %8420 = vmatpush1.msra.mxu0 0.0
    %8421 = vmatprep.subr.mxu0 0.0
    %8422 = vmatpush1.msra.mxu0 0.0
    %8423 = vmatprep.subr.mxu0 0.0
    %8424 = vmatpush1.msra.mxu0 0.0
    %8425 = vmatprep.subr.mxu0 0.0
    %8426 = vmatpush1.msra.mxu0 0.0
    %8427 = vmatprep.subr.mxu0 0.0
    %8428 = vmatpush1.msra.mxu0 0.0
    %8429 = vmatprep.subr.mxu0 0.0
    %8430 = vmatpush1.msra.mxu0 0.0
    %8431 = vmatprep.subr.mxu0 0.0
    %8432 = vmatpush1.msra.mxu0 0.0
    %8433 = vmatprep.subr.mxu0 0.0
    %8434 = vmatpush1.msra.mxu0 0.0
    %8435 = vmatprep.subr.mxu0 0.0
    %8436 = vmatpush1.msra.mxu0 0.0
    %8437 = vmatprep.subr.mxu0 0.0
    %8438 = vmatpush1.msra.mxu0 0.0
    %8439 = vmatprep.subr.mxu0 0.0
    %8440 = vmatpush1.msra.mxu0 0.0
    %8441 = vmatprep.subr.mxu0 0.0
    %8442 = vmatpush1.msra.mxu0 0.0
    %8443 = vmatprep.subr.mxu0 0.0
    %8444 = vmatpush1.msra.mxu0 0.0
    %8445 = vmatprep.subr.mxu0 0.0
    %8446 = vmatpush1.msra.mxu0 0.0
    %8447 = vmatprep.subr.mxu0 0.0
    %8448 = vmatpush1.msra.mxu0 0.0
    %8449 = vmatprep.subr.mxu0 0.0
    %8450 = vmatpush1.msra.mxu0 0.0
    %8451 = vmatprep.subr.mxu0 0.0
    %8452 = vmatpush1.msra.mxu0 0.0
    %8453 = vmatprep.subr.mxu0 0.0
    %8454 = vmatpush1.msra.mxu0 0.0
    %8455 = vmatprep.subr.mxu0 0.0
    %8456 = vmatpush1.msra.mxu0 0.0
    %8457 = vmatprep.subr.mxu0 0.0
    %8458 = vmatpush1.msra.mxu0 0.0
    %8459 = vmatprep.subr.mxu0 0.0
    %8460 = vmatpush1.msra.mxu0 0.0
    %8461 = vmatprep.subr.mxu0 0.0
    %8462 = vmatpush1.msra.mxu0 0.0
    %8463 = vmatprep.subr.mxu0 0.0
    %8464 = vmatpush1.msra.mxu0 0.0
    %8465 = vmatprep.subr.mxu0 0.0
    %8466 = vmatpush1.msra.mxu0 0.0
    %8467 = vmatprep.subr.mxu0 0.0
    %8468 = vmatpush1.msra.mxu0 0.0
    %8469 = vmatprep.subr.mxu0 0.0
    %8470 = vmatpush1.msra.mxu0 0.0
    %8471 = vmatprep.mubr.f32.mxu0 0.0
    %8472 = vmatmul.mubr.f32.gmra.mrb[0].mxu0 %v8405
    %v8473 = vpop.f32.mrb[0].mxu0
    %v8474 = vadd.f32 0.0, %v8473
    %v8475 = vpop.f32.mrb[0].mxu0
    %v8476 = vadd.f32 0.0, %v8475
    %8477 = vdwg.mxu0
    %8478 = vmatprep.subr.bf16.mxu0 %v7601
    %8479 = vmatpush1.bf16.msra.mxu0 %v7600
    %8480 = vmatprep.subr.bf16.mxu0 %v7603
    %8481 = vmatpush1.bf16.msra.mxu0 %v7602
    %8482 = vmatprep.subr.bf16.mxu0 %v7605
    %8483 = vmatpush1.bf16.msra.mxu0 %v7604
    %8484 = vmatprep.subr.bf16.mxu0 %v7607
    %8485 = vmatpush1.bf16.msra.mxu0 %v7606
    %8486 = vmatprep.subr.bf16.mxu0 %v7609
    %8487 = vmatpush1.bf16.msra.mxu0 %v7608
    %8488 = vmatprep.subr.bf16.mxu0 %v7611
    %8489 = vmatpush1.bf16.msra.mxu0 %v7610
    %8490 = vmatprep.subr.bf16.mxu0 %v7613
    %8491 = vmatpush1.bf16.msra.mxu0 %v7612
    %8492 = vmatprep.subr.bf16.mxu0 %v7615
    %8493 = vmatpush1.bf16.msra.mxu0 %v7614
    %8494 = vmatprep.subr.bf16.mxu0 %v7617
    %8495 = vmatpush1.bf16.msra.mxu0 %v7616
    %8496 = vmatprep.subr.bf16.mxu0 %v7619
    %8497 = vmatpush1.bf16.msra.mxu0 %v7618
    %8498 = vmatprep.subr.bf16.mxu0 %v7621
    %8499 = vmatpush1.bf16.msra.mxu0 %v7620
    %8500 = vmatprep.subr.bf16.mxu0 %v7623
    %8501 = vmatpush1.bf16.msra.mxu0 %v7622
    %8502 = vmatprep.subr.bf16.mxu0 %v7625
    %8503 = vmatpush1.bf16.msra.mxu0 %v7624
    %8504 = vmatprep.subr.bf16.mxu0 %v7627
    %8505 = vmatpush1.bf16.msra.mxu0 %v7626
    %8506 = vmatprep.subr.bf16.mxu0 %v7629
    %8507 = vmatpush1.bf16.msra.mxu0 %v7628
    %8508 = vmatprep.subr.bf16.mxu0 %v7631
    %8509 = vmatpush1.bf16.msra.mxu0 %v7630
    %8510 = vmatprep.mubr.bf16.mxu0 %v7551
    %8511 = vmatmul.mubr.bf16.gmra.mrb[0].mxu0 %v7550
    %v8512 = vpop.f32.mrb[0].mxu0
    %v8513 = vadd.f32 %v8474, %v8512
    %v8514 = vpop.f32.mrb[0].mxu0
    %v8515 = vadd.f32 %v8476, %v8514
    %v8516 = vpop.f32.mrb[0].mxu0
    %v8517 = vpop.f32.mrb[0].mxu0
    %8518 = vdwg.mxu0
    %8519 = vmatprep.subr.bf16.mxu0 %v7633
    %8520 = vmatpush1.bf16.msra.mxu0 %v7632
    %8521 = vmatprep.subr.bf16.mxu0 %v7635
    %8522 = vmatpush1.bf16.msra.mxu0 %v7634
    %8523 = vmatprep.subr.bf16.mxu0 %v7637
    %8524 = vmatpush1.bf16.msra.mxu0 %v7636
    %8525 = vmatprep.subr.bf16.mxu0 %v7639
    %8526 = vmatpush1.bf16.msra.mxu0 %v7638
    %8527 = vmatprep.subr.bf16.mxu0 %v7641
    %8528 = vmatpush1.bf16.msra.mxu0 %v7640
    %8529 = vmatprep.subr.bf16.mxu0 %v7643
    %8530 = vmatpush1.bf16.msra.mxu0 %v7642
    %8531 = vmatprep.subr.bf16.mxu0 %v7645
    %8532 = vmatpush1.bf16.msra.mxu0 %v7644
    %8533 = vmatprep.subr.bf16.mxu0 %v7647
    %8534 = vmatpush1.bf16.msra.mxu0 %v7646
    %8535 = vmatprep.subr.bf16.mxu0 %v7649
    %8536 = vmatpush1.bf16.msra.mxu0 %v7648
    %8537 = vmatprep.subr.bf16.mxu0 %v7651
    %8538 = vmatpush1.bf16.msra.mxu0 %v7650
    %8539 = vmatprep.subr.bf16.mxu0 %v7653
    %8540 = vmatpush1.bf16.msra.mxu0 %v7652
    %8541 = vmatprep.subr.bf16.mxu0 %v7655
    %8542 = vmatpush1.bf16.msra.mxu0 %v7654
    %8543 = vmatprep.subr.bf16.mxu0 %v7657
    %8544 = vmatpush1.bf16.msra.mxu0 %v7656
    %8545 = vmatprep.subr.bf16.mxu0 %v7659
    %8546 = vmatpush1.bf16.msra.mxu0 %v7658
    %8547 = vmatprep.subr.bf16.mxu0 %v7661
    %8548 = vmatpush1.bf16.msra.mxu0 %v7660
    %8549 = vmatprep.subr.bf16.mxu0 %v7663
    %8550 = vmatpush1.bf16.msra.mxu0 %v7662
    %8551 = vmatprep.mubr.bf16.mxu0 %v7553
    %8552 = vmatmul.mubr.bf16.gmra.mrb[0].mxu0 %v7552
    %v8553 = vpop.f32.mrb[0].mxu0
    %v8554 = vadd.f32 %v8513, %v8553
    %v8555 = vpop.f32.mrb[0].mxu0
    %v8556 = vadd.f32 %v8515, %v8555
    %v8557 = vpop.f32.mrb[0].mxu0
    %v8558 = vpop.f32.mrb[0].mxu0
    %8559 = vdwg.mxu0
    %8560 = vmatprep.subr.bf16.mxu0 %v7665
    %8561 = vmatpush1.bf16.msra.mxu0 %v7664
    %8562 = vmatprep.subr.bf16.mxu0 %v7667
    %8563 = vmatpush1.bf16.msra.mxu0 %v7666
    %8564 = vmatprep.subr.bf16.mxu0 %v7669
    %8565 = vmatpush1.bf16.msra.mxu0 %v7668
    %8566 = vmatprep.subr.bf16.mxu0 %v7671
    %8567 = vmatpush1.bf16.msra.mxu0 %v7670
    %8568 = vmatprep.subr.bf16.mxu0 %v7673
    %8569 = vmatpush1.bf16.msra.mxu0 %v7672
    %8570 = vmatprep.subr.bf16.mxu0 %v7675
    %8571 = vmatpush1.bf16.msra.mxu0 %v7674
    %8572 = vmatprep.subr.bf16.mxu0 %v7677
    %8573 = vmatpush1.bf16.msra.mxu0 %v7676
    %8574 = vmatprep.subr.bf16.mxu0 %v7679
    %8575 = vmatpush1.bf16.msra.mxu0 %v7678
    %8576 = vmatprep.subr.bf16.mxu0 %v7681
    %8577 = vmatpush1.bf16.msra.mxu0 %v7680
    %8578 = vmatprep.subr.bf16.mxu0 %v7683
    %8579 = vmatpush1.bf16.msra.mxu0 %v7682
    %8580 = vmatprep.subr.bf16.mxu0 %v7685
    %8581 = vmatpush1.bf16.msra.mxu0 %v7684
    %8582 = vmatprep.subr.bf16.mxu0 %v7687
    %8583 = vmatpush1.bf16.msra.mxu0 %v7686
    %8584 = vmatprep.subr.bf16.mxu0 %v7689
    %8585 = vmatpush1.bf16.msra.mxu0 %v7688
    %8586 = vmatprep.subr.bf16.mxu0 %v7691
    %8587 = vmatpush1.bf16.msra.mxu0 %v7690
    %8588 = vmatprep.subr.bf16.mxu0 %v7693
    %8589 = vmatpush1.bf16.msra.mxu0 %v7692
    %8590 = vmatprep.subr.bf16.mxu0 %v7695
    %8591 = vmatpush1.bf16.msra.mxu0 %v7694
    %8592 = vmatprep.mubr.bf16.mxu0 %v7555
    %8593 = vmatmul.mubr.bf16.gmra.mrb[0].mxu0 %v7554
    %v8594 = vpop.f32.mrb[0].mxu0
    %v8595 = vadd.f32 %v8554, %v8594
    %v8596 = vpop.f32.mrb[0].mxu0
    %v8597 = vadd.f32 %v8556, %v8596
    %v8598 = vpop.f32.mrb[0].mxu0
    %v8599 = vpop.f32.mrb[0].mxu0
    %8600 = vdwg.mxu0
    %8601 = vmatprep.subr.bf16.mxu0 %v7697
    %8602 = vmatpush1.bf16.msra.mxu0 %v7696
    %8603 = vmatprep.subr.bf16.mxu0 %v7699
    %8604 = vmatpush1.bf16.msra.mxu0 %v7698
    %8605 = vmatprep.subr.bf16.mxu0 %v7701
    %8606 = vmatpush1.bf16.msra.mxu0 %v7700
    %8607 = vmatprep.subr.bf16.mxu0 %v7703
    %8608 = vmatpush1.bf16.msra.mxu0 %v7702
    %8609 = vmatprep.subr.bf16.mxu0 %v7705
    %8610 = vmatpush1.bf16.msra.mxu0 %v7704
    %8611 = vmatprep.subr.bf16.mxu0 %v7707
    %8612 = vmatpush1.bf16.msra.mxu0 %v7706
    %8613 = vmatprep.subr.bf16.mxu0 %v7709
    %8614 = vmatpush1.bf16.msra.mxu0 %v7708
    %8615 = vmatprep.subr.bf16.mxu0 %v7711
    %8616 = vmatpush1.bf16.msra.mxu0 %v7710
    %8617 = vmatprep.subr.bf16.mxu0 %v7713
    %8618 = vmatpush1.bf16.msra.mxu0 %v7712
    %8619 = vmatprep.subr.bf16.mxu0 %v7715
    %8620 = vmatpush1.bf16.msra.mxu0 %v7714
    %8621 = vmatprep.subr.bf16.mxu0 %v7717
    %8622 = vmatpush1.bf16.msra.mxu0 %v7716
    %8623 = vmatprep.subr.bf16.mxu0 %v7719
    %8624 = vmatpush1.bf16.msra.mxu0 %v7718
    %8625 = vmatprep.subr.bf16.mxu0 %v7721
    %8626 = vmatpush1.bf16.msra.mxu0 %v7720
    %8627 = vmatprep.subr.bf16.mxu0 %v7723
    %8628 = vmatpush1.bf16.msra.mxu0 %v7722
    %8629 = vmatprep.subr.bf16.mxu0 %v7725
    %8630 = vmatpush1.bf16.msra.mxu0 %v7724
    %8631 = vmatprep.subr.bf16.mxu0 %v7727
    %8632 = vmatpush1.bf16.msra.mxu0 %v7726
    %8633 = vmatprep.mubr.bf16.mxu0 %v7557
    %8634 = vmatmul.mubr.bf16.gmra.mrb[0].mxu0 %v7556
    %v8635 = vpop.f32.mrb[0].mxu0
    %v8636 = vadd.f32 %v8595, %v8635
    %v8637 = vpop.f32.mrb[0].mxu0
    %v8638 = vadd.f32 %v8597, %v8637
    %v8639 = vpop.f32.mrb[0].mxu0
    %v8640 = vpop.f32.mrb[0].mxu0
    %8641 = vdwg.mxu0
    %8642 = vmatprep.subr.bf16.mxu0 %v7729
    %8643 = vmatpush1.bf16.msra.mxu0 %v7728
    %8644 = vmatprep.subr.bf16.mxu0 %v7731
    %8645 = vmatpush1.bf16.msra.mxu0 %v7730
    %8646 = vmatprep.subr.bf16.mxu0 %v7733
    %8647 = vmatpush1.bf16.msra.mxu0 %v7732
    %8648 = vmatprep.subr.bf16.mxu0 %v7735
    %8649 = vmatpush1.bf16.msra.mxu0 %v7734
    %8650 = vmatprep.subr.bf16.mxu0 %v7737
    %8651 = vmatpush1.bf16.msra.mxu0 %v7736
    %8652 = vmatprep.subr.bf16.mxu0 %v7739
    %8653 = vmatpush1.bf16.msra.mxu0 %v7738
    %8654 = vmatprep.subr.bf16.mxu0 %v7741
    %8655 = vmatpush1.bf16.msra.mxu0 %v7740
    %8656 = vmatprep.subr.bf16.mxu0 %v7743
    %8657 = vmatpush1.bf16.msra.mxu0 %v7742
    %8658 = vmatprep.subr.bf16.mxu0 %v7745
    %8659 = vmatpush1.bf16.msra.mxu0 %v7744
    %8660 = vmatprep.subr.bf16.mxu0 %v7747
    %8661 = vmatpush1.bf16.msra.mxu0 %v7746
    %8662 = vmatprep.subr.bf16.mxu0 %v7749
    %8663 = vmatpush1.bf16.msra.mxu0 %v7748
    %8664 = vmatprep.subr.bf16.mxu0 %v7751
    %8665 = vmatpush1.bf16.msra.mxu0 %v7750
    %8666 = vmatprep.subr.bf16.mxu0 %v7753
    %8667 = vmatpush1.bf16.msra.mxu0 %v7752
    %8668 = vmatprep.subr.bf16.mxu0 %v7755
    %8669 = vmatpush1.bf16.msra.mxu0 %v7754
    %8670 = vmatprep.subr.bf16.mxu0 %v7757
    %8671 = vmatpush1.bf16.msra.mxu0 %v7756
    %8672 = vmatprep.subr.bf16.mxu0 %v7759
    %8673 = vmatpush1.bf16.msra.mxu0 %v7758
    %8674 = vmatprep.mubr.bf16.mxu0 %v7559
    %8675 = vmatmul.mubr.bf16.gmra.mrb[0].mxu0 %v7558
    %v8676 = vpop.f32.mrb[0].mxu0
    %v8677 = vadd.f32 %v8636, %v8676
    %v8678 = vpop.f32.mrb[0].mxu0
    %v8679 = vadd.f32 %v8638, %v8678
    %v8680 = vpop.f32.mrb[0].mxu0
    %v8681 = vpop.f32.mrb[0].mxu0
    %8682 = vdwg.mxu0
    %8683 = vmatprep.subr.bf16.mxu0 %v7761
    %8684 = vmatpush1.bf16.msra.mxu0 %v7760
    %8685 = vmatprep.subr.bf16.mxu0 %v7763
    %8686 = vmatpush1.bf16.msra.mxu0 %v7762
    %8687 = vmatprep.subr.bf16.mxu0 %v7765
    %8688 = vmatpush1.bf16.msra.mxu0 %v7764
    %8689 = vmatprep.subr.bf16.mxu0 %v7767
    %8690 = vmatpush1.bf16.msra.mxu0 %v7766
    %8691 = vmatprep.subr.bf16.mxu0 %v7769
    %8692 = vmatpush1.bf16.msra.mxu0 %v7768
    %8693 = vmatprep.subr.bf16.mxu0 %v7771
    %8694 = vmatpush1.bf16.msra.mxu0 %v7770
    %8695 = vmatprep.subr.bf16.mxu0 %v7773
    %8696 = vmatpush1.bf16.msra.mxu0 %v7772
    %8697 = vmatprep.subr.bf16.mxu0 %v7775
    %8698 = vmatpush1.bf16.msra.mxu0 %v7774
    %8699 = vmatprep.subr.bf16.mxu0 %v7777
    %8700 = vmatpush1.bf16.msra.mxu0 %v7776
    %8701 = vmatprep.subr.bf16.mxu0 %v7779
    %8702 = vmatpush1.bf16.msra.mxu0 %v7778
    %8703 = vmatprep.subr.bf16.mxu0 %v7781
    %8704 = vmatpush1.bf16.msra.mxu0 %v7780
    %8705 = vmatprep.subr.bf16.mxu0 %v7783
    %8706 = vmatpush1.bf16.msra.mxu0 %v7782
    %8707 = vmatprep.subr.bf16.mxu0 %v7785
    %8708 = vmatpush1.bf16.msra.mxu0 %v7784
    %8709 = vmatprep.subr.bf16.mxu0 %v7787
    %8710 = vmatpush1.bf16.msra.mxu0 %v7786
    %8711 = vmatprep.subr.bf16.mxu0 %v7789
    %8712 = vmatpush1.bf16.msra.mxu0 %v7788
    %8713 = vmatprep.subr.bf16.mxu0 %v7791
    %8714 = vmatpush1.bf16.msra.mxu0 %v7790
    %8715 = vmatprep.mubr.bf16.mxu0 %v7561
    %8716 = vmatmul.mubr.bf16.gmra.mrb[0].mxu0 %v7560
    %v8717 = vpop.f32.mrb[0].mxu0
    %v8718 = vadd.f32 %v8677, %v8717
    %v8719 = vpop.f32.mrb[0].mxu0
    %v8720 = vadd.f32 %v8679, %v8719
    %v8721 = vpop.f32.mrb[0].mxu0
    %v8722 = vpop.f32.mrb[0].mxu0
    %8723 = vdwg.mxu0
    %8724 = vmatprep.subr.bf16.mxu0 %v7793
    %8725 = vmatpush1.bf16.msra.mxu0 %v7792
    %8726 = vmatprep.subr.bf16.mxu0 %v7795
    %8727 = vmatpush1.bf16.msra.mxu0 %v7794
    %8728 = vmatprep.subr.bf16.mxu0 %v7797
    %8729 = vmatpush1.bf16.msra.mxu0 %v7796
    %8730 = vmatprep.subr.bf16.mxu0 %v7799
    %8731 = vmatpush1.bf16.msra.mxu0 %v7798
    %8732 = vmatprep.subr.bf16.mxu0 %v7801
    %8733 = vmatpush1.bf16.msra.mxu0 %v7800
    %8734 = vmatprep.subr.bf16.mxu0 %v7803
    %8735 = vmatpush1.bf16.msra.mxu0 %v7802
    %8736 = vmatprep.subr.bf16.mxu0 %v7805
    %8737 = vmatpush1.bf16.msra.mxu0 %v7804
    %8738 = vmatprep.subr.bf16.mxu0 %v7807
    %8739 = vmatpush1.bf16.msra.mxu0 %v7806
    %8740 = vmatprep.subr.bf16.mxu0 %v7809
    %8741 = vmatpush1.bf16.msra.mxu0 %v7808
    %8742 = vmatprep.subr.bf16.mxu0 %v7811
    %8743 = vmatpush1.bf16.msra.mxu0 %v7810
    %8744 = vmatprep.subr.bf16.mxu0 %v7813
    %8745 = vmatpush1.bf16.msra.mxu0 %v7812
    %8746 = vmatprep.subr.bf16.mxu0 %v7815
    %8747 = vmatpush1.bf16.msra.mxu0 %v7814
    %8748 = vmatprep.subr.bf16.mxu0 %v7817
    %8749 = vmatpush1.bf16.msra.mxu0 %v7816
    %8750 = vmatprep.subr.bf16.mxu0 %v7819
    %8751 = vmatpush1.bf16.msra.mxu0 %v7818
    %8752 = vmatprep.subr.bf16.mxu0 %v7821
    %8753 = vmatpush1.bf16.msra.mxu0 %v7820
    %8754 = vmatprep.subr.bf16.mxu0 %v7823
    %8755 = vmatpush1.bf16.msra.mxu0 %v7822
    %8756 = vmatprep.mubr.bf16.mxu0 %v7563
    %8757 = vmatmul.mubr.bf16.gmra.mrb[0].mxu0 %v7562
    %v8758 = vpop.f32.mrb[0].mxu0
    %v8759 = vadd.f32 %v8718, %v8758
    %v8760 = vpop.f32.mrb[0].mxu0
    %v8761 = vadd.f32 %v8720, %v8760
    %v8762 = vpop.f32.mrb[0].mxu0
    %v8763 = vpop.f32.mrb[0].mxu0
    %8764 = vdwg.mxu0
    %8765 = vmatprep.subr.bf16.mxu0 %v7825
    %8766 = vmatpush1.bf16.msra.mxu0 %v7824
    %8767 = vmatprep.subr.bf16.mxu0 %v7827
    %8768 = vmatpush1.bf16.msra.mxu0 %v7826
    %8769 = vmatprep.subr.bf16.mxu0 %v7829
    %8770 = vmatpush1.bf16.msra.mxu0 %v7828
    %8771 = vmatprep.subr.bf16.mxu0 %v7831
    %8772 = vmatpush1.bf16.msra.mxu0 %v7830
    %8773 = vmatprep.subr.bf16.mxu0 %v7833
    %8774 = vmatpush1.bf16.msra.mxu0 %v7832
    %8775 = vmatprep.subr.bf16.mxu0 %v7835
    %8776 = vmatpush1.bf16.msra.mxu0 %v7834
    %8777 = vmatprep.subr.bf16.mxu0 %v7837
    %8778 = vmatpush1.bf16.msra.mxu0 %v7836
    %8779 = vmatprep.subr.bf16.mxu0 %v7839
    %8780 = vmatpush1.bf16.msra.mxu0 %v7838
    %8781 = vmatprep.subr.bf16.mxu0 %v7841
    %8782 = vmatpush1.bf16.msra.mxu0 %v7840
    %8783 = vmatprep.subr.bf16.mxu0 %v7843
    %8784 = vmatpush1.bf16.msra.mxu0 %v7842
    %8785 = vmatprep.subr.bf16.mxu0 %v7845
    %8786 = vmatpush1.bf16.msra.mxu0 %v7844
    %8787 = vmatprep.subr.bf16.mxu0 %v7847
    %8788 = vmatpush1.bf16.msra.mxu0 %v7846
    %8789 = vmatprep.subr.bf16.mxu0 %v7849
    %8790 = vmatpush1.bf16.msra.mxu0 %v7848
    %8791 = vmatprep.subr.bf16.mxu0 %v7851
    %8792 = vmatpush1.bf16.msra.mxu0 %v7850
    %8793 = vmatprep.subr.bf16.mxu0 %v7853
    %8794 = vmatpush1.bf16.msra.mxu0 %v7852
    %8795 = vmatprep.subr.bf16.mxu0 %v7855
    %8796 = vmatpush1.bf16.msra.mxu0 %v7854
    %8797 = vmatprep.mubr.bf16.mxu0 %v7565
    %8798 = vmatmul.mubr.bf16.gmra.mrb[0].mxu0 %v7564
    %v8799 = vpop.f32.mrb[0].mxu0
    %v8800 = vadd.f32 %v8759, %v8799
    %v8801 = vpop.f32.mrb[0].mxu0
    %v8802 = vadd.f32 %v8761, %v8801
    %v8803 = vpop.f32.mrb[0].mxu0
    %v8804 = vpop.f32.mrb[0].mxu0
    %8805 = vdwg.mxu0
    %8806 = vmatprep.subr.bf16.mxu0 %v7857
    %8807 = vmatpush1.bf16.msra.mxu0 %v7856
    %8808 = vmatprep.subr.bf16.mxu0 %v7859
    %8809 = vmatpush1.bf16.msra.mxu0 %v7858
    %8810 = vmatprep.subr.bf16.mxu0 %v7861
    %8811 = vmatpush1.bf16.msra.mxu0 %v7860
    %8812 = vmatprep.subr.bf16.mxu0 %v7863
    %8813 = vmatpush1.bf16.msra.mxu0 %v7862
    %8814 = vmatprep.subr.bf16.mxu0 %v7865
    %8815 = vmatpush1.bf16.msra.mxu0 %v7864
    %8816 = vmatprep.subr.bf16.mxu0 %v7867
    %8817 = vmatpush1.bf16.msra.mxu0 %v7866
    %8818 = vmatprep.subr.bf16.mxu0 %v7869
    %8819 = vmatpush1.bf16.msra.mxu0 %v7868
    %8820 = vmatprep.subr.bf16.mxu0 %v7871
    %8821 = vmatpush1.bf16.msra.mxu0 %v7870
    %8822 = vmatprep.subr.bf16.mxu0 %v7873
    %8823 = vmatpush1.bf16.msra.mxu0 %v7872
    %8824 = vmatprep.subr.bf16.mxu0 %v7875
    %8825 = vmatpush1.bf16.msra.mxu0 %v7874
    %8826 = vmatprep.subr.bf16.mxu0 %v7877
    %8827 = vmatpush1.bf16.msra.mxu0 %v7876
    %8828 = vmatprep.subr.bf16.mxu0 %v7879
    %8829 = vmatpush1.bf16.msra.mxu0 %v7878
    %8830 = vmatprep.subr.bf16.mxu0 %v7881
    %8831 = vmatpush1.bf16.msra.mxu0 %v7880
    %8832 = vmatprep.subr.bf16.mxu0 %v7883
    %8833 = vmatpush1.bf16.msra.mxu0 %v7882
    %8834 = vmatprep.subr.bf16.mxu0 %v7885
    %8835 = vmatpush1.bf16.msra.mxu0 %v7884
    %8836 = vmatprep.subr.bf16.mxu0 %v7887
    %8837 = vmatpush1.bf16.msra.mxu0 %v7886
    %8838 = vmatprep.mubr.bf16.mxu0 %v7567
    %8839 = vmatmul.mubr.bf16.gmra.mrb[0].mxu0 %v7566
    %v8840 = vpop.f32.mrb[0].mxu0
    %v8841 = vadd.f32 %v8800, %v8840
    %v8842 = vpop.f32.mrb[0].mxu0
    %v8843 = vadd.f32 %v8802, %v8842
    %v8844 = vpop.f32.mrb[0].mxu0
    %v8845 = vpop.f32.mrb[0].mxu0
    %8846 = vdwg.mxu0
    %8847 = vmatprep.subr.bf16.mxu0 %v7889
    %8848 = vmatpush1.bf16.msra.mxu0 %v7888
    %8849 = vmatprep.subr.bf16.mxu0 %v7891
    %8850 = vmatpush1.bf16.msra.mxu0 %v7890
    %8851 = vmatprep.subr.bf16.mxu0 %v7893
    %8852 = vmatpush1.bf16.msra.mxu0 %v7892
    %8853 = vmatprep.subr.bf16.mxu0 %v7895
    %8854 = vmatpush1.bf16.msra.mxu0 %v7894
    %8855 = vmatprep.subr.bf16.mxu0 %v7897
    %8856 = vmatpush1.bf16.msra.mxu0 %v7896
    %8857 = vmatprep.subr.bf16.mxu0 %v7899
    %8858 = vmatpush1.bf16.msra.mxu0 %v7898
    %8859 = vmatprep.subr.bf16.mxu0 %v7901
    %8860 = vmatpush1.bf16.msra.mxu0 %v7900
    %8861 = vmatprep.subr.bf16.mxu0 %v7903
    %8862 = vmatpush1.bf16.msra.mxu0 %v7902
    %8863 = vmatprep.subr.bf16.mxu0 %v7905
    %8864 = vmatpush1.bf16.msra.mxu0 %v7904
    %8865 = vmatprep.subr.bf16.mxu0 %v7907
    %8866 = vmatpush1.bf16.msra.mxu0 %v7906
    %8867 = vmatprep.subr.bf16.mxu0 %v7909
    %8868 = vmatpush1.bf16.msra.mxu0 %v7908
    %8869 = vmatprep.subr.bf16.mxu0 %v7911
    %8870 = vmatpush1.bf16.msra.mxu0 %v7910
    %8871 = vmatprep.subr.bf16.mxu0 %v7913
    %8872 = vmatpush1.bf16.msra.mxu0 %v7912
    %8873 = vmatprep.subr.bf16.mxu0 %v7915
    %8874 = vmatpush1.bf16.msra.mxu0 %v7914
    %8875 = vmatprep.subr.bf16.mxu0 %v7917
    %8876 = vmatpush1.bf16.msra.mxu0 %v7916
    %8877 = vmatprep.subr.bf16.mxu0 %v7919
    %8878 = vmatpush1.bf16.msra.mxu0 %v7918
    %8879 = vmatprep.mubr.bf16.mxu0 %v7569
    %8880 = vmatmul.mubr.bf16.gmra.mrb[0].mxu0 %v7568
    %v8881 = vpop.f32.mrb[0].mxu0
    %v8882 = vadd.f32 %v8841, %v8881
    %v8883 = vpop.f32.mrb[0].mxu0
    %v8884 = vadd.f32 %v8843, %v8883
    %v8885 = vpop.f32.mrb[0].mxu0
    %v8886 = vpop.f32.mrb[0].mxu0
    %8887 = vdwg.mxu0
    %8888 = vmatprep.subr.bf16.mxu0 %v7921
    %8889 = vmatpush1.bf16.msra.mxu0 %v7920
    %8890 = vmatprep.subr.bf16.mxu0 %v7923
    %8891 = vmatpush1.bf16.msra.mxu0 %v7922
    %8892 = vmatprep.subr.bf16.mxu0 %v7925
    %8893 = vmatpush1.bf16.msra.mxu0 %v7924
    %8894 = vmatprep.subr.bf16.mxu0 %v7927
    %8895 = vmatpush1.bf16.msra.mxu0 %v7926
    %8896 = vmatprep.subr.bf16.mxu0 %v7929
    %8897 = vmatpush1.bf16.msra.mxu0 %v7928
    %8898 = vmatprep.subr.bf16.mxu0 %v7931
    %8899 = vmatpush1.bf16.msra.mxu0 %v7930
    %8900 = vmatprep.subr.bf16.mxu0 %v7933
    %8901 = vmatpush1.bf16.msra.mxu0 %v7932
    %8902 = vmatprep.subr.bf16.mxu0 %v7935
    %8903 = vmatpush1.bf16.msra.mxu0 %v7934
    %8904 = vmatprep.subr.bf16.mxu0 %v7937
    %8905 = vmatpush1.bf16.msra.mxu0 %v7936
    %8906 = vmatprep.subr.bf16.mxu0 %v7939
    %8907 = vmatpush1.bf16.msra.mxu0 %v7938
    %8908 = vmatprep.subr.bf16.mxu0 %v7941
    %8909 = vmatpush1.bf16.msra.mxu0 %v7940
    %8910 = vmatprep.subr.bf16.mxu0 %v7943
    %8911 = vmatpush1.bf16.msra.mxu0 %v7942
    %8912 = vmatprep.subr.bf16.mxu0 %v7945
    %8913 = vmatpush1.bf16.msra.mxu0 %v7944
    %8914 = vmatprep.subr.bf16.mxu0 %v7947
    %8915 = vmatpush1.bf16.msra.mxu0 %v7946
    %8916 = vmatprep.subr.bf16.mxu0 %v7949
    %8917 = vmatpush1.bf16.msra.mxu0 %v7948
    %8918 = vmatprep.subr.bf16.mxu0 %v7951
    %8919 = vmatpush1.bf16.msra.mxu0 %v7950
    %8920 = vmatprep.mubr.bf16.mxu0 %v7571
    %8921 = vmatmul.mubr.bf16.gmra.mrb[0].mxu0 %v7570
    %v8922 = vpop.f32.mrb[0].mxu0
    %v8923 = vadd.f32 %v8882, %v8922
    %v8924 = vpop.f32.mrb[0].mxu0
    %v8925 = vadd.f32 %v8884, %v8924
    %v8926 = vpop.f32.mrb[0].mxu0
    %v8927 = vpop.f32.mrb[0].mxu0
    %8928 = vdwg.mxu0
    %8929 = vmatprep.subr.bf16.mxu0 %v7953
    %8930 = vmatpush1.bf16.msra.mxu0 %v7952
    %8931 = vmatprep.subr.bf16.mxu0 %v7955
    %8932 = vmatpush1.bf16.msra.mxu0 %v7954
    %8933 = vmatprep.subr.bf16.mxu0 %v7957
    %8934 = vmatpush1.bf16.msra.mxu0 %v7956
    %8935 = vmatprep.subr.bf16.mxu0 %v7959
    %8936 = vmatpush1.bf16.msra.mxu0 %v7958
    %8937 = vmatprep.subr.bf16.mxu0 %v7961
    %8938 = vmatpush1.bf16.msra.mxu0 %v7960
    %8939 = vmatprep.subr.bf16.mxu0 %v7963
    %8940 = vmatpush1.bf16.msra.mxu0 %v7962
    %8941 = vmatprep.subr.bf16.mxu0 %v7965
    %8942 = vmatpush1.bf16.msra.mxu0 %v7964
    %8943 = vmatprep.subr.bf16.mxu0 %v7967
    %8944 = vmatpush1.bf16.msra.mxu0 %v7966
    %8945 = vmatprep.subr.bf16.mxu0 %v7969
    %8946 = vmatpush1.bf16.msra.mxu0 %v7968
    %8947 = vmatprep.subr.bf16.mxu0 %v7971
    %8948 = vmatpush1.bf16.msra.mxu0 %v7970
    %8949 = vmatprep.subr.bf16.mxu0 %v7973
    %8950 = vmatpush1.bf16.msra.mxu0 %v7972
    %8951 = vmatprep.subr.bf16.mxu0 %v7975
    %8952 = vmatpush1.bf16.msra.mxu0 %v7974
    %8953 = vmatprep.subr.bf16.mxu0 %v7977
    %8954 = vmatpush1.bf16.msra.mxu0 %v7976
    %8955 = vmatprep.subr.bf16.mxu0 %v7979
    %8956 = vmatpush1.bf16.msra.mxu0 %v7978
    %8957 = vmatprep.subr.bf16.mxu0 %v7981
    %8958 = vmatpush1.bf16.msra.mxu0 %v7980
    %8959 = vmatprep.subr.bf16.mxu0 %v7983
    %8960 = vmatpush1.bf16.msra.mxu0 %v7982
    %8961 = vmatprep.mubr.bf16.mxu0 %v7573
    %8962 = vmatmul.mubr.bf16.gmra.mrb[0].mxu0 %v7572
    %v8963 = vpop.f32.mrb[0].mxu0
    %v8964 = vadd.f32 %v8923, %v8963
    %v8965 = vpop.f32.mrb[0].mxu0
    %v8966 = vadd.f32 %v8925, %v8965
    %v8967 = vpop.f32.mrb[0].mxu0
    %v8968 = vpop.f32.mrb[0].mxu0
    %8969 = vdwg.mxu0
    %8970 = vmatprep.subr.bf16.mxu0 %v7985
    %8971 = vmatpush1.bf16.msra.mxu0 %v7984
    %8972 = vmatprep.subr.bf16.mxu0 %v7987
    %8973 = vmatpush1.bf16.msra.mxu0 %v7986
    %8974 = vmatprep.subr.bf16.mxu0 %v7989
    %8975 = vmatpush1.bf16.msra.mxu0 %v7988
    %8976 = vmatprep.subr.bf16.mxu0 %v7991
    %8977 = vmatpush1.bf16.msra.mxu0 %v7990
    %8978 = vmatprep.subr.bf16.mxu0 %v7993
    %8979 = vmatpush1.bf16.msra.mxu0 %v7992
    %8980 = vmatprep.subr.bf16.mxu0 %v7995
    %8981 = vmatpush1.bf16.msra.mxu0 %v7994
    %8982 = vmatprep.subr.bf16.mxu0 %v7997
    %8983 = vmatpush1.bf16.msra.mxu0 %v7996
    %8984 = vmatprep.subr.bf16.mxu0 %v7999
    %8985 = vmatpush1.bf16.msra.mxu0 %v7998
    %8986 = vmatprep.subr.bf16.mxu0 %v8001
    %8987 = vmatpush1.bf16.msra.mxu0 %v8000
    %8988 = vmatprep.subr.bf16.mxu0 %v8003
    %8989 = vmatpush1.bf16.msra.mxu0 %v8002
    %8990 = vmatprep.subr.bf16.mxu0 %v8005
    %8991 = vmatpush1.bf16.msra.mxu0 %v8004
    %8992 = vmatprep.subr.bf16.mxu0 %v8007
    %8993 = vmatpush1.bf16.msra.mxu0 %v8006
    %8994 = vmatprep.subr.bf16.mxu0 %v8009
    %8995 = vmatpush1.bf16.msra.mxu0 %v8008
    %8996 = vmatprep.subr.bf16.mxu0 %v8011
    %8997 = vmatpush1.bf16.msra.mxu0 %v8010
    %8998 = vmatprep.subr.bf16.mxu0 %v8013
    %8999 = vmatpush1.bf16.msra.mxu0 %v8012
    %9000 = vmatprep.subr.bf16.mxu0 %v8015
    %9001 = vmatpush1.bf16.msra.mxu0 %v8014
    %9002 = vmatprep.mubr.bf16.mxu0 %v7575
    %9003 = vmatmul.mubr.bf16.gmra.mrb[0].mxu0 %v7574
    %v9004 = vpop.f32.mrb[0].mxu0
    %v9005 = vadd.f32 %v8964, %v9004
    %v9006 = vpop.f32.mrb[0].mxu0
    %v9007 = vadd.f32 %v8966, %v9006
    %v9008 = vpop.f32.mrb[0].mxu0
    %v9009 = vpop.f32.mrb[0].mxu0
    %9010 = vdwg.mxu0
    %9011 = vmatprep.subr.bf16.mxu0 %v8017
    %9012 = vmatpush1.bf16.msra.mxu0 %v8016
    %9013 = vmatprep.subr.bf16.mxu0 %v8019
    %9014 = vmatpush1.bf16.msra.mxu0 %v8018
    %9015 = vmatprep.subr.bf16.mxu0 %v8021
    %9016 = vmatpush1.bf16.msra.mxu0 %v8020
    %9017 = vmatprep.subr.bf16.mxu0 %v8023
    %9018 = vmatpush1.bf16.msra.mxu0 %v8022
    %9019 = vmatprep.subr.bf16.mxu0 %v8025
    %9020 = vmatpush1.bf16.msra.mxu0 %v8024
    %9021 = vmatprep.subr.bf16.mxu0 %v8027
    %9022 = vmatpush1.bf16.msra.mxu0 %v8026
    %9023 = vmatprep.subr.bf16.mxu0 %v8029
    %9024 = vmatpush1.bf16.msra.mxu0 %v8028
    %9025 = vmatprep.subr.bf16.mxu0 %v8031
    %9026 = vmatpush1.bf16.msra.mxu0 %v8030
    %9027 = vmatprep.subr.bf16.mxu0 %v8033
    %9028 = vmatpush1.bf16.msra.mxu0 %v8032
    %9029 = vmatprep.subr.bf16.mxu0 %v8035
    %9030 = vmatpush1.bf16.msra.mxu0 %v8034
    %9031 = vmatprep.subr.bf16.mxu0 %v8037
    %9032 = vmatpush1.bf16.msra.mxu0 %v8036
    %9033 = vmatprep.subr.bf16.mxu0 %v8039
    %9034 = vmatpush1.bf16.msra.mxu0 %v8038
    %9035 = vmatprep.subr.bf16.mxu0 %v8041
    %9036 = vmatpush1.bf16.msra.mxu0 %v8040
    %9037 = vmatprep.subr.bf16.mxu0 %v8043
    %9038 = vmatpush1.bf16.msra.mxu0 %v8042
    %9039 = vmatprep.subr.bf16.mxu0 %v8045
    %9040 = vmatpush1.bf16.msra.mxu0 %v8044
    %9041 = vmatprep.subr.bf16.mxu0 %v8047
    %9042 = vmatpush1.bf16.msra.mxu0 %v8046
    %9043 = vmatprep.mubr.bf16.mxu0 %v7577
    %9044 = vmatmul.mubr.bf16.gmra.mrb[0].mxu0 %v7576
    %v9045 = vpop.f32.mrb[0].mxu0
    %v9046 = vadd.f32 %v9005, %v9045
    %v9047 = vpop.f32.mrb[0].mxu0
    %v9048 = vadd.f32 %v9007, %v9047
    %v9049 = vpop.f32.mrb[0].mxu0
    %v9050 = vpop.f32.mrb[0].mxu0
    %9051 = vdwg.mxu0
    %9052 = vmatprep.subr.bf16.mxu0 %v8049
    %9053 = vmatpush1.bf16.msra.mxu0 %v8048
    %9054 = vmatprep.subr.bf16.mxu0 %v8051
    %9055 = vmatpush1.bf16.msra.mxu0 %v8050
    %9056 = vmatprep.subr.bf16.mxu0 %v8053
    %9057 = vmatpush1.bf16.msra.mxu0 %v8052
    %9058 = vmatprep.subr.bf16.mxu0 %v8055
    %9059 = vmatpush1.bf16.msra.mxu0 %v8054
    %9060 = vmatprep.subr.bf16.mxu0 %v8057
    %9061 = vmatpush1.bf16.msra.mxu0 %v8056
    %9062 = vmatprep.subr.bf16.mxu0 %v8059
    %9063 = vmatpush1.bf16.msra.mxu0 %v8058
    %9064 = vmatprep.subr.bf16.mxu0 %v8061
    %9065 = vmatpush1.bf16.msra.mxu0 %v8060
    %9066 = vmatprep.subr.bf16.mxu0 %v8063
    %9067 = vmatpush1.bf16.msra.mxu0 %v8062
    %9068 = vmatprep.subr.bf16.mxu0 %v8065
    %9069 = vmatpush1.bf16.msra.mxu0 %v8064
    %9070 = vmatprep.subr.bf16.mxu0 %v8067
    %9071 = vmatpush1.bf16.msra.mxu0 %v8066
    %9072 = vmatprep.subr.bf16.mxu0 %v8069
    %9073 = vmatpush1.bf16.msra.mxu0 %v8068
    %9074 = vmatprep.subr.bf16.mxu0 %v8071
    %9075 = vmatpush1.bf16.msra.mxu0 %v8070
    %9076 = vmatprep.subr.bf16.mxu0 %v8073
    %9077 = vmatpush1.bf16.msra.mxu0 %v8072
    %9078 = vmatprep.subr.bf16.mxu0 %v8075
    %9079 = vmatpush1.bf16.msra.mxu0 %v8074
    %9080 = vmatprep.subr.bf16.mxu0 %v8077
    %9081 = vmatpush1.bf16.msra.mxu0 %v8076
    %9082 = vmatprep.subr.bf16.mxu0 %v8079
    %9083 = vmatpush1.bf16.msra.mxu0 %v8078
    %9084 = vmatprep.mubr.bf16.mxu0 %v7579
    %9085 = vmatmul.mubr.bf16.gmra.mrb[0].mxu0 %v7578
    %v9086 = vpop.f32.mrb[0].mxu0
    %v9087 = vadd.f32 %v9046, %v9086
    %v9088 = vpop.f32.mrb[0].mxu0
    %v9089 = vadd.f32 %v9048, %v9088
    %v9090 = vpop.f32.mrb[0].mxu0
    %v9091 = vpop.f32.mrb[0].mxu0
    %9092 = vdwg.mxu0
    %9093 = vmatprep.subr.bf16.mxu0 %v8081
    %9094 = vmatpush1.bf16.msra.mxu0 %v8080
    %9095 = vmatprep.subr.bf16.mxu0 %v8083
    %9096 = vmatpush1.bf16.msra.mxu0 %v8082
    %9097 = vmatprep.subr.bf16.mxu0 %v8085
    %9098 = vmatpush1.bf16.msra.mxu0 %v8084
    %9099 = vmatprep.subr.bf16.mxu0 %v8087
    %9100 = vmatpush1.bf16.msra.mxu0 %v8086
    %9101 = vmatprep.subr.bf16.mxu0 %v8089
    %9102 = vmatpush1.bf16.msra.mxu0 %v8088
    %9103 = vmatprep.subr.bf16.mxu0 %v8091
    %9104 = vmatpush1.bf16.msra.mxu0 %v8090
    %9105 = vmatprep.subr.bf16.mxu0 %v8093
    %9106 = vmatpush1.bf16.msra.mxu0 %v8092
    %9107 = vmatprep.subr.bf16.mxu0 %v8095
    %9108 = vmatpush1.bf16.msra.mxu0 %v8094
    %9109 = vmatprep.subr.bf16.mxu0 %v8097
    %9110 = vmatpush1.bf16.msra.mxu0 %v8096
    %9111 = vmatprep.subr.bf16.mxu0 %v8099
    %9112 = vmatpush1.bf16.msra.mxu0 %v8098
    %9113 = vmatprep.subr.bf16.mxu0 %v8101
    %9114 = vmatpush1.bf16.msra.mxu0 %v8100
    %9115 = vmatprep.subr.bf16.mxu0 %v8103
    %9116 = vmatpush1.bf16.msra.mxu0 %v8102
    %9117 = vmatprep.subr.bf16.mxu0 %v8105
    %9118 = vmatpush1.bf16.msra.mxu0 %v8104
    %9119 = vmatprep.subr.bf16.mxu0 %v8107
    %9120 = vmatpush1.bf16.msra.mxu0 %v8106
    %9121 = vmatprep.subr.bf16.mxu0 %v8109
    %9122 = vmatpush1.bf16.msra.mxu0 %v8108
    %9123 = vmatprep.subr.bf16.mxu0 %v8111
    %9124 = vmatpush1.bf16.msra.mxu0 %v8110
    %9125 = vmatprep.mubr.bf16.mxu0 %v7581
    %9126 = vmatmul.mubr.bf16.gmra.mrb[0].mxu0 %v7580
    %v9127 = vpop.f32.mrb[0].mxu0
    %v9128 = vadd.f32 %v9087, %v9127
    %v9129 = vpop.f32.mrb[0].mxu0
    %v9130 = vadd.f32 %v9089, %v9129
    %v9131 = vpop.f32.mrb[0].mxu0
    %v9132 = vpop.f32.mrb[0].mxu0
    %9133 = vdwg.mxu0
    %9134 = vmatprep.subr.bf16.mxu0 %v8113
    %9135 = vmatpush1.bf16.msra.mxu0 %v8112
    %9136 = vmatprep.subr.bf16.mxu0 %v8115
    %9137 = vmatpush1.bf16.msra.mxu0 %v8114
    %9138 = vmatprep.subr.bf16.mxu0 %v8117
    %9139 = vmatpush1.bf16.msra.mxu0 %v8116
    %9140 = vmatprep.subr.bf16.mxu0 %v8119
    %9141 = vmatpush1.bf16.msra.mxu0 %v8118
    %9142 = vmatprep.subr.bf16.mxu0 %v8121
    %9143 = vmatpush1.bf16.msra.mxu0 %v8120
    %9144 = vmatprep.subr.bf16.mxu0 %v8123
    %9145 = vmatpush1.bf16.msra.mxu0 %v8122
    %9146 = vmatprep.subr.bf16.mxu0 %v8125
    %9147 = vmatpush1.bf16.msra.mxu0 %v8124
    %9148 = vmatprep.subr.bf16.mxu0 %v8127
    %9149 = vmatpush1.bf16.msra.mxu0 %v8126
    %9150 = vmatprep.subr.bf16.mxu0 %v8129
    %9151 = vmatpush1.bf16.msra.mxu0 %v8128
    %9152 = vmatprep.subr.bf16.mxu0 %v8131
    %9153 = vmatpush1.bf16.msra.mxu0 %v8130
    %9154 = vmatprep.subr.bf16.mxu0 %v8133
    %9155 = vmatpush1.bf16.msra.mxu0 %v8132
    %9156 = vmatprep.subr.bf16.mxu0 %v8135
    %9157 = vmatpush1.bf16.msra.mxu0 %v8134
    %9158 = vmatprep.subr.bf16.mxu0 %v8137
    %9159 = vmatpush1.bf16.msra.mxu0 %v8136
    %9160 = vmatprep.subr.bf16.mxu0 %v8139
    %9161 = vmatpush1.bf16.msra.mxu0 %v8138
    %9162 = vmatprep.subr.bf16.mxu0 %v8141
    %9163 = vmatpush1.bf16.msra.mxu0 %v8140
    %9164 = vmatprep.subr.bf16.mxu0 %v8143
    %9165 = vmatpush1.bf16.msra.mxu0 %v8142
    %9166 = vmatprep.mubr.bf16.mxu0 %v7583
    %9167 = vmatmul.mubr.bf16.gmra.mrb[0].mxu0 %v7582
    %v9168 = vpop.f32.mrb[0].mxu0
    %v9169 = vadd.f32 %v9128, %v9168
    %v9170 = vpop.f32.mrb[0].mxu0
    %v9171 = vadd.f32 %v9130, %v9170
    %v9172 = vpop.f32.mrb[0].mxu0
    %v9173 = vpop.f32.mrb[0].mxu0
    %9174 = vdwg.mxu0
    %9175 = vmatprep.subr.bf16.mxu0 %v8145
    %9176 = vmatpush1.bf16.msra.mxu0 %v8144
    %9177 = vmatprep.subr.bf16.mxu0 %v8147
    %9178 = vmatpush1.bf16.msra.mxu0 %v8146
    %9179 = vmatprep.subr.bf16.mxu0 %v8149
    %9180 = vmatpush1.bf16.msra.mxu0 %v8148
    %9181 = vmatprep.subr.bf16.mxu0 %v8151
    %9182 = vmatpush1.bf16.msra.mxu0 %v8150
    %9183 = vmatprep.subr.bf16.mxu0 %v8153
    %9184 = vmatpush1.bf16.msra.mxu0 %v8152
    %9185 = vmatprep.subr.bf16.mxu0 %v8155
    %9186 = vmatpush1.bf16.msra.mxu0 %v8154
    %9187 = vmatprep.subr.bf16.mxu0 %v8157
    %9188 = vmatpush1.bf16.msra.mxu0 %v8156
    %9189 = vmatprep.subr.bf16.mxu0 %v8159
    %9190 = vmatpush1.bf16.msra.mxu0 %v8158
    %9191 = vmatprep.subr.bf16.mxu0 %v8161
    %9192 = vmatpush1.bf16.msra.mxu0 %v8160
    %9193 = vmatprep.subr.bf16.mxu0 %v8163
    %9194 = vmatpush1.bf16.msra.mxu0 %v8162
    %9195 = vmatprep.subr.bf16.mxu0 %v8165
    %9196 = vmatpush1.bf16.msra.mxu0 %v8164
    %9197 = vmatprep.subr.bf16.mxu0 %v8167
    %9198 = vmatpush1.bf16.msra.mxu0 %v8166
    %9199 = vmatprep.subr.bf16.mxu0 %v8169
    %9200 = vmatpush1.bf16.msra.mxu0 %v8168
    %9201 = vmatprep.subr.bf16.mxu0 %v8171
    %9202 = vmatpush1.bf16.msra.mxu0 %v8170
    %9203 = vmatprep.subr.bf16.mxu0 %v8173
    %9204 = vmatpush1.bf16.msra.mxu0 %v8172
    %9205 = vmatprep.subr.bf16.mxu0 %v8175
    %9206 = vmatpush1.bf16.msra.mxu0 %v8174
    %9207 = vmatprep.mubr.bf16.mxu0 %v7585
    %9208 = vmatmul.mubr.bf16.gmra.mrb[0].mxu0 %v7584
    %v9209 = vpop.f32.mrb[0].mxu0
    %v9210 = vadd.f32 %v9169, %v9209
    %v9211 = vpop.f32.mrb[0].mxu0
    %v9212 = vadd.f32 %v9171, %v9211
    %v9213 = vpop.f32.mrb[0].mxu0
    %v9214 = vpop.f32.mrb[0].mxu0
    %9215 = vdwg.mxu0
    %9216 = vmatprep.subr.bf16.mxu0 %v8177
    %9217 = vmatpush1.bf16.msra.mxu0 %v8176
    %9218 = vmatprep.subr.bf16.mxu0 %v8179
    %9219 = vmatpush1.bf16.msra.mxu0 %v8178
    %9220 = vmatprep.subr.bf16.mxu0 %v8181
    %9221 = vmatpush1.bf16.msra.mxu0 %v8180
    %9222 = vmatprep.subr.bf16.mxu0 %v8183
    %9223 = vmatpush1.bf16.msra.mxu0 %v8182
    %9224 = vmatprep.subr.bf16.mxu0 %v8185
    %9225 = vmatpush1.bf16.msra.mxu0 %v8184
    %9226 = vmatprep.subr.bf16.mxu0 %v8187
    %9227 = vmatpush1.bf16.msra.mxu0 %v8186
    %9228 = vmatprep.subr.bf16.mxu0 %v8189
    %9229 = vmatpush1.bf16.msra.mxu0 %v8188
    %9230 = vmatprep.subr.bf16.mxu0 %v8191
    %9231 = vmatpush1.bf16.msra.mxu0 %v8190
    %9232 = vmatprep.subr.bf16.mxu0 %v8193
    %9233 = vmatpush1.bf16.msra.mxu0 %v8192
    %9234 = vmatprep.subr.bf16.mxu0 %v8195
    %9235 = vmatpush1.bf16.msra.mxu0 %v8194
    %9236 = vmatprep.subr.bf16.mxu0 %v8197
    %9237 = vmatpush1.bf16.msra.mxu0 %v8196
    %9238 = vmatprep.subr.bf16.mxu0 %v8199
    %9239 = vmatpush1.bf16.msra.mxu0 %v8198
    %9240 = vmatprep.subr.bf16.mxu0 %v8201
    %9241 = vmatpush1.bf16.msra.mxu0 %v8200
    %9242 = vmatprep.subr.bf16.mxu0 %v8203
    %9243 = vmatpush1.bf16.msra.mxu0 %v8202
    %9244 = vmatprep.subr.bf16.mxu0 %v8205
    %9245 = vmatpush1.bf16.msra.mxu0 %v8204
    %9246 = vmatprep.subr.bf16.mxu0 %v8207
    %9247 = vmatpush1.bf16.msra.mxu0 %v8206
    %9248 = vmatprep.mubr.bf16.mxu0 %v7587
    %9249 = vmatmul.mubr.bf16.gmra.mrb[0].mxu0 %v7586
    %v9250 = vpop.f32.mrb[0].mxu0
    %v9251 = vadd.f32 %v9210, %v9250
    %v9252 = vpop.f32.mrb[0].mxu0
    %v9253 = vadd.f32 %v9212, %v9252
    %v9254 = vpop.f32.mrb[0].mxu0
    %v9255 = vpop.f32.mrb[0].mxu0
    %9256 = vdwg.mxu0
    %9257 = vmatprep.subr.bf16.mxu0 %v8209
    %9258 = vmatpush1.bf16.msra.mxu0 %v8208
    %9259 = vmatprep.subr.bf16.mxu0 %v8211
    %9260 = vmatpush1.bf16.msra.mxu0 %v8210
    %9261 = vmatprep.subr.bf16.mxu0 %v8213
    %9262 = vmatpush1.bf16.msra.mxu0 %v8212
    %9263 = vmatprep.subr.bf16.mxu0 %v8215
    %9264 = vmatpush1.bf16.msra.mxu0 %v8214
    %9265 = vmatprep.subr.bf16.mxu0 %v8217
    %9266 = vmatpush1.bf16.msra.mxu0 %v8216
    %9267 = vmatprep.subr.bf16.mxu0 %v8219
    %9268 = vmatpush1.bf16.msra.mxu0 %v8218
    %9269 = vmatprep.subr.bf16.mxu0 %v8221
    %9270 = vmatpush1.bf16.msra.mxu0 %v8220
    %9271 = vmatprep.subr.bf16.mxu0 %v8223
    %9272 = vmatpush1.bf16.msra.mxu0 %v8222
    %9273 = vmatprep.subr.bf16.mxu0 %v8225
    %9274 = vmatpush1.bf16.msra.mxu0 %v8224
    %9275 = vmatprep.subr.bf16.mxu0 %v8227
    %9276 = vmatpush1.bf16.msra.mxu0 %v8226
    %9277 = vmatprep.subr.bf16.mxu0 %v8229
    %9278 = vmatpush1.bf16.msra.mxu0 %v8228
    %9279 = vmatprep.subr.bf16.mxu0 %v8231
    %9280 = vmatpush1.bf16.msra.mxu0 %v8230
    %9281 = vmatprep.subr.bf16.mxu0 %v8233
    %9282 = vmatpush1.bf16.msra.mxu0 %v8232
    %9283 = vmatprep.subr.bf16.mxu0 %v8235
    %9284 = vmatpush1.bf16.msra.mxu0 %v8234
    %9285 = vmatprep.subr.bf16.mxu0 %v8237
    %9286 = vmatpush1.bf16.msra.mxu0 %v8236
    %9287 = vmatprep.subr.bf16.mxu0 %v8239
    %9288 = vmatpush1.bf16.msra.mxu0 %v8238
    %9289 = vmatprep.mubr.bf16.mxu0 %v7589
    %9290 = vmatmul.mubr.bf16.gmra.mrb[0].mxu0 %v7588
    %v9291 = vpop.f32.mrb[0].mxu0
    %v9292 = vadd.f32 %v9251, %v9291
    %v9293 = vpop.f32.mrb[0].mxu0
    %v9294 = vadd.f32 %v9253, %v9293
    %v9295 = vpop.f32.mrb[0].mxu0
    %v9296 = vpop.f32.mrb[0].mxu0
    %9297 = vdwg.mxu0
    %9298 = vmatprep.subr.bf16.mxu0 %v8241
    %9299 = vmatpush1.bf16.msra.mxu0 %v8240
    %9300 = vmatprep.subr.bf16.mxu0 %v8243
    %9301 = vmatpush1.bf16.msra.mxu0 %v8242
    %9302 = vmatprep.subr.bf16.mxu0 %v8245
    %9303 = vmatpush1.bf16.msra.mxu0 %v8244
    %9304 = vmatprep.subr.bf16.mxu0 %v8247
    %9305 = vmatpush1.bf16.msra.mxu0 %v8246
    %9306 = vmatprep.subr.bf16.mxu0 %v8249
    %9307 = vmatpush1.bf16.msra.mxu0 %v8248
    %9308 = vmatprep.subr.bf16.mxu0 %v8251
    %9309 = vmatpush1.bf16.msra.mxu0 %v8250
    %9310 = vmatprep.subr.bf16.mxu0 %v8253
    %9311 = vmatpush1.bf16.msra.mxu0 %v8252
    %9312 = vmatprep.subr.bf16.mxu0 %v8255
    %9313 = vmatpush1.bf16.msra.mxu0 %v8254
    %9314 = vmatprep.subr.bf16.mxu0 %v8257
    %9315 = vmatpush1.bf16.msra.mxu0 %v8256
    %9316 = vmatprep.subr.bf16.mxu0 %v8259
    %9317 = vmatpush1.bf16.msra.mxu0 %v8258
    %9318 = vmatprep.subr.bf16.mxu0 %v8261
    %9319 = vmatpush1.bf16.msra.mxu0 %v8260
    %9320 = vmatprep.subr.bf16.mxu0 %v8263
    %9321 = vmatpush1.bf16.msra.mxu0 %v8262
    %9322 = vmatprep.subr.bf16.mxu0 %v8265
    %9323 = vmatpush1.bf16.msra.mxu0 %v8264
    %9324 = vmatprep.subr.bf16.mxu0 %v8267
    %9325 = vmatpush1.bf16.msra.mxu0 %v8266
    %9326 = vmatprep.subr.bf16.mxu0 %v8269
    %9327 = vmatpush1.bf16.msra.mxu0 %v8268
    %9328 = vmatprep.subr.bf16.mxu0 %v8271
    %9329 = vmatpush1.bf16.msra.mxu0 %v8270
    %9330 = vmatprep.mubr.bf16.mxu0 %v7591
    %9331 = vmatmul.mubr.bf16.gmra.mrb[0].mxu0 %v7590
    %v9332 = vpop.f32.mrb[0].mxu0
    %v9333 = vadd.f32 %v9292, %v9332
    %v9334 = vpop.f32.mrb[0].mxu0
    %v9335 = vadd.f32 %v9294, %v9334
    %v9336 = vpop.f32.mrb[0].mxu0
    %v9337 = vpop.f32.mrb[0].mxu0
    %9338 = vdwg.mxu0
    %9339 = vmatprep.subr.bf16.mxu0 %v8273
    %9340 = vmatpush1.bf16.msra.mxu0 %v8272
    %9341 = vmatprep.subr.bf16.mxu0 %v8275
    %9342 = vmatpush1.bf16.msra.mxu0 %v8274
    %9343 = vmatprep.subr.bf16.mxu0 %v8277
    %9344 = vmatpush1.bf16.msra.mxu0 %v8276
    %9345 = vmatprep.subr.bf16.mxu0 %v8279
    %9346 = vmatpush1.bf16.msra.mxu0 %v8278
    %9347 = vmatprep.subr.bf16.mxu0 %v8281
    %9348 = vmatpush1.bf16.msra.mxu0 %v8280
    %9349 = vmatprep.subr.bf16.mxu0 %v8283
    %9350 = vmatpush1.bf16.msra.mxu0 %v8282
    %9351 = vmatprep.subr.bf16.mxu0 %v8285
    %9352 = vmatpush1.bf16.msra.mxu0 %v8284
    %9353 = vmatprep.subr.bf16.mxu0 %v8287
    %9354 = vmatpush1.bf16.msra.mxu0 %v8286
    %9355 = vmatprep.subr.bf16.mxu0 %v8289
    %9356 = vmatpush1.bf16.msra.mxu0 %v8288
    %9357 = vmatprep.subr.bf16.mxu0 %v8291
    %9358 = vmatpush1.bf16.msra.mxu0 %v8290
    %9359 = vmatprep.subr.bf16.mxu0 %v8293
    %9360 = vmatpush1.bf16.msra.mxu0 %v8292
    %9361 = vmatprep.subr.bf16.mxu0 %v8295
    %9362 = vmatpush1.bf16.msra.mxu0 %v8294
    %9363 = vmatprep.subr.bf16.mxu0 %v8297
    %9364 = vmatpush1.bf16.msra.mxu0 %v8296
    %9365 = vmatprep.subr.bf16.mxu0 %v8299
    %9366 = vmatpush1.bf16.msra.mxu0 %v8298
    %9367 = vmatprep.subr.bf16.mxu0 %v8301
    %9368 = vmatpush1.bf16.msra.mxu0 %v8300
    %9369 = vmatprep.subr.bf16.mxu0 %v8303
    %9370 = vmatpush1.bf16.msra.mxu0 %v8302
    %9371 = vmatprep.mubr.bf16.mxu0 %v7593
    %9372 = vmatmul.mubr.bf16.gmra.mrb[0].mxu0 %v7592
    %v9373 = vpop.f32.mrb[0].mxu0
    %v9374 = vadd.f32 %v9333, %v9373
    %v9375 = vpop.f32.mrb[0].mxu0
    %v9376 = vadd.f32 %v9335, %v9375
    %v9377 = vpop.f32.mrb[0].mxu0
    %v9378 = vpop.f32.mrb[0].mxu0
    %9379 = vdwg.mxu0
    %9380 = vmatprep.subr.bf16.mxu0 %v8305
    %9381 = vmatpush1.bf16.msra.mxu0 %v8304
    %9382 = vmatprep.subr.bf16.mxu0 %v8307
    %9383 = vmatpush1.bf16.msra.mxu0 %v8306
    %9384 = vmatprep.subr.bf16.mxu0 %v8309
    %9385 = vmatpush1.bf16.msra.mxu0 %v8308
    %9386 = vmatprep.subr.bf16.mxu0 %v8311
    %9387 = vmatpush1.bf16.msra.mxu0 %v8310
    %9388 = vmatprep.subr.bf16.mxu0 %v8313
    %9389 = vmatpush1.bf16.msra.mxu0 %v8312
    %9390 = vmatprep.subr.bf16.mxu0 %v8315
    %9391 = vmatpush1.bf16.msra.mxu0 %v8314
    %9392 = vmatprep.subr.bf16.mxu0 %v8317
    %9393 = vmatpush1.bf16.msra.mxu0 %v8316
    %9394 = vmatprep.subr.bf16.mxu0 %v8319
    %9395 = vmatpush1.bf16.msra.mxu0 %v8318
    %9396 = vmatprep.subr.bf16.mxu0 %v8321
    %9397 = vmatpush1.bf16.msra.mxu0 %v8320
    %9398 = vmatprep.subr.bf16.mxu0 %v8323
    %9399 = vmatpush1.bf16.msra.mxu0 %v8322
    %9400 = vmatprep.subr.bf16.mxu0 %v8325
    %9401 = vmatpush1.bf16.msra.mxu0 %v8324
    %9402 = vmatprep.subr.bf16.mxu0 %v8327
    %9403 = vmatpush1.bf16.msra.mxu0 %v8326
    %9404 = vmatprep.subr.bf16.mxu0 %v8329
    %9405 = vmatpush1.bf16.msra.mxu0 %v8328
    %9406 = vmatprep.subr.bf16.mxu0 %v8331
    %9407 = vmatpush1.bf16.msra.mxu0 %v8330
    %9408 = vmatprep.subr.bf16.mxu0 %v8333
    %9409 = vmatpush1.bf16.msra.mxu0 %v8332
    %9410 = vmatprep.subr.bf16.mxu0 %v8335
    %9411 = vmatpush1.bf16.msra.mxu0 %v8334
    %9412 = vmatprep.mubr.bf16.mxu0 %v7595
    %9413 = vmatmul.mubr.bf16.gmra.mrb[0].mxu0 %v7594
    %v9414 = vpop.f32.mrb[0].mxu0
    %v9415 = vadd.f32 %v9374, %v9414
    %v9416 = vpop.f32.mrb[0].mxu0
    %v9417 = vadd.f32 %v9376, %v9416
    %v9418 = vpop.f32.mrb[0].mxu0
    %v9419 = vpop.f32.mrb[0].mxu0
    %9420 = vdwg.mxu0
    %9421 = vmatprep.subr.bf16.mxu0 %v8337
    %9422 = vmatpush1.bf16.msra.mxu0 %v8336
    %9423 = vmatprep.subr.bf16.mxu0 %v8339
    %9424 = vmatpush1.bf16.msra.mxu0 %v8338
    %9425 = vmatprep.subr.bf16.mxu0 %v8341
    %9426 = vmatpush1.bf16.msra.mxu0 %v8340
    %9427 = vmatprep.subr.bf16.mxu0 %v8343
    %9428 = vmatpush1.bf16.msra.mxu0 %v8342
    %9429 = vmatprep.subr.bf16.mxu0 %v8345
    %9430 = vmatpush1.bf16.msra.mxu0 %v8344
    %9431 = vmatprep.subr.bf16.mxu0 %v8347
    %9432 = vmatpush1.bf16.msra.mxu0 %v8346
    %9433 = vmatprep.subr.bf16.mxu0 %v8349
    %9434 = vmatpush1.bf16.msra.mxu0 %v8348
    %9435 = vmatprep.subr.bf16.mxu0 %v8351
    %9436 = vmatpush1.bf16.msra.mxu0 %v8350
    %9437 = vmatprep.subr.bf16.mxu0 %v8353
    %9438 = vmatpush1.bf16.msra.mxu0 %v8352
    %9439 = vmatprep.subr.bf16.mxu0 %v8355
    %9440 = vmatpush1.bf16.msra.mxu0 %v8354
    %9441 = vmatprep.subr.bf16.mxu0 %v8357
    %9442 = vmatpush1.bf16.msra.mxu0 %v8356
    %9443 = vmatprep.subr.bf16.mxu0 %v8359
    %9444 = vmatpush1.bf16.msra.mxu0 %v8358
    %9445 = vmatprep.subr.bf16.mxu0 %v8361
    %9446 = vmatpush1.bf16.msra.mxu0 %v8360
    %9447 = vmatprep.subr.bf16.mxu0 %v8363
    %9448 = vmatpush1.bf16.msra.mxu0 %v8362
    %9449 = vmatprep.subr.bf16.mxu0 %v8365
    %9450 = vmatpush1.bf16.msra.mxu0 %v8364
    %9451 = vmatprep.subr.bf16.mxu0 %v8367
    %9452 = vmatpush1.bf16.msra.mxu0 %v8366
    %9453 = vmatprep.mubr.bf16.mxu0 %v7597
    %9454 = vmatmul.mubr.bf16.gmra.mrb[0].mxu0 %v7596
    %v9455 = vpop.f32.mrb[0].mxu0
    %v9456 = vadd.f32 %v9415, %v9455
    %v9457 = vpop.f32.mrb[0].mxu0
    %v9458 = vadd.f32 %v9417, %v9457
    %v9459 = vpop.f32.mrb[0].mxu0
    %v9460 = vpop.f32.mrb[0].mxu0
    %9461 = vdwg.mxu0
    %9462 = vmatprep.subr.bf16.mxu0 %v8369
    %9463 = vmatpush1.bf16.msra.mxu0 %v8368
    %9464 = vmatprep.subr.bf16.mxu0 %v8371
    %9465 = vmatpush1.bf16.msra.mxu0 %v8370
    %9466 = vmatprep.subr.bf16.mxu0 %v8373
    %9467 = vmatpush1.bf16.msra.mxu0 %v8372
    %9468 = vmatprep.subr.bf16.mxu0 %v8375
    %9469 = vmatpush1.bf16.msra.mxu0 %v8374
    %9470 = vmatprep.subr.bf16.mxu0 %v8377
    %9471 = vmatpush1.bf16.msra.mxu0 %v8376
    %9472 = vmatprep.subr.bf16.mxu0 %v8379
    %9473 = vmatpush1.bf16.msra.mxu0 %v8378
    %9474 = vmatprep.subr.bf16.mxu0 %v8381
    %9475 = vmatpush1.bf16.msra.mxu0 %v8380
    %9476 = vmatprep.subr.bf16.mxu0 %v8383
    %9477 = vmatpush1.bf16.msra.mxu0 %v8382
    %9478 = vmatprep.subr.bf16.mxu0 %v8385
    %9479 = vmatpush1.bf16.msra.mxu0 %v8384
    %9480 = vmatprep.subr.bf16.mxu0 %v8387
    %9481 = vmatpush1.bf16.msra.mxu0 %v8386
    %9482 = vmatprep.subr.bf16.mxu0 %v8389
    %9483 = vmatpush1.bf16.msra.mxu0 %v8388
    %9484 = vmatprep.subr.bf16.mxu0 %v8391
    %9485 = vmatpush1.bf16.msra.mxu0 %v8390
    %9486 = vmatprep.subr.bf16.mxu0 %v8393
    %9487 = vmatpush1.bf16.msra.mxu0 %v8392
    %9488 = vmatprep.subr.bf16.mxu0 %v8395
    %9489 = vmatpush1.bf16.msra.mxu0 %v8394
    %9490 = vmatprep.subr.bf16.mxu0 %v8397
    %9491 = vmatpush1.bf16.msra.mxu0 %v8396
    %9492 = vmatprep.subr.bf16.mxu0 %v8399
    %9493 = vmatpush1.bf16.msra.mxu0 %v8398
    %9494 = vmatprep.mubr.bf16.mxu0 %v7599
    %9495 = vmatmul.mubr.bf16.gmra.mrb[0].mxu0 %v7598
    %v9496 = vpop.f32.mrb[0].mxu0
    %v9497 = vadd.f32 %v9456, %v9496
    %v9498 = vpop.f32.mrb[0].mxu0
    %v9499 = vadd.f32 %v9458, %v9498
    %v9500 = vpop.f32.mrb[0].mxu0
    %v9501 = vpop.f32.mrb[0].mxu0
    %9502 = vdwg.mxu0
    %v9503 = vld [vmem:[#allocation20] sm:$0x3]
    %v9505 = vlaneseq
    %v9506 = vshrl.u32 %v9505, 7
    %v9507 = vsub.s32 0, %v9506
    %v9508 = vrot.slane %v9503, %v9507
    %v9509 = vlaneseq
    %v9510 = vshrl.u32 %v9509, 7
    %v9511 = vsub.s32 1, %v9510
    %v9512 = vrot.slane %v9503, %v9511
    %v9515 = vadd.f32 %v9497, %v9508
    %v9516 = vadd.f32 %v9499, %v9512
    %v9517 = vmax.f32 %v9515, 0.0
    %v9518 = vmax.f32 %v9516, 0.0
    %v9519 = vld [vmem:[%s11] sm:$0xff]
    %v9520 = vld [vmem:[%s11 + $0x8] sm:$0xff]
    %v9521 = vld [vmem:[%s11 + $0x10] sm:$0xff]
    %v9522 = vld [vmem:[%s11 + $0x18] sm:$0xff]
    %v9523 = vld [vmem:[%s11 + $0x20] sm:$0xff]
    %v9524 = vld [vmem:[%s11 + $0x28] sm:$0xff]
    %v9525 = vld [vmem:[%s11 + $0x30] sm:$0xff]
    %v9526 = vld [vmem:[%s11 + $0x38] sm:$0xff]
    %v9527 = vld [vmem:[%s11 + $0x40] sm:$0xff]
    %v9528 = vld [vmem:[%s11 + $0x48] sm:$0xff]
    %v9529 = vld [vmem:[%s11 + $0x50] sm:$0xff]
    %v9530 = vld [vmem:[%s11 + $0x58] sm:$0xff]
    %v9531 = vld [vmem:[%s11 + $0x60] sm:$0xff]
    %v9532 = vld [vmem:[%s11 + $0x68] sm:$0xff]
    %v9533 = vld [vmem:[%s11 + $0x70] sm:$0xff]
    %v9534 = vld [vmem:[%s11 + $0x78] sm:$0xff]
    %v9535 = vld [vmem:[%s11 + $0x80] sm:$0xff]
    %v9536 = vld [vmem:[%s11 + $0x88] sm:$0xff]
    %v9537 = vld [vmem:[%s11 + $0x90] sm:$0xff]
    %v9538 = vld [vmem:[%s11 + $0x98] sm:$0xff]
    %v9539 = vld [vmem:[%s11 + $0xa0] sm:$0xff]
    %v9540 = vld [vmem:[%s11 + $0xa8] sm:$0xff]
    %v9541 = vld [vmem:[%s11 + $0xb0] sm:$0xff]
    %v9542 = vld [vmem:[%s11 + $0xb8] sm:$0xff]
    %v9543 = vld [vmem:[%s11 + $0xc0] sm:$0xff]
    %v9544 = vld [vmem:[%s11 + $0xc8] sm:$0xff]
    %v9545 = vld [vmem:[%s11 + $0xd0] sm:$0xff]
    %v9546 = vld [vmem:[%s11 + $0xd8] sm:$0xff]
    %v9547 = vld [vmem:[%s11 + $0xe0] sm:$0xff]
    %v9548 = vld [vmem:[%s11 + $0xe8] sm:$0xff]
    %v9549 = vld [vmem:[%s11 + $0xf0] sm:$0xff]
    %v9550 = vld [vmem:[%s11 + $0xf8] sm:$0xff]
    %v9551 = vld [vmem:[#allocation22] sm:$0x1]
    %v9553 = vlaneseq
    %v9554 = vshrl.u32 %v9553, 7
    %v9555 = vsub.s32 0, %v9554
    %v9556 = vrot.slane %v9551, %v9555
    %9558 = vmatprep.subr.mxu0 0.0
    %9559 = vmatpush1.msra.mxu0 %v9519
    %9560 = vmatprep.subr.mxu0 0.0
    %9561 = vmatpush1.msra.mxu0 %v9520
    %9562 = vmatprep.subr.mxu0 0.0
    %9563 = vmatpush1.msra.mxu0 %v9521
    %9564 = vmatprep.subr.mxu0 0.0
    %9565 = vmatpush1.msra.mxu0 %v9522
    %9566 = vmatprep.subr.mxu0 0.0
    %9567 = vmatpush1.msra.mxu0 %v9523
    %9568 = vmatprep.subr.mxu0 0.0
    %9569 = vmatpush1.msra.mxu0 %v9524
    %9570 = vmatprep.subr.mxu0 0.0
    %9571 = vmatpush1.msra.mxu0 %v9525
    %9572 = vmatprep.subr.mxu0 0.0
    %9573 = vmatpush1.msra.mxu0 %v9526
    %9574 = vmatprep.subr.mxu0 0.0
    %9575 = vmatpush1.msra.mxu0 %v9527
    %9576 = vmatprep.subr.mxu0 0.0
    %9577 = vmatpush1.msra.mxu0 %v9528
    %9578 = vmatprep.subr.mxu0 0.0
    %9579 = vmatpush1.msra.mxu0 %v9529
    %9580 = vmatprep.subr.mxu0 0.0
    %9581 = vmatpush1.msra.mxu0 %v9530
    %9582 = vmatprep.subr.mxu0 0.0
    %9583 = vmatpush1.msra.mxu0 %v9531
    %9584 = vmatprep.subr.mxu0 0.0
    %9585 = vmatpush1.msra.mxu0 %v9532
    %9586 = vmatprep.subr.mxu0 0.0
    %9587 = vmatpush1.msra.mxu0 %v9533
    %9588 = vmatprep.subr.mxu0 0.0
    %9589 = vmatpush1.msra.mxu0 %v9534
    %9590 = vmatprep.subr.mxu0 0.0
    %9591 = vmatpush1.msra.mxu0 %v9535
    %9592 = vmatprep.subr.mxu0 0.0
    %9593 = vmatpush1.msra.mxu0 %v9536
    %9594 = vmatprep.subr.mxu0 0.0
    %9595 = vmatpush1.msra.mxu0 %v9537
    %9596 = vmatprep.subr.mxu0 0.0
    %9597 = vmatpush1.msra.mxu0 %v9538
    %9598 = vmatprep.subr.mxu0 0.0
    %9599 = vmatpush1.msra.mxu0 %v9539
    %9600 = vmatprep.subr.mxu0 0.0
    %9601 = vmatpush1.msra.mxu0 %v9540
    %9602 = vmatprep.subr.mxu0 0.0
    %9603 = vmatpush1.msra.mxu0 %v9541
    %9604 = vmatprep.subr.mxu0 0.0
    %9605 = vmatpush1.msra.mxu0 %v9542
    %9606 = vmatprep.subr.mxu0 0.0
    %9607 = vmatpush1.msra.mxu0 %v9543
    %9608 = vmatprep.subr.mxu0 0.0
    %9609 = vmatpush1.msra.mxu0 %v9544
    %9610 = vmatprep.subr.mxu0 0.0
    %9611 = vmatpush1.msra.mxu0 %v9545
    %9612 = vmatprep.subr.mxu0 0.0
    %9613 = vmatpush1.msra.mxu0 %v9546
    %9614 = vmatprep.subr.mxu0 0.0
    %9615 = vmatpush1.msra.mxu0 %v9547
    %9616 = vmatprep.subr.mxu0 0.0
    %9617 = vmatpush1.msra.mxu0 %v9548
    %9618 = vmatprep.subr.mxu0 0.0
    %9619 = vmatpush1.msra.mxu0 %v9549
    %9620 = vmatprep.subr.mxu0 0.0
    %9621 = vmatpush1.msra.mxu0 %v9550
    %9622 = vmatprep.mubr.f32.mxu0 %v9518
    %9623 = vmatmul.mubr.f32.gmra.mrb[0].mxu0 %v9517
    %v9624 = vpop.f32.mrb[0].mxu0
    %v9625 = vadd.f32 %v9556, %v9624
    %v9626 = vpop.f32.mrb[0].mxu0
    %9627 = vdwg.mxu0
    %v9628 = vld [vmem:[#allocation23] sm:$0x1]
    %v9630 = vlaneseq
    %v9631 = vshrl.u32 %v9630, 7
    %v9632 = vsub.s32 0, %v9631
    %v9633 = vrot.slane %v9628, %v9632
    %v9635 = vadd.f32 %v9625, %v9633
    %vm9636 = vcmask 58368
    %9637 = vst.msk [vmem:[#allocation25] sm:$0x3] %vm9636, %v9635
    // Predicated region
    $region94: #{gnet_goal_dqn_forward.1} parent=1 // pred_check
      _
    $region95: #{gnet_goal_dqn_forward.1} parent=1 // pred_check_branch
      %9639 = sbr.rel (0) target = $region97
    $region96: #{gnet_goal_dqn_forward.1} parent=1 // pred_region
      %s9641 = ssub.s32 32, 32
      %9642 = vsyncadd [#allocation10], %s9641
      %s9644 = sshll.u32 [#allocation25], 4
      %s9645 = int_to_ptr.vmem [resolvable:$true] %s9644
      %9647 = dma.vmem_to_hbm [thread:$0]  %s9645, 32, %s14, [#allocation10]
    $region97: #{gnet_goal_dqn_forward.1} parent=1 // pred_fallthru
      _
    // Predicated region
    $region98: #{gnet_goal_dqn_forward.1} parent=1 // pred_check
      _
    $region99: #{gnet_goal_dqn_forward.1} parent=1 // pred_check_branch
      %9649 = sbr.rel (0) target = $region101
    $region100: #{gnet_goal_dqn_forward.1} parent=1 // pred_region
      %9650 = dma.done [#allocation10], 32
    $region101: #{gnet_goal_dqn_forward.1} parent=1 // pred_fallthru
      _
    %9651 = vsyncpa [#allocation9], 1
    %9652 = vsyncpa [#allocation12], 1
    %9653 = vsyncpa [#allocation15], 1
    %9654 = vsyncpa [#allocation18], 1
    %9655 = vsyncpa [#allocation21], 1
    %9656 = vsyncpa [#allocation24], 1
    %9657 = vsyncpa [#allocation10], 1
  %9658 = vsyncmov [#allocation3]
  %s9659 = vpop.sfrf %9658
  %p9660 = scmp.eq.s32.totalorder %s9659, 0
  %p9661 = pneg %p9660
  %9663 = shalt.err (%p9661)

</llo_original>
